<compile_context>
chip_gen: v6e
topology: v6e:2x2x1
jax: 0.10.0
libtpu: 0.0.40
codegen_flags: <defaults>
</compile_context>

<pallas_src>
import math

import numpy as np
import jax
import jax.numpy as jnp
from jax import lax
from jax.experimental import pallas as pl
from jax.experimental.pallas import tpu as pltpu


# ---------------------------------------------------------------------------
# F.fold as a constant 0/1 scatter matrix (exact), built once at prep time.
#   row m = (ki*kw + kj) * L + (i*nW + j),  col p = y*W + x,
#   y = i*sh - ph + ki, x = j*sw - pw + kj (only in-range positions get a 1).
# ---------------------------------------------------------------------------
def build_fold_matrix(output_size, kernel_size, stride, padding):
    H, W = output_size
    kh, kw = kernel_size
    sh, sw = stride
    ph, pw = padding
    nH = (H + 2 * ph - kh) // sh + 1
    nW = (W + 2 * pw - kw) // sw + 1
    L = nH * nW
    mat = np.zeros((kh * kw * L, H * W), dtype=np.float32)
    for ki in range(kh):
        for kj in range(kw):
            k = ki * kw + kj
            for i in range(nH):
                for j in range(nW):
                    y = i * sh - ph + ki
                    x = j * sw - pw + kj
                    if 0 <= y < H and 0 <= x < W:
                        mat[k * L + i * nW + j, y * W + x] = 1.0
    return mat, L


# ---------------------------------------------------------------------------
# Parameters (deterministic, PyTorch-default-style uniform init).
# ---------------------------------------------------------------------------
def init_softcomp_params(key, channel, hidden, kernel_size):
    c_out = kernel_size[0] * kernel_size[1] * channel
    k1, k2, k3, k4 = jax.random.split(key, 4)
    lim_e = 1.0 / math.sqrt(hidden)
    emb_w = jax.random.uniform(k1, (c_out, hidden), jnp.float32, -lim_e, lim_e)
    emb_b = jax.random.uniform(k2, (c_out,), jnp.float32, -lim_e, lim_e)
    lim_c = 1.0 / math.sqrt(channel * 3 * 3)
    conv_w = jax.random.uniform(k3, (channel, channel, 3, 3), jnp.float32,
                                -lim_c, lim_c)
    conv_b = jax.random.uniform(k4, (channel,), jnp.float32, -lim_c, lim_c)
    return dict(emb_w=emb_w, emb_b=emb_b, conv_w=conv_w, conv_b=conv_b)


# ---------------------------------------------------------------------------
# One-time parameter preparation.
#   * M2[(l*hidden+h), (c*HW+p)] = sum_k emb_w[c*K+k, h] * fold[k*L+l, p]
#     (each entry is a single emb_w value or 0, so bf16 M2 is exactly as
#      precise as casting emb_w itself).
#   * fb[c*HW+p] = sum_k emb_b[c*K+k] * (#patches covering p via k)   (f32)
#   * w3: 3x3 conv as ONE matmul  (BPB*C, 9*BPB*C) — block-diag over batch.
# ---------------------------------------------------------------------------
def prepare_softcomp_params(params, channel, kernel_size, stride, padding,
                            output_size, batch_per_step):
    C = channel
    kh, kw = kernel_size
    K = kh * kw
    hidden = params["emb_w"].shape[1]
    H, W = output_size
    HW = H * W

    fold_np, L = build_fold_matrix(output_size, kernel_size, stride, padding)
    fold_r = fold_np.reshape(K, L, HW)                       # (K, L, HW)
    emb_w = np.asarray(params["emb_w"], np.float32).reshape(C, K, hidden)
    emb_b = np.asarray(params["emb_b"], np.float32).reshape(C, K)

    # Combined linear+fold matrix and folded bias (f32 prep, bf16 constant).
    m2 = np.einsum("ckh,klp->lhcp", emb_w, fold_r).reshape(L * hidden, C * HW)
    fb = np.einsum("ck,kp->cp", emb_b, fold_r.sum(axis=1)).reshape(1, C * HW)

    # 3x3 conv as one matmul per grid step.  ccols rows are ordered
    # (k2, ci, b); output rows are ordered (b, co).
    # NOTE: block-diagonal over batch is O(BPB^2) — fine at BPB=4; restructure
    # to a shared (C, 9C) weight if BPB is scaled up (see review).
    BPB = batch_per_step
    R = BPB * C
    w2 = np.asarray(params["conv_w"], np.float32).reshape(C, C, 9)
    w3 = np.zeros((R, 9 * R), np.float32)
    for b in range(BPB):
        for k2 in range(9):
            for ci in range(C):
                w3[b * C:(b + 1) * C, k2 * R + ci * BPB + b] = w2[:, ci, k2]
    cb = np.tile(np.asarray(params["conv_b"], np.float32), BPB).reshape(R, 1)

    return dict(m2=jnp.asarray(m2, jnp.bfloat16),
                fb=jnp.asarray(fb, jnp.float32),
                w3=jnp.asarray(w3, jnp.bfloat16),
                cb=jnp.asarray(cb, jnp.float32),
                L=L, bpb=BPB, channel=C, hidden=hidden,
                kernel_size=kernel_size, output_size=output_size)


# ---------------------------------------------------------------------------
# The fused kernel: (linear+fold) matmul -> padded scratch -> 3x3 conv matmul.
# ---------------------------------------------------------------------------
def _make_softcomp_kernel(C, L, H, W, BPB, PADM):
    HW = H * W
    R = BPB * C            # rows of folded / conv output handled per step

    def kernel(x_ref, m2_ref, fb_ref, w3_ref, cb_ref, o_ref,
               fpad_ref, ccols_ref):
        # ---- 1) embedding Linear + F.fold == ONE matmul + bias -----------
        folded = jnp.dot(x_ref[...], m2_ref[...],
                         preferred_element_type=jnp.float32) + fb_ref[...]
        folded = folded.astype(jnp.bfloat16)               # (BPB, C*HW)

        # ---- 2) place into lane-zero-padded scratch, rows = (ci, b) ------
        # Margins implement the conv's y-direction zero padding; x-wrap is
        # masked explicitly below.  Margins re-zeroed every step (scratch is
        # not zero-initialised by Pallas).
        zero_m = jnp.zeros((R, PADM), jnp.bfloat16)
        fpad_ref[:, :PADM] = zero_m
        fpad_ref[:, PADM + HW:] = zero_m
        for ci in range(C):
            fpad_ref[ci * BPB:(ci + 1) * BPB, PADM:PADM + HW] = (
                folded[:, ci * HW:(ci + 1) * HW])

        # ---- 3) 3x3 im2col from 9 static shifted slices ------------------
        lane_x = lax.broadcasted_iota(jnp.int32, (R, HW), 1) % W
        left_ok = lane_x >= 1
        right_ok = lane_x <= W - 2
        for dy in range(3):
            for dx in range(3):
                k2 = dy * 3 + dx
                off = (dy - 1) * W + (dx - 1)
                src = fpad_ref[:, PADM + off:PADM + off + HW]
                if dx == 0:                       # mask x-1 wrap-around
                    src = jnp.where(left_ok, src, jnp.zeros_like(src))
                elif dx == 2:                     # mask x+1 wrap-around
                    src = jnp.where(right_ok, src, jnp.zeros_like(src))
                ccols_ref[k2 * R:(k2 + 1) * R, :] = src     # aligned (16,256)

        # ---- 4) conv = one lane-dense matmul + bias -----------------------
        o_ref[...] = (jnp.dot(w3_ref[...], ccols_ref[...],
                              preferred_element_type=jnp.float32)
                      + cb_ref[...])

    return kernel


# ---------------------------------------------------------------------------
# SoftComp.forward
# ---------------------------------------------------------------------------
def soft_comp_forward(prep, x, t):
    b_, t_, hp, wp, hidden = x.shape
    C = prep["channel"]
    L = prep["L"]
    H, W = prep["output_size"]
    HW = H * W
    BPB = prep["bpb"]
    bt = b_ * t
    N = t_ * hp * wp
    assert (b_ * N) % bt == 0 and (b_ * N) // bt == L, \
        "output_size / kernel / stride / padding inconsistent with x"
    assert bt % BPB == 0, "batch*t must be divisible by batch_per_step"
    assert BPB == bt or BPB % 8 == 0, "per-step batch rows must tile cleanly"
    n_steps = bt // BPB
    R = BPB * C
    PADM = max(128, -(-(W + 1) // 128) * 128)    # lane-aligned, >= W+1

    # Only wrapper-side glue: flatten tokens to (bt, L*hidden) and cast bf16.
    x2 = x.reshape(bt, L * hidden).astype(jnp.bfloat16)

    kernel = _make_softcomp_kernel(C, L, H, W, BPB, PADM)
    out = pl.pallas_call(
        kernel,
        out_shape=jax.ShapeDtypeStruct((n_steps * R, HW), jnp.float32),
        grid_spec=pltpu.PrefetchScalarGridSpec(
            num_scalar_prefetch=0,
            grid=(n_steps,),
            in_specs=[
                pl.BlockSpec((BPB, L * hidden), lambda s: (s, 0)),   # tokens
                pl.BlockSpec((L * hidden, C * HW), lambda s: (0, 0)),  # M2
                pl.BlockSpec((1, C * HW), lambda s: (0, 0)),         # fold bias
                pl.BlockSpec((R, 9 * R), lambda s: (0, 0)),          # conv W
                pl.BlockSpec((R, 1), lambda s: (0, 0)),              # conv bias
            ],
            out_specs=pl.BlockSpec((R, HW), lambda s: (s, 0)),
            scratch_shapes=[
                pltpu.VMEM((R, PADM + HW + PADM), jnp.bfloat16),  # padded fold
                pltpu.VMEM((9 * R, HW), jnp.bfloat16),            # conv im2col
            ],
        ),
        compiler_params=pltpu.CompilerParams(
            dimension_semantics=("arbitrary",),
            vmem_limit_bytes=32 * 1024 * 1024),
    )(x2, prep["m2"], prep["fb"], prep["w3"], prep["cb"])

    # rows are (b, co) in order -> pure reshape, no data movement.
    return out.reshape(bt, C, H, W)


# ---------------------------------------------------------------------------
# Pure-JAX f32 reference (scatter-add fold + lax conv) for a sanity check.
# ---------------------------------------------------------------------------
def soft_comp_reference(params, x, t, output_size, channel, kernel_size,
                        stride, padding):
    b_, t_, hp, wp, hidden = x.shape
    kh, kw = kernel_size
    sh, sw = stride
    ph, pw = padding
    H, W = output_size
    c_out = kh * kw * channel

    xf = x.reshape(b_, -1, hidden)
    feat = jnp.einsum("bnh,oh->bno", xf, params["emb_w"]) + params["emb_b"]
    bt = b_ * t
    L = feat.shape[1] // t
    feat = feat.reshape(bt, L, c_out).transpose(0, 2, 1)        # (bt, c_out, L)

    nH = (H + 2 * ph - kh) // sh + 1
    nW = (W + 2 * pw - kw) // sw + 1
    cols = feat.reshape(bt, channel, kh, kw, nH, nW)
    acc = jnp.zeros((bt, channel, H + 2 * ph, W + 2 * pw), jnp.float32)
    for ki in range(kh):
        for kj in range(kw):
            acc = acc.at[:, :, ki:ki + nH * sh:sh, kj:kj + nW * sw:sw].add(
                cols[:, :, ki, kj])
    folded = acc[:, :, ph:ph + H, pw:pw + W]

    out = lax.conv_general_dilated(
        folded, params["conv_w"], window_strides=(1, 1),
        padding=((1, 1), (1, 1)),
        dimension_numbers=("NCHW", "OIHW", "NCHW"))
    return out + params["conv_b"][None, :, None, None]


if __name__ == "__main__":
    # SoftComp(channel=4, hidden=32, kernel_size=(4,4), stride=(2,2), padding=(1,1))
    channel, hidden = 4, 32
    kernel_size, stride, padding = (4, 4), (2, 2), (1, 1)
    output_size = (16, 16)
    b_, t = 2, 2
    nH = (output_size[0] + 2 * padding[0] - kernel_size[0]) // stride[0] + 1
    nW = (output_size[1] + 2 * padding[1] - kernel_size[1]) // stride[1] + 1

    key = jax.random.PRNGKey(0)
    kx, kp = jax.random.split(key)
    # x: (b_, t, h', w', hidden) -- matches `b_, _, _, _, c_ = x.shape`
    x = jax.random.normal(kx, (b_, t, nH, nW, hidden), jnp.float32)
    params = init_softcomp_params(kp, channel, hidden, kernel_size)

    # One-time weight prep: combined linear+fold matrix, folded bias, conv W3.
    # batch_per_step = full bt -> grid == (1,) (review: collapse the grid).
    prep = prepare_softcomp_params(params, channel, kernel_size, stride,
                                   padding, output_size, batch_per_step=b_ * t)

    fwd = jax.jit(lambda xx: soft_comp_forward(prep, xx, t))
    out = jax.block_until_ready(fwd(x))

    ref = jax.block_until_ready(
        soft_comp_reference(params, x, t, output_size, channel, kernel_size,
                            stride, padding))

    assert out.shape == (b_ * t, channel, output_size[0], output_size[1])
    np.testing.assert_allclose(np.asarray(out), np.asarray(ref),
                               rtol=5e-2, atol=5e-2)
    print("KERNEL_OK")
</pallas_src>

<mosaic_0001>
module attributes {stable_mosaic.version = 11 : i64} {
  func.func @kernel(%arg0: i32, %arg1: memref<4x2048xbf16, #tpu.memory_space<vmem>>, %arg2: memref<2048x1024xbf16, #tpu.memory_space<vmem>>, %arg3: memref<1x1024xf32, #tpu.memory_space<vmem>>, %arg4: memref<16x144xbf16, #tpu.memory_space<vmem>>, %arg5: memref<16x1xf32, #tpu.memory_space<vmem>>, %arg6: memref<16x256xf32, #tpu.memory_space<vmem>>, %arg7: memref<16x512xbf16, #tpu.memory_space<vmem>>, %arg8: memref<144x256xbf16, #tpu.memory_space<vmem>>) attributes {dimension_semantics = [#tpu.dimension_semantics<arbitrary>], iteration_bounds = array<i64: 1>, scalar_prefetch = 0 : i64, scratch_operands = 2 : i64, tpu.core_type = #tpu.core_type<tc>, window_params = [{transform_indices = @transform_0, window_bounds = array<i64: 4, 2048>}, {pipeline_mode = #tpu.pipeline_mode<synchronous>, transform_indices = @transform_1, window_bounds = array<i64: 2048, 1024>}, {pipeline_mode = #tpu.pipeline_mode<synchronous>, transform_indices = @transform_2, window_bounds = array<i64: 1, 1024>}, {pipeline_mode = #tpu.pipeline_mode<synchronous>, transform_indices = @transform_3, window_bounds = array<i64: 16, 144>}, {pipeline_mode = #tpu.pipeline_mode<synchronous>, transform_indices = @transform_4, window_bounds = array<i64: 16, 1>}, {transform_indices = @transform_5, window_bounds = array<i64: 16, 256>}]} {
    %c0 = arith.constant 0 : index
    %c0_0 = arith.constant 0 : index
    %0 = vector.load %arg1[%c0, %c0_0] : memref<4x2048xbf16, #tpu.memory_space<vmem>>, vector<4x2048xbf16>
    %c0_1 = arith.constant 0 : index
    %c0_2 = arith.constant 0 : index
    %1 = vector.load %arg2[%c0_1, %c0_2] : memref<2048x1024xbf16, #tpu.memory_space<vmem>>, vector<2048x1024xbf16>
    %cst = arith.constant dense<0.000000e+00> : vector<4x1024xf32>
    %2 = tpu.matmul %0, %1, %cst {dimension_numbers = #tpu.dot_dimension_numbers<[1], [0], [0], [1], [0, 0, 1, 1], [], []>} : vector<4x2048xbf16>, vector<2048x1024xbf16>, vector<4x1024xf32> -> vector<4x1024xf32>
    %c0_3 = arith.constant 0 : index
    %c0_4 = arith.constant 0 : index
    %3 = vector.load %arg3[%c0_3, %c0_4] : memref<1x1024xf32, #tpu.memory_space<vmem>>, vector<1x1024xf32>
    %4 = vector.broadcast %3 : vector<1x1024xf32> to vector<4x1024xf32>
    %5 = arith.addf %2, %4 : vector<4x1024xf32>
    %6 = arith.truncf %5 : vector<4x1024xf32> to vector<4x1024xbf16>
    %cst_5 = arith.constant 0.000000e+00 : bf16
    %7 = vector.broadcast %cst_5 : bf16 to vector<16x128xbf16>
    %c0_6 = arith.constant 0 : index
    %c0_7 = arith.constant 0 : index
    %8 = vector.load %arg7[%c0_6, %c0_7] : memref<16x512xbf16, #tpu.memory_space<vmem>>, vector<16x128xbf16>
    tpu.vector_store %arg7[%c0_6, %c0_7], %7 {strides = array<i32>} : memref<16x512xbf16, #tpu.memory_space<vmem>>, vector<16x128xbf16>,
    %c0_8 = arith.constant 0 : index
    %c384 = arith.constant 384 : index
    %9 = vector.load %arg7[%c0_8, %c384] : memref<16x512xbf16, #tpu.memory_space<vmem>>, vector<16x128xbf16>
    tpu.vector_store %arg7[%c0_8, %c384], %7 {strides = array<i32>} : memref<16x512xbf16, #tpu.memory_space<vmem>>, vector<16x128xbf16>,
    %10 = vector.extract_strided_slice %6 {offsets = [0, 0], sizes = [4, 256], strides = [1, 1]} : vector<4x1024xbf16> to vector<4x256xbf16>
    %c0_9 = arith.constant 0 : index
    %c128 = arith.constant 128 : index
    %11 = vector.load %arg7[%c0_9, %c128] : memref<16x512xbf16, #tpu.memory_space<vmem>>, vector<4x256xbf16>
    tpu.vector_store %arg7[%c0_9, %c128], %10 {strides = array<i32>} : memref<16x512xbf16, #tpu.memory_space<vmem>>, vector<4x256xbf16>,
    %12 = vector.extract_strided_slice %6 {offsets = [0, 256], sizes = [4, 256], strides = [1, 1]} : vector<4x1024xbf16> to vector<4x256xbf16>
    %c4 = arith.constant 4 : index
    %c128_10 = arith.constant 128 : index
    %13 = vector.load %arg7[%c4, %c128_10] : memref<16x512xbf16, #tpu.memory_space<vmem>>, vector<4x256xbf16>
    tpu.vector_store %arg7[%c4, %c128_10], %12 {strides = array<i32>} : memref<16x512xbf16, #tpu.memory_space<vmem>>, vector<4x256xbf16>,
    %14 = vector.extract_strided_slice %6 {offsets = [0, 512], sizes = [4, 256], strides = [1, 1]} : vector<4x1024xbf16> to vector<4x256xbf16>
    %c8 = arith.constant 8 : index
    %c128_11 = arith.constant 128 : index
    %15 = vector.load %arg7[%c8, %c128_11] : memref<16x512xbf16, #tpu.memory_space<vmem>>, vector<4x256xbf16>
    tpu.vector_store %arg7[%c8, %c128_11], %14 {strides = array<i32>} : memref<16x512xbf16, #tpu.memory_space<vmem>>, vector<4x256xbf16>,
    %16 = vector.extract_strided_slice %6 {offsets = [0, 768], sizes = [4, 256], strides = [1, 1]} : vector<4x1024xbf16> to vector<4x256xbf16>
    %c12 = arith.constant 12 : index
    %c128_12 = arith.constant 128 : index
    %17 = vector.load %arg7[%c12, %c128_12] : memref<16x512xbf16, #tpu.memory_space<vmem>>, vector<4x256xbf16>
    tpu.vector_store %arg7[%c12, %c128_12], %16 {strides = array<i32>} : memref<16x512xbf16, #tpu.memory_space<vmem>>, vector<4x256xbf16>,
    %18 = tpu.iota {dimensions = array<i32: 1>} : vector<16x256xi32>
    %c16_i32 = arith.constant 16 : i32
    %c0_i32 = arith.constant 0 : i32
    %19 = arith.cmpi eq, %c16_i32, %c0_i32 : i32
    %c1_i32 = arith.constant 1 : i32
    %20 = arith.select %19, %c1_i32, %c16_i32 : i32
    %21 = vector.broadcast %20 : i32 to vector<16x256xi32>
    %22 = arith.remsi %18, %21 : vector<16x256xi32>
    %c0_i32_13 = arith.constant 0 : i32
    %23 = vector.broadcast %c0_i32_13 : i32 to vector<16x256xi32>
    %24 = arith.cmpi ne, %22, %23 : vector<16x256xi32>
    %c0_i32_14 = arith.constant 0 : i32
    %25 = vector.broadcast %c0_i32_14 : i32 to vector<16x256xi32>
    %26 = arith.cmpi slt, %22, %25 : vector<16x256xi32>
    %c0_i32_15 = arith.constant 0 : i32
    %27 = arith.cmpi slt, %20, %c0_i32_15 : i32
    %28 = vector.broadcast %27 : i1 to vector<16x256xi1>
    %29 = vector.broadcast %28 : vector<16x256xi1> to vector<16x256xi1>
    %30 = arith.xori %26, %29 : vector<16x256xi1>
    %31 = arith.andi %30, %24 : vector<16x256xi1>
    %32 = vector.broadcast %20 : i32 to vector<16x256xi32>
    %33 = arith.addi %22, %32 : vector<16x256xi32>
    %34 = arith.select %31, %33, %22 : vector<16x256xi1>, vector<16x256xi32>
    %c1_i32_16 = arith.constant 1 : i32
    %35 = vector.broadcast %c1_i32_16 : i32 to vector<16x256xi32>
    %36 = arith.cmpi sge, %34, %35 : vector<16x256xi32>
    %c14_i32 = arith.constant 14 : i32
    %37 = vector.broadcast %c14_i32 : i32 to vector<16x256xi32>
    %38 = arith.cmpi sle, %34, %37 : vector<16x256xi32>
    %c0_17 = arith.constant 0 : index
    %c111 = arith.constant 111 : index
    %39 = vector.load %arg7[%c0_17, %c111] : memref<16x512xbf16, #tpu.memory_space<vmem>>, vector<16x256xbf16>
    %cst_18 = arith.constant 0.000000e+00 : bf16
    %40 = vector.broadcast %cst_18 : bf16 to vector<16x256xbf16>
    %41 = arith.select %36, %39, %40 : vector<16x256xi1>, vector<16x256xbf16>
    %c0_19 = arith.constant 0 : index
    %c0_20 = arith.constant 0 : index
    %42 = vector.load %arg8[%c0_19, %c0_20] : memref<144x256xbf16, #tpu.memory_space<vmem>>, vector<16x256xbf16>
    tpu.vector_store %arg8[%c0_19, %c0_20], %41 {strides = array<i32>} : memref<144x256xbf16, #tpu.memory_space<vmem>>, vector<16x256xbf16>,
    %c0_21 = arith.constant 0 : index
    %c112 = arith.constant 112 : index
    %43 = vector.load %arg7[%c0_21, %c112] : memref<16x512xbf16, #tpu.memory_space<vmem>>, vector<16x256xbf16>
    %c16 = arith.constant 16 : index
    %c0_22 = arith.constant 0 : index
    %44 = vector.load %arg8[%c16, %c0_22] : memref<144x256xbf16, #tpu.memory_space<vmem>>, vector<16x256xbf16>
    tpu.vector_store %arg8[%c16, %c0_22], %43 {strides = array<i32>} : memref<144x256xbf16, #tpu.memory_space<vmem>>, vector<16x256xbf16>,
    %c0_23 = arith.constant 0 : index
    %c113 = arith.constant 113 : index
    %45 = vector.load %arg7[%c0_23, %c113] : memref<16x512xbf16, #tpu.memory_space<vmem>>, vector<16x256xbf16>
    %cst_24 = arith.constant 0.000000e+00 : bf16
    %46 = vector.broadcast %cst_24 : bf16 to vector<16x256xbf16>
    %47 = arith.select %38, %45, %46 : vector<16x256xi1>, vector<16x256xbf16>
    %c32 = arith.constant 32 : index
    %c0_25 = arith.constant 0 : index
    %48 = vector.load %arg8[%c32, %c0_25] : memref<144x256xbf16, #tpu.memory_space<vmem>>, vector<16x256xbf16>
    tpu.vector_store %arg8[%c32, %c0_25], %47 {strides = array<i32>} : memref<144x256xbf16, #tpu.memory_space<vmem>>, vector<16x256xbf16>,
    %c0_26 = arith.constant 0 : index
    %c127 = arith.constant 127 : index
    %49 = vector.load %arg7[%c0_26, %c127] : memref<16x512xbf16, #tpu.memory_space<vmem>>, vector<16x256xbf16>
    %cst_27 = arith.constant 0.000000e+00 : bf16
    %50 = vector.broadcast %cst_27 : bf16 to vector<16x256xbf16>
    %51 = arith.select %36, %49, %50 : vector<16x256xi1>, vector<16x256xbf16>
    %c48 = arith.constant 48 : index
    %c0_28 = arith.constant 0 : index
    %52 = vector.load %arg8[%c48, %c0_28] : memref<144x256xbf16, #tpu.memory_space<vmem>>, vector<16x256xbf16>
    tpu.vector_store %arg8[%c48, %c0_28], %51 {strides = array<i32>} : memref<144x256xbf16, #tpu.memory_space<vmem>>, vector<16x256xbf16>,
    %c0_29 = arith.constant 0 : index
    %c128_30 = arith.constant 128 : index
    %53 = vector.load %arg7[%c0_29, %c128_30] : memref<16x512xbf16, #tpu.memory_space<vmem>>, vector<16x256xbf16>
    %c64 = arith.constant 64 : index
    %c0_31 = arith.constant 0 : index
    %54 = vector.load %arg8[%c64, %c0_31] : memref<144x256xbf16, #tpu.memory_space<vmem>>, vector<16x256xbf16>
    tpu.vector_store %arg8[%c64, %c0_31], %53 {strides = array<i32>} : memref<144x256xbf16, #tpu.memory_space<vmem>>, vector<16x256xbf16>,
    %c0_32 = arith.constant 0 : index
    %c129 = arith.constant 129 : index
    %55 = vector.load %arg7[%c0_32, %c129] : memref<16x512xbf16, #tpu.memory_space<vmem>>, vector<16x256xbf16>
    %cst_33 = arith.constant 0.000000e+00 : bf16
    %56 = vector.broadcast %cst_33 : bf16 to vector<16x256xbf16>
    %57 = arith.select %38, %55, %56 : vector<16x256xi1>, vector<16x256xbf16>
    %c80 = arith.constant 80 : index
    %c0_34 = arith.constant 0 : index
    %58 = vector.load %arg8[%c80, %c0_34] : memref<144x256xbf16, #tpu.memory_space<vmem>>, vector<16x256xbf16>
    tpu.vector_store %arg8[%c80, %c0_34], %57 {strides = array<i32>} : memref<144x256xbf16, #tpu.memory_space<vmem>>, vector<16x256xbf16>,
    %c0_35 = arith.constant 0 : index
    %c143 = arith.constant 143 : index
    %59 = vector.load %arg7[%c0_35, %c143] : memref<16x512xbf16, #tpu.memory_space<vmem>>, vector<16x256xbf16>
    %cst_36 = arith.constant 0.000000e+00 : bf16
    %60 = vector.broadcast %cst_36 : bf16 to vector<16x256xbf16>
    %61 = arith.select %36, %59, %60 : vector<16x256xi1>, vector<16x256xbf16>
    %c96 = arith.constant 96 : index
    %c0_37 = arith.constant 0 : index
    %62 = vector.load %arg8[%c96, %c0_37] : memref<144x256xbf16, #tpu.memory_space<vmem>>, vector<16x256xbf16>
    tpu.vector_store %arg8[%c96, %c0_37], %61 {strides = array<i32>} : memref<144x256xbf16, #tpu.memory_space<vmem>>, vector<16x256xbf16>,
    %c0_38 = arith.constant 0 : index
    %c144 = arith.constant 144 : index
    %63 = vector.load %arg7[%c0_38, %c144] : memref<16x512xbf16, #tpu.memory_space<vmem>>, vector<16x256xbf16>
    %c112_39 = arith.constant 112 : index
    %c0_40 = arith.constant 0 : index
    %64 = vector.load %arg8[%c112_39, %c0_40] : memref<144x256xbf16, #tpu.memory_space<vmem>>, vector<16x256xbf16>
    tpu.vector_store %arg8[%c112_39, %c0_40], %63 {strides = array<i32>} : memref<144x256xbf16, #tpu.memory_space<vmem>>, vector<16x256xbf16>,
    %c0_41 = arith.constant 0 : index
    %c145 = arith.constant 145 : index
    %65 = vector.load %arg7[%c0_41, %c145] : memref<16x512xbf16, #tpu.memory_space<vmem>>, vector<16x256xbf16>
    %cst_42 = arith.constant 0.000000e+00 : bf16
    %66 = vector.broadcast %cst_42 : bf16 to vector<16x256xbf16>
    %67 = arith.select %38, %65, %66 : vector<16x256xi1>, vector<16x256xbf16>
    %c128_43 = arith.constant 128 : index
    %c0_44 = arith.constant 0 : index
    %68 = vector.load %arg8[%c128_43, %c0_44] : memref<144x256xbf16, #tpu.memory_space<vmem>>, vector<16x256xbf16>
    tpu.vector_store %arg8[%c128_43, %c0_44], %67 {strides = array<i32>} : memref<144x256xbf16, #tpu.memory_space<vmem>>, vector<16x256xbf16>,
    %c0_45 = arith.constant 0 : index
    %c0_46 = arith.constant 0 : index
    %69 = vector.load %arg4[%c0_45, %c0_46] : memref<16x144xbf16, #tpu.memory_space<vmem>>, vector<16x144xbf16>
    %c0_47 = arith.constant 0 : index
    %c0_48 = arith.constant 0 : index
    %70 = vector.load %arg8[%c0_47, %c0_48] : memref<144x256xbf16, #tpu.memory_space<vmem>>, vector<144x256xbf16>
    %cst_49 = arith.constant dense<0.000000e+00> : vector<16x256xf32>
    %71 = tpu.matmul %69, %70, %cst_49 {dimension_numbers = #tpu.dot_dimension_numbers<[1], [0], [0], [1], [0, 0, 1, 1], [], []>} : vector<16x144xbf16>, vector<144x256xbf16>, vector<16x256xf32> -> vector<16x256xf32>
    %c0_50 = arith.constant 0 : index
    %c0_51 = arith.constant 0 : index
    %72 = vector.load %arg5[%c0_50, %c0_51] : memref<16x1xf32, #tpu.memory_space<vmem>>, vector<16x1xf32>
    %73 = vector.broadcast %72 : vector<16x1xf32> to vector<16x256xf32>
    %74 = arith.addf %71, %73 : vector<16x256xf32>
    %c0_52 = arith.constant 0 : index
    %c0_53 = arith.constant 0 : index
    %75 = vector.load %arg6[%c0_52, %c0_53] : memref<16x256xf32, #tpu.memory_space<vmem>>, vector<16x256xf32>
    tpu.vector_store %arg6[%c0_52, %c0_53], %74 {strides = array<i32>} : memref<16x256xf32, #tpu.memory_space<vmem>>, vector<16x256xf32>,
    return
  }
  func.func @transform_0(%arg0: i32) -> (i32, i32) {
    %c0_i32 = arith.constant 0 : i32
    %c0_i32_0 = arith.constant 0 : i32
    return %arg0, %c0_i32 : i32, i32
  }
  func.func @transform_1(%arg0: i32) -> (i32, i32) {
    %c0_i32 = arith.constant 0 : i32
    %c0_i32_0 = arith.constant 0 : i32
    %c0_i32_1 = arith.constant 0 : i32
    return %c0_i32, %c0_i32_0 : i32, i32
  }
  func.func @transform_2(%arg0: i32) -> (i32, i32) {
    %c0_i32 = arith.constant 0 : i32
    %c0_i32_0 = arith.constant 0 : i32
    %c0_i32_1 = arith.constant 0 : i32
    return %c0_i32, %c0_i32_0 : i32, i32
  }
  func.func @transform_3(%arg0: i32) -> (i32, i32) {
    %c0_i32 = arith.constant 0 : i32
    %c0_i32_0 = arith.constant 0 : i32
    %c0_i32_1 = arith.constant 0 : i32
    return %c0_i32, %c0_i32_0 : i32, i32
  }
  func.func @transform_4(%arg0: i32) -> (i32, i32) {
    %c0_i32 = arith.constant 0 : i32
    %c0_i32_0 = arith.constant 0 : i32
    %c0_i32_1 = arith.constant 0 : i32
    return %c0_i32, %c0_i32_0 : i32, i32
  }
  func.func @transform_5(%arg0: i32) -> (i32, i32) {
    %c0_i32 = arith.constant 0 : i32
    %c0_i32_0 = arith.constant 0 : i32
    return %arg0, %c0_i32 : i32, i32
  }
}

</mosaic_0001>

<llo_original>
// kernel: _lambda_.1
$region0: #{_lambda_.1}
  #allocation0 [shape = 'u32[]', space=smem, size = 0x4, offset = 0x4, fixed_abs, tag = 'smem constant byte address 0x4 - core index']
  #allocation1 [shape = 'u32[144,128]{1,0:T(1,128)}', space=vmem, size = 0x12000, scoped, tag = 'internal scratch']
  #allocation2 [shape = 'bf16[16,512]{1,0:T(8,128)(2,1)}', space=vmem, size = 0x4000, scoped, tag = 'scratch operand']
  #allocation3 [shape = 'bf16[144,256]{1,0:T(8,128)(2,1)}', space=vmem, size = 0x12000, scoped, tag = 'scratch operand']
  %s0 = inlined_call_operand.vmem [shape: bf16[4,2048], index: 0, kind: input, shape index: {}]
  %s1 = inlined_call_operand.hbm [shape: bf16[2048,1024], index: 1, kind: input, shape index: {}]
  %s2 = inlined_call_operand.hbm [shape: f32[1,1024], index: 2, kind: input, shape index: {}]
  %s3 = inlined_call_operand.hbm [shape: bf16[16,144], index: 3, kind: input, shape index: {}]
  %s4 = inlined_call_operand.hbm [shape: f32[16,1], index: 4, kind: input, shape index: {}]
  %s5 = inlined_call_operand.vmem [shape: f32[16,256], index: 5, kind: output, shape index: {}]
  %s6 = sld [smem:[#allocation0]]
  $region46: #{_lambda_.1} parent=0
    _
  %s8 = ssub.s32 1, %s6
  %s9 = scalar_select 0, %s8, %s6
  $region1: #{_lambda_.1} parent=0
    #allocation4 [shape = 'u8[4194304]{0}', space=vmem, size = 0x400000, scoped, tag = 'input window, operand 1, single buffered']
    #allocation5 [shape = 's32[1]{0}', space=sflag, size = 0x4, scoped, tag = 'scoped memory for _lambda_.1']
    #allocation6 [shape = 'u8[4096]{0}', space=vmem, size = 0x1000, scoped, tag = 'input window, operand 2, single buffered']
    #allocation7 [shape = 's32[1]{0}', space=sflag, size = 0x4, scoped, tag = 'scoped memory for _lambda_.1']
    #allocation8 [shape = 'u8[8192]{0}', space=vmem, size = 0x2000, scoped, tag = 'input window, operand 3, single buffered']
    #allocation9 [shape = 'u8[8192]{0}', space=vmem, size = 0x2000, scoped, tag = 'input window, operand 4, single buffered']
    #allocation10 [shape = 's32[1]{0}', space=sflag, size = 0x4, scoped, tag = 'scoped memory for _lambda_.1']
    %10 = vsyncpa [#allocation5], 0
    %11 = vsyncpa [#allocation7], 0
    %12 = vsyncpa [#allocation10], 0
    // Predicated region
    $region2: #{_lambda_.1} parent=1 // pred_check
      _
    $region3: #{_lambda_.1} parent=1 // pred_check_branch
      %14 = sbr.rel (0) target = $region5
    $region4: #{_lambda_.1} parent=1 // pred_region
      _
    $region5: #{_lambda_.1} parent=1 // pred_fallthru
      _
    // Predicated region
    $region6: #{_lambda_.1} parent=1 // pred_check
      _
    $region7: #{_lambda_.1} parent=1 // pred_check_branch
      %16 = sbr.rel (0) target = $region9
    $region8: #{_lambda_.1} parent=1 // pred_region
      %s18 = ssub.s32 131072, 131072
      %19 = vsyncadd [#allocation5], %s18
      %s20 = sshll.u32 [#allocation4], 4
      %s21 = int_to_ptr.vmem [resolvable:$true] %s20
      %26 = dma.hbm_to_vmem [thread:$0]  %s1, 131072, %s21, [#allocation5], 512, 512, 32
    $region9: #{_lambda_.1} parent=1 // pred_fallthru
      _
    // Predicated region
    $region10: #{_lambda_.1} parent=1 // pred_check
      _
    $region11: #{_lambda_.1} parent=1 // pred_check_branch
      %28 = sbr.rel (0) target = $region13
    $region12: #{_lambda_.1} parent=1 // pred_region
      %s30 = ssub.s32 128, 128
      %31 = vsyncadd [#allocation7], %s30
      %s33 = sshll.u32 [#allocation6], 4
      %s34 = int_to_ptr.vmem [resolvable:$true] %s33
      %36 = dma.hbm_to_vmem [thread:$0]  %s2, 128, %s34, [#allocation7]
    $region13: #{_lambda_.1} parent=1 // pred_fallthru
      _
    // Predicated region
    $region14: #{_lambda_.1} parent=1 // pred_check
      _
    $region15: #{_lambda_.1} parent=1 // pred_check_branch
      %38 = sbr.rel (0) target = $region17
    $region16: #{_lambda_.1} parent=1 // pred_region
      %s40 = ssub.s32 256, 256
      %41 = vsyncadd [#allocation7], %s40
      %s42 = sshll.u32 [#allocation8], 4
      %s43 = int_to_ptr.vmem [resolvable:$true] %s42
      %48 = dma.hbm_to_vmem [thread:$0]  %s3, 256, %s43, [#allocation7], 128, 128, 8
    $region17: #{_lambda_.1} parent=1 // pred_fallthru
      _
    // Predicated region
    $region18: #{_lambda_.1} parent=1 // pred_check
      _
    $region19: #{_lambda_.1} parent=1 // pred_check_branch
      %50 = sbr.rel (0) target = $region21
    $region20: #{_lambda_.1} parent=1 // pred_region
      %s52 = ssub.s32 256, 256
      %53 = vsyncadd [#allocation10], %s52
      %s54 = sshll.u32 [#allocation9], 4
      %s55 = int_to_ptr.vmem [resolvable:$true] %s54
      %60 = dma.hbm_to_vmem [thread:$0]  %s4, 256, %s55, [#allocation10], 128, 128, 8
    $region21: #{_lambda_.1} parent=1 // pred_fallthru
      _
    // Predicated region
    $region22: #{_lambda_.1} parent=1 // pred_check
      _
    $region23: #{_lambda_.1} parent=1 // pred_check_branch
      %62 = sbr.rel (0) target = $region25
    $region24: #{_lambda_.1} parent=1 // pred_region
      %63 = dma.done [#allocation5], 131072
    $region25: #{_lambda_.1} parent=1 // pred_fallthru
      _
    // Predicated region
    $region26: #{_lambda_.1} parent=1 // pred_check
      _
    $region27: #{_lambda_.1} parent=1 // pred_check_branch
      %65 = sbr.rel (0) target = $region29
    $region28: #{_lambda_.1} parent=1 // pred_region
      %66 = dma.done [#allocation7], 128
    $region29: #{_lambda_.1} parent=1 // pred_fallthru
      _
    // Predicated region
    $region30: #{_lambda_.1} parent=1 // pred_check
      _
    $region31: #{_lambda_.1} parent=1 // pred_check_branch
      %68 = sbr.rel (0) target = $region33
    $region32: #{_lambda_.1} parent=1 // pred_region
      %69 = dma.done [#allocation7], 256
    $region33: #{_lambda_.1} parent=1 // pred_fallthru
      _
    // Predicated region
    $region34: #{_lambda_.1} parent=1 // pred_check
      _
    $region35: #{_lambda_.1} parent=1 // pred_check_branch
      %71 = sbr.rel (0) target = $region37
    $region36: #{_lambda_.1} parent=1 // pred_region
      %72 = dma.done [#allocation10], 256
    $region37: #{_lambda_.1} parent=1 // pred_fallthru
      _
    %v76 = vld [vmem:[%s0] sm:$0xff]
    %v77 = vld [vmem:[%s0 + $0x8] sm:$0xff]
    %v78 = vld [vmem:[%s0 + $0x10] sm:$0xff]
    %v79 = vld [vmem:[%s0 + $0x18] sm:$0xff]
    %v80 = vld [vmem:[#allocation4] sm:$0xff]
    %v81 = vld [vmem:[#allocation4 + $0x8] sm:$0xff]
    %v82 = vld [vmem:[#allocation4 + $0x10] sm:$0xff]
    %v83 = vld [vmem:[#allocation4 + $0x18] sm:$0xff]
    %v84 = vld [vmem:[#allocation4 + $0x20] sm:$0xff]
    %v85 = vld [vmem:[#allocation4 + $0x28] sm:$0xff]
    %v86 = vld [vmem:[#allocation4 + $0x30] sm:$0xff]
    %v87 = vld [vmem:[#allocation4 + $0x38] sm:$0xff]
    %v88 = vld [vmem:[#allocation4 + $0x40] sm:$0xff]
    %v89 = vld [vmem:[#allocation4 + $0x48] sm:$0xff]
    %v90 = vld [vmem:[#allocation4 + $0x50] sm:$0xff]
    %v91 = vld [vmem:[#allocation4 + $0x58] sm:$0xff]
    %v92 = vld [vmem:[#allocation4 + $0x60] sm:$0xff]
    %v93 = vld [vmem:[#allocation4 + $0x68] sm:$0xff]
    %v94 = vld [vmem:[#allocation4 + $0x70] sm:$0xff]
    %v95 = vld [vmem:[#allocation4 + $0x78] sm:$0xff]
    %v96 = vld [vmem:[#allocation4 + $0x80] sm:$0xff]
    %v97 = vld [vmem:[#allocation4 + $0x88] sm:$0xff]
    %v98 = vld [vmem:[#allocation4 + $0x90] sm:$0xff]
    %v99 = vld [vmem:[#allocation4 + $0x98] sm:$0xff]
    %v100 = vld [vmem:[#allocation4 + $0xa0] sm:$0xff]
    %v101 = vld [vmem:[#allocation4 + $0xa8] sm:$0xff]
    %v102 = vld [vmem:[#allocation4 + $0xb0] sm:$0xff]
    %v103 = vld [vmem:[#allocation4 + $0xb8] sm:$0xff]
    %v104 = vld [vmem:[#allocation4 + $0xc0] sm:$0xff]
    %v105 = vld [vmem:[#allocation4 + $0xc8] sm:$0xff]
    %v106 = vld [vmem:[#allocation4 + $0xd0] sm:$0xff]
    %v107 = vld [vmem:[#allocation4 + $0xd8] sm:$0xff]
    %v108 = vld [vmem:[#allocation4 + $0xe0] sm:$0xff]
    %v109 = vld [vmem:[#allocation4 + $0xe8] sm:$0xff]
    %v110 = vld [vmem:[#allocation4 + $0xf0] sm:$0xff]
    %v111 = vld [vmem:[#allocation4 + $0xf8] sm:$0xff]
    %v112 = vld [vmem:[#allocation4 + $0x100] sm:$0xff]
    %v113 = vld [vmem:[#allocation4 + $0x108] sm:$0xff]
    %v114 = vld [vmem:[#allocation4 + $0x110] sm:$0xff]
    %v115 = vld [vmem:[#allocation4 + $0x118] sm:$0xff]
    %v116 = vld [vmem:[#allocation4 + $0x120] sm:$0xff]
    %v117 = vld [vmem:[#allocation4 + $0x128] sm:$0xff]
    %v118 = vld [vmem:[#allocation4 + $0x130] sm:$0xff]
    %v119 = vld [vmem:[#allocation4 + $0x138] sm:$0xff]
    %v120 = vld [vmem:[#allocation4 + $0x140] sm:$0xff]
    %v121 = vld [vmem:[#allocation4 + $0x148] sm:$0xff]
    %v122 = vld [vmem:[#allocation4 + $0x150] sm:$0xff]
    %v123 = vld [vmem:[#allocation4 + $0x158] sm:$0xff]
    %v124 = vld [vmem:[#allocation4 + $0x160] sm:$0xff]
    %v125 = vld [vmem:[#allocation4 + $0x168] sm:$0xff]
    %v126 = vld [vmem:[#allocation4 + $0x170] sm:$0xff]
    %v127 = vld [vmem:[#allocation4 + $0x178] sm:$0xff]
    %v128 = vld [vmem:[#allocation4 + $0x180] sm:$0xff]
    %v129 = vld [vmem:[#allocation4 + $0x188] sm:$0xff]
    %v130 = vld [vmem:[#allocation4 + $0x190] sm:$0xff]
    %v131 = vld [vmem:[#allocation4 + $0x198] sm:$0xff]
    %v132 = vld [vmem:[#allocation4 + $0x1a0] sm:$0xff]
    %v133 = vld [vmem:[#allocation4 + $0x1a8] sm:$0xff]
    %v134 = vld [vmem:[#allocation4 + $0x1b0] sm:$0xff]
    %v135 = vld [vmem:[#allocation4 + $0x1b8] sm:$0xff]
    %v136 = vld [vmem:[#allocation4 + $0x1c0] sm:$0xff]
    %v137 = vld [vmem:[#allocation4 + $0x1c8] sm:$0xff]
    %v138 = vld [vmem:[#allocation4 + $0x1d0] sm:$0xff]
    %v139 = vld [vmem:[#allocation4 + $0x1d8] sm:$0xff]
    %v140 = vld [vmem:[#allocation4 + $0x1e0] sm:$0xff]
    %v141 = vld [vmem:[#allocation4 + $0x1e8] sm:$0xff]
    %v142 = vld [vmem:[#allocation4 + $0x1f0] sm:$0xff]
    %v143 = vld [vmem:[#allocation4 + $0x1f8] sm:$0xff]
    %v144 = vld [vmem:[#allocation4 + $0x200] sm:$0xff]
    %v145 = vld [vmem:[#allocation4 + $0x208] sm:$0xff]
    %v146 = vld [vmem:[#allocation4 + $0x210] sm:$0xff]
    %v147 = vld [vmem:[#allocation4 + $0x218] sm:$0xff]
    %v148 = vld [vmem:[#allocation4 + $0x220] sm:$0xff]
    %v149 = vld [vmem:[#allocation4 + $0x228] sm:$0xff]
    %v150 = vld [vmem:[#allocation4 + $0x230] sm:$0xff]
    %v151 = vld [vmem:[#allocation4 + $0x238] sm:$0xff]
    %v152 = vld [vmem:[#allocation4 + $0x240] sm:$0xff]
    %v153 = vld [vmem:[#allocation4 + $0x248] sm:$0xff]
    %v154 = vld [vmem:[#allocation4 + $0x250] sm:$0xff]
    %v155 = vld [vmem:[#allocation4 + $0x258] sm:$0xff]
    %v156 = vld [vmem:[#allocation4 + $0x260] sm:$0xff]
    %v157 = vld [vmem:[#allocation4 + $0x268] sm:$0xff]
    %v158 = vld [vmem:[#allocation4 + $0x270] sm:$0xff]
    %v159 = vld [vmem:[#allocation4 + $0x278] sm:$0xff]
    %v160 = vld [vmem:[#allocation4 + $0x280] sm:$0xff]
    %v161 = vld [vmem:[#allocation4 + $0x288] sm:$0xff]
    %v162 = vld [vmem:[#allocation4 + $0x290] sm:$0xff]
    %v163 = vld [vmem:[#allocation4 + $0x298] sm:$0xff]
    %v164 = vld [vmem:[#allocation4 + $0x2a0] sm:$0xff]
    %v165 = vld [vmem:[#allocation4 + $0x2a8] sm:$0xff]
    %v166 = vld [vmem:[#allocation4 + $0x2b0] sm:$0xff]
    %v167 = vld [vmem:[#allocation4 + $0x2b8] sm:$0xff]
    %v168 = vld [vmem:[#allocation4 + $0x2c0] sm:$0xff]
    %v169 = vld [vmem:[#allocation4 + $0x2c8] sm:$0xff]
    %v170 = vld [vmem:[#allocation4 + $0x2d0] sm:$0xff]
    %v171 = vld [vmem:[#allocation4 + $0x2d8] sm:$0xff]
    %v172 = vld [vmem:[#allocation4 + $0x2e0] sm:$0xff]
    %v173 = vld [vmem:[#allocation4 + $0x2e8] sm:$0xff]
    %v174 = vld [vmem:[#allocation4 + $0x2f0] sm:$0xff]
    %v175 = vld [vmem:[#allocation4 + $0x2f8] sm:$0xff]
    %v176 = vld [vmem:[#allocation4 + $0x300] sm:$0xff]
    %v177 = vld [vmem:[#allocation4 + $0x308] sm:$0xff]
    %v178 = vld [vmem:[#allocation4 + $0x310] sm:$0xff]
    %v179 = vld [vmem:[#allocation4 + $0x318] sm:$0xff]
    %v180 = vld [vmem:[#allocation4 + $0x320] sm:$0xff]
    %v181 = vld [vmem:[#allocation4 + $0x328] sm:$0xff]
    %v182 = vld [vmem:[#allocation4 + $0x330] sm:$0xff]
    %v183 = vld [vmem:[#allocation4 + $0x338] sm:$0xff]
    %v184 = vld [vmem:[#allocation4 + $0x340] sm:$0xff]
    %v185 = vld [vmem:[#allocation4 + $0x348] sm:$0xff]
    %v186 = vld [vmem:[#allocation4 + $0x350] sm:$0xff]
    %v187 = vld [vmem:[#allocation4 + $0x358] sm:$0xff]
    %v188 = vld [vmem:[#allocation4 + $0x360] sm:$0xff]
    %v189 = vld [vmem:[#allocation4 + $0x368] sm:$0xff]
    %v190 = vld [vmem:[#allocation4 + $0x370] sm:$0xff]
    %v191 = vld [vmem:[#allocation4 + $0x378] sm:$0xff]
    %v192 = vld [vmem:[#allocation4 + $0x380] sm:$0xff]
    %v193 = vld [vmem:[#allocation4 + $0x388] sm:$0xff]
    %v194 = vld [vmem:[#allocation4 + $0x390] sm:$0xff]
    %v195 = vld [vmem:[#allocation4 + $0x398] sm:$0xff]
    %v196 = vld [vmem:[#allocation4 + $0x3a0] sm:$0xff]
    %v197 = vld [vmem:[#allocation4 + $0x3a8] sm:$0xff]
    %v198 = vld [vmem:[#allocation4 + $0x3b0] sm:$0xff]
    %v199 = vld [vmem:[#allocation4 + $0x3b8] sm:$0xff]
    %v200 = vld [vmem:[#allocation4 + $0x3c0] sm:$0xff]
    %v201 = vld [vmem:[#allocation4 + $0x3c8] sm:$0xff]
    %v202 = vld [vmem:[#allocation4 + $0x3d0] sm:$0xff]
    %v203 = vld [vmem:[#allocation4 + $0x3d8] sm:$0xff]
    %v204 = vld [vmem:[#allocation4 + $0x3e0] sm:$0xff]
    %v205 = vld [vmem:[#allocation4 + $0x3e8] sm:$0xff]
    %v206 = vld [vmem:[#allocation4 + $0x3f0] sm:$0xff]
    %v207 = vld [vmem:[#allocation4 + $0x3f8] sm:$0xff]
    %v208 = vld [vmem:[#allocation4 + $0x400] sm:$0xff]
    %v209 = vld [vmem:[#allocation4 + $0x408] sm:$0xff]
    %v210 = vld [vmem:[#allocation4 + $0x410] sm:$0xff]
    %v211 = vld [vmem:[#allocation4 + $0x418] sm:$0xff]
    %v212 = vld [vmem:[#allocation4 + $0x420] sm:$0xff]
    %v213 = vld [vmem:[#allocation4 + $0x428] sm:$0xff]
    %v214 = vld [vmem:[#allocation4 + $0x430] sm:$0xff]
    %v215 = vld [vmem:[#allocation4 + $0x438] sm:$0xff]
    %v216 = vld [vmem:[#allocation4 + $0x440] sm:$0xff]
    %v217 = vld [vmem:[#allocation4 + $0x448] sm:$0xff]
    %v218 = vld [vmem:[#allocation4 + $0x450] sm:$0xff]
    %v219 = vld [vmem:[#allocation4 + $0x458] sm:$0xff]
    %v220 = vld [vmem:[#allocation4 + $0x460] sm:$0xff]
    %v221 = vld [vmem:[#allocation4 + $0x468] sm:$0xff]
    %v222 = vld [vmem:[#allocation4 + $0x470] sm:$0xff]
    %v223 = vld [vmem:[#allocation4 + $0x478] sm:$0xff]
    %v224 = vld [vmem:[#allocation4 + $0x480] sm:$0xff]
    %v225 = vld [vmem:[#allocation4 + $0x488] sm:$0xff]
    %v226 = vld [vmem:[#allocation4 + $0x490] sm:$0xff]
    %v227 = vld [vmem:[#allocation4 + $0x498] sm:$0xff]
    %v228 = vld [vmem:[#allocation4 + $0x4a0] sm:$0xff]
    %v229 = vld [vmem:[#allocation4 + $0x4a8] sm:$0xff]
    %v230 = vld [vmem:[#allocation4 + $0x4b0] sm:$0xff]
    %v231 = vld [vmem:[#allocation4 + $0x4b8] sm:$0xff]
    %v232 = vld [vmem:[#allocation4 + $0x4c0] sm:$0xff]
    %v233 = vld [vmem:[#allocation4 + $0x4c8] sm:$0xff]
    %v234 = vld [vmem:[#allocation4 + $0x4d0] sm:$0xff]
    %v235 = vld [vmem:[#allocation4 + $0x4d8] sm:$0xff]
    %v236 = vld [vmem:[#allocation4 + $0x4e0] sm:$0xff]
    %v237 = vld [vmem:[#allocation4 + $0x4e8] sm:$0xff]
    %v238 = vld [vmem:[#allocation4 + $0x4f0] sm:$0xff]
    %v239 = vld [vmem:[#allocation4 + $0x4f8] sm:$0xff]
    %v240 = vld [vmem:[#allocation4 + $0x500] sm:$0xff]
    %v241 = vld [vmem:[#allocation4 + $0x508] sm:$0xff]
    %v242 = vld [vmem:[#allocation4 + $0x510] sm:$0xff]
    %v243 = vld [vmem:[#allocation4 + $0x518] sm:$0xff]
    %v244 = vld [vmem:[#allocation4 + $0x520] sm:$0xff]
    %v245 = vld [vmem:[#allocation4 + $0x528] sm:$0xff]
    %v246 = vld [vmem:[#allocation4 + $0x530] sm:$0xff]
    %v247 = vld [vmem:[#allocation4 + $0x538] sm:$0xff]
    %v248 = vld [vmem:[#allocation4 + $0x540] sm:$0xff]
    %v249 = vld [vmem:[#allocation4 + $0x548] sm:$0xff]
    %v250 = vld [vmem:[#allocation4 + $0x550] sm:$0xff]
    %v251 = vld [vmem:[#allocation4 + $0x558] sm:$0xff]
    %v252 = vld [vmem:[#allocation4 + $0x560] sm:$0xff]
    %v253 = vld [vmem:[#allocation4 + $0x568] sm:$0xff]
    %v254 = vld [vmem:[#allocation4 + $0x570] sm:$0xff]
    %v255 = vld [vmem:[#allocation4 + $0x578] sm:$0xff]
    %v256 = vld [vmem:[#allocation4 + $0x580] sm:$0xff]
    %v257 = vld [vmem:[#allocation4 + $0x588] sm:$0xff]
    %v258 = vld [vmem:[#allocation4 + $0x590] sm:$0xff]
    %v259 = vld [vmem:[#allocation4 + $0x598] sm:$0xff]
    %v260 = vld [vmem:[#allocation4 + $0x5a0] sm:$0xff]
    %v261 = vld [vmem:[#allocation4 + $0x5a8] sm:$0xff]
    %v262 = vld [vmem:[#allocation4 + $0x5b0] sm:$0xff]
    %v263 = vld [vmem:[#allocation4 + $0x5b8] sm:$0xff]
    %v264 = vld [vmem:[#allocation4 + $0x5c0] sm:$0xff]
    %v265 = vld [vmem:[#allocation4 + $0x5c8] sm:$0xff]
    %v266 = vld [vmem:[#allocation4 + $0x5d0] sm:$0xff]
    %v267 = vld [vmem:[#allocation4 + $0x5d8] sm:$0xff]
    %v268 = vld [vmem:[#allocation4 + $0x5e0] sm:$0xff]
    %v269 = vld [vmem:[#allocation4 + $0x5e8] sm:$0xff]
    %v270 = vld [vmem:[#allocation4 + $0x5f0] sm:$0xff]
    %v271 = vld [vmem:[#allocation4 + $0x5f8] sm:$0xff]
    %v272 = vld [vmem:[#allocation4 + $0x600] sm:$0xff]
    %v273 = vld [vmem:[#allocation4 + $0x608] sm:$0xff]
    %v274 = vld [vmem:[#allocation4 + $0x610] sm:$0xff]
    %v275 = vld [vmem:[#allocation4 + $0x618] sm:$0xff]
    %v276 = vld [vmem:[#allocation4 + $0x620] sm:$0xff]
    %v277 = vld [vmem:[#allocation4 + $0x628] sm:$0xff]
    %v278 = vld [vmem:[#allocation4 + $0x630] sm:$0xff]
    %v279 = vld [vmem:[#allocation4 + $0x638] sm:$0xff]
    %v280 = vld [vmem:[#allocation4 + $0x640] sm:$0xff]
    %v281 = vld [vmem:[#allocation4 + $0x648] sm:$0xff]
    %v282 = vld [vmem:[#allocation4 + $0x650] sm:$0xff]
    %v283 = vld [vmem:[#allocation4 + $0x658] sm:$0xff]
    %v284 = vld [vmem:[#allocation4 + $0x660] sm:$0xff]
    %v285 = vld [vmem:[#allocation4 + $0x668] sm:$0xff]
    %v286 = vld [vmem:[#allocation4 + $0x670] sm:$0xff]
    %v287 = vld [vmem:[#allocation4 + $0x678] sm:$0xff]
    %v288 = vld [vmem:[#allocation4 + $0x680] sm:$0xff]
    %v289 = vld [vmem:[#allocation4 + $0x688] sm:$0xff]
    %v290 = vld [vmem:[#allocation4 + $0x690] sm:$0xff]
    %v291 = vld [vmem:[#allocation4 + $0x698] sm:$0xff]
    %v292 = vld [vmem:[#allocation4 + $0x6a0] sm:$0xff]
    %v293 = vld [vmem:[#allocation4 + $0x6a8] sm:$0xff]
    %v294 = vld [vmem:[#allocation4 + $0x6b0] sm:$0xff]
    %v295 = vld [vmem:[#allocation4 + $0x6b8] sm:$0xff]
    %v296 = vld [vmem:[#allocation4 + $0x6c0] sm:$0xff]
    %v297 = vld [vmem:[#allocation4 + $0x6c8] sm:$0xff]
    %v298 = vld [vmem:[#allocation4 + $0x6d0] sm:$0xff]
    %v299 = vld [vmem:[#allocation4 + $0x6d8] sm:$0xff]
    %v300 = vld [vmem:[#allocation4 + $0x6e0] sm:$0xff]
    %v301 = vld [vmem:[#allocation4 + $0x6e8] sm:$0xff]
    %v302 = vld [vmem:[#allocation4 + $0x6f0] sm:$0xff]
    %v303 = vld [vmem:[#allocation4 + $0x6f8] sm:$0xff]
    %v304 = vld [vmem:[#allocation4 + $0x700] sm:$0xff]
    %v305 = vld [vmem:[#allocation4 + $0x708] sm:$0xff]
    %v306 = vld [vmem:[#allocation4 + $0x710] sm:$0xff]
    %v307 = vld [vmem:[#allocation4 + $0x718] sm:$0xff]
    %v308 = vld [vmem:[#allocation4 + $0x720] sm:$0xff]
    %v309 = vld [vmem:[#allocation4 + $0x728] sm:$0xff]
    %v310 = vld [vmem:[#allocation4 + $0x730] sm:$0xff]
    %v311 = vld [vmem:[#allocation4 + $0x738] sm:$0xff]
    %v312 = vld [vmem:[#allocation4 + $0x740] sm:$0xff]
    %v313 = vld [vmem:[#allocation4 + $0x748] sm:$0xff]
    %v314 = vld [vmem:[#allocation4 + $0x750] sm:$0xff]
    %v315 = vld [vmem:[#allocation4 + $0x758] sm:$0xff]
    %v316 = vld [vmem:[#allocation4 + $0x760] sm:$0xff]
    %v317 = vld [vmem:[#allocation4 + $0x768] sm:$0xff]
    %v318 = vld [vmem:[#allocation4 + $0x770] sm:$0xff]
    %v319 = vld [vmem:[#allocation4 + $0x778] sm:$0xff]
    %v320 = vld [vmem:[#allocation4 + $0x780] sm:$0xff]
    %v321 = vld [vmem:[#allocation4 + $0x788] sm:$0xff]
    %v322 = vld [vmem:[#allocation4 + $0x790] sm:$0xff]
    %v323 = vld [vmem:[#allocation4 + $0x798] sm:$0xff]
    %v324 = vld [vmem:[#allocation4 + $0x7a0] sm:$0xff]
    %v325 = vld [vmem:[#allocation4 + $0x7a8] sm:$0xff]
    %v326 = vld [vmem:[#allocation4 + $0x7b0] sm:$0xff]
    %v327 = vld [vmem:[#allocation4 + $0x7b8] sm:$0xff]
    %v328 = vld [vmem:[#allocation4 + $0x7c0] sm:$0xff]
    %v329 = vld [vmem:[#allocation4 + $0x7c8] sm:$0xff]
    %v330 = vld [vmem:[#allocation4 + $0x7d0] sm:$0xff]
    %v331 = vld [vmem:[#allocation4 + $0x7d8] sm:$0xff]
    %v332 = vld [vmem:[#allocation4 + $0x7e0] sm:$0xff]
    %v333 = vld [vmem:[#allocation4 + $0x7e8] sm:$0xff]
    %v334 = vld [vmem:[#allocation4 + $0x7f0] sm:$0xff]
    %v335 = vld [vmem:[#allocation4 + $0x7f8] sm:$0xff]
    %v336 = vld [vmem:[#allocation4 + $0x800] sm:$0xff]
    %v337 = vld [vmem:[#allocation4 + $0x808] sm:$0xff]
    %v338 = vld [vmem:[#allocation4 + $0x810] sm:$0xff]
    %v339 = vld [vmem:[#allocation4 + $0x818] sm:$0xff]
    %v340 = vld [vmem:[#allocation4 + $0x820] sm:$0xff]
    %v341 = vld [vmem:[#allocation4 + $0x828] sm:$0xff]
    %v342 = vld [vmem:[#allocation4 + $0x830] sm:$0xff]
    %v343 = vld [vmem:[#allocation4 + $0x838] sm:$0xff]
    %v344 = vld [vmem:[#allocation4 + $0x840] sm:$0xff]
    %v345 = vld [vmem:[#allocation4 + $0x848] sm:$0xff]
    %v346 = vld [vmem:[#allocation4 + $0x850] sm:$0xff]
    %v347 = vld [vmem:[#allocation4 + $0x858] sm:$0xff]
    %v348 = vld [vmem:[#allocation4 + $0x860] sm:$0xff]
    %v349 = vld [vmem:[#allocation4 + $0x868] sm:$0xff]
    %v350 = vld [vmem:[#allocation4 + $0x870] sm:$0xff]
    %v351 = vld [vmem:[#allocation4 + $0x878] sm:$0xff]
    %v352 = vld [vmem:[#allocation4 + $0x880] sm:$0xff]
    %v353 = vld [vmem:[#allocation4 + $0x888] sm:$0xff]
    %v354 = vld [vmem:[#allocation4 + $0x890] sm:$0xff]
    %v355 = vld [vmem:[#allocation4 + $0x898] sm:$0xff]
    %v356 = vld [vmem:[#allocation4 + $0x8a0] sm:$0xff]
    %v357 = vld [vmem:[#allocation4 + $0x8a8] sm:$0xff]
    %v358 = vld [vmem:[#allocation4 + $0x8b0] sm:$0xff]
    %v359 = vld [vmem:[#allocation4 + $0x8b8] sm:$0xff]
    %v360 = vld [vmem:[#allocation4 + $0x8c0] sm:$0xff]
    %v361 = vld [vmem:[#allocation4 + $0x8c8] sm:$0xff]
    %v362 = vld [vmem:[#allocation4 + $0x8d0] sm:$0xff]
    %v363 = vld [vmem:[#allocation4 + $0x8d8] sm:$0xff]
    %v364 = vld [vmem:[#allocation4 + $0x8e0] sm:$0xff]
    %v365 = vld [vmem:[#allocation4 + $0x8e8] sm:$0xff]
    %v366 = vld [vmem:[#allocation4 + $0x8f0] sm:$0xff]
    %v367 = vld [vmem:[#allocation4 + $0x8f8] sm:$0xff]
    %v368 = vld [vmem:[#allocation4 + $0x900] sm:$0xff]
    %v369 = vld [vmem:[#allocation4 + $0x908] sm:$0xff]
    %v370 = vld [vmem:[#allocation4 + $0x910] sm:$0xff]
    %v371 = vld [vmem:[#allocation4 + $0x918] sm:$0xff]
    %v372 = vld [vmem:[#allocation4 + $0x920] sm:$0xff]
    %v373 = vld [vmem:[#allocation4 + $0x928] sm:$0xff]
    %v374 = vld [vmem:[#allocation4 + $0x930] sm:$0xff]
    %v375 = vld [vmem:[#allocation4 + $0x938] sm:$0xff]
    %v376 = vld [vmem:[#allocation4 + $0x940] sm:$0xff]
    %v377 = vld [vmem:[#allocation4 + $0x948] sm:$0xff]
    %v378 = vld [vmem:[#allocation4 + $0x950] sm:$0xff]
    %v379 = vld [vmem:[#allocation4 + $0x958] sm:$0xff]
    %v380 = vld [vmem:[#allocation4 + $0x960] sm:$0xff]
    %v381 = vld [vmem:[#allocation4 + $0x968] sm:$0xff]
    %v382 = vld [vmem:[#allocation4 + $0x970] sm:$0xff]
    %v383 = vld [vmem:[#allocation4 + $0x978] sm:$0xff]
    %v384 = vld [vmem:[#allocation4 + $0x980] sm:$0xff]
    %v385 = vld [vmem:[#allocation4 + $0x988] sm:$0xff]
    %v386 = vld [vmem:[#allocation4 + $0x990] sm:$0xff]
    %v387 = vld [vmem:[#allocation4 + $0x998] sm:$0xff]
    %v388 = vld [vmem:[#allocation4 + $0x9a0] sm:$0xff]
    %v389 = vld [vmem:[#allocation4 + $0x9a8] sm:$0xff]
    %v390 = vld [vmem:[#allocation4 + $0x9b0] sm:$0xff]
    %v391 = vld [vmem:[#allocation4 + $0x9b8] sm:$0xff]
    %v392 = vld [vmem:[#allocation4 + $0x9c0] sm:$0xff]
    %v393 = vld [vmem:[#allocation4 + $0x9c8] sm:$0xff]
    %v394 = vld [vmem:[#allocation4 + $0x9d0] sm:$0xff]
    %v395 = vld [vmem:[#allocation4 + $0x9d8] sm:$0xff]
    %v396 = vld [vmem:[#allocation4 + $0x9e0] sm:$0xff]
    %v397 = vld [vmem:[#allocation4 + $0x9e8] sm:$0xff]
    %v398 = vld [vmem:[#allocation4 + $0x9f0] sm:$0xff]
    %v399 = vld [vmem:[#allocation4 + $0x9f8] sm:$0xff]
    %v400 = vld [vmem:[#allocation4 + $0xa00] sm:$0xff]
    %v401 = vld [vmem:[#allocation4 + $0xa08] sm:$0xff]
    %v402 = vld [vmem:[#allocation4 + $0xa10] sm:$0xff]
    %v403 = vld [vmem:[#allocation4 + $0xa18] sm:$0xff]
    %v404 = vld [vmem:[#allocation4 + $0xa20] sm:$0xff]
    %v405 = vld [vmem:[#allocation4 + $0xa28] sm:$0xff]
    %v406 = vld [vmem:[#allocation4 + $0xa30] sm:$0xff]
    %v407 = vld [vmem:[#allocation4 + $0xa38] sm:$0xff]
    %v408 = vld [vmem:[#allocation4 + $0xa40] sm:$0xff]
    %v409 = vld [vmem:[#allocation4 + $0xa48] sm:$0xff]
    %v410 = vld [vmem:[#allocation4 + $0xa50] sm:$0xff]
    %v411 = vld [vmem:[#allocation4 + $0xa58] sm:$0xff]
    %v412 = vld [vmem:[#allocation4 + $0xa60] sm:$0xff]
    %v413 = vld [vmem:[#allocation4 + $0xa68] sm:$0xff]
    %v414 = vld [vmem:[#allocation4 + $0xa70] sm:$0xff]
    %v415 = vld [vmem:[#allocation4 + $0xa78] sm:$0xff]
    %v416 = vld [vmem:[#allocation4 + $0xa80] sm:$0xff]
    %v417 = vld [vmem:[#allocation4 + $0xa88] sm:$0xff]
    %v418 = vld [vmem:[#allocation4 + $0xa90] sm:$0xff]
    %v419 = vld [vmem:[#allocation4 + $0xa98] sm:$0xff]
    %v420 = vld [vmem:[#allocation4 + $0xaa0] sm:$0xff]
    %v421 = vld [vmem:[#allocation4 + $0xaa8] sm:$0xff]
    %v422 = vld [vmem:[#allocation4 + $0xab0] sm:$0xff]
    %v423 = vld [vmem:[#allocation4 + $0xab8] sm:$0xff]
    %v424 = vld [vmem:[#allocation4 + $0xac0] sm:$0xff]
    %v425 = vld [vmem:[#allocation4 + $0xac8] sm:$0xff]
    %v426 = vld [vmem:[#allocation4 + $0xad0] sm:$0xff]
    %v427 = vld [vmem:[#allocation4 + $0xad8] sm:$0xff]
    %v428 = vld [vmem:[#allocation4 + $0xae0] sm:$0xff]
    %v429 = vld [vmem:[#allocation4 + $0xae8] sm:$0xff]
    %v430 = vld [vmem:[#allocation4 + $0xaf0] sm:$0xff]
    %v431 = vld [vmem:[#allocation4 + $0xaf8] sm:$0xff]
    %v432 = vld [vmem:[#allocation4 + $0xb00] sm:$0xff]
    %v433 = vld [vmem:[#allocation4 + $0xb08] sm:$0xff]
    %v434 = vld [vmem:[#allocation4 + $0xb10] sm:$0xff]
    %v435 = vld [vmem:[#allocation4 + $0xb18] sm:$0xff]
    %v436 = vld [vmem:[#allocation4 + $0xb20] sm:$0xff]
    %v437 = vld [vmem:[#allocation4 + $0xb28] sm:$0xff]
    %v438 = vld [vmem:[#allocation4 + $0xb30] sm:$0xff]
    %v439 = vld [vmem:[#allocation4 + $0xb38] sm:$0xff]
    %v440 = vld [vmem:[#allocation4 + $0xb40] sm:$0xff]
    %v441 = vld [vmem:[#allocation4 + $0xb48] sm:$0xff]
    %v442 = vld [vmem:[#allocation4 + $0xb50] sm:$0xff]
    %v443 = vld [vmem:[#allocation4 + $0xb58] sm:$0xff]
    %v444 = vld [vmem:[#allocation4 + $0xb60] sm:$0xff]
    %v445 = vld [vmem:[#allocation4 + $0xb68] sm:$0xff]
    %v446 = vld [vmem:[#allocation4 + $0xb70] sm:$0xff]
    %v447 = vld [vmem:[#allocation4 + $0xb78] sm:$0xff]
    %v448 = vld [vmem:[#allocation4 + $0xb80] sm:$0xff]
    %v449 = vld [vmem:[#allocation4 + $0xb88] sm:$0xff]
    %v450 = vld [vmem:[#allocation4 + $0xb90] sm:$0xff]
    %v451 = vld [vmem:[#allocation4 + $0xb98] sm:$0xff]
    %v452 = vld [vmem:[#allocation4 + $0xba0] sm:$0xff]
    %v453 = vld [vmem:[#allocation4 + $0xba8] sm:$0xff]
    %v454 = vld [vmem:[#allocation4 + $0xbb0] sm:$0xff]
    %v455 = vld [vmem:[#allocation4 + $0xbb8] sm:$0xff]
    %v456 = vld [vmem:[#allocation4 + $0xbc0] sm:$0xff]
    %v457 = vld [vmem:[#allocation4 + $0xbc8] sm:$0xff]
    %v458 = vld [vmem:[#allocation4 + $0xbd0] sm:$0xff]
    %v459 = vld [vmem:[#allocation4 + $0xbd8] sm:$0xff]
    %v460 = vld [vmem:[#allocation4 + $0xbe0] sm:$0xff]
    %v461 = vld [vmem:[#allocation4 + $0xbe8] sm:$0xff]
    %v462 = vld [vmem:[#allocation4 + $0xbf0] sm:$0xff]
    %v463 = vld [vmem:[#allocation4 + $0xbf8] sm:$0xff]
    %v464 = vld [vmem:[#allocation4 + $0xc00] sm:$0xff]
    %v465 = vld [vmem:[#allocation4 + $0xc08] sm:$0xff]
    %v466 = vld [vmem:[#allocation4 + $0xc10] sm:$0xff]
    %v467 = vld [vmem:[#allocation4 + $0xc18] sm:$0xff]
    %v468 = vld [vmem:[#allocation4 + $0xc20] sm:$0xff]
    %v469 = vld [vmem:[#allocation4 + $0xc28] sm:$0xff]
    %v470 = vld [vmem:[#allocation4 + $0xc30] sm:$0xff]
    %v471 = vld [vmem:[#allocation4 + $0xc38] sm:$0xff]
    %v472 = vld [vmem:[#allocation4 + $0xc40] sm:$0xff]
    %v473 = vld [vmem:[#allocation4 + $0xc48] sm:$0xff]
    %v474 = vld [vmem:[#allocation4 + $0xc50] sm:$0xff]
    %v475 = vld [vmem:[#allocation4 + $0xc58] sm:$0xff]
    %v476 = vld [vmem:[#allocation4 + $0xc60] sm:$0xff]
    %v477 = vld [vmem:[#allocation4 + $0xc68] sm:$0xff]
    %v478 = vld [vmem:[#allocation4 + $0xc70] sm:$0xff]
    %v479 = vld [vmem:[#allocation4 + $0xc78] sm:$0xff]
    %v480 = vld [vmem:[#allocation4 + $0xc80] sm:$0xff]
    %v481 = vld [vmem:[#allocation4 + $0xc88] sm:$0xff]
    %v482 = vld [vmem:[#allocation4 + $0xc90] sm:$0xff]
    %v483 = vld [vmem:[#allocation4 + $0xc98] sm:$0xff]
    %v484 = vld [vmem:[#allocation4 + $0xca0] sm:$0xff]
    %v485 = vld [vmem:[#allocation4 + $0xca8] sm:$0xff]
    %v486 = vld [vmem:[#allocation4 + $0xcb0] sm:$0xff]
    %v487 = vld [vmem:[#allocation4 + $0xcb8] sm:$0xff]
    %v488 = vld [vmem:[#allocation4 + $0xcc0] sm:$0xff]
    %v489 = vld [vmem:[#allocation4 + $0xcc8] sm:$0xff]
    %v490 = vld [vmem:[#allocation4 + $0xcd0] sm:$0xff]
    %v491 = vld [vmem:[#allocation4 + $0xcd8] sm:$0xff]
    %v492 = vld [vmem:[#allocation4 + $0xce0] sm:$0xff]
    %v493 = vld [vmem:[#allocation4 + $0xce8] sm:$0xff]
    %v494 = vld [vmem:[#allocation4 + $0xcf0] sm:$0xff]
    %v495 = vld [vmem:[#allocation4 + $0xcf8] sm:$0xff]
    %v496 = vld [vmem:[#allocation4 + $0xd00] sm:$0xff]
    %v497 = vld [vmem:[#allocation4 + $0xd08] sm:$0xff]
    %v498 = vld [vmem:[#allocation4 + $0xd10] sm:$0xff]
    %v499 = vld [vmem:[#allocation4 + $0xd18] sm:$0xff]
    %v500 = vld [vmem:[#allocation4 + $0xd20] sm:$0xff]
    %v501 = vld [vmem:[#allocation4 + $0xd28] sm:$0xff]
    %v502 = vld [vmem:[#allocation4 + $0xd30] sm:$0xff]
    %v503 = vld [vmem:[#allocation4 + $0xd38] sm:$0xff]
    %v504 = vld [vmem:[#allocation4 + $0xd40] sm:$0xff]
    %v505 = vld [vmem:[#allocation4 + $0xd48] sm:$0xff]
    %v506 = vld [vmem:[#allocation4 + $0xd50] sm:$0xff]
    %v507 = vld [vmem:[#allocation4 + $0xd58] sm:$0xff]
    %v508 = vld [vmem:[#allocation4 + $0xd60] sm:$0xff]
    %v509 = vld [vmem:[#allocation4 + $0xd68] sm:$0xff]
    %v510 = vld [vmem:[#allocation4 + $0xd70] sm:$0xff]
    %v511 = vld [vmem:[#allocation4 + $0xd78] sm:$0xff]
    %v512 = vld [vmem:[#allocation4 + $0xd80] sm:$0xff]
    %v513 = vld [vmem:[#allocation4 + $0xd88] sm:$0xff]
    %v514 = vld [vmem:[#allocation4 + $0xd90] sm:$0xff]
    %v515 = vld [vmem:[#allocation4 + $0xd98] sm:$0xff]
    %v516 = vld [vmem:[#allocation4 + $0xda0] sm:$0xff]
    %v517 = vld [vmem:[#allocation4 + $0xda8] sm:$0xff]
    %v518 = vld [vmem:[#allocation4 + $0xdb0] sm:$0xff]
    %v519 = vld [vmem:[#allocation4 + $0xdb8] sm:$0xff]
    %v520 = vld [vmem:[#allocation4 + $0xdc0] sm:$0xff]
    %v521 = vld [vmem:[#allocation4 + $0xdc8] sm:$0xff]
    %v522 = vld [vmem:[#allocation4 + $0xdd0] sm:$0xff]
    %v523 = vld [vmem:[#allocation4 + $0xdd8] sm:$0xff]
    %v524 = vld [vmem:[#allocation4 + $0xde0] sm:$0xff]
    %v525 = vld [vmem:[#allocation4 + $0xde8] sm:$0xff]
    %v526 = vld [vmem:[#allocation4 + $0xdf0] sm:$0xff]
    %v527 = vld [vmem:[#allocation4 + $0xdf8] sm:$0xff]
    %v528 = vld [vmem:[#allocation4 + $0xe00] sm:$0xff]
    %v529 = vld [vmem:[#allocation4 + $0xe08] sm:$0xff]
    %v530 = vld [vmem:[#allocation4 + $0xe10] sm:$0xff]
    %v531 = vld [vmem:[#allocation4 + $0xe18] sm:$0xff]
    %v532 = vld [vmem:[#allocation4 + $0xe20] sm:$0xff]
    %v533 = vld [vmem:[#allocation4 + $0xe28] sm:$0xff]
    %v534 = vld [vmem:[#allocation4 + $0xe30] sm:$0xff]
    %v535 = vld [vmem:[#allocation4 + $0xe38] sm:$0xff]
    %v536 = vld [vmem:[#allocation4 + $0xe40] sm:$0xff]
    %v537 = vld [vmem:[#allocation4 + $0xe48] sm:$0xff]
    %v538 = vld [vmem:[#allocation4 + $0xe50] sm:$0xff]
    %v539 = vld [vmem:[#allocation4 + $0xe58] sm:$0xff]
    %v540 = vld [vmem:[#allocation4 + $0xe60] sm:$0xff]
    %v541 = vld [vmem:[#allocation4 + $0xe68] sm:$0xff]
    %v542 = vld [vmem:[#allocation4 + $0xe70] sm:$0xff]
    %v543 = vld [vmem:[#allocation4 + $0xe78] sm:$0xff]
    %v544 = vld [vmem:[#allocation4 + $0xe80] sm:$0xff]
    %v545 = vld [vmem:[#allocation4 + $0xe88] sm:$0xff]
    %v546 = vld [vmem:[#allocation4 + $0xe90] sm:$0xff]
    %v547 = vld [vmem:[#allocation4 + $0xe98] sm:$0xff]
    %v548 = vld [vmem:[#allocation4 + $0xea0] sm:$0xff]
    %v549 = vld [vmem:[#allocation4 + $0xea8] sm:$0xff]
    %v550 = vld [vmem:[#allocation4 + $0xeb0] sm:$0xff]
    %v551 = vld [vmem:[#allocation4 + $0xeb8] sm:$0xff]
    %v552 = vld [vmem:[#allocation4 + $0xec0] sm:$0xff]
    %v553 = vld [vmem:[#allocation4 + $0xec8] sm:$0xff]
    %v554 = vld [vmem:[#allocation4 + $0xed0] sm:$0xff]
    %v555 = vld [vmem:[#allocation4 + $0xed8] sm:$0xff]
    %v556 = vld [vmem:[#allocation4 + $0xee0] sm:$0xff]
    %v557 = vld [vmem:[#allocation4 + $0xee8] sm:$0xff]
    %v558 = vld [vmem:[#allocation4 + $0xef0] sm:$0xff]
    %v559 = vld [vmem:[#allocation4 + $0xef8] sm:$0xff]
    %v560 = vld [vmem:[#allocation4 + $0xf00] sm:$0xff]
    %v561 = vld [vmem:[#allocation4 + $0xf08] sm:$0xff]
    %v562 = vld [vmem:[#allocation4 + $0xf10] sm:$0xff]
    %v563 = vld [vmem:[#allocation4 + $0xf18] sm:$0xff]
    %v564 = vld [vmem:[#allocation4 + $0xf20] sm:$0xff]
    %v565 = vld [vmem:[#allocation4 + $0xf28] sm:$0xff]
    %v566 = vld [vmem:[#allocation4 + $0xf30] sm:$0xff]
    %v567 = vld [vmem:[#allocation4 + $0xf38] sm:$0xff]
    %v568 = vld [vmem:[#allocation4 + $0xf40] sm:$0xff]
    %v569 = vld [vmem:[#allocation4 + $0xf48] sm:$0xff]
    %v570 = vld [vmem:[#allocation4 + $0xf50] sm:$0xff]
    %v571 = vld [vmem:[#allocation4 + $0xf58] sm:$0xff]
    %v572 = vld [vmem:[#allocation4 + $0xf60] sm:$0xff]
    %v573 = vld [vmem:[#allocation4 + $0xf68] sm:$0xff]
    %v574 = vld [vmem:[#allocation4 + $0xf70] sm:$0xff]
    %v575 = vld [vmem:[#allocation4 + $0xf78] sm:$0xff]
    %v576 = vld [vmem:[#allocation4 + $0xf80] sm:$0xff]
    %v577 = vld [vmem:[#allocation4 + $0xf88] sm:$0xff]
    %v578 = vld [vmem:[#allocation4 + $0xf90] sm:$0xff]
    %v579 = vld [vmem:[#allocation4 + $0xf98] sm:$0xff]
    %v580 = vld [vmem:[#allocation4 + $0xfa0] sm:$0xff]
    %v581 = vld [vmem:[#allocation4 + $0xfa8] sm:$0xff]
    %v582 = vld [vmem:[#allocation4 + $0xfb0] sm:$0xff]
    %v583 = vld [vmem:[#allocation4 + $0xfb8] sm:$0xff]
    %v584 = vld [vmem:[#allocation4 + $0xfc0] sm:$0xff]
    %v585 = vld [vmem:[#allocation4 + $0xfc8] sm:$0xff]
    %v586 = vld [vmem:[#allocation4 + $0xfd0] sm:$0xff]
    %v587 = vld [vmem:[#allocation4 + $0xfd8] sm:$0xff]
    %v588 = vld [vmem:[#allocation4 + $0xfe0] sm:$0xff]
    %v589 = vld [vmem:[#allocation4 + $0xfe8] sm:$0xff]
    %v590 = vld [vmem:[#allocation4 + $0xff0] sm:$0xff]
    %v591 = vld [vmem:[#allocation4 + $0xff8] sm:$0xff]
    %v592 = vld [vmem:[#allocation4 + $0x1000] sm:$0xff]
    %v593 = vld [vmem:[#allocation4 + $0x1008] sm:$0xff]
    %v594 = vld [vmem:[#allocation4 + $0x1010] sm:$0xff]
    %v595 = vld [vmem:[#allocation4 + $0x1018] sm:$0xff]
    %v596 = vld [vmem:[#allocation4 + $0x1020] sm:$0xff]
    %v597 = vld [vmem:[#allocation4 + $0x1028] sm:$0xff]
    %v598 = vld [vmem:[#allocation4 + $0x1030] sm:$0xff]
    %v599 = vld [vmem:[#allocation4 + $0x1038] sm:$0xff]
    %v600 = vld [vmem:[#allocation4 + $0x1040] sm:$0xff]
    %v601 = vld [vmem:[#allocation4 + $0x1048] sm:$0xff]
    %v602 = vld [vmem:[#allocation4 + $0x1050] sm:$0xff]
    %v603 = vld [vmem:[#allocation4 + $0x1058] sm:$0xff]
    %v604 = vld [vmem:[#allocation4 + $0x1060] sm:$0xff]
    %v605 = vld [vmem:[#allocation4 + $0x1068] sm:$0xff]
    %v606 = vld [vmem:[#allocation4 + $0x1070] sm:$0xff]
    %v607 = vld [vmem:[#allocation4 + $0x1078] sm:$0xff]
    %v608 = vld [vmem:[#allocation4 + $0x1080] sm:$0xff]
    %v609 = vld [vmem:[#allocation4 + $0x1088] sm:$0xff]
    %v610 = vld [vmem:[#allocation4 + $0x1090] sm:$0xff]
    %v611 = vld [vmem:[#allocation4 + $0x1098] sm:$0xff]
    %v612 = vld [vmem:[#allocation4 + $0x10a0] sm:$0xff]
    %v613 = vld [vmem:[#allocation4 + $0x10a8] sm:$0xff]
    %v614 = vld [vmem:[#allocation4 + $0x10b0] sm:$0xff]
    %v615 = vld [vmem:[#allocation4 + $0x10b8] sm:$0xff]
    %v616 = vld [vmem:[#allocation4 + $0x10c0] sm:$0xff]
    %v617 = vld [vmem:[#allocation4 + $0x10c8] sm:$0xff]
    %v618 = vld [vmem:[#allocation4 + $0x10d0] sm:$0xff]
    %v619 = vld [vmem:[#allocation4 + $0x10d8] sm:$0xff]
    %v620 = vld [vmem:[#allocation4 + $0x10e0] sm:$0xff]
    %v621 = vld [vmem:[#allocation4 + $0x10e8] sm:$0xff]
    %v622 = vld [vmem:[#allocation4 + $0x10f0] sm:$0xff]
    %v623 = vld [vmem:[#allocation4 + $0x10f8] sm:$0xff]
    %v624 = vld [vmem:[#allocation4 + $0x1100] sm:$0xff]
    %v625 = vld [vmem:[#allocation4 + $0x1108] sm:$0xff]
    %v626 = vld [vmem:[#allocation4 + $0x1110] sm:$0xff]
    %v627 = vld [vmem:[#allocation4 + $0x1118] sm:$0xff]
    %v628 = vld [vmem:[#allocation4 + $0x1120] sm:$0xff]
    %v629 = vld [vmem:[#allocation4 + $0x1128] sm:$0xff]
    %v630 = vld [vmem:[#allocation4 + $0x1130] sm:$0xff]
    %v631 = vld [vmem:[#allocation4 + $0x1138] sm:$0xff]
    %v632 = vld [vmem:[#allocation4 + $0x1140] sm:$0xff]
    %v633 = vld [vmem:[#allocation4 + $0x1148] sm:$0xff]
    %v634 = vld [vmem:[#allocation4 + $0x1150] sm:$0xff]
    %v635 = vld [vmem:[#allocation4 + $0x1158] sm:$0xff]
    %v636 = vld [vmem:[#allocation4 + $0x1160] sm:$0xff]
    %v637 = vld [vmem:[#allocation4 + $0x1168] sm:$0xff]
    %v638 = vld [vmem:[#allocation4 + $0x1170] sm:$0xff]
    %v639 = vld [vmem:[#allocation4 + $0x1178] sm:$0xff]
    %v640 = vld [vmem:[#allocation4 + $0x1180] sm:$0xff]
    %v641 = vld [vmem:[#allocation4 + $0x1188] sm:$0xff]
    %v642 = vld [vmem:[#allocation4 + $0x1190] sm:$0xff]
    %v643 = vld [vmem:[#allocation4 + $0x1198] sm:$0xff]
    %v644 = vld [vmem:[#allocation4 + $0x11a0] sm:$0xff]
    %v645 = vld [vmem:[#allocation4 + $0x11a8] sm:$0xff]
    %v646 = vld [vmem:[#allocation4 + $0x11b0] sm:$0xff]
    %v647 = vld [vmem:[#allocation4 + $0x11b8] sm:$0xff]
    %v648 = vld [vmem:[#allocation4 + $0x11c0] sm:$0xff]
    %v649 = vld [vmem:[#allocation4 + $0x11c8] sm:$0xff]
    %v650 = vld [vmem:[#allocation4 + $0x11d0] sm:$0xff]
    %v651 = vld [vmem:[#allocation4 + $0x11d8] sm:$0xff]
    %v652 = vld [vmem:[#allocation4 + $0x11e0] sm:$0xff]
    %v653 = vld [vmem:[#allocation4 + $0x11e8] sm:$0xff]
    %v654 = vld [vmem:[#allocation4 + $0x11f0] sm:$0xff]
    %v655 = vld [vmem:[#allocation4 + $0x11f8] sm:$0xff]
    %v656 = vld [vmem:[#allocation4 + $0x1200] sm:$0xff]
    %v657 = vld [vmem:[#allocation4 + $0x1208] sm:$0xff]
    %v658 = vld [vmem:[#allocation4 + $0x1210] sm:$0xff]
    %v659 = vld [vmem:[#allocation4 + $0x1218] sm:$0xff]
    %v660 = vld [vmem:[#allocation4 + $0x1220] sm:$0xff]
    %v661 = vld [vmem:[#allocation4 + $0x1228] sm:$0xff]
    %v662 = vld [vmem:[#allocation4 + $0x1230] sm:$0xff]
    %v663 = vld [vmem:[#allocation4 + $0x1238] sm:$0xff]
    %v664 = vld [vmem:[#allocation4 + $0x1240] sm:$0xff]
    %v665 = vld [vmem:[#allocation4 + $0x1248] sm:$0xff]
    %v666 = vld [vmem:[#allocation4 + $0x1250] sm:$0xff]
    %v667 = vld [vmem:[#allocation4 + $0x1258] sm:$0xff]
    %v668 = vld [vmem:[#allocation4 + $0x1260] sm:$0xff]
    %v669 = vld [vmem:[#allocation4 + $0x1268] sm:$0xff]
    %v670 = vld [vmem:[#allocation4 + $0x1270] sm:$0xff]
    %v671 = vld [vmem:[#allocation4 + $0x1278] sm:$0xff]
    %v672 = vld [vmem:[#allocation4 + $0x1280] sm:$0xff]
    %v673 = vld [vmem:[#allocation4 + $0x1288] sm:$0xff]
    %v674 = vld [vmem:[#allocation4 + $0x1290] sm:$0xff]
    %v675 = vld [vmem:[#allocation4 + $0x1298] sm:$0xff]
    %v676 = vld [vmem:[#allocation4 + $0x12a0] sm:$0xff]
    %v677 = vld [vmem:[#allocation4 + $0x12a8] sm:$0xff]
    %v678 = vld [vmem:[#allocation4 + $0x12b0] sm:$0xff]
    %v679 = vld [vmem:[#allocation4 + $0x12b8] sm:$0xff]
    %v680 = vld [vmem:[#allocation4 + $0x12c0] sm:$0xff]
    %v681 = vld [vmem:[#allocation4 + $0x12c8] sm:$0xff]
    %v682 = vld [vmem:[#allocation4 + $0x12d0] sm:$0xff]
    %v683 = vld [vmem:[#allocation4 + $0x12d8] sm:$0xff]
    %v684 = vld [vmem:[#allocation4 + $0x12e0] sm:$0xff]
    %v685 = vld [vmem:[#allocation4 + $0x12e8] sm:$0xff]
    %v686 = vld [vmem:[#allocation4 + $0x12f0] sm:$0xff]
    %v687 = vld [vmem:[#allocation4 + $0x12f8] sm:$0xff]
    %v688 = vld [vmem:[#allocation4 + $0x1300] sm:$0xff]
    %v689 = vld [vmem:[#allocation4 + $0x1308] sm:$0xff]
    %v690 = vld [vmem:[#allocation4 + $0x1310] sm:$0xff]
    %v691 = vld [vmem:[#allocation4 + $0x1318] sm:$0xff]
    %v692 = vld [vmem:[#allocation4 + $0x1320] sm:$0xff]
    %v693 = vld [vmem:[#allocation4 + $0x1328] sm:$0xff]
    %v694 = vld [vmem:[#allocation4 + $0x1330] sm:$0xff]
    %v695 = vld [vmem:[#allocation4 + $0x1338] sm:$0xff]
    %v696 = vld [vmem:[#allocation4 + $0x1340] sm:$0xff]
    %v697 = vld [vmem:[#allocation4 + $0x1348] sm:$0xff]
    %v698 = vld [vmem:[#allocation4 + $0x1350] sm:$0xff]
    %v699 = vld [vmem:[#allocation4 + $0x1358] sm:$0xff]
    %v700 = vld [vmem:[#allocation4 + $0x1360] sm:$0xff]
    %v701 = vld [vmem:[#allocation4 + $0x1368] sm:$0xff]
    %v702 = vld [vmem:[#allocation4 + $0x1370] sm:$0xff]
    %v703 = vld [vmem:[#allocation4 + $0x1378] sm:$0xff]
    %v704 = vld [vmem:[#allocation4 + $0x1380] sm:$0xff]
    %v705 = vld [vmem:[#allocation4 + $0x1388] sm:$0xff]
    %v706 = vld [vmem:[#allocation4 + $0x1390] sm:$0xff]
    %v707 = vld [vmem:[#allocation4 + $0x1398] sm:$0xff]
    %v708 = vld [vmem:[#allocation4 + $0x13a0] sm:$0xff]
    %v709 = vld [vmem:[#allocation4 + $0x13a8] sm:$0xff]
    %v710 = vld [vmem:[#allocation4 + $0x13b0] sm:$0xff]
    %v711 = vld [vmem:[#allocation4 + $0x13b8] sm:$0xff]
    %v712 = vld [vmem:[#allocation4 + $0x13c0] sm:$0xff]
    %v713 = vld [vmem:[#allocation4 + $0x13c8] sm:$0xff]
    %v714 = vld [vmem:[#allocation4 + $0x13d0] sm:$0xff]
    %v715 = vld [vmem:[#allocation4 + $0x13d8] sm:$0xff]
    %v716 = vld [vmem:[#allocation4 + $0x13e0] sm:$0xff]
    %v717 = vld [vmem:[#allocation4 + $0x13e8] sm:$0xff]
    %v718 = vld [vmem:[#allocation4 + $0x13f0] sm:$0xff]
    %v719 = vld [vmem:[#allocation4 + $0x13f8] sm:$0xff]
    %v720 = vld [vmem:[#allocation4 + $0x1400] sm:$0xff]
    %v721 = vld [vmem:[#allocation4 + $0x1408] sm:$0xff]
    %v722 = vld [vmem:[#allocation4 + $0x1410] sm:$0xff]
    %v723 = vld [vmem:[#allocation4 + $0x1418] sm:$0xff]
    %v724 = vld [vmem:[#allocation4 + $0x1420] sm:$0xff]
    %v725 = vld [vmem:[#allocation4 + $0x1428] sm:$0xff]
    %v726 = vld [vmem:[#allocation4 + $0x1430] sm:$0xff]
    %v727 = vld [vmem:[#allocation4 + $0x1438] sm:$0xff]
    %v728 = vld [vmem:[#allocation4 + $0x1440] sm:$0xff]
    %v729 = vld [vmem:[#allocation4 + $0x1448] sm:$0xff]
    %v730 = vld [vmem:[#allocation4 + $0x1450] sm:$0xff]
    %v731 = vld [vmem:[#allocation4 + $0x1458] sm:$0xff]
    %v732 = vld [vmem:[#allocation4 + $0x1460] sm:$0xff]
    %v733 = vld [vmem:[#allocation4 + $0x1468] sm:$0xff]
    %v734 = vld [vmem:[#allocation4 + $0x1470] sm:$0xff]
    %v735 = vld [vmem:[#allocation4 + $0x1478] sm:$0xff]
    %v736 = vld [vmem:[#allocation4 + $0x1480] sm:$0xff]
    %v737 = vld [vmem:[#allocation4 + $0x1488] sm:$0xff]
    %v738 = vld [vmem:[#allocation4 + $0x1490] sm:$0xff]
    %v739 = vld [vmem:[#allocation4 + $0x1498] sm:$0xff]
    %v740 = vld [vmem:[#allocation4 + $0x14a0] sm:$0xff]
    %v741 = vld [vmem:[#allocation4 + $0x14a8] sm:$0xff]
    %v742 = vld [vmem:[#allocation4 + $0x14b0] sm:$0xff]
    %v743 = vld [vmem:[#allocation4 + $0x14b8] sm:$0xff]
    %v744 = vld [vmem:[#allocation4 + $0x14c0] sm:$0xff]
    %v745 = vld [vmem:[#allocation4 + $0x14c8] sm:$0xff]
    %v746 = vld [vmem:[#allocation4 + $0x14d0] sm:$0xff]
    %v747 = vld [vmem:[#allocation4 + $0x14d8] sm:$0xff]
    %v748 = vld [vmem:[#allocation4 + $0x14e0] sm:$0xff]
    %v749 = vld [vmem:[#allocation4 + $0x14e8] sm:$0xff]
    %v750 = vld [vmem:[#allocation4 + $0x14f0] sm:$0xff]
    %v751 = vld [vmem:[#allocation4 + $0x14f8] sm:$0xff]
    %v752 = vld [vmem:[#allocation4 + $0x1500] sm:$0xff]
    %v753 = vld [vmem:[#allocation4 + $0x1508] sm:$0xff]
    %v754 = vld [vmem:[#allocation4 + $0x1510] sm:$0xff]
    %v755 = vld [vmem:[#allocation4 + $0x1518] sm:$0xff]
    %v756 = vld [vmem:[#allocation4 + $0x1520] sm:$0xff]
    %v757 = vld [vmem:[#allocation4 + $0x1528] sm:$0xff]
    %v758 = vld [vmem:[#allocation4 + $0x1530] sm:$0xff]
    %v759 = vld [vmem:[#allocation4 + $0x1538] sm:$0xff]
    %v760 = vld [vmem:[#allocation4 + $0x1540] sm:$0xff]
    %v761 = vld [vmem:[#allocation4 + $0x1548] sm:$0xff]
    %v762 = vld [vmem:[#allocation4 + $0x1550] sm:$0xff]
    %v763 = vld [vmem:[#allocation4 + $0x1558] sm:$0xff]
    %v764 = vld [vmem:[#allocation4 + $0x1560] sm:$0xff]
    %v765 = vld [vmem:[#allocation4 + $0x1568] sm:$0xff]
    %v766 = vld [vmem:[#allocation4 + $0x1570] sm:$0xff]
    %v767 = vld [vmem:[#allocation4 + $0x1578] sm:$0xff]
    %v768 = vld [vmem:[#allocation4 + $0x1580] sm:$0xff]
    %v769 = vld [vmem:[#allocation4 + $0x1588] sm:$0xff]
    %v770 = vld [vmem:[#allocation4 + $0x1590] sm:$0xff]
    %v771 = vld [vmem:[#allocation4 + $0x1598] sm:$0xff]
    %v772 = vld [vmem:[#allocation4 + $0x15a0] sm:$0xff]
    %v773 = vld [vmem:[#allocation4 + $0x15a8] sm:$0xff]
    %v774 = vld [vmem:[#allocation4 + $0x15b0] sm:$0xff]
    %v775 = vld [vmem:[#allocation4 + $0x15b8] sm:$0xff]
    %v776 = vld [vmem:[#allocation4 + $0x15c0] sm:$0xff]
    %v777 = vld [vmem:[#allocation4 + $0x15c8] sm:$0xff]
    %v778 = vld [vmem:[#allocation4 + $0x15d0] sm:$0xff]
    %v779 = vld [vmem:[#allocation4 + $0x15d8] sm:$0xff]
    %v780 = vld [vmem:[#allocation4 + $0x15e0] sm:$0xff]
    %v781 = vld [vmem:[#allocation4 + $0x15e8] sm:$0xff]
    %v782 = vld [vmem:[#allocation4 + $0x15f0] sm:$0xff]
    %v783 = vld [vmem:[#allocation4 + $0x15f8] sm:$0xff]
    %v784 = vld [vmem:[#allocation4 + $0x1600] sm:$0xff]
    %v785 = vld [vmem:[#allocation4 + $0x1608] sm:$0xff]
    %v786 = vld [vmem:[#allocation4 + $0x1610] sm:$0xff]
    %v787 = vld [vmem:[#allocation4 + $0x1618] sm:$0xff]
    %v788 = vld [vmem:[#allocation4 + $0x1620] sm:$0xff]
    %v789 = vld [vmem:[#allocation4 + $0x1628] sm:$0xff]
    %v790 = vld [vmem:[#allocation4 + $0x1630] sm:$0xff]
    %v791 = vld [vmem:[#allocation4 + $0x1638] sm:$0xff]
    %v792 = vld [vmem:[#allocation4 + $0x1640] sm:$0xff]
    %v793 = vld [vmem:[#allocation4 + $0x1648] sm:$0xff]
    %v794 = vld [vmem:[#allocation4 + $0x1650] sm:$0xff]
    %v795 = vld [vmem:[#allocation4 + $0x1658] sm:$0xff]
    %v796 = vld [vmem:[#allocation4 + $0x1660] sm:$0xff]
    %v797 = vld [vmem:[#allocation4 + $0x1668] sm:$0xff]
    %v798 = vld [vmem:[#allocation4 + $0x1670] sm:$0xff]
    %v799 = vld [vmem:[#allocation4 + $0x1678] sm:$0xff]
    %v800 = vld [vmem:[#allocation4 + $0x1680] sm:$0xff]
    %v801 = vld [vmem:[#allocation4 + $0x1688] sm:$0xff]
    %v802 = vld [vmem:[#allocation4 + $0x1690] sm:$0xff]
    %v803 = vld [vmem:[#allocation4 + $0x1698] sm:$0xff]
    %v804 = vld [vmem:[#allocation4 + $0x16a0] sm:$0xff]
    %v805 = vld [vmem:[#allocation4 + $0x16a8] sm:$0xff]
    %v806 = vld [vmem:[#allocation4 + $0x16b0] sm:$0xff]
    %v807 = vld [vmem:[#allocation4 + $0x16b8] sm:$0xff]
    %v808 = vld [vmem:[#allocation4 + $0x16c0] sm:$0xff]
    %v809 = vld [vmem:[#allocation4 + $0x16c8] sm:$0xff]
    %v810 = vld [vmem:[#allocation4 + $0x16d0] sm:$0xff]
    %v811 = vld [vmem:[#allocation4 + $0x16d8] sm:$0xff]
    %v812 = vld [vmem:[#allocation4 + $0x16e0] sm:$0xff]
    %v813 = vld [vmem:[#allocation4 + $0x16e8] sm:$0xff]
    %v814 = vld [vmem:[#allocation4 + $0x16f0] sm:$0xff]
    %v815 = vld [vmem:[#allocation4 + $0x16f8] sm:$0xff]
    %v816 = vld [vmem:[#allocation4 + $0x1700] sm:$0xff]
    %v817 = vld [vmem:[#allocation4 + $0x1708] sm:$0xff]
    %v818 = vld [vmem:[#allocation4 + $0x1710] sm:$0xff]
    %v819 = vld [vmem:[#allocation4 + $0x1718] sm:$0xff]
    %v820 = vld [vmem:[#allocation4 + $0x1720] sm:$0xff]
    %v821 = vld [vmem:[#allocation4 + $0x1728] sm:$0xff]
    %v822 = vld [vmem:[#allocation4 + $0x1730] sm:$0xff]
    %v823 = vld [vmem:[#allocation4 + $0x1738] sm:$0xff]
    %v824 = vld [vmem:[#allocation4 + $0x1740] sm:$0xff]
    %v825 = vld [vmem:[#allocation4 + $0x1748] sm:$0xff]
    %v826 = vld [vmem:[#allocation4 + $0x1750] sm:$0xff]
    %v827 = vld [vmem:[#allocation4 + $0x1758] sm:$0xff]
    %v828 = vld [vmem:[#allocation4 + $0x1760] sm:$0xff]
    %v829 = vld [vmem:[#allocation4 + $0x1768] sm:$0xff]
    %v830 = vld [vmem:[#allocation4 + $0x1770] sm:$0xff]
    %v831 = vld [vmem:[#allocation4 + $0x1778] sm:$0xff]
    %v832 = vld [vmem:[#allocation4 + $0x1780] sm:$0xff]
    %v833 = vld [vmem:[#allocation4 + $0x1788] sm:$0xff]
    %v834 = vld [vmem:[#allocation4 + $0x1790] sm:$0xff]
    %v835 = vld [vmem:[#allocation4 + $0x1798] sm:$0xff]
    %v836 = vld [vmem:[#allocation4 + $0x17a0] sm:$0xff]
    %v837 = vld [vmem:[#allocation4 + $0x17a8] sm:$0xff]
    %v838 = vld [vmem:[#allocation4 + $0x17b0] sm:$0xff]
    %v839 = vld [vmem:[#allocation4 + $0x17b8] sm:$0xff]
    %v840 = vld [vmem:[#allocation4 + $0x17c0] sm:$0xff]
    %v841 = vld [vmem:[#allocation4 + $0x17c8] sm:$0xff]
    %v842 = vld [vmem:[#allocation4 + $0x17d0] sm:$0xff]
    %v843 = vld [vmem:[#allocation4 + $0x17d8] sm:$0xff]
    %v844 = vld [vmem:[#allocation4 + $0x17e0] sm:$0xff]
    %v845 = vld [vmem:[#allocation4 + $0x17e8] sm:$0xff]
    %v846 = vld [vmem:[#allocation4 + $0x17f0] sm:$0xff]
    %v847 = vld [vmem:[#allocation4 + $0x17f8] sm:$0xff]
    %v848 = vld [vmem:[#allocation4 + $0x1800] sm:$0xff]
    %v849 = vld [vmem:[#allocation4 + $0x1808] sm:$0xff]
    %v850 = vld [vmem:[#allocation4 + $0x1810] sm:$0xff]
    %v851 = vld [vmem:[#allocation4 + $0x1818] sm:$0xff]
    %v852 = vld [vmem:[#allocation4 + $0x1820] sm:$0xff]
    %v853 = vld [vmem:[#allocation4 + $0x1828] sm:$0xff]
    %v854 = vld [vmem:[#allocation4 + $0x1830] sm:$0xff]
    %v855 = vld [vmem:[#allocation4 + $0x1838] sm:$0xff]
    %v856 = vld [vmem:[#allocation4 + $0x1840] sm:$0xff]
    %v857 = vld [vmem:[#allocation4 + $0x1848] sm:$0xff]
    %v858 = vld [vmem:[#allocation4 + $0x1850] sm:$0xff]
    %v859 = vld [vmem:[#allocation4 + $0x1858] sm:$0xff]
    %v860 = vld [vmem:[#allocation4 + $0x1860] sm:$0xff]
    %v861 = vld [vmem:[#allocation4 + $0x1868] sm:$0xff]
    %v862 = vld [vmem:[#allocation4 + $0x1870] sm:$0xff]
    %v863 = vld [vmem:[#allocation4 + $0x1878] sm:$0xff]
    %v864 = vld [vmem:[#allocation4 + $0x1880] sm:$0xff]
    %v865 = vld [vmem:[#allocation4 + $0x1888] sm:$0xff]
    %v866 = vld [vmem:[#allocation4 + $0x1890] sm:$0xff]
    %v867 = vld [vmem:[#allocation4 + $0x1898] sm:$0xff]
    %v868 = vld [vmem:[#allocation4 + $0x18a0] sm:$0xff]
    %v869 = vld [vmem:[#allocation4 + $0x18a8] sm:$0xff]
    %v870 = vld [vmem:[#allocation4 + $0x18b0] sm:$0xff]
    %v871 = vld [vmem:[#allocation4 + $0x18b8] sm:$0xff]
    %v872 = vld [vmem:[#allocation4 + $0x18c0] sm:$0xff]
    %v873 = vld [vmem:[#allocation4 + $0x18c8] sm:$0xff]
    %v874 = vld [vmem:[#allocation4 + $0x18d0] sm:$0xff]
    %v875 = vld [vmem:[#allocation4 + $0x18d8] sm:$0xff]
    %v876 = vld [vmem:[#allocation4 + $0x18e0] sm:$0xff]
    %v877 = vld [vmem:[#allocation4 + $0x18e8] sm:$0xff]
    %v878 = vld [vmem:[#allocation4 + $0x18f0] sm:$0xff]
    %v879 = vld [vmem:[#allocation4 + $0x18f8] sm:$0xff]
    %v880 = vld [vmem:[#allocation4 + $0x1900] sm:$0xff]
    %v881 = vld [vmem:[#allocation4 + $0x1908] sm:$0xff]
    %v882 = vld [vmem:[#allocation4 + $0x1910] sm:$0xff]
    %v883 = vld [vmem:[#allocation4 + $0x1918] sm:$0xff]
    %v884 = vld [vmem:[#allocation4 + $0x1920] sm:$0xff]
    %v885 = vld [vmem:[#allocation4 + $0x1928] sm:$0xff]
    %v886 = vld [vmem:[#allocation4 + $0x1930] sm:$0xff]
    %v887 = vld [vmem:[#allocation4 + $0x1938] sm:$0xff]
    %v888 = vld [vmem:[#allocation4 + $0x1940] sm:$0xff]
    %v889 = vld [vmem:[#allocation4 + $0x1948] sm:$0xff]
    %v890 = vld [vmem:[#allocation4 + $0x1950] sm:$0xff]
    %v891 = vld [vmem:[#allocation4 + $0x1958] sm:$0xff]
    %v892 = vld [vmem:[#allocation4 + $0x1960] sm:$0xff]
    %v893 = vld [vmem:[#allocation4 + $0x1968] sm:$0xff]
    %v894 = vld [vmem:[#allocation4 + $0x1970] sm:$0xff]
    %v895 = vld [vmem:[#allocation4 + $0x1978] sm:$0xff]
    %v896 = vld [vmem:[#allocation4 + $0x1980] sm:$0xff]
    %v897 = vld [vmem:[#allocation4 + $0x1988] sm:$0xff]
    %v898 = vld [vmem:[#allocation4 + $0x1990] sm:$0xff]
    %v899 = vld [vmem:[#allocation4 + $0x1998] sm:$0xff]
    %v900 = vld [vmem:[#allocation4 + $0x19a0] sm:$0xff]
    %v901 = vld [vmem:[#allocation4 + $0x19a8] sm:$0xff]
    %v902 = vld [vmem:[#allocation4 + $0x19b0] sm:$0xff]
    %v903 = vld [vmem:[#allocation4 + $0x19b8] sm:$0xff]
    %v904 = vld [vmem:[#allocation4 + $0x19c0] sm:$0xff]
    %v905 = vld [vmem:[#allocation4 + $0x19c8] sm:$0xff]
    %v906 = vld [vmem:[#allocation4 + $0x19d0] sm:$0xff]
    %v907 = vld [vmem:[#allocation4 + $0x19d8] sm:$0xff]
    %v908 = vld [vmem:[#allocation4 + $0x19e0] sm:$0xff]
    %v909 = vld [vmem:[#allocation4 + $0x19e8] sm:$0xff]
    %v910 = vld [vmem:[#allocation4 + $0x19f0] sm:$0xff]
    %v911 = vld [vmem:[#allocation4 + $0x19f8] sm:$0xff]
    %v912 = vld [vmem:[#allocation4 + $0x1a00] sm:$0xff]
    %v913 = vld [vmem:[#allocation4 + $0x1a08] sm:$0xff]
    %v914 = vld [vmem:[#allocation4 + $0x1a10] sm:$0xff]
    %v915 = vld [vmem:[#allocation4 + $0x1a18] sm:$0xff]
    %v916 = vld [vmem:[#allocation4 + $0x1a20] sm:$0xff]
    %v917 = vld [vmem:[#allocation4 + $0x1a28] sm:$0xff]
    %v918 = vld [vmem:[#allocation4 + $0x1a30] sm:$0xff]
    %v919 = vld [vmem:[#allocation4 + $0x1a38] sm:$0xff]
    %v920 = vld [vmem:[#allocation4 + $0x1a40] sm:$0xff]
    %v921 = vld [vmem:[#allocation4 + $0x1a48] sm:$0xff]
    %v922 = vld [vmem:[#allocation4 + $0x1a50] sm:$0xff]
    %v923 = vld [vmem:[#allocation4 + $0x1a58] sm:$0xff]
    %v924 = vld [vmem:[#allocation4 + $0x1a60] sm:$0xff]
    %v925 = vld [vmem:[#allocation4 + $0x1a68] sm:$0xff]
    %v926 = vld [vmem:[#allocation4 + $0x1a70] sm:$0xff]
    %v927 = vld [vmem:[#allocation4 + $0x1a78] sm:$0xff]
    %v928 = vld [vmem:[#allocation4 + $0x1a80] sm:$0xff]
    %v929 = vld [vmem:[#allocation4 + $0x1a88] sm:$0xff]
    %v930 = vld [vmem:[#allocation4 + $0x1a90] sm:$0xff]
    %v931 = vld [vmem:[#allocation4 + $0x1a98] sm:$0xff]
    %v932 = vld [vmem:[#allocation4 + $0x1aa0] sm:$0xff]
    %v933 = vld [vmem:[#allocation4 + $0x1aa8] sm:$0xff]
    %v934 = vld [vmem:[#allocation4 + $0x1ab0] sm:$0xff]
    %v935 = vld [vmem:[#allocation4 + $0x1ab8] sm:$0xff]
    %v936 = vld [vmem:[#allocation4 + $0x1ac0] sm:$0xff]
    %v937 = vld [vmem:[#allocation4 + $0x1ac8] sm:$0xff]
    %v938 = vld [vmem:[#allocation4 + $0x1ad0] sm:$0xff]
    %v939 = vld [vmem:[#allocation4 + $0x1ad8] sm:$0xff]
    %v940 = vld [vmem:[#allocation4 + $0x1ae0] sm:$0xff]
    %v941 = vld [vmem:[#allocation4 + $0x1ae8] sm:$0xff]
    %v942 = vld [vmem:[#allocation4 + $0x1af0] sm:$0xff]
    %v943 = vld [vmem:[#allocation4 + $0x1af8] sm:$0xff]
    %v944 = vld [vmem:[#allocation4 + $0x1b00] sm:$0xff]
    %v945 = vld [vmem:[#allocation4 + $0x1b08] sm:$0xff]
    %v946 = vld [vmem:[#allocation4 + $0x1b10] sm:$0xff]
    %v947 = vld [vmem:[#allocation4 + $0x1b18] sm:$0xff]
    %v948 = vld [vmem:[#allocation4 + $0x1b20] sm:$0xff]
    %v949 = vld [vmem:[#allocation4 + $0x1b28] sm:$0xff]
    %v950 = vld [vmem:[#allocation4 + $0x1b30] sm:$0xff]
    %v951 = vld [vmem:[#allocation4 + $0x1b38] sm:$0xff]
    %v952 = vld [vmem:[#allocation4 + $0x1b40] sm:$0xff]
    %v953 = vld [vmem:[#allocation4 + $0x1b48] sm:$0xff]
    %v954 = vld [vmem:[#allocation4 + $0x1b50] sm:$0xff]
    %v955 = vld [vmem:[#allocation4 + $0x1b58] sm:$0xff]
    %v956 = vld [vmem:[#allocation4 + $0x1b60] sm:$0xff]
    %v957 = vld [vmem:[#allocation4 + $0x1b68] sm:$0xff]
    %v958 = vld [vmem:[#allocation4 + $0x1b70] sm:$0xff]
    %v959 = vld [vmem:[#allocation4 + $0x1b78] sm:$0xff]
    %v960 = vld [vmem:[#allocation4 + $0x1b80] sm:$0xff]
    %v961 = vld [vmem:[#allocation4 + $0x1b88] sm:$0xff]
    %v962 = vld [vmem:[#allocation4 + $0x1b90] sm:$0xff]
    %v963 = vld [vmem:[#allocation4 + $0x1b98] sm:$0xff]
    %v964 = vld [vmem:[#allocation4 + $0x1ba0] sm:$0xff]
    %v965 = vld [vmem:[#allocation4 + $0x1ba8] sm:$0xff]
    %v966 = vld [vmem:[#allocation4 + $0x1bb0] sm:$0xff]
    %v967 = vld [vmem:[#allocation4 + $0x1bb8] sm:$0xff]
    %v968 = vld [vmem:[#allocation4 + $0x1bc0] sm:$0xff]
    %v969 = vld [vmem:[#allocation4 + $0x1bc8] sm:$0xff]
    %v970 = vld [vmem:[#allocation4 + $0x1bd0] sm:$0xff]
    %v971 = vld [vmem:[#allocation4 + $0x1bd8] sm:$0xff]
    %v972 = vld [vmem:[#allocation4 + $0x1be0] sm:$0xff]
    %v973 = vld [vmem:[#allocation4 + $0x1be8] sm:$0xff]
    %v974 = vld [vmem:[#allocation4 + $0x1bf0] sm:$0xff]
    %v975 = vld [vmem:[#allocation4 + $0x1bf8] sm:$0xff]
    %v976 = vld [vmem:[#allocation4 + $0x1c00] sm:$0xff]
    %v977 = vld [vmem:[#allocation4 + $0x1c08] sm:$0xff]
    %v978 = vld [vmem:[#allocation4 + $0x1c10] sm:$0xff]
    %v979 = vld [vmem:[#allocation4 + $0x1c18] sm:$0xff]
    %v980 = vld [vmem:[#allocation4 + $0x1c20] sm:$0xff]
    %v981 = vld [vmem:[#allocation4 + $0x1c28] sm:$0xff]
    %v982 = vld [vmem:[#allocation4 + $0x1c30] sm:$0xff]
    %v983 = vld [vmem:[#allocation4 + $0x1c38] sm:$0xff]
    %v984 = vld [vmem:[#allocation4 + $0x1c40] sm:$0xff]
    %v985 = vld [vmem:[#allocation4 + $0x1c48] sm:$0xff]
    %v986 = vld [vmem:[#allocation4 + $0x1c50] sm:$0xff]
    %v987 = vld [vmem:[#allocation4 + $0x1c58] sm:$0xff]
    %v988 = vld [vmem:[#allocation4 + $0x1c60] sm:$0xff]
    %v989 = vld [vmem:[#allocation4 + $0x1c68] sm:$0xff]
    %v990 = vld [vmem:[#allocation4 + $0x1c70] sm:$0xff]
    %v991 = vld [vmem:[#allocation4 + $0x1c78] sm:$0xff]
    %v992 = vld [vmem:[#allocation4 + $0x1c80] sm:$0xff]
    %v993 = vld [vmem:[#allocation4 + $0x1c88] sm:$0xff]
    %v994 = vld [vmem:[#allocation4 + $0x1c90] sm:$0xff]
    %v995 = vld [vmem:[#allocation4 + $0x1c98] sm:$0xff]
    %v996 = vld [vmem:[#allocation4 + $0x1ca0] sm:$0xff]
    %v997 = vld [vmem:[#allocation4 + $0x1ca8] sm:$0xff]
    %v998 = vld [vmem:[#allocation4 + $0x1cb0] sm:$0xff]
    %v999 = vld [vmem:[#allocation4 + $0x1cb8] sm:$0xff]
    %v1000 = vld [vmem:[#allocation4 + $0x1cc0] sm:$0xff]
    %v1001 = vld [vmem:[#allocation4 + $0x1cc8] sm:$0xff]
    %v1002 = vld [vmem:[#allocation4 + $0x1cd0] sm:$0xff]
    %v1003 = vld [vmem:[#allocation4 + $0x1cd8] sm:$0xff]
    %v1004 = vld [vmem:[#allocation4 + $0x1ce0] sm:$0xff]
    %v1005 = vld [vmem:[#allocation4 + $0x1ce8] sm:$0xff]
    %v1006 = vld [vmem:[#allocation4 + $0x1cf0] sm:$0xff]
    %v1007 = vld [vmem:[#allocation4 + $0x1cf8] sm:$0xff]
    %v1008 = vld [vmem:[#allocation4 + $0x1d00] sm:$0xff]
    %v1009 = vld [vmem:[#allocation4 + $0x1d08] sm:$0xff]
    %v1010 = vld [vmem:[#allocation4 + $0x1d10] sm:$0xff]
    %v1011 = vld [vmem:[#allocation4 + $0x1d18] sm:$0xff]
    %v1012 = vld [vmem:[#allocation4 + $0x1d20] sm:$0xff]
    %v1013 = vld [vmem:[#allocation4 + $0x1d28] sm:$0xff]
    %v1014 = vld [vmem:[#allocation4 + $0x1d30] sm:$0xff]
    %v1015 = vld [vmem:[#allocation4 + $0x1d38] sm:$0xff]
    %v1016 = vld [vmem:[#allocation4 + $0x1d40] sm:$0xff]
    %v1017 = vld [vmem:[#allocation4 + $0x1d48] sm:$0xff]
    %v1018 = vld [vmem:[#allocation4 + $0x1d50] sm:$0xff]
    %v1019 = vld [vmem:[#allocation4 + $0x1d58] sm:$0xff]
    %v1020 = vld [vmem:[#allocation4 + $0x1d60] sm:$0xff]
    %v1021 = vld [vmem:[#allocation4 + $0x1d68] sm:$0xff]
    %v1022 = vld [vmem:[#allocation4 + $0x1d70] sm:$0xff]
    %v1023 = vld [vmem:[#allocation4 + $0x1d78] sm:$0xff]
    %v1024 = vld [vmem:[#allocation4 + $0x1d80] sm:$0xff]
    %v1025 = vld [vmem:[#allocation4 + $0x1d88] sm:$0xff]
    %v1026 = vld [vmem:[#allocation4 + $0x1d90] sm:$0xff]
    %v1027 = vld [vmem:[#allocation4 + $0x1d98] sm:$0xff]
    %v1028 = vld [vmem:[#allocation4 + $0x1da0] sm:$0xff]
    %v1029 = vld [vmem:[#allocation4 + $0x1da8] sm:$0xff]
    %v1030 = vld [vmem:[#allocation4 + $0x1db0] sm:$0xff]
    %v1031 = vld [vmem:[#allocation4 + $0x1db8] sm:$0xff]
    %v1032 = vld [vmem:[#allocation4 + $0x1dc0] sm:$0xff]
    %v1033 = vld [vmem:[#allocation4 + $0x1dc8] sm:$0xff]
    %v1034 = vld [vmem:[#allocation4 + $0x1dd0] sm:$0xff]
    %v1035 = vld [vmem:[#allocation4 + $0x1dd8] sm:$0xff]
    %v1036 = vld [vmem:[#allocation4 + $0x1de0] sm:$0xff]
    %v1037 = vld [vmem:[#allocation4 + $0x1de8] sm:$0xff]
    %v1038 = vld [vmem:[#allocation4 + $0x1df0] sm:$0xff]
    %v1039 = vld [vmem:[#allocation4 + $0x1df8] sm:$0xff]
    %v1040 = vld [vmem:[#allocation4 + $0x1e00] sm:$0xff]
    %v1041 = vld [vmem:[#allocation4 + $0x1e08] sm:$0xff]
    %v1042 = vld [vmem:[#allocation4 + $0x1e10] sm:$0xff]
    %v1043 = vld [vmem:[#allocation4 + $0x1e18] sm:$0xff]
    %v1044 = vld [vmem:[#allocation4 + $0x1e20] sm:$0xff]
    %v1045 = vld [vmem:[#allocation4 + $0x1e28] sm:$0xff]
    %v1046 = vld [vmem:[#allocation4 + $0x1e30] sm:$0xff]
    %v1047 = vld [vmem:[#allocation4 + $0x1e38] sm:$0xff]
    %v1048 = vld [vmem:[#allocation4 + $0x1e40] sm:$0xff]
    %v1049 = vld [vmem:[#allocation4 + $0x1e48] sm:$0xff]
    %v1050 = vld [vmem:[#allocation4 + $0x1e50] sm:$0xff]
    %v1051 = vld [vmem:[#allocation4 + $0x1e58] sm:$0xff]
    %v1052 = vld [vmem:[#allocation4 + $0x1e60] sm:$0xff]
    %v1053 = vld [vmem:[#allocation4 + $0x1e68] sm:$0xff]
    %v1054 = vld [vmem:[#allocation4 + $0x1e70] sm:$0xff]
    %v1055 = vld [vmem:[#allocation4 + $0x1e78] sm:$0xff]
    %v1056 = vld [vmem:[#allocation4 + $0x1e80] sm:$0xff]
    %v1057 = vld [vmem:[#allocation4 + $0x1e88] sm:$0xff]
    %v1058 = vld [vmem:[#allocation4 + $0x1e90] sm:$0xff]
    %v1059 = vld [vmem:[#allocation4 + $0x1e98] sm:$0xff]
    %v1060 = vld [vmem:[#allocation4 + $0x1ea0] sm:$0xff]
    %v1061 = vld [vmem:[#allocation4 + $0x1ea8] sm:$0xff]
    %v1062 = vld [vmem:[#allocation4 + $0x1eb0] sm:$0xff]
    %v1063 = vld [vmem:[#allocation4 + $0x1eb8] sm:$0xff]
    %v1064 = vld [vmem:[#allocation4 + $0x1ec0] sm:$0xff]
    %v1065 = vld [vmem:[#allocation4 + $0x1ec8] sm:$0xff]
    %v1066 = vld [vmem:[#allocation4 + $0x1ed0] sm:$0xff]
    %v1067 = vld [vmem:[#allocation4 + $0x1ed8] sm:$0xff]
    %v1068 = vld [vmem:[#allocation4 + $0x1ee0] sm:$0xff]
    %v1069 = vld [vmem:[#allocation4 + $0x1ee8] sm:$0xff]
    %v1070 = vld [vmem:[#allocation4 + $0x1ef0] sm:$0xff]
    %v1071 = vld [vmem:[#allocation4 + $0x1ef8] sm:$0xff]
    %v1072 = vld [vmem:[#allocation4 + $0x1f00] sm:$0xff]
    %v1073 = vld [vmem:[#allocation4 + $0x1f08] sm:$0xff]
    %v1074 = vld [vmem:[#allocation4 + $0x1f10] sm:$0xff]
    %v1075 = vld [vmem:[#allocation4 + $0x1f18] sm:$0xff]
    %v1076 = vld [vmem:[#allocation4 + $0x1f20] sm:$0xff]
    %v1077 = vld [vmem:[#allocation4 + $0x1f28] sm:$0xff]
    %v1078 = vld [vmem:[#allocation4 + $0x1f30] sm:$0xff]
    %v1079 = vld [vmem:[#allocation4 + $0x1f38] sm:$0xff]
    %v1080 = vld [vmem:[#allocation4 + $0x1f40] sm:$0xff]
    %v1081 = vld [vmem:[#allocation4 + $0x1f48] sm:$0xff]
    %v1082 = vld [vmem:[#allocation4 + $0x1f50] sm:$0xff]
    %v1083 = vld [vmem:[#allocation4 + $0x1f58] sm:$0xff]
    %v1084 = vld [vmem:[#allocation4 + $0x1f60] sm:$0xff]
    %v1085 = vld [vmem:[#allocation4 + $0x1f68] sm:$0xff]
    %v1086 = vld [vmem:[#allocation4 + $0x1f70] sm:$0xff]
    %v1087 = vld [vmem:[#allocation4 + $0x1f78] sm:$0xff]
    %v1088 = vld [vmem:[#allocation4 + $0x1f80] sm:$0xff]
    %v1089 = vld [vmem:[#allocation4 + $0x1f88] sm:$0xff]
    %v1090 = vld [vmem:[#allocation4 + $0x1f90] sm:$0xff]
    %v1091 = vld [vmem:[#allocation4 + $0x1f98] sm:$0xff]
    %v1092 = vld [vmem:[#allocation4 + $0x1fa0] sm:$0xff]
    %v1093 = vld [vmem:[#allocation4 + $0x1fa8] sm:$0xff]
    %v1094 = vld [vmem:[#allocation4 + $0x1fb0] sm:$0xff]
    %v1095 = vld [vmem:[#allocation4 + $0x1fb8] sm:$0xff]
    %v1096 = vld [vmem:[#allocation4 + $0x1fc0] sm:$0xff]
    %v1097 = vld [vmem:[#allocation4 + $0x1fc8] sm:$0xff]
    %v1098 = vld [vmem:[#allocation4 + $0x1fd0] sm:$0xff]
    %v1099 = vld [vmem:[#allocation4 + $0x1fd8] sm:$0xff]
    %v1100 = vld [vmem:[#allocation4 + $0x1fe0] sm:$0xff]
    %v1101 = vld [vmem:[#allocation4 + $0x1fe8] sm:$0xff]
    %v1102 = vld [vmem:[#allocation4 + $0x1ff0] sm:$0xff]
    %v1103 = vld [vmem:[#allocation4 + $0x1ff8] sm:$0xff]
    %v1104 = vld [vmem:[#allocation6] sm:$0xff]
    %v1106 = vlaneseq
    %v1107 = vshrl.u32 %v1106, 7
    %v1108 = vsub.s32 0, %v1107
    %v1109 = vrot.slane %v1104, %v1108
    %v1110 = vlaneseq
    %v1111 = vshrl.u32 %v1110, 7
    %v1112 = vsub.s32 1, %v1111
    %v1113 = vrot.slane %v1104, %v1112
    %v1114 = vlaneseq
    %v1115 = vshrl.u32 %v1114, 7
    %v1116 = vsub.s32 2, %v1115
    %v1117 = vrot.slane %v1104, %v1116
    %v1118 = vlaneseq
    %v1119 = vshrl.u32 %v1118, 7
    %v1120 = vsub.s32 3, %v1119
    %v1121 = vrot.slane %v1104, %v1120
    %v1122 = vlaneseq
    %v1123 = vshrl.u32 %v1122, 7
    %v1124 = vsub.s32 4, %v1123
    %v1125 = vrot.slane %v1104, %v1124
    %v1126 = vlaneseq
    %v1127 = vshrl.u32 %v1126, 7
    %v1128 = vsub.s32 5, %v1127
    %v1129 = vrot.slane %v1104, %v1128
    %v1130 = vlaneseq
    %v1131 = vshrl.u32 %v1130, 7
    %v1132 = vsub.s32 6, %v1131
    %v1133 = vrot.slane %v1104, %v1132
    %v1134 = vlaneseq
    %v1135 = vshrl.u32 %v1134, 7
    %v1136 = vsub.s32 7, %v1135
    %v1137 = vrot.slane %v1104, %v1136
    %v1150 = vcombine.high %v76, %v76
    %v1152 = vunpack.c.l.s4 1983009808
    %v1153 = vunpack.c.0.s8 %v1152
    %v1154 = vlaneseq
    %v1155 = vshrl.u32 %v1154, 7
    %v1156 = vsub.s32 %v1153, %v1155
    %v1157 = vrot.slane %v76, %v1156
    %v1159 = vunpack.c.l.s4 1983009808
    %v1160 = vunpack.c.0.s8 %v1159
    %v1161 = vlaneseq
    %v1162 = vshrl.u32 %v1161, 7
    %v1163 = vsub.s32 %v1160, %v1162
    %v1164 = vrot.slane %v1150, %v1163
    %v1165 = vcombine.high %v1157, %v1157
    %v1166 = vcombine.high %v1164, %v1164
    %v1167 = vcombine.high %v77, %v77
    %v1169 = vunpack.c.l.s4 1983009808
    %v1170 = vunpack.c.0.s8 %v1169
    %v1171 = vlaneseq
    %v1172 = vshrl.u32 %v1171, 7
    %v1173 = vsub.s32 %v1170, %v1172
    %v1174 = vrot.slane %v77, %v1173
    %v1176 = vunpack.c.l.s4 1983009808
    %v1177 = vunpack.c.0.s8 %v1176
    %v1178 = vlaneseq
    %v1179 = vshrl.u32 %v1178, 7
    %v1180 = vsub.s32 %v1177, %v1179
    %v1181 = vrot.slane %v1167, %v1180
    %v1182 = vcombine.high %v1174, %v1174
    %v1183 = vcombine.high %v1181, %v1181
    %v1184 = vcombine.high %v78, %v78
    %v1186 = vunpack.c.l.s4 1983009808
    %v1187 = vunpack.c.0.s8 %v1186
    %v1188 = vlaneseq
    %v1189 = vshrl.u32 %v1188, 7
    %v1190 = vsub.s32 %v1187, %v1189
    %v1191 = vrot.slane %v78, %v1190
    %v1193 = vunpack.c.l.s4 1983009808
    %v1194 = vunpack.c.0.s8 %v1193
    %v1195 = vlaneseq
    %v1196 = vshrl.u32 %v1195, 7
    %v1197 = vsub.s32 %v1194, %v1196
    %v1198 = vrot.slane %v1184, %v1197
    %v1199 = vcombine.high %v1191, %v1191
    %v1200 = vcombine.high %v1198, %v1198
    %v1201 = vcombine.high %v79, %v79
    %v1203 = vunpack.c.l.s4 1983009808
    %v1204 = vunpack.c.0.s8 %v1203
    %v1205 = vlaneseq
    %v1206 = vshrl.u32 %v1205, 7
    %v1207 = vsub.s32 %v1204, %v1206
    %v1208 = vrot.slane %v79, %v1207
    %v1210 = vunpack.c.l.s4 1983009808
    %v1211 = vunpack.c.0.s8 %v1210
    %v1212 = vlaneseq
    %v1213 = vshrl.u32 %v1212, 7
    %v1214 = vsub.s32 %v1211, %v1213
    %v1215 = vrot.slane %v1201, %v1214
    %v1216 = vcombine.high %v1208, %v1208
    %v1217 = vcombine.high %v1215, %v1215
    %v2258 = vunpack.c.l.b16 %v80
    %v2259 = vunpack.c.h.b16 %v80
    %v2260 = vunpack.c.l.b16 %v81
    %v2261 = vunpack.c.h.b16 %v81
    %v2262 = vunpack.c.l.b16 %v82
    %v2263 = vunpack.c.h.b16 %v82
    %v2264 = vunpack.c.l.b16 %v83
    %v2265 = vunpack.c.h.b16 %v83
    %v2266 = vunpack.c.l.b16 %v84
    %v2267 = vunpack.c.h.b16 %v84
    %v2268 = vunpack.c.l.b16 %v85
    %v2269 = vunpack.c.h.b16 %v85
    %v2270 = vunpack.c.l.b16 %v86
    %v2271 = vunpack.c.h.b16 %v86
    %v2272 = vunpack.c.l.b16 %v87
    %v2273 = vunpack.c.h.b16 %v87
    %v2274 = vunpack.c.l.b16 %v88
    %v2275 = vunpack.c.h.b16 %v88
    %v2276 = vunpack.c.l.b16 %v89
    %v2277 = vunpack.c.h.b16 %v89
    %v2278 = vunpack.c.l.b16 %v90
    %v2279 = vunpack.c.h.b16 %v90
    %v2280 = vunpack.c.l.b16 %v91
    %v2281 = vunpack.c.h.b16 %v91
    %v2282 = vunpack.c.l.b16 %v92
    %v2283 = vunpack.c.h.b16 %v92
    %v2284 = vunpack.c.l.b16 %v93
    %v2285 = vunpack.c.h.b16 %v93
    %v2286 = vunpack.c.l.b16 %v94
    %v2287 = vunpack.c.h.b16 %v94
    %v2288 = vunpack.c.l.b16 %v95
    %v2289 = vunpack.c.h.b16 %v95
    %v2290 = vunpack.c.l.b16 %v96
    %v2291 = vunpack.c.h.b16 %v96
    %v2292 = vunpack.c.l.b16 %v97
    %v2293 = vunpack.c.h.b16 %v97
    %v2294 = vunpack.c.l.b16 %v98
    %v2295 = vunpack.c.h.b16 %v98
    %v2296 = vunpack.c.l.b16 %v99
    %v2297 = vunpack.c.h.b16 %v99
    %v2298 = vunpack.c.l.b16 %v100
    %v2299 = vunpack.c.h.b16 %v100
    %v2300 = vunpack.c.l.b16 %v101
    %v2301 = vunpack.c.h.b16 %v101
    %v2302 = vunpack.c.l.b16 %v102
    %v2303 = vunpack.c.h.b16 %v102
    %v2304 = vunpack.c.l.b16 %v103
    %v2305 = vunpack.c.h.b16 %v103
    %v2306 = vunpack.c.l.b16 %v104
    %v2307 = vunpack.c.h.b16 %v104
    %v2308 = vunpack.c.l.b16 %v105
    %v2309 = vunpack.c.h.b16 %v105
    %v2310 = vunpack.c.l.b16 %v106
    %v2311 = vunpack.c.h.b16 %v106
    %v2312 = vunpack.c.l.b16 %v107
    %v2313 = vunpack.c.h.b16 %v107
    %v2314 = vunpack.c.l.b16 %v108
    %v2315 = vunpack.c.h.b16 %v108
    %v2316 = vunpack.c.l.b16 %v109
    %v2317 = vunpack.c.h.b16 %v109
    %v2318 = vunpack.c.l.b16 %v110
    %v2319 = vunpack.c.h.b16 %v110
    %v2320 = vunpack.c.l.b16 %v111
    %v2321 = vunpack.c.h.b16 %v111
    %v2322 = vunpack.c.l.b16 %v112
    %v2323 = vunpack.c.h.b16 %v112
    %v2324 = vunpack.c.l.b16 %v113
    %v2325 = vunpack.c.h.b16 %v113
    %v2326 = vunpack.c.l.b16 %v114
    %v2327 = vunpack.c.h.b16 %v114
    %v2328 = vunpack.c.l.b16 %v115
    %v2329 = vunpack.c.h.b16 %v115
    %v2330 = vunpack.c.l.b16 %v116
    %v2331 = vunpack.c.h.b16 %v116
    %v2332 = vunpack.c.l.b16 %v117
    %v2333 = vunpack.c.h.b16 %v117
    %v2334 = vunpack.c.l.b16 %v118
    %v2335 = vunpack.c.h.b16 %v118
    %v2336 = vunpack.c.l.b16 %v119
    %v2337 = vunpack.c.h.b16 %v119
    %v2338 = vunpack.c.l.b16 %v120
    %v2339 = vunpack.c.h.b16 %v120
    %v2340 = vunpack.c.l.b16 %v121
    %v2341 = vunpack.c.h.b16 %v121
    %v2342 = vunpack.c.l.b16 %v122
    %v2343 = vunpack.c.h.b16 %v122
    %v2344 = vunpack.c.l.b16 %v123
    %v2345 = vunpack.c.h.b16 %v123
    %v2346 = vunpack.c.l.b16 %v124
    %v2347 = vunpack.c.h.b16 %v124
    %v2348 = vunpack.c.l.b16 %v125
    %v2349 = vunpack.c.h.b16 %v125
    %v2350 = vunpack.c.l.b16 %v126
    %v2351 = vunpack.c.h.b16 %v126
    %v2352 = vunpack.c.l.b16 %v127
    %v2353 = vunpack.c.h.b16 %v127
    %v2354 = vunpack.c.l.b16 %v128
    %v2355 = vunpack.c.h.b16 %v128
    %v2356 = vunpack.c.l.b16 %v129
    %v2357 = vunpack.c.h.b16 %v129
    %v2358 = vunpack.c.l.b16 %v130
    %v2359 = vunpack.c.h.b16 %v130
    %v2360 = vunpack.c.l.b16 %v131
    %v2361 = vunpack.c.h.b16 %v131
    %v2362 = vunpack.c.l.b16 %v132
    %v2363 = vunpack.c.h.b16 %v132
    %v2364 = vunpack.c.l.b16 %v133
    %v2365 = vunpack.c.h.b16 %v133
    %v2366 = vunpack.c.l.b16 %v134
    %v2367 = vunpack.c.h.b16 %v134
    %v2368 = vunpack.c.l.b16 %v135
    %v2369 = vunpack.c.h.b16 %v135
    %v2370 = vunpack.c.l.b16 %v136
    %v2371 = vunpack.c.h.b16 %v136
    %v2372 = vunpack.c.l.b16 %v137
    %v2373 = vunpack.c.h.b16 %v137
    %v2374 = vunpack.c.l.b16 %v138
    %v2375 = vunpack.c.h.b16 %v138
    %v2376 = vunpack.c.l.b16 %v139
    %v2377 = vunpack.c.h.b16 %v139
    %v2378 = vunpack.c.l.b16 %v140
    %v2379 = vunpack.c.h.b16 %v140
    %v2380 = vunpack.c.l.b16 %v141
    %v2381 = vunpack.c.h.b16 %v141
    %v2382 = vunpack.c.l.b16 %v142
    %v2383 = vunpack.c.h.b16 %v142
    %v2384 = vunpack.c.l.b16 %v143
    %v2385 = vunpack.c.h.b16 %v143
    %v2386 = vunpack.c.l.b16 %v144
    %v2387 = vunpack.c.h.b16 %v144
    %v2388 = vunpack.c.l.b16 %v145
    %v2389 = vunpack.c.h.b16 %v145
    %v2390 = vunpack.c.l.b16 %v146
    %v2391 = vunpack.c.h.b16 %v146
    %v2392 = vunpack.c.l.b16 %v147
    %v2393 = vunpack.c.h.b16 %v147
    %v2394 = vunpack.c.l.b16 %v148
    %v2395 = vunpack.c.h.b16 %v148
    %v2396 = vunpack.c.l.b16 %v149
    %v2397 = vunpack.c.h.b16 %v149
    %v2398 = vunpack.c.l.b16 %v150
    %v2399 = vunpack.c.h.b16 %v150
    %v2400 = vunpack.c.l.b16 %v151
    %v2401 = vunpack.c.h.b16 %v151
    %v2402 = vunpack.c.l.b16 %v152
    %v2403 = vunpack.c.h.b16 %v152
    %v2404 = vunpack.c.l.b16 %v153
    %v2405 = vunpack.c.h.b16 %v153
    %v2406 = vunpack.c.l.b16 %v154
    %v2407 = vunpack.c.h.b16 %v154
    %v2408 = vunpack.c.l.b16 %v155
    %v2409 = vunpack.c.h.b16 %v155
    %v2410 = vunpack.c.l.b16 %v156
    %v2411 = vunpack.c.h.b16 %v156
    %v2412 = vunpack.c.l.b16 %v157
    %v2413 = vunpack.c.h.b16 %v157
    %v2414 = vunpack.c.l.b16 %v158
    %v2415 = vunpack.c.h.b16 %v158
    %v2416 = vunpack.c.l.b16 %v159
    %v2417 = vunpack.c.h.b16 %v159
    %v2418 = vunpack.c.l.b16 %v160
    %v2419 = vunpack.c.h.b16 %v160
    %v2420 = vunpack.c.l.b16 %v161
    %v2421 = vunpack.c.h.b16 %v161
    %v2422 = vunpack.c.l.b16 %v162
    %v2423 = vunpack.c.h.b16 %v162
    %v2424 = vunpack.c.l.b16 %v163
    %v2425 = vunpack.c.h.b16 %v163
    %v2426 = vunpack.c.l.b16 %v164
    %v2427 = vunpack.c.h.b16 %v164
    %v2428 = vunpack.c.l.b16 %v165
    %v2429 = vunpack.c.h.b16 %v165
    %v2430 = vunpack.c.l.b16 %v166
    %v2431 = vunpack.c.h.b16 %v166
    %v2432 = vunpack.c.l.b16 %v167
    %v2433 = vunpack.c.h.b16 %v167
    %v2434 = vunpack.c.l.b16 %v168
    %v2435 = vunpack.c.h.b16 %v168
    %v2436 = vunpack.c.l.b16 %v169
    %v2437 = vunpack.c.h.b16 %v169
    %v2438 = vunpack.c.l.b16 %v170
    %v2439 = vunpack.c.h.b16 %v170
    %v2440 = vunpack.c.l.b16 %v171
    %v2441 = vunpack.c.h.b16 %v171
    %v2442 = vunpack.c.l.b16 %v172
    %v2443 = vunpack.c.h.b16 %v172
    %v2444 = vunpack.c.l.b16 %v173
    %v2445 = vunpack.c.h.b16 %v173
    %v2446 = vunpack.c.l.b16 %v174
    %v2447 = vunpack.c.h.b16 %v174
    %v2448 = vunpack.c.l.b16 %v175
    %v2449 = vunpack.c.h.b16 %v175
    %v2450 = vunpack.c.l.b16 %v176
    %v2451 = vunpack.c.h.b16 %v176
    %v2452 = vunpack.c.l.b16 %v177
    %v2453 = vunpack.c.h.b16 %v177
    %v2454 = vunpack.c.l.b16 %v178
    %v2455 = vunpack.c.h.b16 %v178
    %v2456 = vunpack.c.l.b16 %v179
    %v2457 = vunpack.c.h.b16 %v179
    %v2458 = vunpack.c.l.b16 %v180
    %v2459 = vunpack.c.h.b16 %v180
    %v2460 = vunpack.c.l.b16 %v181
    %v2461 = vunpack.c.h.b16 %v181
    %v2462 = vunpack.c.l.b16 %v182
    %v2463 = vunpack.c.h.b16 %v182
    %v2464 = vunpack.c.l.b16 %v183
    %v2465 = vunpack.c.h.b16 %v183
    %v2466 = vunpack.c.l.b16 %v184
    %v2467 = vunpack.c.h.b16 %v184
    %v2468 = vunpack.c.l.b16 %v185
    %v2469 = vunpack.c.h.b16 %v185
    %v2470 = vunpack.c.l.b16 %v186
    %v2471 = vunpack.c.h.b16 %v186
    %v2472 = vunpack.c.l.b16 %v187
    %v2473 = vunpack.c.h.b16 %v187
    %v2474 = vunpack.c.l.b16 %v188
    %v2475 = vunpack.c.h.b16 %v188
    %v2476 = vunpack.c.l.b16 %v189
    %v2477 = vunpack.c.h.b16 %v189
    %v2478 = vunpack.c.l.b16 %v190
    %v2479 = vunpack.c.h.b16 %v190
    %v2480 = vunpack.c.l.b16 %v191
    %v2481 = vunpack.c.h.b16 %v191
    %v2482 = vunpack.c.l.b16 %v192
    %v2483 = vunpack.c.h.b16 %v192
    %v2484 = vunpack.c.l.b16 %v193
    %v2485 = vunpack.c.h.b16 %v193
    %v2486 = vunpack.c.l.b16 %v194
    %v2487 = vunpack.c.h.b16 %v194
    %v2488 = vunpack.c.l.b16 %v195
    %v2489 = vunpack.c.h.b16 %v195
    %v2490 = vunpack.c.l.b16 %v196
    %v2491 = vunpack.c.h.b16 %v196
    %v2492 = vunpack.c.l.b16 %v197
    %v2493 = vunpack.c.h.b16 %v197
    %v2494 = vunpack.c.l.b16 %v198
    %v2495 = vunpack.c.h.b16 %v198
    %v2496 = vunpack.c.l.b16 %v199
    %v2497 = vunpack.c.h.b16 %v199
    %v2498 = vunpack.c.l.b16 %v200
    %v2499 = vunpack.c.h.b16 %v200
    %v2500 = vunpack.c.l.b16 %v201
    %v2501 = vunpack.c.h.b16 %v201
    %v2502 = vunpack.c.l.b16 %v202
    %v2503 = vunpack.c.h.b16 %v202
    %v2504 = vunpack.c.l.b16 %v203
    %v2505 = vunpack.c.h.b16 %v203
    %v2506 = vunpack.c.l.b16 %v204
    %v2507 = vunpack.c.h.b16 %v204
    %v2508 = vunpack.c.l.b16 %v205
    %v2509 = vunpack.c.h.b16 %v205
    %v2510 = vunpack.c.l.b16 %v206
    %v2511 = vunpack.c.h.b16 %v206
    %v2512 = vunpack.c.l.b16 %v207
    %v2513 = vunpack.c.h.b16 %v207
    %v2514 = vunpack.c.l.b16 %v208
    %v2515 = vunpack.c.h.b16 %v208
    %v2516 = vunpack.c.l.b16 %v209
    %v2517 = vunpack.c.h.b16 %v209
    %v2518 = vunpack.c.l.b16 %v210
    %v2519 = vunpack.c.h.b16 %v210
    %v2520 = vunpack.c.l.b16 %v211
    %v2521 = vunpack.c.h.b16 %v211
    %v2522 = vunpack.c.l.b16 %v212
    %v2523 = vunpack.c.h.b16 %v212
    %v2524 = vunpack.c.l.b16 %v213
    %v2525 = vunpack.c.h.b16 %v213
    %v2526 = vunpack.c.l.b16 %v214
    %v2527 = vunpack.c.h.b16 %v214
    %v2528 = vunpack.c.l.b16 %v215
    %v2529 = vunpack.c.h.b16 %v215
    %v2530 = vunpack.c.l.b16 %v216
    %v2531 = vunpack.c.h.b16 %v216
    %v2532 = vunpack.c.l.b16 %v217
    %v2533 = vunpack.c.h.b16 %v217
    %v2534 = vunpack.c.l.b16 %v218
    %v2535 = vunpack.c.h.b16 %v218
    %v2536 = vunpack.c.l.b16 %v219
    %v2537 = vunpack.c.h.b16 %v219
    %v2538 = vunpack.c.l.b16 %v220
    %v2539 = vunpack.c.h.b16 %v220
    %v2540 = vunpack.c.l.b16 %v221
    %v2541 = vunpack.c.h.b16 %v221
    %v2542 = vunpack.c.l.b16 %v222
    %v2543 = vunpack.c.h.b16 %v222
    %v2544 = vunpack.c.l.b16 %v223
    %v2545 = vunpack.c.h.b16 %v223
    %v2546 = vunpack.c.l.b16 %v224
    %v2547 = vunpack.c.h.b16 %v224
    %v2548 = vunpack.c.l.b16 %v225
    %v2549 = vunpack.c.h.b16 %v225
    %v2550 = vunpack.c.l.b16 %v226
    %v2551 = vunpack.c.h.b16 %v226
    %v2552 = vunpack.c.l.b16 %v227
    %v2553 = vunpack.c.h.b16 %v227
    %v2554 = vunpack.c.l.b16 %v228
    %v2555 = vunpack.c.h.b16 %v228
    %v2556 = vunpack.c.l.b16 %v229
    %v2557 = vunpack.c.h.b16 %v229
    %v2558 = vunpack.c.l.b16 %v230
    %v2559 = vunpack.c.h.b16 %v230
    %v2560 = vunpack.c.l.b16 %v231
    %v2561 = vunpack.c.h.b16 %v231
    %v2562 = vunpack.c.l.b16 %v232
    %v2563 = vunpack.c.h.b16 %v232
    %v2564 = vunpack.c.l.b16 %v233
    %v2565 = vunpack.c.h.b16 %v233
    %v2566 = vunpack.c.l.b16 %v234
    %v2567 = vunpack.c.h.b16 %v234
    %v2568 = vunpack.c.l.b16 %v235
    %v2569 = vunpack.c.h.b16 %v235
    %v2570 = vunpack.c.l.b16 %v236
    %v2571 = vunpack.c.h.b16 %v236
    %v2572 = vunpack.c.l.b16 %v237
    %v2573 = vunpack.c.h.b16 %v237
    %v2574 = vunpack.c.l.b16 %v238
    %v2575 = vunpack.c.h.b16 %v238
    %v2576 = vunpack.c.l.b16 %v239
    %v2577 = vunpack.c.h.b16 %v239
    %v2578 = vunpack.c.l.b16 %v240
    %v2579 = vunpack.c.h.b16 %v240
    %v2580 = vunpack.c.l.b16 %v241
    %v2581 = vunpack.c.h.b16 %v241
    %v2582 = vunpack.c.l.b16 %v242
    %v2583 = vunpack.c.h.b16 %v242
    %v2584 = vunpack.c.l.b16 %v243
    %v2585 = vunpack.c.h.b16 %v243
    %v2586 = vunpack.c.l.b16 %v244
    %v2587 = vunpack.c.h.b16 %v244
    %v2588 = vunpack.c.l.b16 %v245
    %v2589 = vunpack.c.h.b16 %v245
    %v2590 = vunpack.c.l.b16 %v246
    %v2591 = vunpack.c.h.b16 %v246
    %v2592 = vunpack.c.l.b16 %v247
    %v2593 = vunpack.c.h.b16 %v247
    %v2594 = vunpack.c.l.b16 %v248
    %v2595 = vunpack.c.h.b16 %v248
    %v2596 = vunpack.c.l.b16 %v249
    %v2597 = vunpack.c.h.b16 %v249
    %v2598 = vunpack.c.l.b16 %v250
    %v2599 = vunpack.c.h.b16 %v250
    %v2600 = vunpack.c.l.b16 %v251
    %v2601 = vunpack.c.h.b16 %v251
    %v2602 = vunpack.c.l.b16 %v252
    %v2603 = vunpack.c.h.b16 %v252
    %v2604 = vunpack.c.l.b16 %v253
    %v2605 = vunpack.c.h.b16 %v253
    %v2606 = vunpack.c.l.b16 %v254
    %v2607 = vunpack.c.h.b16 %v254
    %v2608 = vunpack.c.l.b16 %v255
    %v2609 = vunpack.c.h.b16 %v255
    %v2610 = vunpack.c.l.b16 %v256
    %v2611 = vunpack.c.h.b16 %v256
    %v2612 = vunpack.c.l.b16 %v257
    %v2613 = vunpack.c.h.b16 %v257
    %v2614 = vunpack.c.l.b16 %v258
    %v2615 = vunpack.c.h.b16 %v258
    %v2616 = vunpack.c.l.b16 %v259
    %v2617 = vunpack.c.h.b16 %v259
    %v2618 = vunpack.c.l.b16 %v260
    %v2619 = vunpack.c.h.b16 %v260
    %v2620 = vunpack.c.l.b16 %v261
    %v2621 = vunpack.c.h.b16 %v261
    %v2622 = vunpack.c.l.b16 %v262
    %v2623 = vunpack.c.h.b16 %v262
    %v2624 = vunpack.c.l.b16 %v263
    %v2625 = vunpack.c.h.b16 %v263
    %v2626 = vunpack.c.l.b16 %v264
    %v2627 = vunpack.c.h.b16 %v264
    %v2628 = vunpack.c.l.b16 %v265
    %v2629 = vunpack.c.h.b16 %v265
    %v2630 = vunpack.c.l.b16 %v266
    %v2631 = vunpack.c.h.b16 %v266
    %v2632 = vunpack.c.l.b16 %v267
    %v2633 = vunpack.c.h.b16 %v267
    %v2634 = vunpack.c.l.b16 %v268
    %v2635 = vunpack.c.h.b16 %v268
    %v2636 = vunpack.c.l.b16 %v269
    %v2637 = vunpack.c.h.b16 %v269
    %v2638 = vunpack.c.l.b16 %v270
    %v2639 = vunpack.c.h.b16 %v270
    %v2640 = vunpack.c.l.b16 %v271
    %v2641 = vunpack.c.h.b16 %v271
    %v2642 = vunpack.c.l.b16 %v272
    %v2643 = vunpack.c.h.b16 %v272
    %v2644 = vunpack.c.l.b16 %v273
    %v2645 = vunpack.c.h.b16 %v273
    %v2646 = vunpack.c.l.b16 %v274
    %v2647 = vunpack.c.h.b16 %v274
    %v2648 = vunpack.c.l.b16 %v275
    %v2649 = vunpack.c.h.b16 %v275
    %v2650 = vunpack.c.l.b16 %v276
    %v2651 = vunpack.c.h.b16 %v276
    %v2652 = vunpack.c.l.b16 %v277
    %v2653 = vunpack.c.h.b16 %v277
    %v2654 = vunpack.c.l.b16 %v278
    %v2655 = vunpack.c.h.b16 %v278
    %v2656 = vunpack.c.l.b16 %v279
    %v2657 = vunpack.c.h.b16 %v279
    %v2658 = vunpack.c.l.b16 %v280
    %v2659 = vunpack.c.h.b16 %v280
    %v2660 = vunpack.c.l.b16 %v281
    %v2661 = vunpack.c.h.b16 %v281
    %v2662 = vunpack.c.l.b16 %v282
    %v2663 = vunpack.c.h.b16 %v282
    %v2664 = vunpack.c.l.b16 %v283
    %v2665 = vunpack.c.h.b16 %v283
    %v2666 = vunpack.c.l.b16 %v284
    %v2667 = vunpack.c.h.b16 %v284
    %v2668 = vunpack.c.l.b16 %v285
    %v2669 = vunpack.c.h.b16 %v285
    %v2670 = vunpack.c.l.b16 %v286
    %v2671 = vunpack.c.h.b16 %v286
    %v2672 = vunpack.c.l.b16 %v287
    %v2673 = vunpack.c.h.b16 %v287
    %v2674 = vunpack.c.l.b16 %v288
    %v2675 = vunpack.c.h.b16 %v288
    %v2676 = vunpack.c.l.b16 %v289
    %v2677 = vunpack.c.h.b16 %v289
    %v2678 = vunpack.c.l.b16 %v290
    %v2679 = vunpack.c.h.b16 %v290
    %v2680 = vunpack.c.l.b16 %v291
    %v2681 = vunpack.c.h.b16 %v291
    %v2682 = vunpack.c.l.b16 %v292
    %v2683 = vunpack.c.h.b16 %v292
    %v2684 = vunpack.c.l.b16 %v293
    %v2685 = vunpack.c.h.b16 %v293
    %v2686 = vunpack.c.l.b16 %v294
    %v2687 = vunpack.c.h.b16 %v294
    %v2688 = vunpack.c.l.b16 %v295
    %v2689 = vunpack.c.h.b16 %v295
    %v2690 = vunpack.c.l.b16 %v296
    %v2691 = vunpack.c.h.b16 %v296
    %v2692 = vunpack.c.l.b16 %v297
    %v2693 = vunpack.c.h.b16 %v297
    %v2694 = vunpack.c.l.b16 %v298
    %v2695 = vunpack.c.h.b16 %v298
    %v2696 = vunpack.c.l.b16 %v299
    %v2697 = vunpack.c.h.b16 %v299
    %v2698 = vunpack.c.l.b16 %v300
    %v2699 = vunpack.c.h.b16 %v300
    %v2700 = vunpack.c.l.b16 %v301
    %v2701 = vunpack.c.h.b16 %v301
    %v2702 = vunpack.c.l.b16 %v302
    %v2703 = vunpack.c.h.b16 %v302
    %v2704 = vunpack.c.l.b16 %v303
    %v2705 = vunpack.c.h.b16 %v303
    %v2706 = vunpack.c.l.b16 %v304
    %v2707 = vunpack.c.h.b16 %v304
    %v2708 = vunpack.c.l.b16 %v305
    %v2709 = vunpack.c.h.b16 %v305
    %v2710 = vunpack.c.l.b16 %v306
    %v2711 = vunpack.c.h.b16 %v306
    %v2712 = vunpack.c.l.b16 %v307
    %v2713 = vunpack.c.h.b16 %v307
    %v2714 = vunpack.c.l.b16 %v308
    %v2715 = vunpack.c.h.b16 %v308
    %v2716 = vunpack.c.l.b16 %v309
    %v2717 = vunpack.c.h.b16 %v309
    %v2718 = vunpack.c.l.b16 %v310
    %v2719 = vunpack.c.h.b16 %v310
    %v2720 = vunpack.c.l.b16 %v311
    %v2721 = vunpack.c.h.b16 %v311
    %v2722 = vunpack.c.l.b16 %v312
    %v2723 = vunpack.c.h.b16 %v312
    %v2724 = vunpack.c.l.b16 %v313
    %v2725 = vunpack.c.h.b16 %v313
    %v2726 = vunpack.c.l.b16 %v314
    %v2727 = vunpack.c.h.b16 %v314
    %v2728 = vunpack.c.l.b16 %v315
    %v2729 = vunpack.c.h.b16 %v315
    %v2730 = vunpack.c.l.b16 %v316
    %v2731 = vunpack.c.h.b16 %v316
    %v2732 = vunpack.c.l.b16 %v317
    %v2733 = vunpack.c.h.b16 %v317
    %v2734 = vunpack.c.l.b16 %v318
    %v2735 = vunpack.c.h.b16 %v318
    %v2736 = vunpack.c.l.b16 %v319
    %v2737 = vunpack.c.h.b16 %v319
    %v2738 = vunpack.c.l.b16 %v320
    %v2739 = vunpack.c.h.b16 %v320
    %v2740 = vunpack.c.l.b16 %v321
    %v2741 = vunpack.c.h.b16 %v321
    %v2742 = vunpack.c.l.b16 %v322
    %v2743 = vunpack.c.h.b16 %v322
    %v2744 = vunpack.c.l.b16 %v323
    %v2745 = vunpack.c.h.b16 %v323
    %v2746 = vunpack.c.l.b16 %v324
    %v2747 = vunpack.c.h.b16 %v324
    %v2748 = vunpack.c.l.b16 %v325
    %v2749 = vunpack.c.h.b16 %v325
    %v2750 = vunpack.c.l.b16 %v326
    %v2751 = vunpack.c.h.b16 %v326
    %v2752 = vunpack.c.l.b16 %v327
    %v2753 = vunpack.c.h.b16 %v327
    %v2754 = vunpack.c.l.b16 %v328
    %v2755 = vunpack.c.h.b16 %v328
    %v2756 = vunpack.c.l.b16 %v329
    %v2757 = vunpack.c.h.b16 %v329
    %v2758 = vunpack.c.l.b16 %v330
    %v2759 = vunpack.c.h.b16 %v330
    %v2760 = vunpack.c.l.b16 %v331
    %v2761 = vunpack.c.h.b16 %v331
    %v2762 = vunpack.c.l.b16 %v332
    %v2763 = vunpack.c.h.b16 %v332
    %v2764 = vunpack.c.l.b16 %v333
    %v2765 = vunpack.c.h.b16 %v333
    %v2766 = vunpack.c.l.b16 %v334
    %v2767 = vunpack.c.h.b16 %v334
    %v2768 = vunpack.c.l.b16 %v335
    %v2769 = vunpack.c.h.b16 %v335
    %v2770 = vunpack.c.l.b16 %v336
    %v2771 = vunpack.c.h.b16 %v336
    %v2772 = vunpack.c.l.b16 %v337
    %v2773 = vunpack.c.h.b16 %v337
    %v2774 = vunpack.c.l.b16 %v338
    %v2775 = vunpack.c.h.b16 %v338
    %v2776 = vunpack.c.l.b16 %v339
    %v2777 = vunpack.c.h.b16 %v339
    %v2778 = vunpack.c.l.b16 %v340
    %v2779 = vunpack.c.h.b16 %v340
    %v2780 = vunpack.c.l.b16 %v341
    %v2781 = vunpack.c.h.b16 %v341
    %v2782 = vunpack.c.l.b16 %v342
    %v2783 = vunpack.c.h.b16 %v342
    %v2784 = vunpack.c.l.b16 %v343
    %v2785 = vunpack.c.h.b16 %v343
    %v2786 = vunpack.c.l.b16 %v344
    %v2787 = vunpack.c.h.b16 %v344
    %v2788 = vunpack.c.l.b16 %v345
    %v2789 = vunpack.c.h.b16 %v345
    %v2790 = vunpack.c.l.b16 %v346
    %v2791 = vunpack.c.h.b16 %v346
    %v2792 = vunpack.c.l.b16 %v347
    %v2793 = vunpack.c.h.b16 %v347
    %v2794 = vunpack.c.l.b16 %v348
    %v2795 = vunpack.c.h.b16 %v348
    %v2796 = vunpack.c.l.b16 %v349
    %v2797 = vunpack.c.h.b16 %v349
    %v2798 = vunpack.c.l.b16 %v350
    %v2799 = vunpack.c.h.b16 %v350
    %v2800 = vunpack.c.l.b16 %v351
    %v2801 = vunpack.c.h.b16 %v351
    %v2802 = vunpack.c.l.b16 %v352
    %v2803 = vunpack.c.h.b16 %v352
    %v2804 = vunpack.c.l.b16 %v353
    %v2805 = vunpack.c.h.b16 %v353
    %v2806 = vunpack.c.l.b16 %v354
    %v2807 = vunpack.c.h.b16 %v354
    %v2808 = vunpack.c.l.b16 %v355
    %v2809 = vunpack.c.h.b16 %v355
    %v2810 = vunpack.c.l.b16 %v356
    %v2811 = vunpack.c.h.b16 %v356
    %v2812 = vunpack.c.l.b16 %v357
    %v2813 = vunpack.c.h.b16 %v357
    %v2814 = vunpack.c.l.b16 %v358
    %v2815 = vunpack.c.h.b16 %v358
    %v2816 = vunpack.c.l.b16 %v359
    %v2817 = vunpack.c.h.b16 %v359
    %v2818 = vunpack.c.l.b16 %v360
    %v2819 = vunpack.c.h.b16 %v360
    %v2820 = vunpack.c.l.b16 %v361
    %v2821 = vunpack.c.h.b16 %v361
    %v2822 = vunpack.c.l.b16 %v362
    %v2823 = vunpack.c.h.b16 %v362
    %v2824 = vunpack.c.l.b16 %v363
    %v2825 = vunpack.c.h.b16 %v363
    %v2826 = vunpack.c.l.b16 %v364
    %v2827 = vunpack.c.h.b16 %v364
    %v2828 = vunpack.c.l.b16 %v365
    %v2829 = vunpack.c.h.b16 %v365
    %v2830 = vunpack.c.l.b16 %v366
    %v2831 = vunpack.c.h.b16 %v366
    %v2832 = vunpack.c.l.b16 %v367
    %v2833 = vunpack.c.h.b16 %v367
    %v2834 = vunpack.c.l.b16 %v368
    %v2835 = vunpack.c.h.b16 %v368
    %v2836 = vunpack.c.l.b16 %v369
    %v2837 = vunpack.c.h.b16 %v369
    %v2838 = vunpack.c.l.b16 %v370
    %v2839 = vunpack.c.h.b16 %v370
    %v2840 = vunpack.c.l.b16 %v371
    %v2841 = vunpack.c.h.b16 %v371
    %v2842 = vunpack.c.l.b16 %v372
    %v2843 = vunpack.c.h.b16 %v372
    %v2844 = vunpack.c.l.b16 %v373
    %v2845 = vunpack.c.h.b16 %v373
    %v2846 = vunpack.c.l.b16 %v374
    %v2847 = vunpack.c.h.b16 %v374
    %v2848 = vunpack.c.l.b16 %v375
    %v2849 = vunpack.c.h.b16 %v375
    %v2850 = vunpack.c.l.b16 %v376
    %v2851 = vunpack.c.h.b16 %v376
    %v2852 = vunpack.c.l.b16 %v377
    %v2853 = vunpack.c.h.b16 %v377
    %v2854 = vunpack.c.l.b16 %v378
    %v2855 = vunpack.c.h.b16 %v378
    %v2856 = vunpack.c.l.b16 %v379
    %v2857 = vunpack.c.h.b16 %v379
    %v2858 = vunpack.c.l.b16 %v380
    %v2859 = vunpack.c.h.b16 %v380
    %v2860 = vunpack.c.l.b16 %v381
    %v2861 = vunpack.c.h.b16 %v381
    %v2862 = vunpack.c.l.b16 %v382
    %v2863 = vunpack.c.h.b16 %v382
    %v2864 = vunpack.c.l.b16 %v383
    %v2865 = vunpack.c.h.b16 %v383
    %v2866 = vunpack.c.l.b16 %v384
    %v2867 = vunpack.c.h.b16 %v384
    %v2868 = vunpack.c.l.b16 %v385
    %v2869 = vunpack.c.h.b16 %v385
    %v2870 = vunpack.c.l.b16 %v386
    %v2871 = vunpack.c.h.b16 %v386
    %v2872 = vunpack.c.l.b16 %v387
    %v2873 = vunpack.c.h.b16 %v387
    %v2874 = vunpack.c.l.b16 %v388
    %v2875 = vunpack.c.h.b16 %v388
    %v2876 = vunpack.c.l.b16 %v389
    %v2877 = vunpack.c.h.b16 %v389
    %v2878 = vunpack.c.l.b16 %v390
    %v2879 = vunpack.c.h.b16 %v390
    %v2880 = vunpack.c.l.b16 %v391
    %v2881 = vunpack.c.h.b16 %v391
    %v2882 = vunpack.c.l.b16 %v392
    %v2883 = vunpack.c.h.b16 %v392
    %v2884 = vunpack.c.l.b16 %v393
    %v2885 = vunpack.c.h.b16 %v393
    %v2886 = vunpack.c.l.b16 %v394
    %v2887 = vunpack.c.h.b16 %v394
    %v2888 = vunpack.c.l.b16 %v395
    %v2889 = vunpack.c.h.b16 %v395
    %v2890 = vunpack.c.l.b16 %v396
    %v2891 = vunpack.c.h.b16 %v396
    %v2892 = vunpack.c.l.b16 %v397
    %v2893 = vunpack.c.h.b16 %v397
    %v2894 = vunpack.c.l.b16 %v398
    %v2895 = vunpack.c.h.b16 %v398
    %v2896 = vunpack.c.l.b16 %v399
    %v2897 = vunpack.c.h.b16 %v399
    %v2898 = vunpack.c.l.b16 %v400
    %v2899 = vunpack.c.h.b16 %v400
    %v2900 = vunpack.c.l.b16 %v401
    %v2901 = vunpack.c.h.b16 %v401
    %v2902 = vunpack.c.l.b16 %v402
    %v2903 = vunpack.c.h.b16 %v402
    %v2904 = vunpack.c.l.b16 %v403
    %v2905 = vunpack.c.h.b16 %v403
    %v2906 = vunpack.c.l.b16 %v404
    %v2907 = vunpack.c.h.b16 %v404
    %v2908 = vunpack.c.l.b16 %v405
    %v2909 = vunpack.c.h.b16 %v405
    %v2910 = vunpack.c.l.b16 %v406
    %v2911 = vunpack.c.h.b16 %v406
    %v2912 = vunpack.c.l.b16 %v407
    %v2913 = vunpack.c.h.b16 %v407
    %v2914 = vunpack.c.l.b16 %v408
    %v2915 = vunpack.c.h.b16 %v408
    %v2916 = vunpack.c.l.b16 %v409
    %v2917 = vunpack.c.h.b16 %v409
    %v2918 = vunpack.c.l.b16 %v410
    %v2919 = vunpack.c.h.b16 %v410
    %v2920 = vunpack.c.l.b16 %v411
    %v2921 = vunpack.c.h.b16 %v411
    %v2922 = vunpack.c.l.b16 %v412
    %v2923 = vunpack.c.h.b16 %v412
    %v2924 = vunpack.c.l.b16 %v413
    %v2925 = vunpack.c.h.b16 %v413
    %v2926 = vunpack.c.l.b16 %v414
    %v2927 = vunpack.c.h.b16 %v414
    %v2928 = vunpack.c.l.b16 %v415
    %v2929 = vunpack.c.h.b16 %v415
    %v2930 = vunpack.c.l.b16 %v416
    %v2931 = vunpack.c.h.b16 %v416
    %v2932 = vunpack.c.l.b16 %v417
    %v2933 = vunpack.c.h.b16 %v417
    %v2934 = vunpack.c.l.b16 %v418
    %v2935 = vunpack.c.h.b16 %v418
    %v2936 = vunpack.c.l.b16 %v419
    %v2937 = vunpack.c.h.b16 %v419
    %v2938 = vunpack.c.l.b16 %v420
    %v2939 = vunpack.c.h.b16 %v420
    %v2940 = vunpack.c.l.b16 %v421
    %v2941 = vunpack.c.h.b16 %v421
    %v2942 = vunpack.c.l.b16 %v422
    %v2943 = vunpack.c.h.b16 %v422
    %v2944 = vunpack.c.l.b16 %v423
    %v2945 = vunpack.c.h.b16 %v423
    %v2946 = vunpack.c.l.b16 %v424
    %v2947 = vunpack.c.h.b16 %v424
    %v2948 = vunpack.c.l.b16 %v425
    %v2949 = vunpack.c.h.b16 %v425
    %v2950 = vunpack.c.l.b16 %v426
    %v2951 = vunpack.c.h.b16 %v426
    %v2952 = vunpack.c.l.b16 %v427
    %v2953 = vunpack.c.h.b16 %v427
    %v2954 = vunpack.c.l.b16 %v428
    %v2955 = vunpack.c.h.b16 %v428
    %v2956 = vunpack.c.l.b16 %v429
    %v2957 = vunpack.c.h.b16 %v429
    %v2958 = vunpack.c.l.b16 %v430
    %v2959 = vunpack.c.h.b16 %v430
    %v2960 = vunpack.c.l.b16 %v431
    %v2961 = vunpack.c.h.b16 %v431
    %v2962 = vunpack.c.l.b16 %v432
    %v2963 = vunpack.c.h.b16 %v432
    %v2964 = vunpack.c.l.b16 %v433
    %v2965 = vunpack.c.h.b16 %v433
    %v2966 = vunpack.c.l.b16 %v434
    %v2967 = vunpack.c.h.b16 %v434
    %v2968 = vunpack.c.l.b16 %v435
    %v2969 = vunpack.c.h.b16 %v435
    %v2970 = vunpack.c.l.b16 %v436
    %v2971 = vunpack.c.h.b16 %v436
    %v2972 = vunpack.c.l.b16 %v437
    %v2973 = vunpack.c.h.b16 %v437
    %v2974 = vunpack.c.l.b16 %v438
    %v2975 = vunpack.c.h.b16 %v438
    %v2976 = vunpack.c.l.b16 %v439
    %v2977 = vunpack.c.h.b16 %v439
    %v2978 = vunpack.c.l.b16 %v440
    %v2979 = vunpack.c.h.b16 %v440
    %v2980 = vunpack.c.l.b16 %v441
    %v2981 = vunpack.c.h.b16 %v441
    %v2982 = vunpack.c.l.b16 %v442
    %v2983 = vunpack.c.h.b16 %v442
    %v2984 = vunpack.c.l.b16 %v443
    %v2985 = vunpack.c.h.b16 %v443
    %v2986 = vunpack.c.l.b16 %v444
    %v2987 = vunpack.c.h.b16 %v444
    %v2988 = vunpack.c.l.b16 %v445
    %v2989 = vunpack.c.h.b16 %v445
    %v2990 = vunpack.c.l.b16 %v446
    %v2991 = vunpack.c.h.b16 %v446
    %v2992 = vunpack.c.l.b16 %v447
    %v2993 = vunpack.c.h.b16 %v447
    %v2994 = vunpack.c.l.b16 %v448
    %v2995 = vunpack.c.h.b16 %v448
    %v2996 = vunpack.c.l.b16 %v449
    %v2997 = vunpack.c.h.b16 %v449
    %v2998 = vunpack.c.l.b16 %v450
    %v2999 = vunpack.c.h.b16 %v450
    %v3000 = vunpack.c.l.b16 %v451
    %v3001 = vunpack.c.h.b16 %v451
    %v3002 = vunpack.c.l.b16 %v452
    %v3003 = vunpack.c.h.b16 %v452
    %v3004 = vunpack.c.l.b16 %v453
    %v3005 = vunpack.c.h.b16 %v453
    %v3006 = vunpack.c.l.b16 %v454
    %v3007 = vunpack.c.h.b16 %v454
    %v3008 = vunpack.c.l.b16 %v455
    %v3009 = vunpack.c.h.b16 %v455
    %v3010 = vunpack.c.l.b16 %v456
    %v3011 = vunpack.c.h.b16 %v456
    %v3012 = vunpack.c.l.b16 %v457
    %v3013 = vunpack.c.h.b16 %v457
    %v3014 = vunpack.c.l.b16 %v458
    %v3015 = vunpack.c.h.b16 %v458
    %v3016 = vunpack.c.l.b16 %v459
    %v3017 = vunpack.c.h.b16 %v459
    %v3018 = vunpack.c.l.b16 %v460
    %v3019 = vunpack.c.h.b16 %v460
    %v3020 = vunpack.c.l.b16 %v461
    %v3021 = vunpack.c.h.b16 %v461
    %v3022 = vunpack.c.l.b16 %v462
    %v3023 = vunpack.c.h.b16 %v462
    %v3024 = vunpack.c.l.b16 %v463
    %v3025 = vunpack.c.h.b16 %v463
    %v3026 = vunpack.c.l.b16 %v464
    %v3027 = vunpack.c.h.b16 %v464
    %v3028 = vunpack.c.l.b16 %v465
    %v3029 = vunpack.c.h.b16 %v465
    %v3030 = vunpack.c.l.b16 %v466
    %v3031 = vunpack.c.h.b16 %v466
    %v3032 = vunpack.c.l.b16 %v467
    %v3033 = vunpack.c.h.b16 %v467
    %v3034 = vunpack.c.l.b16 %v468
    %v3035 = vunpack.c.h.b16 %v468
    %v3036 = vunpack.c.l.b16 %v469
    %v3037 = vunpack.c.h.b16 %v469
    %v3038 = vunpack.c.l.b16 %v470
    %v3039 = vunpack.c.h.b16 %v470
    %v3040 = vunpack.c.l.b16 %v471
    %v3041 = vunpack.c.h.b16 %v471
    %v3042 = vunpack.c.l.b16 %v472
    %v3043 = vunpack.c.h.b16 %v472
    %v3044 = vunpack.c.l.b16 %v473
    %v3045 = vunpack.c.h.b16 %v473
    %v3046 = vunpack.c.l.b16 %v474
    %v3047 = vunpack.c.h.b16 %v474
    %v3048 = vunpack.c.l.b16 %v475
    %v3049 = vunpack.c.h.b16 %v475
    %v3050 = vunpack.c.l.b16 %v476
    %v3051 = vunpack.c.h.b16 %v476
    %v3052 = vunpack.c.l.b16 %v477
    %v3053 = vunpack.c.h.b16 %v477
    %v3054 = vunpack.c.l.b16 %v478
    %v3055 = vunpack.c.h.b16 %v478
    %v3056 = vunpack.c.l.b16 %v479
    %v3057 = vunpack.c.h.b16 %v479
    %v3058 = vunpack.c.l.b16 %v480
    %v3059 = vunpack.c.h.b16 %v480
    %v3060 = vunpack.c.l.b16 %v481
    %v3061 = vunpack.c.h.b16 %v481
    %v3062 = vunpack.c.l.b16 %v482
    %v3063 = vunpack.c.h.b16 %v482
    %v3064 = vunpack.c.l.b16 %v483
    %v3065 = vunpack.c.h.b16 %v483
    %v3066 = vunpack.c.l.b16 %v484
    %v3067 = vunpack.c.h.b16 %v484
    %v3068 = vunpack.c.l.b16 %v485
    %v3069 = vunpack.c.h.b16 %v485
    %v3070 = vunpack.c.l.b16 %v486
    %v3071 = vunpack.c.h.b16 %v486
    %v3072 = vunpack.c.l.b16 %v487
    %v3073 = vunpack.c.h.b16 %v487
    %v3074 = vunpack.c.l.b16 %v488
    %v3075 = vunpack.c.h.b16 %v488
    %v3076 = vunpack.c.l.b16 %v489
    %v3077 = vunpack.c.h.b16 %v489
    %v3078 = vunpack.c.l.b16 %v490
    %v3079 = vunpack.c.h.b16 %v490
    %v3080 = vunpack.c.l.b16 %v491
    %v3081 = vunpack.c.h.b16 %v491
    %v3082 = vunpack.c.l.b16 %v492
    %v3083 = vunpack.c.h.b16 %v492
    %v3084 = vunpack.c.l.b16 %v493
    %v3085 = vunpack.c.h.b16 %v493
    %v3086 = vunpack.c.l.b16 %v494
    %v3087 = vunpack.c.h.b16 %v494
    %v3088 = vunpack.c.l.b16 %v495
    %v3089 = vunpack.c.h.b16 %v495
    %v3090 = vunpack.c.l.b16 %v496
    %v3091 = vunpack.c.h.b16 %v496
    %v3092 = vunpack.c.l.b16 %v497
    %v3093 = vunpack.c.h.b16 %v497
    %v3094 = vunpack.c.l.b16 %v498
    %v3095 = vunpack.c.h.b16 %v498
    %v3096 = vunpack.c.l.b16 %v499
    %v3097 = vunpack.c.h.b16 %v499
    %v3098 = vunpack.c.l.b16 %v500
    %v3099 = vunpack.c.h.b16 %v500
    %v3100 = vunpack.c.l.b16 %v501
    %v3101 = vunpack.c.h.b16 %v501
    %v3102 = vunpack.c.l.b16 %v502
    %v3103 = vunpack.c.h.b16 %v502
    %v3104 = vunpack.c.l.b16 %v503
    %v3105 = vunpack.c.h.b16 %v503
    %v3106 = vunpack.c.l.b16 %v504
    %v3107 = vunpack.c.h.b16 %v504
    %v3108 = vunpack.c.l.b16 %v505
    %v3109 = vunpack.c.h.b16 %v505
    %v3110 = vunpack.c.l.b16 %v506
    %v3111 = vunpack.c.h.b16 %v506
    %v3112 = vunpack.c.l.b16 %v507
    %v3113 = vunpack.c.h.b16 %v507
    %v3114 = vunpack.c.l.b16 %v508
    %v3115 = vunpack.c.h.b16 %v508
    %v3116 = vunpack.c.l.b16 %v509
    %v3117 = vunpack.c.h.b16 %v509
    %v3118 = vunpack.c.l.b16 %v510
    %v3119 = vunpack.c.h.b16 %v510
    %v3120 = vunpack.c.l.b16 %v511
    %v3121 = vunpack.c.h.b16 %v511
    %v3122 = vunpack.c.l.b16 %v512
    %v3123 = vunpack.c.h.b16 %v512
    %v3124 = vunpack.c.l.b16 %v513
    %v3125 = vunpack.c.h.b16 %v513
    %v3126 = vunpack.c.l.b16 %v514
    %v3127 = vunpack.c.h.b16 %v514
    %v3128 = vunpack.c.l.b16 %v515
    %v3129 = vunpack.c.h.b16 %v515
    %v3130 = vunpack.c.l.b16 %v516
    %v3131 = vunpack.c.h.b16 %v516
    %v3132 = vunpack.c.l.b16 %v517
    %v3133 = vunpack.c.h.b16 %v517
    %v3134 = vunpack.c.l.b16 %v518
    %v3135 = vunpack.c.h.b16 %v518
    %v3136 = vunpack.c.l.b16 %v519
    %v3137 = vunpack.c.h.b16 %v519
    %v3138 = vunpack.c.l.b16 %v520
    %v3139 = vunpack.c.h.b16 %v520
    %v3140 = vunpack.c.l.b16 %v521
    %v3141 = vunpack.c.h.b16 %v521
    %v3142 = vunpack.c.l.b16 %v522
    %v3143 = vunpack.c.h.b16 %v522
    %v3144 = vunpack.c.l.b16 %v523
    %v3145 = vunpack.c.h.b16 %v523
    %v3146 = vunpack.c.l.b16 %v524
    %v3147 = vunpack.c.h.b16 %v524
    %v3148 = vunpack.c.l.b16 %v525
    %v3149 = vunpack.c.h.b16 %v525
    %v3150 = vunpack.c.l.b16 %v526
    %v3151 = vunpack.c.h.b16 %v526
    %v3152 = vunpack.c.l.b16 %v527
    %v3153 = vunpack.c.h.b16 %v527
    %v3154 = vunpack.c.l.b16 %v528
    %v3155 = vunpack.c.h.b16 %v528
    %v3156 = vunpack.c.l.b16 %v529
    %v3157 = vunpack.c.h.b16 %v529
    %v3158 = vunpack.c.l.b16 %v530
    %v3159 = vunpack.c.h.b16 %v530
    %v3160 = vunpack.c.l.b16 %v531
    %v3161 = vunpack.c.h.b16 %v531
    %v3162 = vunpack.c.l.b16 %v532
    %v3163 = vunpack.c.h.b16 %v532
    %v3164 = vunpack.c.l.b16 %v533
    %v3165 = vunpack.c.h.b16 %v533
    %v3166 = vunpack.c.l.b16 %v534
    %v3167 = vunpack.c.h.b16 %v534
    %v3168 = vunpack.c.l.b16 %v535
    %v3169 = vunpack.c.h.b16 %v535
    %v3170 = vunpack.c.l.b16 %v536
    %v3171 = vunpack.c.h.b16 %v536
    %v3172 = vunpack.c.l.b16 %v537
    %v3173 = vunpack.c.h.b16 %v537
    %v3174 = vunpack.c.l.b16 %v538
    %v3175 = vunpack.c.h.b16 %v538
    %v3176 = vunpack.c.l.b16 %v539
    %v3177 = vunpack.c.h.b16 %v539
    %v3178 = vunpack.c.l.b16 %v540
    %v3179 = vunpack.c.h.b16 %v540
    %v3180 = vunpack.c.l.b16 %v541
    %v3181 = vunpack.c.h.b16 %v541
    %v3182 = vunpack.c.l.b16 %v542
    %v3183 = vunpack.c.h.b16 %v542
    %v3184 = vunpack.c.l.b16 %v543
    %v3185 = vunpack.c.h.b16 %v543
    %v3186 = vunpack.c.l.b16 %v544
    %v3187 = vunpack.c.h.b16 %v544
    %v3188 = vunpack.c.l.b16 %v545
    %v3189 = vunpack.c.h.b16 %v545
    %v3190 = vunpack.c.l.b16 %v546
    %v3191 = vunpack.c.h.b16 %v546
    %v3192 = vunpack.c.l.b16 %v547
    %v3193 = vunpack.c.h.b16 %v547
    %v3194 = vunpack.c.l.b16 %v548
    %v3195 = vunpack.c.h.b16 %v548
    %v3196 = vunpack.c.l.b16 %v549
    %v3197 = vunpack.c.h.b16 %v549
    %v3198 = vunpack.c.l.b16 %v550
    %v3199 = vunpack.c.h.b16 %v550
    %v3200 = vunpack.c.l.b16 %v551
    %v3201 = vunpack.c.h.b16 %v551
    %v3202 = vunpack.c.l.b16 %v552
    %v3203 = vunpack.c.h.b16 %v552
    %v3204 = vunpack.c.l.b16 %v553
    %v3205 = vunpack.c.h.b16 %v553
    %v3206 = vunpack.c.l.b16 %v554
    %v3207 = vunpack.c.h.b16 %v554
    %v3208 = vunpack.c.l.b16 %v555
    %v3209 = vunpack.c.h.b16 %v555
    %v3210 = vunpack.c.l.b16 %v556
    %v3211 = vunpack.c.h.b16 %v556
    %v3212 = vunpack.c.l.b16 %v557
    %v3213 = vunpack.c.h.b16 %v557
    %v3214 = vunpack.c.l.b16 %v558
    %v3215 = vunpack.c.h.b16 %v558
    %v3216 = vunpack.c.l.b16 %v559
    %v3217 = vunpack.c.h.b16 %v559
    %v3218 = vunpack.c.l.b16 %v560
    %v3219 = vunpack.c.h.b16 %v560
    %v3220 = vunpack.c.l.b16 %v561
    %v3221 = vunpack.c.h.b16 %v561
    %v3222 = vunpack.c.l.b16 %v562
    %v3223 = vunpack.c.h.b16 %v562
    %v3224 = vunpack.c.l.b16 %v563
    %v3225 = vunpack.c.h.b16 %v563
    %v3226 = vunpack.c.l.b16 %v564
    %v3227 = vunpack.c.h.b16 %v564
    %v3228 = vunpack.c.l.b16 %v565
    %v3229 = vunpack.c.h.b16 %v565
    %v3230 = vunpack.c.l.b16 %v566
    %v3231 = vunpack.c.h.b16 %v566
    %v3232 = vunpack.c.l.b16 %v567
    %v3233 = vunpack.c.h.b16 %v567
    %v3234 = vunpack.c.l.b16 %v568
    %v3235 = vunpack.c.h.b16 %v568
    %v3236 = vunpack.c.l.b16 %v569
    %v3237 = vunpack.c.h.b16 %v569
    %v3238 = vunpack.c.l.b16 %v570
    %v3239 = vunpack.c.h.b16 %v570
    %v3240 = vunpack.c.l.b16 %v571
    %v3241 = vunpack.c.h.b16 %v571
    %v3242 = vunpack.c.l.b16 %v572
    %v3243 = vunpack.c.h.b16 %v572
    %v3244 = vunpack.c.l.b16 %v573
    %v3245 = vunpack.c.h.b16 %v573
    %v3246 = vunpack.c.l.b16 %v574
    %v3247 = vunpack.c.h.b16 %v574
    %v3248 = vunpack.c.l.b16 %v575
    %v3249 = vunpack.c.h.b16 %v575
    %v3250 = vunpack.c.l.b16 %v576
    %v3251 = vunpack.c.h.b16 %v576
    %v3252 = vunpack.c.l.b16 %v577
    %v3253 = vunpack.c.h.b16 %v577
    %v3254 = vunpack.c.l.b16 %v578
    %v3255 = vunpack.c.h.b16 %v578
    %v3256 = vunpack.c.l.b16 %v579
    %v3257 = vunpack.c.h.b16 %v579
    %v3258 = vunpack.c.l.b16 %v580
    %v3259 = vunpack.c.h.b16 %v580
    %v3260 = vunpack.c.l.b16 %v581
    %v3261 = vunpack.c.h.b16 %v581
    %v3262 = vunpack.c.l.b16 %v582
    %v3263 = vunpack.c.h.b16 %v582
    %v3264 = vunpack.c.l.b16 %v583
    %v3265 = vunpack.c.h.b16 %v583
    %v3266 = vunpack.c.l.b16 %v584
    %v3267 = vunpack.c.h.b16 %v584
    %v3268 = vunpack.c.l.b16 %v585
    %v3269 = vunpack.c.h.b16 %v585
    %v3270 = vunpack.c.l.b16 %v586
    %v3271 = vunpack.c.h.b16 %v586
    %v3272 = vunpack.c.l.b16 %v587
    %v3273 = vunpack.c.h.b16 %v587
    %v3274 = vunpack.c.l.b16 %v588
    %v3275 = vunpack.c.h.b16 %v588
    %v3276 = vunpack.c.l.b16 %v589
    %v3277 = vunpack.c.h.b16 %v589
    %v3278 = vunpack.c.l.b16 %v590
    %v3279 = vunpack.c.h.b16 %v590
    %v3280 = vunpack.c.l.b16 %v591
    %v3281 = vunpack.c.h.b16 %v591
    %v3282 = vunpack.c.l.b16 %v592
    %v3283 = vunpack.c.h.b16 %v592
    %v3284 = vunpack.c.l.b16 %v593
    %v3285 = vunpack.c.h.b16 %v593
    %v3286 = vunpack.c.l.b16 %v594
    %v3287 = vunpack.c.h.b16 %v594
    %v3288 = vunpack.c.l.b16 %v595
    %v3289 = vunpack.c.h.b16 %v595
    %v3290 = vunpack.c.l.b16 %v596
    %v3291 = vunpack.c.h.b16 %v596
    %v3292 = vunpack.c.l.b16 %v597
    %v3293 = vunpack.c.h.b16 %v597
    %v3294 = vunpack.c.l.b16 %v598
    %v3295 = vunpack.c.h.b16 %v598
    %v3296 = vunpack.c.l.b16 %v599
    %v3297 = vunpack.c.h.b16 %v599
    %v3298 = vunpack.c.l.b16 %v600
    %v3299 = vunpack.c.h.b16 %v600
    %v3300 = vunpack.c.l.b16 %v601
    %v3301 = vunpack.c.h.b16 %v601
    %v3302 = vunpack.c.l.b16 %v602
    %v3303 = vunpack.c.h.b16 %v602
    %v3304 = vunpack.c.l.b16 %v603
    %v3305 = vunpack.c.h.b16 %v603
    %v3306 = vunpack.c.l.b16 %v604
    %v3307 = vunpack.c.h.b16 %v604
    %v3308 = vunpack.c.l.b16 %v605
    %v3309 = vunpack.c.h.b16 %v605
    %v3310 = vunpack.c.l.b16 %v606
    %v3311 = vunpack.c.h.b16 %v606
    %v3312 = vunpack.c.l.b16 %v607
    %v3313 = vunpack.c.h.b16 %v607
    %v3314 = vunpack.c.l.b16 %v608
    %v3315 = vunpack.c.h.b16 %v608
    %v3316 = vunpack.c.l.b16 %v609
    %v3317 = vunpack.c.h.b16 %v609
    %v3318 = vunpack.c.l.b16 %v610
    %v3319 = vunpack.c.h.b16 %v610
    %v3320 = vunpack.c.l.b16 %v611
    %v3321 = vunpack.c.h.b16 %v611
    %v3322 = vunpack.c.l.b16 %v612
    %v3323 = vunpack.c.h.b16 %v612
    %v3324 = vunpack.c.l.b16 %v613
    %v3325 = vunpack.c.h.b16 %v613
    %v3326 = vunpack.c.l.b16 %v614
    %v3327 = vunpack.c.h.b16 %v614
    %v3328 = vunpack.c.l.b16 %v615
    %v3329 = vunpack.c.h.b16 %v615
    %v3330 = vunpack.c.l.b16 %v616
    %v3331 = vunpack.c.h.b16 %v616
    %v3332 = vunpack.c.l.b16 %v617
    %v3333 = vunpack.c.h.b16 %v617
    %v3334 = vunpack.c.l.b16 %v618
    %v3335 = vunpack.c.h.b16 %v618
    %v3336 = vunpack.c.l.b16 %v619
    %v3337 = vunpack.c.h.b16 %v619
    %v3338 = vunpack.c.l.b16 %v620
    %v3339 = vunpack.c.h.b16 %v620
    %v3340 = vunpack.c.l.b16 %v621
    %v3341 = vunpack.c.h.b16 %v621
    %v3342 = vunpack.c.l.b16 %v622
    %v3343 = vunpack.c.h.b16 %v622
    %v3344 = vunpack.c.l.b16 %v623
    %v3345 = vunpack.c.h.b16 %v623
    %v3346 = vunpack.c.l.b16 %v624
    %v3347 = vunpack.c.h.b16 %v624
    %v3348 = vunpack.c.l.b16 %v625
    %v3349 = vunpack.c.h.b16 %v625
    %v3350 = vunpack.c.l.b16 %v626
    %v3351 = vunpack.c.h.b16 %v626
    %v3352 = vunpack.c.l.b16 %v627
    %v3353 = vunpack.c.h.b16 %v627
    %v3354 = vunpack.c.l.b16 %v628
    %v3355 = vunpack.c.h.b16 %v628
    %v3356 = vunpack.c.l.b16 %v629
    %v3357 = vunpack.c.h.b16 %v629
    %v3358 = vunpack.c.l.b16 %v630
    %v3359 = vunpack.c.h.b16 %v630
    %v3360 = vunpack.c.l.b16 %v631
    %v3361 = vunpack.c.h.b16 %v631
    %v3362 = vunpack.c.l.b16 %v632
    %v3363 = vunpack.c.h.b16 %v632
    %v3364 = vunpack.c.l.b16 %v633
    %v3365 = vunpack.c.h.b16 %v633
    %v3366 = vunpack.c.l.b16 %v634
    %v3367 = vunpack.c.h.b16 %v634
    %v3368 = vunpack.c.l.b16 %v635
    %v3369 = vunpack.c.h.b16 %v635
    %v3370 = vunpack.c.l.b16 %v636
    %v3371 = vunpack.c.h.b16 %v636
    %v3372 = vunpack.c.l.b16 %v637
    %v3373 = vunpack.c.h.b16 %v637
    %v3374 = vunpack.c.l.b16 %v638
    %v3375 = vunpack.c.h.b16 %v638
    %v3376 = vunpack.c.l.b16 %v639
    %v3377 = vunpack.c.h.b16 %v639
    %v3378 = vunpack.c.l.b16 %v640
    %v3379 = vunpack.c.h.b16 %v640
    %v3380 = vunpack.c.l.b16 %v641
    %v3381 = vunpack.c.h.b16 %v641
    %v3382 = vunpack.c.l.b16 %v642
    %v3383 = vunpack.c.h.b16 %v642
    %v3384 = vunpack.c.l.b16 %v643
    %v3385 = vunpack.c.h.b16 %v643
    %v3386 = vunpack.c.l.b16 %v644
    %v3387 = vunpack.c.h.b16 %v644
    %v3388 = vunpack.c.l.b16 %v645
    %v3389 = vunpack.c.h.b16 %v645
    %v3390 = vunpack.c.l.b16 %v646
    %v3391 = vunpack.c.h.b16 %v646
    %v3392 = vunpack.c.l.b16 %v647
    %v3393 = vunpack.c.h.b16 %v647
    %v3394 = vunpack.c.l.b16 %v648
    %v3395 = vunpack.c.h.b16 %v648
    %v3396 = vunpack.c.l.b16 %v649
    %v3397 = vunpack.c.h.b16 %v649
    %v3398 = vunpack.c.l.b16 %v650
    %v3399 = vunpack.c.h.b16 %v650
    %v3400 = vunpack.c.l.b16 %v651
    %v3401 = vunpack.c.h.b16 %v651
    %v3402 = vunpack.c.l.b16 %v652
    %v3403 = vunpack.c.h.b16 %v652
    %v3404 = vunpack.c.l.b16 %v653
    %v3405 = vunpack.c.h.b16 %v653
    %v3406 = vunpack.c.l.b16 %v654
    %v3407 = vunpack.c.h.b16 %v654
    %v3408 = vunpack.c.l.b16 %v655
    %v3409 = vunpack.c.h.b16 %v655
    %v3410 = vunpack.c.l.b16 %v656
    %v3411 = vunpack.c.h.b16 %v656
    %v3412 = vunpack.c.l.b16 %v657
    %v3413 = vunpack.c.h.b16 %v657
    %v3414 = vunpack.c.l.b16 %v658
    %v3415 = vunpack.c.h.b16 %v658
    %v3416 = vunpack.c.l.b16 %v659
    %v3417 = vunpack.c.h.b16 %v659
    %v3418 = vunpack.c.l.b16 %v660
    %v3419 = vunpack.c.h.b16 %v660
    %v3420 = vunpack.c.l.b16 %v661
    %v3421 = vunpack.c.h.b16 %v661
    %v3422 = vunpack.c.l.b16 %v662
    %v3423 = vunpack.c.h.b16 %v662
    %v3424 = vunpack.c.l.b16 %v663
    %v3425 = vunpack.c.h.b16 %v663
    %v3426 = vunpack.c.l.b16 %v664
    %v3427 = vunpack.c.h.b16 %v664
    %v3428 = vunpack.c.l.b16 %v665
    %v3429 = vunpack.c.h.b16 %v665
    %v3430 = vunpack.c.l.b16 %v666
    %v3431 = vunpack.c.h.b16 %v666
    %v3432 = vunpack.c.l.b16 %v667
    %v3433 = vunpack.c.h.b16 %v667
    %v3434 = vunpack.c.l.b16 %v668
    %v3435 = vunpack.c.h.b16 %v668
    %v3436 = vunpack.c.l.b16 %v669
    %v3437 = vunpack.c.h.b16 %v669
    %v3438 = vunpack.c.l.b16 %v670
    %v3439 = vunpack.c.h.b16 %v670
    %v3440 = vunpack.c.l.b16 %v671
    %v3441 = vunpack.c.h.b16 %v671
    %v3442 = vunpack.c.l.b16 %v672
    %v3443 = vunpack.c.h.b16 %v672
    %v3444 = vunpack.c.l.b16 %v673
    %v3445 = vunpack.c.h.b16 %v673
    %v3446 = vunpack.c.l.b16 %v674
    %v3447 = vunpack.c.h.b16 %v674
    %v3448 = vunpack.c.l.b16 %v675
    %v3449 = vunpack.c.h.b16 %v675
    %v3450 = vunpack.c.l.b16 %v676
    %v3451 = vunpack.c.h.b16 %v676
    %v3452 = vunpack.c.l.b16 %v677
    %v3453 = vunpack.c.h.b16 %v677
    %v3454 = vunpack.c.l.b16 %v678
    %v3455 = vunpack.c.h.b16 %v678
    %v3456 = vunpack.c.l.b16 %v679
    %v3457 = vunpack.c.h.b16 %v679
    %v3458 = vunpack.c.l.b16 %v680
    %v3459 = vunpack.c.h.b16 %v680
    %v3460 = vunpack.c.l.b16 %v681
    %v3461 = vunpack.c.h.b16 %v681
    %v3462 = vunpack.c.l.b16 %v682
    %v3463 = vunpack.c.h.b16 %v682
    %v3464 = vunpack.c.l.b16 %v683
    %v3465 = vunpack.c.h.b16 %v683
    %v3466 = vunpack.c.l.b16 %v684
    %v3467 = vunpack.c.h.b16 %v684
    %v3468 = vunpack.c.l.b16 %v685
    %v3469 = vunpack.c.h.b16 %v685
    %v3470 = vunpack.c.l.b16 %v686
    %v3471 = vunpack.c.h.b16 %v686
    %v3472 = vunpack.c.l.b16 %v687
    %v3473 = vunpack.c.h.b16 %v687
    %v3474 = vunpack.c.l.b16 %v688
    %v3475 = vunpack.c.h.b16 %v688
    %v3476 = vunpack.c.l.b16 %v689
    %v3477 = vunpack.c.h.b16 %v689
    %v3478 = vunpack.c.l.b16 %v690
    %v3479 = vunpack.c.h.b16 %v690
    %v3480 = vunpack.c.l.b16 %v691
    %v3481 = vunpack.c.h.b16 %v691
    %v3482 = vunpack.c.l.b16 %v692
    %v3483 = vunpack.c.h.b16 %v692
    %v3484 = vunpack.c.l.b16 %v693
    %v3485 = vunpack.c.h.b16 %v693
    %v3486 = vunpack.c.l.b16 %v694
    %v3487 = vunpack.c.h.b16 %v694
    %v3488 = vunpack.c.l.b16 %v695
    %v3489 = vunpack.c.h.b16 %v695
    %v3490 = vunpack.c.l.b16 %v696
    %v3491 = vunpack.c.h.b16 %v696
    %v3492 = vunpack.c.l.b16 %v697
    %v3493 = vunpack.c.h.b16 %v697
    %v3494 = vunpack.c.l.b16 %v698
    %v3495 = vunpack.c.h.b16 %v698
    %v3496 = vunpack.c.l.b16 %v699
    %v3497 = vunpack.c.h.b16 %v699
    %v3498 = vunpack.c.l.b16 %v700
    %v3499 = vunpack.c.h.b16 %v700
    %v3500 = vunpack.c.l.b16 %v701
    %v3501 = vunpack.c.h.b16 %v701
    %v3502 = vunpack.c.l.b16 %v702
    %v3503 = vunpack.c.h.b16 %v702
    %v3504 = vunpack.c.l.b16 %v703
    %v3505 = vunpack.c.h.b16 %v703
    %v3506 = vunpack.c.l.b16 %v704
    %v3507 = vunpack.c.h.b16 %v704
    %v3508 = vunpack.c.l.b16 %v705
    %v3509 = vunpack.c.h.b16 %v705
    %v3510 = vunpack.c.l.b16 %v706
    %v3511 = vunpack.c.h.b16 %v706
    %v3512 = vunpack.c.l.b16 %v707
    %v3513 = vunpack.c.h.b16 %v707
    %v3514 = vunpack.c.l.b16 %v708
    %v3515 = vunpack.c.h.b16 %v708
    %v3516 = vunpack.c.l.b16 %v709
    %v3517 = vunpack.c.h.b16 %v709
    %v3518 = vunpack.c.l.b16 %v710
    %v3519 = vunpack.c.h.b16 %v710
    %v3520 = vunpack.c.l.b16 %v711
    %v3521 = vunpack.c.h.b16 %v711
    %v3522 = vunpack.c.l.b16 %v712
    %v3523 = vunpack.c.h.b16 %v712
    %v3524 = vunpack.c.l.b16 %v713
    %v3525 = vunpack.c.h.b16 %v713
    %v3526 = vunpack.c.l.b16 %v714
    %v3527 = vunpack.c.h.b16 %v714
    %v3528 = vunpack.c.l.b16 %v715
    %v3529 = vunpack.c.h.b16 %v715
    %v3530 = vunpack.c.l.b16 %v716
    %v3531 = vunpack.c.h.b16 %v716
    %v3532 = vunpack.c.l.b16 %v717
    %v3533 = vunpack.c.h.b16 %v717
    %v3534 = vunpack.c.l.b16 %v718
    %v3535 = vunpack.c.h.b16 %v718
    %v3536 = vunpack.c.l.b16 %v719
    %v3537 = vunpack.c.h.b16 %v719
    %v3538 = vunpack.c.l.b16 %v720
    %v3539 = vunpack.c.h.b16 %v720
    %v3540 = vunpack.c.l.b16 %v721
    %v3541 = vunpack.c.h.b16 %v721
    %v3542 = vunpack.c.l.b16 %v722
    %v3543 = vunpack.c.h.b16 %v722
    %v3544 = vunpack.c.l.b16 %v723
    %v3545 = vunpack.c.h.b16 %v723
    %v3546 = vunpack.c.l.b16 %v724
    %v3547 = vunpack.c.h.b16 %v724
    %v3548 = vunpack.c.l.b16 %v725
    %v3549 = vunpack.c.h.b16 %v725
    %v3550 = vunpack.c.l.b16 %v726
    %v3551 = vunpack.c.h.b16 %v726
    %v3552 = vunpack.c.l.b16 %v727
    %v3553 = vunpack.c.h.b16 %v727
    %v3554 = vunpack.c.l.b16 %v728
    %v3555 = vunpack.c.h.b16 %v728
    %v3556 = vunpack.c.l.b16 %v729
    %v3557 = vunpack.c.h.b16 %v729
    %v3558 = vunpack.c.l.b16 %v730
    %v3559 = vunpack.c.h.b16 %v730
    %v3560 = vunpack.c.l.b16 %v731
    %v3561 = vunpack.c.h.b16 %v731
    %v3562 = vunpack.c.l.b16 %v732
    %v3563 = vunpack.c.h.b16 %v732
    %v3564 = vunpack.c.l.b16 %v733
    %v3565 = vunpack.c.h.b16 %v733
    %v3566 = vunpack.c.l.b16 %v734
    %v3567 = vunpack.c.h.b16 %v734
    %v3568 = vunpack.c.l.b16 %v735
    %v3569 = vunpack.c.h.b16 %v735
    %v3570 = vunpack.c.l.b16 %v736
    %v3571 = vunpack.c.h.b16 %v736
    %v3572 = vunpack.c.l.b16 %v737
    %v3573 = vunpack.c.h.b16 %v737
    %v3574 = vunpack.c.l.b16 %v738
    %v3575 = vunpack.c.h.b16 %v738
    %v3576 = vunpack.c.l.b16 %v739
    %v3577 = vunpack.c.h.b16 %v739
    %v3578 = vunpack.c.l.b16 %v740
    %v3579 = vunpack.c.h.b16 %v740
    %v3580 = vunpack.c.l.b16 %v741
    %v3581 = vunpack.c.h.b16 %v741
    %v3582 = vunpack.c.l.b16 %v742
    %v3583 = vunpack.c.h.b16 %v742
    %v3584 = vunpack.c.l.b16 %v743
    %v3585 = vunpack.c.h.b16 %v743
    %v3586 = vunpack.c.l.b16 %v744
    %v3587 = vunpack.c.h.b16 %v744
    %v3588 = vunpack.c.l.b16 %v745
    %v3589 = vunpack.c.h.b16 %v745
    %v3590 = vunpack.c.l.b16 %v746
    %v3591 = vunpack.c.h.b16 %v746
    %v3592 = vunpack.c.l.b16 %v747
    %v3593 = vunpack.c.h.b16 %v747
    %v3594 = vunpack.c.l.b16 %v748
    %v3595 = vunpack.c.h.b16 %v748
    %v3596 = vunpack.c.l.b16 %v749
    %v3597 = vunpack.c.h.b16 %v749
    %v3598 = vunpack.c.l.b16 %v750
    %v3599 = vunpack.c.h.b16 %v750
    %v3600 = vunpack.c.l.b16 %v751
    %v3601 = vunpack.c.h.b16 %v751
    %v3602 = vunpack.c.l.b16 %v752
    %v3603 = vunpack.c.h.b16 %v752
    %v3604 = vunpack.c.l.b16 %v753
    %v3605 = vunpack.c.h.b16 %v753
    %v3606 = vunpack.c.l.b16 %v754
    %v3607 = vunpack.c.h.b16 %v754
    %v3608 = vunpack.c.l.b16 %v755
    %v3609 = vunpack.c.h.b16 %v755
    %v3610 = vunpack.c.l.b16 %v756
    %v3611 = vunpack.c.h.b16 %v756
    %v3612 = vunpack.c.l.b16 %v757
    %v3613 = vunpack.c.h.b16 %v757
    %v3614 = vunpack.c.l.b16 %v758
    %v3615 = vunpack.c.h.b16 %v758
    %v3616 = vunpack.c.l.b16 %v759
    %v3617 = vunpack.c.h.b16 %v759
    %v3618 = vunpack.c.l.b16 %v760
    %v3619 = vunpack.c.h.b16 %v760
    %v3620 = vunpack.c.l.b16 %v761
    %v3621 = vunpack.c.h.b16 %v761
    %v3622 = vunpack.c.l.b16 %v762
    %v3623 = vunpack.c.h.b16 %v762
    %v3624 = vunpack.c.l.b16 %v763
    %v3625 = vunpack.c.h.b16 %v763
    %v3626 = vunpack.c.l.b16 %v764
    %v3627 = vunpack.c.h.b16 %v764
    %v3628 = vunpack.c.l.b16 %v765
    %v3629 = vunpack.c.h.b16 %v765
    %v3630 = vunpack.c.l.b16 %v766
    %v3631 = vunpack.c.h.b16 %v766
    %v3632 = vunpack.c.l.b16 %v767
    %v3633 = vunpack.c.h.b16 %v767
    %v3634 = vunpack.c.l.b16 %v768
    %v3635 = vunpack.c.h.b16 %v768
    %v3636 = vunpack.c.l.b16 %v769
    %v3637 = vunpack.c.h.b16 %v769
    %v3638 = vunpack.c.l.b16 %v770
    %v3639 = vunpack.c.h.b16 %v770
    %v3640 = vunpack.c.l.b16 %v771
    %v3641 = vunpack.c.h.b16 %v771
    %v3642 = vunpack.c.l.b16 %v772
    %v3643 = vunpack.c.h.b16 %v772
    %v3644 = vunpack.c.l.b16 %v773
    %v3645 = vunpack.c.h.b16 %v773
    %v3646 = vunpack.c.l.b16 %v774
    %v3647 = vunpack.c.h.b16 %v774
    %v3648 = vunpack.c.l.b16 %v775
    %v3649 = vunpack.c.h.b16 %v775
    %v3650 = vunpack.c.l.b16 %v776
    %v3651 = vunpack.c.h.b16 %v776
    %v3652 = vunpack.c.l.b16 %v777
    %v3653 = vunpack.c.h.b16 %v777
    %v3654 = vunpack.c.l.b16 %v778
    %v3655 = vunpack.c.h.b16 %v778
    %v3656 = vunpack.c.l.b16 %v779
    %v3657 = vunpack.c.h.b16 %v779
    %v3658 = vunpack.c.l.b16 %v780
    %v3659 = vunpack.c.h.b16 %v780
    %v3660 = vunpack.c.l.b16 %v781
    %v3661 = vunpack.c.h.b16 %v781
    %v3662 = vunpack.c.l.b16 %v782
    %v3663 = vunpack.c.h.b16 %v782
    %v3664 = vunpack.c.l.b16 %v783
    %v3665 = vunpack.c.h.b16 %v783
    %v3666 = vunpack.c.l.b16 %v784
    %v3667 = vunpack.c.h.b16 %v784
    %v3668 = vunpack.c.l.b16 %v785
    %v3669 = vunpack.c.h.b16 %v785
    %v3670 = vunpack.c.l.b16 %v786
    %v3671 = vunpack.c.h.b16 %v786
    %v3672 = vunpack.c.l.b16 %v787
    %v3673 = vunpack.c.h.b16 %v787
    %v3674 = vunpack.c.l.b16 %v788
    %v3675 = vunpack.c.h.b16 %v788
    %v3676 = vunpack.c.l.b16 %v789
    %v3677 = vunpack.c.h.b16 %v789
    %v3678 = vunpack.c.l.b16 %v790
    %v3679 = vunpack.c.h.b16 %v790
    %v3680 = vunpack.c.l.b16 %v791
    %v3681 = vunpack.c.h.b16 %v791
    %v3682 = vunpack.c.l.b16 %v792
    %v3683 = vunpack.c.h.b16 %v792
    %v3684 = vunpack.c.l.b16 %v793
    %v3685 = vunpack.c.h.b16 %v793
    %v3686 = vunpack.c.l.b16 %v794
    %v3687 = vunpack.c.h.b16 %v794
    %v3688 = vunpack.c.l.b16 %v795
    %v3689 = vunpack.c.h.b16 %v795
    %v3690 = vunpack.c.l.b16 %v796
    %v3691 = vunpack.c.h.b16 %v796
    %v3692 = vunpack.c.l.b16 %v797
    %v3693 = vunpack.c.h.b16 %v797
    %v3694 = vunpack.c.l.b16 %v798
    %v3695 = vunpack.c.h.b16 %v798
    %v3696 = vunpack.c.l.b16 %v799
    %v3697 = vunpack.c.h.b16 %v799
    %v3698 = vunpack.c.l.b16 %v800
    %v3699 = vunpack.c.h.b16 %v800
    %v3700 = vunpack.c.l.b16 %v801
    %v3701 = vunpack.c.h.b16 %v801
    %v3702 = vunpack.c.l.b16 %v802
    %v3703 = vunpack.c.h.b16 %v802
    %v3704 = vunpack.c.l.b16 %v803
    %v3705 = vunpack.c.h.b16 %v803
    %v3706 = vunpack.c.l.b16 %v804
    %v3707 = vunpack.c.h.b16 %v804
    %v3708 = vunpack.c.l.b16 %v805
    %v3709 = vunpack.c.h.b16 %v805
    %v3710 = vunpack.c.l.b16 %v806
    %v3711 = vunpack.c.h.b16 %v806
    %v3712 = vunpack.c.l.b16 %v807
    %v3713 = vunpack.c.h.b16 %v807
    %v3714 = vunpack.c.l.b16 %v808
    %v3715 = vunpack.c.h.b16 %v808
    %v3716 = vunpack.c.l.b16 %v809
    %v3717 = vunpack.c.h.b16 %v809
    %v3718 = vunpack.c.l.b16 %v810
    %v3719 = vunpack.c.h.b16 %v810
    %v3720 = vunpack.c.l.b16 %v811
    %v3721 = vunpack.c.h.b16 %v811
    %v3722 = vunpack.c.l.b16 %v812
    %v3723 = vunpack.c.h.b16 %v812
    %v3724 = vunpack.c.l.b16 %v813
    %v3725 = vunpack.c.h.b16 %v813
    %v3726 = vunpack.c.l.b16 %v814
    %v3727 = vunpack.c.h.b16 %v814
    %v3728 = vunpack.c.l.b16 %v815
    %v3729 = vunpack.c.h.b16 %v815
    %v3730 = vunpack.c.l.b16 %v816
    %v3731 = vunpack.c.h.b16 %v816
    %v3732 = vunpack.c.l.b16 %v817
    %v3733 = vunpack.c.h.b16 %v817
    %v3734 = vunpack.c.l.b16 %v818
    %v3735 = vunpack.c.h.b16 %v818
    %v3736 = vunpack.c.l.b16 %v819
    %v3737 = vunpack.c.h.b16 %v819
    %v3738 = vunpack.c.l.b16 %v820
    %v3739 = vunpack.c.h.b16 %v820
    %v3740 = vunpack.c.l.b16 %v821
    %v3741 = vunpack.c.h.b16 %v821
    %v3742 = vunpack.c.l.b16 %v822
    %v3743 = vunpack.c.h.b16 %v822
    %v3744 = vunpack.c.l.b16 %v823
    %v3745 = vunpack.c.h.b16 %v823
    %v3746 = vunpack.c.l.b16 %v824
    %v3747 = vunpack.c.h.b16 %v824
    %v3748 = vunpack.c.l.b16 %v825
    %v3749 = vunpack.c.h.b16 %v825
    %v3750 = vunpack.c.l.b16 %v826
    %v3751 = vunpack.c.h.b16 %v826
    %v3752 = vunpack.c.l.b16 %v827
    %v3753 = vunpack.c.h.b16 %v827
    %v3754 = vunpack.c.l.b16 %v828
    %v3755 = vunpack.c.h.b16 %v828
    %v3756 = vunpack.c.l.b16 %v829
    %v3757 = vunpack.c.h.b16 %v829
    %v3758 = vunpack.c.l.b16 %v830
    %v3759 = vunpack.c.h.b16 %v830
    %v3760 = vunpack.c.l.b16 %v831
    %v3761 = vunpack.c.h.b16 %v831
    %v3762 = vunpack.c.l.b16 %v832
    %v3763 = vunpack.c.h.b16 %v832
    %v3764 = vunpack.c.l.b16 %v833
    %v3765 = vunpack.c.h.b16 %v833
    %v3766 = vunpack.c.l.b16 %v834
    %v3767 = vunpack.c.h.b16 %v834
    %v3768 = vunpack.c.l.b16 %v835
    %v3769 = vunpack.c.h.b16 %v835
    %v3770 = vunpack.c.l.b16 %v836
    %v3771 = vunpack.c.h.b16 %v836
    %v3772 = vunpack.c.l.b16 %v837
    %v3773 = vunpack.c.h.b16 %v837
    %v3774 = vunpack.c.l.b16 %v838
    %v3775 = vunpack.c.h.b16 %v838
    %v3776 = vunpack.c.l.b16 %v839
    %v3777 = vunpack.c.h.b16 %v839
    %v3778 = vunpack.c.l.b16 %v840
    %v3779 = vunpack.c.h.b16 %v840
    %v3780 = vunpack.c.l.b16 %v841
    %v3781 = vunpack.c.h.b16 %v841
    %v3782 = vunpack.c.l.b16 %v842
    %v3783 = vunpack.c.h.b16 %v842
    %v3784 = vunpack.c.l.b16 %v843
    %v3785 = vunpack.c.h.b16 %v843
    %v3786 = vunpack.c.l.b16 %v844
    %v3787 = vunpack.c.h.b16 %v844
    %v3788 = vunpack.c.l.b16 %v845
    %v3789 = vunpack.c.h.b16 %v845
    %v3790 = vunpack.c.l.b16 %v846
    %v3791 = vunpack.c.h.b16 %v846
    %v3792 = vunpack.c.l.b16 %v847
    %v3793 = vunpack.c.h.b16 %v847
    %v3794 = vunpack.c.l.b16 %v848
    %v3795 = vunpack.c.h.b16 %v848
    %v3796 = vunpack.c.l.b16 %v849
    %v3797 = vunpack.c.h.b16 %v849
    %v3798 = vunpack.c.l.b16 %v850
    %v3799 = vunpack.c.h.b16 %v850
    %v3800 = vunpack.c.l.b16 %v851
    %v3801 = vunpack.c.h.b16 %v851
    %v3802 = vunpack.c.l.b16 %v852
    %v3803 = vunpack.c.h.b16 %v852
    %v3804 = vunpack.c.l.b16 %v853
    %v3805 = vunpack.c.h.b16 %v853
    %v3806 = vunpack.c.l.b16 %v854
    %v3807 = vunpack.c.h.b16 %v854
    %v3808 = vunpack.c.l.b16 %v855
    %v3809 = vunpack.c.h.b16 %v855
    %v3810 = vunpack.c.l.b16 %v856
    %v3811 = vunpack.c.h.b16 %v856
    %v3812 = vunpack.c.l.b16 %v857
    %v3813 = vunpack.c.h.b16 %v857
    %v3814 = vunpack.c.l.b16 %v858
    %v3815 = vunpack.c.h.b16 %v858
    %v3816 = vunpack.c.l.b16 %v859
    %v3817 = vunpack.c.h.b16 %v859
    %v3818 = vunpack.c.l.b16 %v860
    %v3819 = vunpack.c.h.b16 %v860
    %v3820 = vunpack.c.l.b16 %v861
    %v3821 = vunpack.c.h.b16 %v861
    %v3822 = vunpack.c.l.b16 %v862
    %v3823 = vunpack.c.h.b16 %v862
    %v3824 = vunpack.c.l.b16 %v863
    %v3825 = vunpack.c.h.b16 %v863
    %v3826 = vunpack.c.l.b16 %v864
    %v3827 = vunpack.c.h.b16 %v864
    %v3828 = vunpack.c.l.b16 %v865
    %v3829 = vunpack.c.h.b16 %v865
    %v3830 = vunpack.c.l.b16 %v866
    %v3831 = vunpack.c.h.b16 %v866
    %v3832 = vunpack.c.l.b16 %v867
    %v3833 = vunpack.c.h.b16 %v867
    %v3834 = vunpack.c.l.b16 %v868
    %v3835 = vunpack.c.h.b16 %v868
    %v3836 = vunpack.c.l.b16 %v869
    %v3837 = vunpack.c.h.b16 %v869
    %v3838 = vunpack.c.l.b16 %v870
    %v3839 = vunpack.c.h.b16 %v870
    %v3840 = vunpack.c.l.b16 %v871
    %v3841 = vunpack.c.h.b16 %v871
    %v3842 = vunpack.c.l.b16 %v872
    %v3843 = vunpack.c.h.b16 %v872
    %v3844 = vunpack.c.l.b16 %v873
    %v3845 = vunpack.c.h.b16 %v873
    %v3846 = vunpack.c.l.b16 %v874
    %v3847 = vunpack.c.h.b16 %v874
    %v3848 = vunpack.c.l.b16 %v875
    %v3849 = vunpack.c.h.b16 %v875
    %v3850 = vunpack.c.l.b16 %v876
    %v3851 = vunpack.c.h.b16 %v876
    %v3852 = vunpack.c.l.b16 %v877
    %v3853 = vunpack.c.h.b16 %v877
    %v3854 = vunpack.c.l.b16 %v878
    %v3855 = vunpack.c.h.b16 %v878
    %v3856 = vunpack.c.l.b16 %v879
    %v3857 = vunpack.c.h.b16 %v879
    %v3858 = vunpack.c.l.b16 %v880
    %v3859 = vunpack.c.h.b16 %v880
    %v3860 = vunpack.c.l.b16 %v881
    %v3861 = vunpack.c.h.b16 %v881
    %v3862 = vunpack.c.l.b16 %v882
    %v3863 = vunpack.c.h.b16 %v882
    %v3864 = vunpack.c.l.b16 %v883
    %v3865 = vunpack.c.h.b16 %v883
    %v3866 = vunpack.c.l.b16 %v884
    %v3867 = vunpack.c.h.b16 %v884
    %v3868 = vunpack.c.l.b16 %v885
    %v3869 = vunpack.c.h.b16 %v885
    %v3870 = vunpack.c.l.b16 %v886
    %v3871 = vunpack.c.h.b16 %v886
    %v3872 = vunpack.c.l.b16 %v887
    %v3873 = vunpack.c.h.b16 %v887
    %v3874 = vunpack.c.l.b16 %v888
    %v3875 = vunpack.c.h.b16 %v888
    %v3876 = vunpack.c.l.b16 %v889
    %v3877 = vunpack.c.h.b16 %v889
    %v3878 = vunpack.c.l.b16 %v890
    %v3879 = vunpack.c.h.b16 %v890
    %v3880 = vunpack.c.l.b16 %v891
    %v3881 = vunpack.c.h.b16 %v891
    %v3882 = vunpack.c.l.b16 %v892
    %v3883 = vunpack.c.h.b16 %v892
    %v3884 = vunpack.c.l.b16 %v893
    %v3885 = vunpack.c.h.b16 %v893
    %v3886 = vunpack.c.l.b16 %v894
    %v3887 = vunpack.c.h.b16 %v894
    %v3888 = vunpack.c.l.b16 %v895
    %v3889 = vunpack.c.h.b16 %v895
    %v3890 = vunpack.c.l.b16 %v896
    %v3891 = vunpack.c.h.b16 %v896
    %v3892 = vunpack.c.l.b16 %v897
    %v3893 = vunpack.c.h.b16 %v897
    %v3894 = vunpack.c.l.b16 %v898
    %v3895 = vunpack.c.h.b16 %v898
    %v3896 = vunpack.c.l.b16 %v899
    %v3897 = vunpack.c.h.b16 %v899
    %v3898 = vunpack.c.l.b16 %v900
    %v3899 = vunpack.c.h.b16 %v900
    %v3900 = vunpack.c.l.b16 %v901
    %v3901 = vunpack.c.h.b16 %v901
    %v3902 = vunpack.c.l.b16 %v902
    %v3903 = vunpack.c.h.b16 %v902
    %v3904 = vunpack.c.l.b16 %v903
    %v3905 = vunpack.c.h.b16 %v903
    %v3906 = vunpack.c.l.b16 %v904
    %v3907 = vunpack.c.h.b16 %v904
    %v3908 = vunpack.c.l.b16 %v905
    %v3909 = vunpack.c.h.b16 %v905
    %v3910 = vunpack.c.l.b16 %v906
    %v3911 = vunpack.c.h.b16 %v906
    %v3912 = vunpack.c.l.b16 %v907
    %v3913 = vunpack.c.h.b16 %v907
    %v3914 = vunpack.c.l.b16 %v908
    %v3915 = vunpack.c.h.b16 %v908
    %v3916 = vunpack.c.l.b16 %v909
    %v3917 = vunpack.c.h.b16 %v909
    %v3918 = vunpack.c.l.b16 %v910
    %v3919 = vunpack.c.h.b16 %v910
    %v3920 = vunpack.c.l.b16 %v911
    %v3921 = vunpack.c.h.b16 %v911
    %v3922 = vunpack.c.l.b16 %v912
    %v3923 = vunpack.c.h.b16 %v912
    %v3924 = vunpack.c.l.b16 %v913
    %v3925 = vunpack.c.h.b16 %v913
    %v3926 = vunpack.c.l.b16 %v914
    %v3927 = vunpack.c.h.b16 %v914
    %v3928 = vunpack.c.l.b16 %v915
    %v3929 = vunpack.c.h.b16 %v915
    %v3930 = vunpack.c.l.b16 %v916
    %v3931 = vunpack.c.h.b16 %v916
    %v3932 = vunpack.c.l.b16 %v917
    %v3933 = vunpack.c.h.b16 %v917
    %v3934 = vunpack.c.l.b16 %v918
    %v3935 = vunpack.c.h.b16 %v918
    %v3936 = vunpack.c.l.b16 %v919
    %v3937 = vunpack.c.h.b16 %v919
    %v3938 = vunpack.c.l.b16 %v920
    %v3939 = vunpack.c.h.b16 %v920
    %v3940 = vunpack.c.l.b16 %v921
    %v3941 = vunpack.c.h.b16 %v921
    %v3942 = vunpack.c.l.b16 %v922
    %v3943 = vunpack.c.h.b16 %v922
    %v3944 = vunpack.c.l.b16 %v923
    %v3945 = vunpack.c.h.b16 %v923
    %v3946 = vunpack.c.l.b16 %v924
    %v3947 = vunpack.c.h.b16 %v924
    %v3948 = vunpack.c.l.b16 %v925
    %v3949 = vunpack.c.h.b16 %v925
    %v3950 = vunpack.c.l.b16 %v926
    %v3951 = vunpack.c.h.b16 %v926
    %v3952 = vunpack.c.l.b16 %v927
    %v3953 = vunpack.c.h.b16 %v927
    %v3954 = vunpack.c.l.b16 %v928
    %v3955 = vunpack.c.h.b16 %v928
    %v3956 = vunpack.c.l.b16 %v929
    %v3957 = vunpack.c.h.b16 %v929
    %v3958 = vunpack.c.l.b16 %v930
    %v3959 = vunpack.c.h.b16 %v930
    %v3960 = vunpack.c.l.b16 %v931
    %v3961 = vunpack.c.h.b16 %v931
    %v3962 = vunpack.c.l.b16 %v932
    %v3963 = vunpack.c.h.b16 %v932
    %v3964 = vunpack.c.l.b16 %v933
    %v3965 = vunpack.c.h.b16 %v933
    %v3966 = vunpack.c.l.b16 %v934
    %v3967 = vunpack.c.h.b16 %v934
    %v3968 = vunpack.c.l.b16 %v935
    %v3969 = vunpack.c.h.b16 %v935
    %v3970 = vunpack.c.l.b16 %v936
    %v3971 = vunpack.c.h.b16 %v936
    %v3972 = vunpack.c.l.b16 %v937
    %v3973 = vunpack.c.h.b16 %v937
    %v3974 = vunpack.c.l.b16 %v938
    %v3975 = vunpack.c.h.b16 %v938
    %v3976 = vunpack.c.l.b16 %v939
    %v3977 = vunpack.c.h.b16 %v939
    %v3978 = vunpack.c.l.b16 %v940
    %v3979 = vunpack.c.h.b16 %v940
    %v3980 = vunpack.c.l.b16 %v941
    %v3981 = vunpack.c.h.b16 %v941
    %v3982 = vunpack.c.l.b16 %v942
    %v3983 = vunpack.c.h.b16 %v942
    %v3984 = vunpack.c.l.b16 %v943
    %v3985 = vunpack.c.h.b16 %v943
    %v3986 = vunpack.c.l.b16 %v944
    %v3987 = vunpack.c.h.b16 %v944
    %v3988 = vunpack.c.l.b16 %v945
    %v3989 = vunpack.c.h.b16 %v945
    %v3990 = vunpack.c.l.b16 %v946
    %v3991 = vunpack.c.h.b16 %v946
    %v3992 = vunpack.c.l.b16 %v947
    %v3993 = vunpack.c.h.b16 %v947
    %v3994 = vunpack.c.l.b16 %v948
    %v3995 = vunpack.c.h.b16 %v948
    %v3996 = vunpack.c.l.b16 %v949
    %v3997 = vunpack.c.h.b16 %v949
    %v3998 = vunpack.c.l.b16 %v950
    %v3999 = vunpack.c.h.b16 %v950
    %v4000 = vunpack.c.l.b16 %v951
    %v4001 = vunpack.c.h.b16 %v951
    %v4002 = vunpack.c.l.b16 %v952
    %v4003 = vunpack.c.h.b16 %v952
    %v4004 = vunpack.c.l.b16 %v953
    %v4005 = vunpack.c.h.b16 %v953
    %v4006 = vunpack.c.l.b16 %v954
    %v4007 = vunpack.c.h.b16 %v954
    %v4008 = vunpack.c.l.b16 %v955
    %v4009 = vunpack.c.h.b16 %v955
    %v4010 = vunpack.c.l.b16 %v956
    %v4011 = vunpack.c.h.b16 %v956
    %v4012 = vunpack.c.l.b16 %v957
    %v4013 = vunpack.c.h.b16 %v957
    %v4014 = vunpack.c.l.b16 %v958
    %v4015 = vunpack.c.h.b16 %v958
    %v4016 = vunpack.c.l.b16 %v959
    %v4017 = vunpack.c.h.b16 %v959
    %v4018 = vunpack.c.l.b16 %v960
    %v4019 = vunpack.c.h.b16 %v960
    %v4020 = vunpack.c.l.b16 %v961
    %v4021 = vunpack.c.h.b16 %v961
    %v4022 = vunpack.c.l.b16 %v962
    %v4023 = vunpack.c.h.b16 %v962
    %v4024 = vunpack.c.l.b16 %v963
    %v4025 = vunpack.c.h.b16 %v963
    %v4026 = vunpack.c.l.b16 %v964
    %v4027 = vunpack.c.h.b16 %v964
    %v4028 = vunpack.c.l.b16 %v965
    %v4029 = vunpack.c.h.b16 %v965
    %v4030 = vunpack.c.l.b16 %v966
    %v4031 = vunpack.c.h.b16 %v966
    %v4032 = vunpack.c.l.b16 %v967
    %v4033 = vunpack.c.h.b16 %v967
    %v4034 = vunpack.c.l.b16 %v968
    %v4035 = vunpack.c.h.b16 %v968
    %v4036 = vunpack.c.l.b16 %v969
    %v4037 = vunpack.c.h.b16 %v969
    %v4038 = vunpack.c.l.b16 %v970
    %v4039 = vunpack.c.h.b16 %v970
    %v4040 = vunpack.c.l.b16 %v971
    %v4041 = vunpack.c.h.b16 %v971
    %v4042 = vunpack.c.l.b16 %v972
    %v4043 = vunpack.c.h.b16 %v972
    %v4044 = vunpack.c.l.b16 %v973
    %v4045 = vunpack.c.h.b16 %v973
    %v4046 = vunpack.c.l.b16 %v974
    %v4047 = vunpack.c.h.b16 %v974
    %v4048 = vunpack.c.l.b16 %v975
    %v4049 = vunpack.c.h.b16 %v975
    %v4050 = vunpack.c.l.b16 %v976
    %v4051 = vunpack.c.h.b16 %v976
    %v4052 = vunpack.c.l.b16 %v977
    %v4053 = vunpack.c.h.b16 %v977
    %v4054 = vunpack.c.l.b16 %v978
    %v4055 = vunpack.c.h.b16 %v978
    %v4056 = vunpack.c.l.b16 %v979
    %v4057 = vunpack.c.h.b16 %v979
    %v4058 = vunpack.c.l.b16 %v980
    %v4059 = vunpack.c.h.b16 %v980
    %v4060 = vunpack.c.l.b16 %v981
    %v4061 = vunpack.c.h.b16 %v981
    %v4062 = vunpack.c.l.b16 %v982
    %v4063 = vunpack.c.h.b16 %v982
    %v4064 = vunpack.c.l.b16 %v983
    %v4065 = vunpack.c.h.b16 %v983
    %v4066 = vunpack.c.l.b16 %v984
    %v4067 = vunpack.c.h.b16 %v984
    %v4068 = vunpack.c.l.b16 %v985
    %v4069 = vunpack.c.h.b16 %v985
    %v4070 = vunpack.c.l.b16 %v986
    %v4071 = vunpack.c.h.b16 %v986
    %v4072 = vunpack.c.l.b16 %v987
    %v4073 = vunpack.c.h.b16 %v987
    %v4074 = vunpack.c.l.b16 %v988
    %v4075 = vunpack.c.h.b16 %v988
    %v4076 = vunpack.c.l.b16 %v989
    %v4077 = vunpack.c.h.b16 %v989
    %v4078 = vunpack.c.l.b16 %v990
    %v4079 = vunpack.c.h.b16 %v990
    %v4080 = vunpack.c.l.b16 %v991
    %v4081 = vunpack.c.h.b16 %v991
    %v4082 = vunpack.c.l.b16 %v992
    %v4083 = vunpack.c.h.b16 %v992
    %v4084 = vunpack.c.l.b16 %v993
    %v4085 = vunpack.c.h.b16 %v993
    %v4086 = vunpack.c.l.b16 %v994
    %v4087 = vunpack.c.h.b16 %v994
    %v4088 = vunpack.c.l.b16 %v995
    %v4089 = vunpack.c.h.b16 %v995
    %v4090 = vunpack.c.l.b16 %v996
    %v4091 = vunpack.c.h.b16 %v996
    %v4092 = vunpack.c.l.b16 %v997
    %v4093 = vunpack.c.h.b16 %v997
    %v4094 = vunpack.c.l.b16 %v998
    %v4095 = vunpack.c.h.b16 %v998
    %v4096 = vunpack.c.l.b16 %v999
    %v4097 = vunpack.c.h.b16 %v999
    %v4098 = vunpack.c.l.b16 %v1000
    %v4099 = vunpack.c.h.b16 %v1000
    %v4100 = vunpack.c.l.b16 %v1001
    %v4101 = vunpack.c.h.b16 %v1001
    %v4102 = vunpack.c.l.b16 %v1002
    %v4103 = vunpack.c.h.b16 %v1002
    %v4104 = vunpack.c.l.b16 %v1003
    %v4105 = vunpack.c.h.b16 %v1003
    %v4106 = vunpack.c.l.b16 %v1004
    %v4107 = vunpack.c.h.b16 %v1004
    %v4108 = vunpack.c.l.b16 %v1005
    %v4109 = vunpack.c.h.b16 %v1005
    %v4110 = vunpack.c.l.b16 %v1006
    %v4111 = vunpack.c.h.b16 %v1006
    %v4112 = vunpack.c.l.b16 %v1007
    %v4113 = vunpack.c.h.b16 %v1007
    %v4114 = vunpack.c.l.b16 %v1008
    %v4115 = vunpack.c.h.b16 %v1008
    %v4116 = vunpack.c.l.b16 %v1009
    %v4117 = vunpack.c.h.b16 %v1009
    %v4118 = vunpack.c.l.b16 %v1010
    %v4119 = vunpack.c.h.b16 %v1010
    %v4120 = vunpack.c.l.b16 %v1011
    %v4121 = vunpack.c.h.b16 %v1011
    %v4122 = vunpack.c.l.b16 %v1012
    %v4123 = vunpack.c.h.b16 %v1012
    %v4124 = vunpack.c.l.b16 %v1013
    %v4125 = vunpack.c.h.b16 %v1013
    %v4126 = vunpack.c.l.b16 %v1014
    %v4127 = vunpack.c.h.b16 %v1014
    %v4128 = vunpack.c.l.b16 %v1015
    %v4129 = vunpack.c.h.b16 %v1015
    %v4130 = vunpack.c.l.b16 %v1016
    %v4131 = vunpack.c.h.b16 %v1016
    %v4132 = vunpack.c.l.b16 %v1017
    %v4133 = vunpack.c.h.b16 %v1017
    %v4134 = vunpack.c.l.b16 %v1018
    %v4135 = vunpack.c.h.b16 %v1018
    %v4136 = vunpack.c.l.b16 %v1019
    %v4137 = vunpack.c.h.b16 %v1019
    %v4138 = vunpack.c.l.b16 %v1020
    %v4139 = vunpack.c.h.b16 %v1020
    %v4140 = vunpack.c.l.b16 %v1021
    %v4141 = vunpack.c.h.b16 %v1021
    %v4142 = vunpack.c.l.b16 %v1022
    %v4143 = vunpack.c.h.b16 %v1022
    %v4144 = vunpack.c.l.b16 %v1023
    %v4145 = vunpack.c.h.b16 %v1023
    %v4146 = vunpack.c.l.b16 %v1024
    %v4147 = vunpack.c.h.b16 %v1024
    %v4148 = vunpack.c.l.b16 %v1025
    %v4149 = vunpack.c.h.b16 %v1025
    %v4150 = vunpack.c.l.b16 %v1026
    %v4151 = vunpack.c.h.b16 %v1026
    %v4152 = vunpack.c.l.b16 %v1027
    %v4153 = vunpack.c.h.b16 %v1027
    %v4154 = vunpack.c.l.b16 %v1028
    %v4155 = vunpack.c.h.b16 %v1028
    %v4156 = vunpack.c.l.b16 %v1029
    %v4157 = vunpack.c.h.b16 %v1029
    %v4158 = vunpack.c.l.b16 %v1030
    %v4159 = vunpack.c.h.b16 %v1030
    %v4160 = vunpack.c.l.b16 %v1031
    %v4161 = vunpack.c.h.b16 %v1031
    %v4162 = vunpack.c.l.b16 %v1032
    %v4163 = vunpack.c.h.b16 %v1032
    %v4164 = vunpack.c.l.b16 %v1033
    %v4165 = vunpack.c.h.b16 %v1033
    %v4166 = vunpack.c.l.b16 %v1034
    %v4167 = vunpack.c.h.b16 %v1034
    %v4168 = vunpack.c.l.b16 %v1035
    %v4169 = vunpack.c.h.b16 %v1035
    %v4170 = vunpack.c.l.b16 %v1036
    %v4171 = vunpack.c.h.b16 %v1036
    %v4172 = vunpack.c.l.b16 %v1037
    %v4173 = vunpack.c.h.b16 %v1037
    %v4174 = vunpack.c.l.b16 %v1038
    %v4175 = vunpack.c.h.b16 %v1038
    %v4176 = vunpack.c.l.b16 %v1039
    %v4177 = vunpack.c.h.b16 %v1039
    %v4178 = vunpack.c.l.b16 %v1040
    %v4179 = vunpack.c.h.b16 %v1040
    %v4180 = vunpack.c.l.b16 %v1041
    %v4181 = vunpack.c.h.b16 %v1041
    %v4182 = vunpack.c.l.b16 %v1042
    %v4183 = vunpack.c.h.b16 %v1042
    %v4184 = vunpack.c.l.b16 %v1043
    %v4185 = vunpack.c.h.b16 %v1043
    %v4186 = vunpack.c.l.b16 %v1044
    %v4187 = vunpack.c.h.b16 %v1044
    %v4188 = vunpack.c.l.b16 %v1045
    %v4189 = vunpack.c.h.b16 %v1045
    %v4190 = vunpack.c.l.b16 %v1046
    %v4191 = vunpack.c.h.b16 %v1046
    %v4192 = vunpack.c.l.b16 %v1047
    %v4193 = vunpack.c.h.b16 %v1047
    %v4194 = vunpack.c.l.b16 %v1048
    %v4195 = vunpack.c.h.b16 %v1048
    %v4196 = vunpack.c.l.b16 %v1049
    %v4197 = vunpack.c.h.b16 %v1049
    %v4198 = vunpack.c.l.b16 %v1050
    %v4199 = vunpack.c.h.b16 %v1050
    %v4200 = vunpack.c.l.b16 %v1051
    %v4201 = vunpack.c.h.b16 %v1051
    %v4202 = vunpack.c.l.b16 %v1052
    %v4203 = vunpack.c.h.b16 %v1052
    %v4204 = vunpack.c.l.b16 %v1053
    %v4205 = vunpack.c.h.b16 %v1053
    %v4206 = vunpack.c.l.b16 %v1054
    %v4207 = vunpack.c.h.b16 %v1054
    %v4208 = vunpack.c.l.b16 %v1055
    %v4209 = vunpack.c.h.b16 %v1055
    %v4210 = vunpack.c.l.b16 %v1056
    %v4211 = vunpack.c.h.b16 %v1056
    %v4212 = vunpack.c.l.b16 %v1057
    %v4213 = vunpack.c.h.b16 %v1057
    %v4214 = vunpack.c.l.b16 %v1058
    %v4215 = vunpack.c.h.b16 %v1058
    %v4216 = vunpack.c.l.b16 %v1059
    %v4217 = vunpack.c.h.b16 %v1059
    %v4218 = vunpack.c.l.b16 %v1060
    %v4219 = vunpack.c.h.b16 %v1060
    %v4220 = vunpack.c.l.b16 %v1061
    %v4221 = vunpack.c.h.b16 %v1061
    %v4222 = vunpack.c.l.b16 %v1062
    %v4223 = vunpack.c.h.b16 %v1062
    %v4224 = vunpack.c.l.b16 %v1063
    %v4225 = vunpack.c.h.b16 %v1063
    %v4226 = vunpack.c.l.b16 %v1064
    %v4227 = vunpack.c.h.b16 %v1064
    %v4228 = vunpack.c.l.b16 %v1065
    %v4229 = vunpack.c.h.b16 %v1065
    %v4230 = vunpack.c.l.b16 %v1066
    %v4231 = vunpack.c.h.b16 %v1066
    %v4232 = vunpack.c.l.b16 %v1067
    %v4233 = vunpack.c.h.b16 %v1067
    %v4234 = vunpack.c.l.b16 %v1068
    %v4235 = vunpack.c.h.b16 %v1068
    %v4236 = vunpack.c.l.b16 %v1069
    %v4237 = vunpack.c.h.b16 %v1069
    %v4238 = vunpack.c.l.b16 %v1070
    %v4239 = vunpack.c.h.b16 %v1070
    %v4240 = vunpack.c.l.b16 %v1071
    %v4241 = vunpack.c.h.b16 %v1071
    %v4242 = vunpack.c.l.b16 %v1072
    %v4243 = vunpack.c.h.b16 %v1072
    %v4244 = vunpack.c.l.b16 %v1073
    %v4245 = vunpack.c.h.b16 %v1073
    %v4246 = vunpack.c.l.b16 %v1074
    %v4247 = vunpack.c.h.b16 %v1074
    %v4248 = vunpack.c.l.b16 %v1075
    %v4249 = vunpack.c.h.b16 %v1075
    %v4250 = vunpack.c.l.b16 %v1076
    %v4251 = vunpack.c.h.b16 %v1076
    %v4252 = vunpack.c.l.b16 %v1077
    %v4253 = vunpack.c.h.b16 %v1077
    %v4254 = vunpack.c.l.b16 %v1078
    %v4255 = vunpack.c.h.b16 %v1078
    %v4256 = vunpack.c.l.b16 %v1079
    %v4257 = vunpack.c.h.b16 %v1079
    %v4258 = vunpack.c.l.b16 %v1080
    %v4259 = vunpack.c.h.b16 %v1080
    %v4260 = vunpack.c.l.b16 %v1081
    %v4261 = vunpack.c.h.b16 %v1081
    %v4262 = vunpack.c.l.b16 %v1082
    %v4263 = vunpack.c.h.b16 %v1082
    %v4264 = vunpack.c.l.b16 %v1083
    %v4265 = vunpack.c.h.b16 %v1083
    %v4266 = vunpack.c.l.b16 %v1084
    %v4267 = vunpack.c.h.b16 %v1084
    %v4268 = vunpack.c.l.b16 %v1085
    %v4269 = vunpack.c.h.b16 %v1085
    %v4270 = vunpack.c.l.b16 %v1086
    %v4271 = vunpack.c.h.b16 %v1086
    %v4272 = vunpack.c.l.b16 %v1087
    %v4273 = vunpack.c.h.b16 %v1087
    %v4274 = vunpack.c.l.b16 %v1088
    %v4275 = vunpack.c.h.b16 %v1088
    %v4276 = vunpack.c.l.b16 %v1089
    %v4277 = vunpack.c.h.b16 %v1089
    %v4278 = vunpack.c.l.b16 %v1090
    %v4279 = vunpack.c.h.b16 %v1090
    %v4280 = vunpack.c.l.b16 %v1091
    %v4281 = vunpack.c.h.b16 %v1091
    %v4282 = vunpack.c.l.b16 %v1092
    %v4283 = vunpack.c.h.b16 %v1092
    %v4284 = vunpack.c.l.b16 %v1093
    %v4285 = vunpack.c.h.b16 %v1093
    %v4286 = vunpack.c.l.b16 %v1094
    %v4287 = vunpack.c.h.b16 %v1094
    %v4288 = vunpack.c.l.b16 %v1095
    %v4289 = vunpack.c.h.b16 %v1095
    %v4290 = vunpack.c.l.b16 %v1096
    %v4291 = vunpack.c.h.b16 %v1096
    %v4292 = vunpack.c.l.b16 %v1097
    %v4293 = vunpack.c.h.b16 %v1097
    %v4294 = vunpack.c.l.b16 %v1098
    %v4295 = vunpack.c.h.b16 %v1098
    %v4296 = vunpack.c.l.b16 %v1099
    %v4297 = vunpack.c.h.b16 %v1099
    %v4298 = vunpack.c.l.b16 %v1100
    %v4299 = vunpack.c.h.b16 %v1100
    %v4300 = vunpack.c.l.b16 %v1101
    %v4301 = vunpack.c.h.b16 %v1101
    %v4302 = vunpack.c.l.b16 %v1102
    %v4303 = vunpack.c.h.b16 %v1102
    %v4304 = vunpack.c.l.b16 %v1103
    %v4305 = vunpack.c.h.b16 %v1103
    %v4306 = vpack.c.b16 %v2266, %v2258
    %v4307 = vpack.c.b16 %v2267, %v2259
    %v4308 = vpack.c.b16 %v2268, %v2260
    %v4309 = vpack.c.b16 %v2269, %v2261
    %v4310 = vpack.c.b16 %v2270, %v2262
    %v4311 = vpack.c.b16 %v2271, %v2263
    %v4312 = vpack.c.b16 %v2272, %v2264
    %v4313 = vpack.c.b16 %v2273, %v2265
    %v4314 = vpack.c.b16 %v2282, %v2274
    %v4315 = vpack.c.b16 %v2283, %v2275
    %v4316 = vpack.c.b16 %v2284, %v2276
    %v4317 = vpack.c.b16 %v2285, %v2277
    %v4318 = vpack.c.b16 %v2286, %v2278
    %v4319 = vpack.c.b16 %v2287, %v2279
    %v4320 = vpack.c.b16 %v2288, %v2280
    %v4321 = vpack.c.b16 %v2289, %v2281
    %v4322 = vpack.c.b16 %v2298, %v2290
    %v4323 = vpack.c.b16 %v2299, %v2291
    %v4324 = vpack.c.b16 %v2300, %v2292
    %v4325 = vpack.c.b16 %v2301, %v2293
    %v4326 = vpack.c.b16 %v2302, %v2294
    %v4327 = vpack.c.b16 %v2303, %v2295
    %v4328 = vpack.c.b16 %v2304, %v2296
    %v4329 = vpack.c.b16 %v2305, %v2297
    %v4330 = vpack.c.b16 %v2314, %v2306
    %v4331 = vpack.c.b16 %v2315, %v2307
    %v4332 = vpack.c.b16 %v2316, %v2308
    %v4333 = vpack.c.b16 %v2317, %v2309
    %v4334 = vpack.c.b16 %v2318, %v2310
    %v4335 = vpack.c.b16 %v2319, %v2311
    %v4336 = vpack.c.b16 %v2320, %v2312
    %v4337 = vpack.c.b16 %v2321, %v2313
    %v4338 = vpack.c.b16 %v2330, %v2322
    %v4339 = vpack.c.b16 %v2331, %v2323
    %v4340 = vpack.c.b16 %v2332, %v2324
    %v4341 = vpack.c.b16 %v2333, %v2325
    %v4342 = vpack.c.b16 %v2334, %v2326
    %v4343 = vpack.c.b16 %v2335, %v2327
    %v4344 = vpack.c.b16 %v2336, %v2328
    %v4345 = vpack.c.b16 %v2337, %v2329
    %v4346 = vpack.c.b16 %v2346, %v2338
    %v4347 = vpack.c.b16 %v2347, %v2339
    %v4348 = vpack.c.b16 %v2348, %v2340
    %v4349 = vpack.c.b16 %v2349, %v2341
    %v4350 = vpack.c.b16 %v2350, %v2342
    %v4351 = vpack.c.b16 %v2351, %v2343
    %v4352 = vpack.c.b16 %v2352, %v2344
    %v4353 = vpack.c.b16 %v2353, %v2345
    %v4354 = vpack.c.b16 %v2362, %v2354
    %v4355 = vpack.c.b16 %v2363, %v2355
    %v4356 = vpack.c.b16 %v2364, %v2356
    %v4357 = vpack.c.b16 %v2365, %v2357
    %v4358 = vpack.c.b16 %v2366, %v2358
    %v4359 = vpack.c.b16 %v2367, %v2359
    %v4360 = vpack.c.b16 %v2368, %v2360
    %v4361 = vpack.c.b16 %v2369, %v2361
    %v4362 = vpack.c.b16 %v2378, %v2370
    %v4363 = vpack.c.b16 %v2379, %v2371
    %v4364 = vpack.c.b16 %v2380, %v2372
    %v4365 = vpack.c.b16 %v2381, %v2373
    %v4366 = vpack.c.b16 %v2382, %v2374
    %v4367 = vpack.c.b16 %v2383, %v2375
    %v4368 = vpack.c.b16 %v2384, %v2376
    %v4369 = vpack.c.b16 %v2385, %v2377
    %v4370 = vpack.c.b16 %v2394, %v2386
    %v4371 = vpack.c.b16 %v2395, %v2387
    %v4372 = vpack.c.b16 %v2396, %v2388
    %v4373 = vpack.c.b16 %v2397, %v2389
    %v4374 = vpack.c.b16 %v2398, %v2390
    %v4375 = vpack.c.b16 %v2399, %v2391
    %v4376 = vpack.c.b16 %v2400, %v2392
    %v4377 = vpack.c.b16 %v2401, %v2393
    %v4378 = vpack.c.b16 %v2410, %v2402
    %v4379 = vpack.c.b16 %v2411, %v2403
    %v4380 = vpack.c.b16 %v2412, %v2404
    %v4381 = vpack.c.b16 %v2413, %v2405
    %v4382 = vpack.c.b16 %v2414, %v2406
    %v4383 = vpack.c.b16 %v2415, %v2407
    %v4384 = vpack.c.b16 %v2416, %v2408
    %v4385 = vpack.c.b16 %v2417, %v2409
    %v4386 = vpack.c.b16 %v2426, %v2418
    %v4387 = vpack.c.b16 %v2427, %v2419
    %v4388 = vpack.c.b16 %v2428, %v2420
    %v4389 = vpack.c.b16 %v2429, %v2421
    %v4390 = vpack.c.b16 %v2430, %v2422
    %v4391 = vpack.c.b16 %v2431, %v2423
    %v4392 = vpack.c.b16 %v2432, %v2424
    %v4393 = vpack.c.b16 %v2433, %v2425
    %v4394 = vpack.c.b16 %v2442, %v2434
    %v4395 = vpack.c.b16 %v2443, %v2435
    %v4396 = vpack.c.b16 %v2444, %v2436
    %v4397 = vpack.c.b16 %v2445, %v2437
    %v4398 = vpack.c.b16 %v2446, %v2438
    %v4399 = vpack.c.b16 %v2447, %v2439
    %v4400 = vpack.c.b16 %v2448, %v2440
    %v4401 = vpack.c.b16 %v2449, %v2441
    %v4402 = vpack.c.b16 %v2458, %v2450
    %v4403 = vpack.c.b16 %v2459, %v2451
    %v4404 = vpack.c.b16 %v2460, %v2452
    %v4405 = vpack.c.b16 %v2461, %v2453
    %v4406 = vpack.c.b16 %v2462, %v2454
    %v4407 = vpack.c.b16 %v2463, %v2455
    %v4408 = vpack.c.b16 %v2464, %v2456
    %v4409 = vpack.c.b16 %v2465, %v2457
    %v4410 = vpack.c.b16 %v2474, %v2466
    %v4411 = vpack.c.b16 %v2475, %v2467
    %v4412 = vpack.c.b16 %v2476, %v2468
    %v4413 = vpack.c.b16 %v2477, %v2469
    %v4414 = vpack.c.b16 %v2478, %v2470
    %v4415 = vpack.c.b16 %v2479, %v2471
    %v4416 = vpack.c.b16 %v2480, %v2472
    %v4417 = vpack.c.b16 %v2481, %v2473
    %v4418 = vpack.c.b16 %v2490, %v2482
    %v4419 = vpack.c.b16 %v2491, %v2483
    %v4420 = vpack.c.b16 %v2492, %v2484
    %v4421 = vpack.c.b16 %v2493, %v2485
    %v4422 = vpack.c.b16 %v2494, %v2486
    %v4423 = vpack.c.b16 %v2495, %v2487
    %v4424 = vpack.c.b16 %v2496, %v2488
    %v4425 = vpack.c.b16 %v2497, %v2489
    %v4426 = vpack.c.b16 %v2506, %v2498
    %v4427 = vpack.c.b16 %v2507, %v2499
    %v4428 = vpack.c.b16 %v2508, %v2500
    %v4429 = vpack.c.b16 %v2509, %v2501
    %v4430 = vpack.c.b16 %v2510, %v2502
    %v4431 = vpack.c.b16 %v2511, %v2503
    %v4432 = vpack.c.b16 %v2512, %v2504
    %v4433 = vpack.c.b16 %v2513, %v2505
    %v4434 = vpack.c.b16 %v2522, %v2514
    %v4435 = vpack.c.b16 %v2523, %v2515
    %v4436 = vpack.c.b16 %v2524, %v2516
    %v4437 = vpack.c.b16 %v2525, %v2517
    %v4438 = vpack.c.b16 %v2526, %v2518
    %v4439 = vpack.c.b16 %v2527, %v2519
    %v4440 = vpack.c.b16 %v2528, %v2520
    %v4441 = vpack.c.b16 %v2529, %v2521
    %v4442 = vpack.c.b16 %v2538, %v2530
    %v4443 = vpack.c.b16 %v2539, %v2531
    %v4444 = vpack.c.b16 %v2540, %v2532
    %v4445 = vpack.c.b16 %v2541, %v2533
    %v4446 = vpack.c.b16 %v2542, %v2534
    %v4447 = vpack.c.b16 %v2543, %v2535
    %v4448 = vpack.c.b16 %v2544, %v2536
    %v4449 = vpack.c.b16 %v2545, %v2537
    %v4450 = vpack.c.b16 %v2554, %v2546
    %v4451 = vpack.c.b16 %v2555, %v2547
    %v4452 = vpack.c.b16 %v2556, %v2548
    %v4453 = vpack.c.b16 %v2557, %v2549
    %v4454 = vpack.c.b16 %v2558, %v2550
    %v4455 = vpack.c.b16 %v2559, %v2551
    %v4456 = vpack.c.b16 %v2560, %v2552
    %v4457 = vpack.c.b16 %v2561, %v2553
    %v4458 = vpack.c.b16 %v2570, %v2562
    %v4459 = vpack.c.b16 %v2571, %v2563
    %v4460 = vpack.c.b16 %v2572, %v2564
    %v4461 = vpack.c.b16 %v2573, %v2565
    %v4462 = vpack.c.b16 %v2574, %v2566
    %v4463 = vpack.c.b16 %v2575, %v2567
    %v4464 = vpack.c.b16 %v2576, %v2568
    %v4465 = vpack.c.b16 %v2577, %v2569
    %v4466 = vpack.c.b16 %v2586, %v2578
    %v4467 = vpack.c.b16 %v2587, %v2579
    %v4468 = vpack.c.b16 %v2588, %v2580
    %v4469 = vpack.c.b16 %v2589, %v2581
    %v4470 = vpack.c.b16 %v2590, %v2582
    %v4471 = vpack.c.b16 %v2591, %v2583
    %v4472 = vpack.c.b16 %v2592, %v2584
    %v4473 = vpack.c.b16 %v2593, %v2585
    %v4474 = vpack.c.b16 %v2602, %v2594
    %v4475 = vpack.c.b16 %v2603, %v2595
    %v4476 = vpack.c.b16 %v2604, %v2596
    %v4477 = vpack.c.b16 %v2605, %v2597
    %v4478 = vpack.c.b16 %v2606, %v2598
    %v4479 = vpack.c.b16 %v2607, %v2599
    %v4480 = vpack.c.b16 %v2608, %v2600
    %v4481 = vpack.c.b16 %v2609, %v2601
    %v4482 = vpack.c.b16 %v2618, %v2610
    %v4483 = vpack.c.b16 %v2619, %v2611
    %v4484 = vpack.c.b16 %v2620, %v2612
    %v4485 = vpack.c.b16 %v2621, %v2613
    %v4486 = vpack.c.b16 %v2622, %v2614
    %v4487 = vpack.c.b16 %v2623, %v2615
    %v4488 = vpack.c.b16 %v2624, %v2616
    %v4489 = vpack.c.b16 %v2625, %v2617
    %v4490 = vpack.c.b16 %v2634, %v2626
    %v4491 = vpack.c.b16 %v2635, %v2627
    %v4492 = vpack.c.b16 %v2636, %v2628
    %v4493 = vpack.c.b16 %v2637, %v2629
    %v4494 = vpack.c.b16 %v2638, %v2630
    %v4495 = vpack.c.b16 %v2639, %v2631
    %v4496 = vpack.c.b16 %v2640, %v2632
    %v4497 = vpack.c.b16 %v2641, %v2633
    %v4498 = vpack.c.b16 %v2650, %v2642
    %v4499 = vpack.c.b16 %v2651, %v2643
    %v4500 = vpack.c.b16 %v2652, %v2644
    %v4501 = vpack.c.b16 %v2653, %v2645
    %v4502 = vpack.c.b16 %v2654, %v2646
    %v4503 = vpack.c.b16 %v2655, %v2647
    %v4504 = vpack.c.b16 %v2656, %v2648
    %v4505 = vpack.c.b16 %v2657, %v2649
    %v4506 = vpack.c.b16 %v2666, %v2658
    %v4507 = vpack.c.b16 %v2667, %v2659
    %v4508 = vpack.c.b16 %v2668, %v2660
    %v4509 = vpack.c.b16 %v2669, %v2661
    %v4510 = vpack.c.b16 %v2670, %v2662
    %v4511 = vpack.c.b16 %v2671, %v2663
    %v4512 = vpack.c.b16 %v2672, %v2664
    %v4513 = vpack.c.b16 %v2673, %v2665
    %v4514 = vpack.c.b16 %v2682, %v2674
    %v4515 = vpack.c.b16 %v2683, %v2675
    %v4516 = vpack.c.b16 %v2684, %v2676
    %v4517 = vpack.c.b16 %v2685, %v2677
    %v4518 = vpack.c.b16 %v2686, %v2678
    %v4519 = vpack.c.b16 %v2687, %v2679
    %v4520 = vpack.c.b16 %v2688, %v2680
    %v4521 = vpack.c.b16 %v2689, %v2681
    %v4522 = vpack.c.b16 %v2698, %v2690
    %v4523 = vpack.c.b16 %v2699, %v2691
    %v4524 = vpack.c.b16 %v2700, %v2692
    %v4525 = vpack.c.b16 %v2701, %v2693
    %v4526 = vpack.c.b16 %v2702, %v2694
    %v4527 = vpack.c.b16 %v2703, %v2695
    %v4528 = vpack.c.b16 %v2704, %v2696
    %v4529 = vpack.c.b16 %v2705, %v2697
    %v4530 = vpack.c.b16 %v2714, %v2706
    %v4531 = vpack.c.b16 %v2715, %v2707
    %v4532 = vpack.c.b16 %v2716, %v2708
    %v4533 = vpack.c.b16 %v2717, %v2709
    %v4534 = vpack.c.b16 %v2718, %v2710
    %v4535 = vpack.c.b16 %v2719, %v2711
    %v4536 = vpack.c.b16 %v2720, %v2712
    %v4537 = vpack.c.b16 %v2721, %v2713
    %v4538 = vpack.c.b16 %v2730, %v2722
    %v4539 = vpack.c.b16 %v2731, %v2723
    %v4540 = vpack.c.b16 %v2732, %v2724
    %v4541 = vpack.c.b16 %v2733, %v2725
    %v4542 = vpack.c.b16 %v2734, %v2726
    %v4543 = vpack.c.b16 %v2735, %v2727
    %v4544 = vpack.c.b16 %v2736, %v2728
    %v4545 = vpack.c.b16 %v2737, %v2729
    %v4546 = vpack.c.b16 %v2746, %v2738
    %v4547 = vpack.c.b16 %v2747, %v2739
    %v4548 = vpack.c.b16 %v2748, %v2740
    %v4549 = vpack.c.b16 %v2749, %v2741
    %v4550 = vpack.c.b16 %v2750, %v2742
    %v4551 = vpack.c.b16 %v2751, %v2743
    %v4552 = vpack.c.b16 %v2752, %v2744
    %v4553 = vpack.c.b16 %v2753, %v2745
    %v4554 = vpack.c.b16 %v2762, %v2754
    %v4555 = vpack.c.b16 %v2763, %v2755
    %v4556 = vpack.c.b16 %v2764, %v2756
    %v4557 = vpack.c.b16 %v2765, %v2757
    %v4558 = vpack.c.b16 %v2766, %v2758
    %v4559 = vpack.c.b16 %v2767, %v2759
    %v4560 = vpack.c.b16 %v2768, %v2760
    %v4561 = vpack.c.b16 %v2769, %v2761
    %v4562 = vpack.c.b16 %v2778, %v2770
    %v4563 = vpack.c.b16 %v2779, %v2771
    %v4564 = vpack.c.b16 %v2780, %v2772
    %v4565 = vpack.c.b16 %v2781, %v2773
    %v4566 = vpack.c.b16 %v2782, %v2774
    %v4567 = vpack.c.b16 %v2783, %v2775
    %v4568 = vpack.c.b16 %v2784, %v2776
    %v4569 = vpack.c.b16 %v2785, %v2777
    %v4570 = vpack.c.b16 %v2794, %v2786
    %v4571 = vpack.c.b16 %v2795, %v2787
    %v4572 = vpack.c.b16 %v2796, %v2788
    %v4573 = vpack.c.b16 %v2797, %v2789
    %v4574 = vpack.c.b16 %v2798, %v2790
    %v4575 = vpack.c.b16 %v2799, %v2791
    %v4576 = vpack.c.b16 %v2800, %v2792
    %v4577 = vpack.c.b16 %v2801, %v2793
    %v4578 = vpack.c.b16 %v2810, %v2802
    %v4579 = vpack.c.b16 %v2811, %v2803
    %v4580 = vpack.c.b16 %v2812, %v2804
    %v4581 = vpack.c.b16 %v2813, %v2805
    %v4582 = vpack.c.b16 %v2814, %v2806
    %v4583 = vpack.c.b16 %v2815, %v2807
    %v4584 = vpack.c.b16 %v2816, %v2808
    %v4585 = vpack.c.b16 %v2817, %v2809
    %v4586 = vpack.c.b16 %v2826, %v2818
    %v4587 = vpack.c.b16 %v2827, %v2819
    %v4588 = vpack.c.b16 %v2828, %v2820
    %v4589 = vpack.c.b16 %v2829, %v2821
    %v4590 = vpack.c.b16 %v2830, %v2822
    %v4591 = vpack.c.b16 %v2831, %v2823
    %v4592 = vpack.c.b16 %v2832, %v2824
    %v4593 = vpack.c.b16 %v2833, %v2825
    %v4594 = vpack.c.b16 %v2842, %v2834
    %v4595 = vpack.c.b16 %v2843, %v2835
    %v4596 = vpack.c.b16 %v2844, %v2836
    %v4597 = vpack.c.b16 %v2845, %v2837
    %v4598 = vpack.c.b16 %v2846, %v2838
    %v4599 = vpack.c.b16 %v2847, %v2839
    %v4600 = vpack.c.b16 %v2848, %v2840
    %v4601 = vpack.c.b16 %v2849, %v2841
    %v4602 = vpack.c.b16 %v2858, %v2850
    %v4603 = vpack.c.b16 %v2859, %v2851
    %v4604 = vpack.c.b16 %v2860, %v2852
    %v4605 = vpack.c.b16 %v2861, %v2853
    %v4606 = vpack.c.b16 %v2862, %v2854
    %v4607 = vpack.c.b16 %v2863, %v2855
    %v4608 = vpack.c.b16 %v2864, %v2856
    %v4609 = vpack.c.b16 %v2865, %v2857
    %v4610 = vpack.c.b16 %v2874, %v2866
    %v4611 = vpack.c.b16 %v2875, %v2867
    %v4612 = vpack.c.b16 %v2876, %v2868
    %v4613 = vpack.c.b16 %v2877, %v2869
    %v4614 = vpack.c.b16 %v2878, %v2870
    %v4615 = vpack.c.b16 %v2879, %v2871
    %v4616 = vpack.c.b16 %v2880, %v2872
    %v4617 = vpack.c.b16 %v2881, %v2873
    %v4618 = vpack.c.b16 %v2890, %v2882
    %v4619 = vpack.c.b16 %v2891, %v2883
    %v4620 = vpack.c.b16 %v2892, %v2884
    %v4621 = vpack.c.b16 %v2893, %v2885
    %v4622 = vpack.c.b16 %v2894, %v2886
    %v4623 = vpack.c.b16 %v2895, %v2887
    %v4624 = vpack.c.b16 %v2896, %v2888
    %v4625 = vpack.c.b16 %v2897, %v2889
    %v4626 = vpack.c.b16 %v2906, %v2898
    %v4627 = vpack.c.b16 %v2907, %v2899
    %v4628 = vpack.c.b16 %v2908, %v2900
    %v4629 = vpack.c.b16 %v2909, %v2901
    %v4630 = vpack.c.b16 %v2910, %v2902
    %v4631 = vpack.c.b16 %v2911, %v2903
    %v4632 = vpack.c.b16 %v2912, %v2904
    %v4633 = vpack.c.b16 %v2913, %v2905
    %v4634 = vpack.c.b16 %v2922, %v2914
    %v4635 = vpack.c.b16 %v2923, %v2915
    %v4636 = vpack.c.b16 %v2924, %v2916
    %v4637 = vpack.c.b16 %v2925, %v2917
    %v4638 = vpack.c.b16 %v2926, %v2918
    %v4639 = vpack.c.b16 %v2927, %v2919
    %v4640 = vpack.c.b16 %v2928, %v2920
    %v4641 = vpack.c.b16 %v2929, %v2921
    %v4642 = vpack.c.b16 %v2938, %v2930
    %v4643 = vpack.c.b16 %v2939, %v2931
    %v4644 = vpack.c.b16 %v2940, %v2932
    %v4645 = vpack.c.b16 %v2941, %v2933
    %v4646 = vpack.c.b16 %v2942, %v2934
    %v4647 = vpack.c.b16 %v2943, %v2935
    %v4648 = vpack.c.b16 %v2944, %v2936
    %v4649 = vpack.c.b16 %v2945, %v2937
    %v4650 = vpack.c.b16 %v2954, %v2946
    %v4651 = vpack.c.b16 %v2955, %v2947
    %v4652 = vpack.c.b16 %v2956, %v2948
    %v4653 = vpack.c.b16 %v2957, %v2949
    %v4654 = vpack.c.b16 %v2958, %v2950
    %v4655 = vpack.c.b16 %v2959, %v2951
    %v4656 = vpack.c.b16 %v2960, %v2952
    %v4657 = vpack.c.b16 %v2961, %v2953
    %v4658 = vpack.c.b16 %v2970, %v2962
    %v4659 = vpack.c.b16 %v2971, %v2963
    %v4660 = vpack.c.b16 %v2972, %v2964
    %v4661 = vpack.c.b16 %v2973, %v2965
    %v4662 = vpack.c.b16 %v2974, %v2966
    %v4663 = vpack.c.b16 %v2975, %v2967
    %v4664 = vpack.c.b16 %v2976, %v2968
    %v4665 = vpack.c.b16 %v2977, %v2969
    %v4666 = vpack.c.b16 %v2986, %v2978
    %v4667 = vpack.c.b16 %v2987, %v2979
    %v4668 = vpack.c.b16 %v2988, %v2980
    %v4669 = vpack.c.b16 %v2989, %v2981
    %v4670 = vpack.c.b16 %v2990, %v2982
    %v4671 = vpack.c.b16 %v2991, %v2983
    %v4672 = vpack.c.b16 %v2992, %v2984
    %v4673 = vpack.c.b16 %v2993, %v2985
    %v4674 = vpack.c.b16 %v3002, %v2994
    %v4675 = vpack.c.b16 %v3003, %v2995
    %v4676 = vpack.c.b16 %v3004, %v2996
    %v4677 = vpack.c.b16 %v3005, %v2997
    %v4678 = vpack.c.b16 %v3006, %v2998
    %v4679 = vpack.c.b16 %v3007, %v2999
    %v4680 = vpack.c.b16 %v3008, %v3000
    %v4681 = vpack.c.b16 %v3009, %v3001
    %v4682 = vpack.c.b16 %v3018, %v3010
    %v4683 = vpack.c.b16 %v3019, %v3011
    %v4684 = vpack.c.b16 %v3020, %v3012
    %v4685 = vpack.c.b16 %v3021, %v3013
    %v4686 = vpack.c.b16 %v3022, %v3014
    %v4687 = vpack.c.b16 %v3023, %v3015
    %v4688 = vpack.c.b16 %v3024, %v3016
    %v4689 = vpack.c.b16 %v3025, %v3017
    %v4690 = vpack.c.b16 %v3034, %v3026
    %v4691 = vpack.c.b16 %v3035, %v3027
    %v4692 = vpack.c.b16 %v3036, %v3028
    %v4693 = vpack.c.b16 %v3037, %v3029
    %v4694 = vpack.c.b16 %v3038, %v3030
    %v4695 = vpack.c.b16 %v3039, %v3031
    %v4696 = vpack.c.b16 %v3040, %v3032
    %v4697 = vpack.c.b16 %v3041, %v3033
    %v4698 = vpack.c.b16 %v3050, %v3042
    %v4699 = vpack.c.b16 %v3051, %v3043
    %v4700 = vpack.c.b16 %v3052, %v3044
    %v4701 = vpack.c.b16 %v3053, %v3045
    %v4702 = vpack.c.b16 %v3054, %v3046
    %v4703 = vpack.c.b16 %v3055, %v3047
    %v4704 = vpack.c.b16 %v3056, %v3048
    %v4705 = vpack.c.b16 %v3057, %v3049
    %v4706 = vpack.c.b16 %v3066, %v3058
    %v4707 = vpack.c.b16 %v3067, %v3059
    %v4708 = vpack.c.b16 %v3068, %v3060
    %v4709 = vpack.c.b16 %v3069, %v3061
    %v4710 = vpack.c.b16 %v3070, %v3062
    %v4711 = vpack.c.b16 %v3071, %v3063
    %v4712 = vpack.c.b16 %v3072, %v3064
    %v4713 = vpack.c.b16 %v3073, %v3065
    %v4714 = vpack.c.b16 %v3082, %v3074
    %v4715 = vpack.c.b16 %v3083, %v3075
    %v4716 = vpack.c.b16 %v3084, %v3076
    %v4717 = vpack.c.b16 %v3085, %v3077
    %v4718 = vpack.c.b16 %v3086, %v3078
    %v4719 = vpack.c.b16 %v3087, %v3079
    %v4720 = vpack.c.b16 %v3088, %v3080
    %v4721 = vpack.c.b16 %v3089, %v3081
    %v4722 = vpack.c.b16 %v3098, %v3090
    %v4723 = vpack.c.b16 %v3099, %v3091
    %v4724 = vpack.c.b16 %v3100, %v3092
    %v4725 = vpack.c.b16 %v3101, %v3093
    %v4726 = vpack.c.b16 %v3102, %v3094
    %v4727 = vpack.c.b16 %v3103, %v3095
    %v4728 = vpack.c.b16 %v3104, %v3096
    %v4729 = vpack.c.b16 %v3105, %v3097
    %v4730 = vpack.c.b16 %v3114, %v3106
    %v4731 = vpack.c.b16 %v3115, %v3107
    %v4732 = vpack.c.b16 %v3116, %v3108
    %v4733 = vpack.c.b16 %v3117, %v3109
    %v4734 = vpack.c.b16 %v3118, %v3110
    %v4735 = vpack.c.b16 %v3119, %v3111
    %v4736 = vpack.c.b16 %v3120, %v3112
    %v4737 = vpack.c.b16 %v3121, %v3113
    %v4738 = vpack.c.b16 %v3130, %v3122
    %v4739 = vpack.c.b16 %v3131, %v3123
    %v4740 = vpack.c.b16 %v3132, %v3124
    %v4741 = vpack.c.b16 %v3133, %v3125
    %v4742 = vpack.c.b16 %v3134, %v3126
    %v4743 = vpack.c.b16 %v3135, %v3127
    %v4744 = vpack.c.b16 %v3136, %v3128
    %v4745 = vpack.c.b16 %v3137, %v3129
    %v4746 = vpack.c.b16 %v3146, %v3138
    %v4747 = vpack.c.b16 %v3147, %v3139
    %v4748 = vpack.c.b16 %v3148, %v3140
    %v4749 = vpack.c.b16 %v3149, %v3141
    %v4750 = vpack.c.b16 %v3150, %v3142
    %v4751 = vpack.c.b16 %v3151, %v3143
    %v4752 = vpack.c.b16 %v3152, %v3144
    %v4753 = vpack.c.b16 %v3153, %v3145
    %v4754 = vpack.c.b16 %v3162, %v3154
    %v4755 = vpack.c.b16 %v3163, %v3155
    %v4756 = vpack.c.b16 %v3164, %v3156
    %v4757 = vpack.c.b16 %v3165, %v3157
    %v4758 = vpack.c.b16 %v3166, %v3158
    %v4759 = vpack.c.b16 %v3167, %v3159
    %v4760 = vpack.c.b16 %v3168, %v3160
    %v4761 = vpack.c.b16 %v3169, %v3161
    %v4762 = vpack.c.b16 %v3178, %v3170
    %v4763 = vpack.c.b16 %v3179, %v3171
    %v4764 = vpack.c.b16 %v3180, %v3172
    %v4765 = vpack.c.b16 %v3181, %v3173
    %v4766 = vpack.c.b16 %v3182, %v3174
    %v4767 = vpack.c.b16 %v3183, %v3175
    %v4768 = vpack.c.b16 %v3184, %v3176
    %v4769 = vpack.c.b16 %v3185, %v3177
    %v4770 = vpack.c.b16 %v3194, %v3186
    %v4771 = vpack.c.b16 %v3195, %v3187
    %v4772 = vpack.c.b16 %v3196, %v3188
    %v4773 = vpack.c.b16 %v3197, %v3189
    %v4774 = vpack.c.b16 %v3198, %v3190
    %v4775 = vpack.c.b16 %v3199, %v3191
    %v4776 = vpack.c.b16 %v3200, %v3192
    %v4777 = vpack.c.b16 %v3201, %v3193
    %v4778 = vpack.c.b16 %v3210, %v3202
    %v4779 = vpack.c.b16 %v3211, %v3203
    %v4780 = vpack.c.b16 %v3212, %v3204
    %v4781 = vpack.c.b16 %v3213, %v3205
    %v4782 = vpack.c.b16 %v3214, %v3206
    %v4783 = vpack.c.b16 %v3215, %v3207
    %v4784 = vpack.c.b16 %v3216, %v3208
    %v4785 = vpack.c.b16 %v3217, %v3209
    %v4786 = vpack.c.b16 %v3226, %v3218
    %v4787 = vpack.c.b16 %v3227, %v3219
    %v4788 = vpack.c.b16 %v3228, %v3220
    %v4789 = vpack.c.b16 %v3229, %v3221
    %v4790 = vpack.c.b16 %v3230, %v3222
    %v4791 = vpack.c.b16 %v3231, %v3223
    %v4792 = vpack.c.b16 %v3232, %v3224
    %v4793 = vpack.c.b16 %v3233, %v3225
    %v4794 = vpack.c.b16 %v3242, %v3234
    %v4795 = vpack.c.b16 %v3243, %v3235
    %v4796 = vpack.c.b16 %v3244, %v3236
    %v4797 = vpack.c.b16 %v3245, %v3237
    %v4798 = vpack.c.b16 %v3246, %v3238
    %v4799 = vpack.c.b16 %v3247, %v3239
    %v4800 = vpack.c.b16 %v3248, %v3240
    %v4801 = vpack.c.b16 %v3249, %v3241
    %v4802 = vpack.c.b16 %v3258, %v3250
    %v4803 = vpack.c.b16 %v3259, %v3251
    %v4804 = vpack.c.b16 %v3260, %v3252
    %v4805 = vpack.c.b16 %v3261, %v3253
    %v4806 = vpack.c.b16 %v3262, %v3254
    %v4807 = vpack.c.b16 %v3263, %v3255
    %v4808 = vpack.c.b16 %v3264, %v3256
    %v4809 = vpack.c.b16 %v3265, %v3257
    %v4810 = vpack.c.b16 %v3274, %v3266
    %v4811 = vpack.c.b16 %v3275, %v3267
    %v4812 = vpack.c.b16 %v3276, %v3268
    %v4813 = vpack.c.b16 %v3277, %v3269
    %v4814 = vpack.c.b16 %v3278, %v3270
    %v4815 = vpack.c.b16 %v3279, %v3271
    %v4816 = vpack.c.b16 %v3280, %v3272
    %v4817 = vpack.c.b16 %v3281, %v3273
    %v4818 = vpack.c.b16 %v3290, %v3282
    %v4819 = vpack.c.b16 %v3291, %v3283
    %v4820 = vpack.c.b16 %v3292, %v3284
    %v4821 = vpack.c.b16 %v3293, %v3285
    %v4822 = vpack.c.b16 %v3294, %v3286
    %v4823 = vpack.c.b16 %v3295, %v3287
    %v4824 = vpack.c.b16 %v3296, %v3288
    %v4825 = vpack.c.b16 %v3297, %v3289
    %v4826 = vpack.c.b16 %v3306, %v3298
    %v4827 = vpack.c.b16 %v3307, %v3299
    %v4828 = vpack.c.b16 %v3308, %v3300
    %v4829 = vpack.c.b16 %v3309, %v3301
    %v4830 = vpack.c.b16 %v3310, %v3302
    %v4831 = vpack.c.b16 %v3311, %v3303
    %v4832 = vpack.c.b16 %v3312, %v3304
    %v4833 = vpack.c.b16 %v3313, %v3305
    %v4834 = vpack.c.b16 %v3322, %v3314
    %v4835 = vpack.c.b16 %v3323, %v3315
    %v4836 = vpack.c.b16 %v3324, %v3316
    %v4837 = vpack.c.b16 %v3325, %v3317
    %v4838 = vpack.c.b16 %v3326, %v3318
    %v4839 = vpack.c.b16 %v3327, %v3319
    %v4840 = vpack.c.b16 %v3328, %v3320
    %v4841 = vpack.c.b16 %v3329, %v3321
    %v4842 = vpack.c.b16 %v3338, %v3330
    %v4843 = vpack.c.b16 %v3339, %v3331
    %v4844 = vpack.c.b16 %v3340, %v3332
    %v4845 = vpack.c.b16 %v3341, %v3333
    %v4846 = vpack.c.b16 %v3342, %v3334
    %v4847 = vpack.c.b16 %v3343, %v3335
    %v4848 = vpack.c.b16 %v3344, %v3336
    %v4849 = vpack.c.b16 %v3345, %v3337
    %v4850 = vpack.c.b16 %v3354, %v3346
    %v4851 = vpack.c.b16 %v3355, %v3347
    %v4852 = vpack.c.b16 %v3356, %v3348
    %v4853 = vpack.c.b16 %v3357, %v3349
    %v4854 = vpack.c.b16 %v3358, %v3350
    %v4855 = vpack.c.b16 %v3359, %v3351
    %v4856 = vpack.c.b16 %v3360, %v3352
    %v4857 = vpack.c.b16 %v3361, %v3353
    %v4858 = vpack.c.b16 %v3370, %v3362
    %v4859 = vpack.c.b16 %v3371, %v3363
    %v4860 = vpack.c.b16 %v3372, %v3364
    %v4861 = vpack.c.b16 %v3373, %v3365
    %v4862 = vpack.c.b16 %v3374, %v3366
    %v4863 = vpack.c.b16 %v3375, %v3367
    %v4864 = vpack.c.b16 %v3376, %v3368
    %v4865 = vpack.c.b16 %v3377, %v3369
    %v4866 = vpack.c.b16 %v3386, %v3378
    %v4867 = vpack.c.b16 %v3387, %v3379
    %v4868 = vpack.c.b16 %v3388, %v3380
    %v4869 = vpack.c.b16 %v3389, %v3381
    %v4870 = vpack.c.b16 %v3390, %v3382
    %v4871 = vpack.c.b16 %v3391, %v3383
    %v4872 = vpack.c.b16 %v3392, %v3384
    %v4873 = vpack.c.b16 %v3393, %v3385
    %v4874 = vpack.c.b16 %v3402, %v3394
    %v4875 = vpack.c.b16 %v3403, %v3395
    %v4876 = vpack.c.b16 %v3404, %v3396
    %v4877 = vpack.c.b16 %v3405, %v3397
    %v4878 = vpack.c.b16 %v3406, %v3398
    %v4879 = vpack.c.b16 %v3407, %v3399
    %v4880 = vpack.c.b16 %v3408, %v3400
    %v4881 = vpack.c.b16 %v3409, %v3401
    %v4882 = vpack.c.b16 %v3418, %v3410
    %v4883 = vpack.c.b16 %v3419, %v3411
    %v4884 = vpack.c.b16 %v3420, %v3412
    %v4885 = vpack.c.b16 %v3421, %v3413
    %v4886 = vpack.c.b16 %v3422, %v3414
    %v4887 = vpack.c.b16 %v3423, %v3415
    %v4888 = vpack.c.b16 %v3424, %v3416
    %v4889 = vpack.c.b16 %v3425, %v3417
    %v4890 = vpack.c.b16 %v3434, %v3426
    %v4891 = vpack.c.b16 %v3435, %v3427
    %v4892 = vpack.c.b16 %v3436, %v3428
    %v4893 = vpack.c.b16 %v3437, %v3429
    %v4894 = vpack.c.b16 %v3438, %v3430
    %v4895 = vpack.c.b16 %v3439, %v3431
    %v4896 = vpack.c.b16 %v3440, %v3432
    %v4897 = vpack.c.b16 %v3441, %v3433
    %v4898 = vpack.c.b16 %v3450, %v3442
    %v4899 = vpack.c.b16 %v3451, %v3443
    %v4900 = vpack.c.b16 %v3452, %v3444
    %v4901 = vpack.c.b16 %v3453, %v3445
    %v4902 = vpack.c.b16 %v3454, %v3446
    %v4903 = vpack.c.b16 %v3455, %v3447
    %v4904 = vpack.c.b16 %v3456, %v3448
    %v4905 = vpack.c.b16 %v3457, %v3449
    %v4906 = vpack.c.b16 %v3466, %v3458
    %v4907 = vpack.c.b16 %v3467, %v3459
    %v4908 = vpack.c.b16 %v3468, %v3460
    %v4909 = vpack.c.b16 %v3469, %v3461
    %v4910 = vpack.c.b16 %v3470, %v3462
    %v4911 = vpack.c.b16 %v3471, %v3463
    %v4912 = vpack.c.b16 %v3472, %v3464
    %v4913 = vpack.c.b16 %v3473, %v3465
    %v4914 = vpack.c.b16 %v3482, %v3474
    %v4915 = vpack.c.b16 %v3483, %v3475
    %v4916 = vpack.c.b16 %v3484, %v3476
    %v4917 = vpack.c.b16 %v3485, %v3477
    %v4918 = vpack.c.b16 %v3486, %v3478
    %v4919 = vpack.c.b16 %v3487, %v3479
    %v4920 = vpack.c.b16 %v3488, %v3480
    %v4921 = vpack.c.b16 %v3489, %v3481
    %v4922 = vpack.c.b16 %v3498, %v3490
    %v4923 = vpack.c.b16 %v3499, %v3491
    %v4924 = vpack.c.b16 %v3500, %v3492
    %v4925 = vpack.c.b16 %v3501, %v3493
    %v4926 = vpack.c.b16 %v3502, %v3494
    %v4927 = vpack.c.b16 %v3503, %v3495
    %v4928 = vpack.c.b16 %v3504, %v3496
    %v4929 = vpack.c.b16 %v3505, %v3497
    %v4930 = vpack.c.b16 %v3514, %v3506
    %v4931 = vpack.c.b16 %v3515, %v3507
    %v4932 = vpack.c.b16 %v3516, %v3508
    %v4933 = vpack.c.b16 %v3517, %v3509
    %v4934 = vpack.c.b16 %v3518, %v3510
    %v4935 = vpack.c.b16 %v3519, %v3511
    %v4936 = vpack.c.b16 %v3520, %v3512
    %v4937 = vpack.c.b16 %v3521, %v3513
    %v4938 = vpack.c.b16 %v3530, %v3522
    %v4939 = vpack.c.b16 %v3531, %v3523
    %v4940 = vpack.c.b16 %v3532, %v3524
    %v4941 = vpack.c.b16 %v3533, %v3525
    %v4942 = vpack.c.b16 %v3534, %v3526
    %v4943 = vpack.c.b16 %v3535, %v3527
    %v4944 = vpack.c.b16 %v3536, %v3528
    %v4945 = vpack.c.b16 %v3537, %v3529
    %v4946 = vpack.c.b16 %v3546, %v3538
    %v4947 = vpack.c.b16 %v3547, %v3539
    %v4948 = vpack.c.b16 %v3548, %v3540
    %v4949 = vpack.c.b16 %v3549, %v3541
    %v4950 = vpack.c.b16 %v3550, %v3542
    %v4951 = vpack.c.b16 %v3551, %v3543
    %v4952 = vpack.c.b16 %v3552, %v3544
    %v4953 = vpack.c.b16 %v3553, %v3545
    %v4954 = vpack.c.b16 %v3562, %v3554
    %v4955 = vpack.c.b16 %v3563, %v3555
    %v4956 = vpack.c.b16 %v3564, %v3556
    %v4957 = vpack.c.b16 %v3565, %v3557
    %v4958 = vpack.c.b16 %v3566, %v3558
    %v4959 = vpack.c.b16 %v3567, %v3559
    %v4960 = vpack.c.b16 %v3568, %v3560
    %v4961 = vpack.c.b16 %v3569, %v3561
    %v4962 = vpack.c.b16 %v3578, %v3570
    %v4963 = vpack.c.b16 %v3579, %v3571
    %v4964 = vpack.c.b16 %v3580, %v3572
    %v4965 = vpack.c.b16 %v3581, %v3573
    %v4966 = vpack.c.b16 %v3582, %v3574
    %v4967 = vpack.c.b16 %v3583, %v3575
    %v4968 = vpack.c.b16 %v3584, %v3576
    %v4969 = vpack.c.b16 %v3585, %v3577
    %v4970 = vpack.c.b16 %v3594, %v3586
    %v4971 = vpack.c.b16 %v3595, %v3587
    %v4972 = vpack.c.b16 %v3596, %v3588
    %v4973 = vpack.c.b16 %v3597, %v3589
    %v4974 = vpack.c.b16 %v3598, %v3590
    %v4975 = vpack.c.b16 %v3599, %v3591
    %v4976 = vpack.c.b16 %v3600, %v3592
    %v4977 = vpack.c.b16 %v3601, %v3593
    %v4978 = vpack.c.b16 %v3610, %v3602
    %v4979 = vpack.c.b16 %v3611, %v3603
    %v4980 = vpack.c.b16 %v3612, %v3604
    %v4981 = vpack.c.b16 %v3613, %v3605
    %v4982 = vpack.c.b16 %v3614, %v3606
    %v4983 = vpack.c.b16 %v3615, %v3607
    %v4984 = vpack.c.b16 %v3616, %v3608
    %v4985 = vpack.c.b16 %v3617, %v3609
    %v4986 = vpack.c.b16 %v3626, %v3618
    %v4987 = vpack.c.b16 %v3627, %v3619
    %v4988 = vpack.c.b16 %v3628, %v3620
    %v4989 = vpack.c.b16 %v3629, %v3621
    %v4990 = vpack.c.b16 %v3630, %v3622
    %v4991 = vpack.c.b16 %v3631, %v3623
    %v4992 = vpack.c.b16 %v3632, %v3624
    %v4993 = vpack.c.b16 %v3633, %v3625
    %v4994 = vpack.c.b16 %v3642, %v3634
    %v4995 = vpack.c.b16 %v3643, %v3635
    %v4996 = vpack.c.b16 %v3644, %v3636
    %v4997 = vpack.c.b16 %v3645, %v3637
    %v4998 = vpack.c.b16 %v3646, %v3638
    %v4999 = vpack.c.b16 %v3647, %v3639
    %v5000 = vpack.c.b16 %v3648, %v3640
    %v5001 = vpack.c.b16 %v3649, %v3641
    %v5002 = vpack.c.b16 %v3658, %v3650
    %v5003 = vpack.c.b16 %v3659, %v3651
    %v5004 = vpack.c.b16 %v3660, %v3652
    %v5005 = vpack.c.b16 %v3661, %v3653
    %v5006 = vpack.c.b16 %v3662, %v3654
    %v5007 = vpack.c.b16 %v3663, %v3655
    %v5008 = vpack.c.b16 %v3664, %v3656
    %v5009 = vpack.c.b16 %v3665, %v3657
    %v5010 = vpack.c.b16 %v3674, %v3666
    %v5011 = vpack.c.b16 %v3675, %v3667
    %v5012 = vpack.c.b16 %v3676, %v3668
    %v5013 = vpack.c.b16 %v3677, %v3669
    %v5014 = vpack.c.b16 %v3678, %v3670
    %v5015 = vpack.c.b16 %v3679, %v3671
    %v5016 = vpack.c.b16 %v3680, %v3672
    %v5017 = vpack.c.b16 %v3681, %v3673
    %v5018 = vpack.c.b16 %v3690, %v3682
    %v5019 = vpack.c.b16 %v3691, %v3683
    %v5020 = vpack.c.b16 %v3692, %v3684
    %v5021 = vpack.c.b16 %v3693, %v3685
    %v5022 = vpack.c.b16 %v3694, %v3686
    %v5023 = vpack.c.b16 %v3695, %v3687
    %v5024 = vpack.c.b16 %v3696, %v3688
    %v5025 = vpack.c.b16 %v3697, %v3689
    %v5026 = vpack.c.b16 %v3706, %v3698
    %v5027 = vpack.c.b16 %v3707, %v3699
    %v5028 = vpack.c.b16 %v3708, %v3700
    %v5029 = vpack.c.b16 %v3709, %v3701
    %v5030 = vpack.c.b16 %v3710, %v3702
    %v5031 = vpack.c.b16 %v3711, %v3703
    %v5032 = vpack.c.b16 %v3712, %v3704
    %v5033 = vpack.c.b16 %v3713, %v3705
    %v5034 = vpack.c.b16 %v3722, %v3714
    %v5035 = vpack.c.b16 %v3723, %v3715
    %v5036 = vpack.c.b16 %v3724, %v3716
    %v5037 = vpack.c.b16 %v3725, %v3717
    %v5038 = vpack.c.b16 %v3726, %v3718
    %v5039 = vpack.c.b16 %v3727, %v3719
    %v5040 = vpack.c.b16 %v3728, %v3720
    %v5041 = vpack.c.b16 %v3729, %v3721
    %v5042 = vpack.c.b16 %v3738, %v3730
    %v5043 = vpack.c.b16 %v3739, %v3731
    %v5044 = vpack.c.b16 %v3740, %v3732
    %v5045 = vpack.c.b16 %v3741, %v3733
    %v5046 = vpack.c.b16 %v3742, %v3734
    %v5047 = vpack.c.b16 %v3743, %v3735
    %v5048 = vpack.c.b16 %v3744, %v3736
    %v5049 = vpack.c.b16 %v3745, %v3737
    %v5050 = vpack.c.b16 %v3754, %v3746
    %v5051 = vpack.c.b16 %v3755, %v3747
    %v5052 = vpack.c.b16 %v3756, %v3748
    %v5053 = vpack.c.b16 %v3757, %v3749
    %v5054 = vpack.c.b16 %v3758, %v3750
    %v5055 = vpack.c.b16 %v3759, %v3751
    %v5056 = vpack.c.b16 %v3760, %v3752
    %v5057 = vpack.c.b16 %v3761, %v3753
    %v5058 = vpack.c.b16 %v3770, %v3762
    %v5059 = vpack.c.b16 %v3771, %v3763
    %v5060 = vpack.c.b16 %v3772, %v3764
    %v5061 = vpack.c.b16 %v3773, %v3765
    %v5062 = vpack.c.b16 %v3774, %v3766
    %v5063 = vpack.c.b16 %v3775, %v3767
    %v5064 = vpack.c.b16 %v3776, %v3768
    %v5065 = vpack.c.b16 %v3777, %v3769
    %v5066 = vpack.c.b16 %v3786, %v3778
    %v5067 = vpack.c.b16 %v3787, %v3779
    %v5068 = vpack.c.b16 %v3788, %v3780
    %v5069 = vpack.c.b16 %v3789, %v3781
    %v5070 = vpack.c.b16 %v3790, %v3782
    %v5071 = vpack.c.b16 %v3791, %v3783
    %v5072 = vpack.c.b16 %v3792, %v3784
    %v5073 = vpack.c.b16 %v3793, %v3785
    %v5074 = vpack.c.b16 %v3802, %v3794
    %v5075 = vpack.c.b16 %v3803, %v3795
    %v5076 = vpack.c.b16 %v3804, %v3796
    %v5077 = vpack.c.b16 %v3805, %v3797
    %v5078 = vpack.c.b16 %v3806, %v3798
    %v5079 = vpack.c.b16 %v3807, %v3799
    %v5080 = vpack.c.b16 %v3808, %v3800
    %v5081 = vpack.c.b16 %v3809, %v3801
    %v5082 = vpack.c.b16 %v3818, %v3810
    %v5083 = vpack.c.b16 %v3819, %v3811
    %v5084 = vpack.c.b16 %v3820, %v3812
    %v5085 = vpack.c.b16 %v3821, %v3813
    %v5086 = vpack.c.b16 %v3822, %v3814
    %v5087 = vpack.c.b16 %v3823, %v3815
    %v5088 = vpack.c.b16 %v3824, %v3816
    %v5089 = vpack.c.b16 %v3825, %v3817
    %v5090 = vpack.c.b16 %v3834, %v3826
    %v5091 = vpack.c.b16 %v3835, %v3827
    %v5092 = vpack.c.b16 %v3836, %v3828
    %v5093 = vpack.c.b16 %v3837, %v3829
    %v5094 = vpack.c.b16 %v3838, %v3830
    %v5095 = vpack.c.b16 %v3839, %v3831
    %v5096 = vpack.c.b16 %v3840, %v3832
    %v5097 = vpack.c.b16 %v3841, %v3833
    %v5098 = vpack.c.b16 %v3850, %v3842
    %v5099 = vpack.c.b16 %v3851, %v3843
    %v5100 = vpack.c.b16 %v3852, %v3844
    %v5101 = vpack.c.b16 %v3853, %v3845
    %v5102 = vpack.c.b16 %v3854, %v3846
    %v5103 = vpack.c.b16 %v3855, %v3847
    %v5104 = vpack.c.b16 %v3856, %v3848
    %v5105 = vpack.c.b16 %v3857, %v3849
    %v5106 = vpack.c.b16 %v3866, %v3858
    %v5107 = vpack.c.b16 %v3867, %v3859
    %v5108 = vpack.c.b16 %v3868, %v3860
    %v5109 = vpack.c.b16 %v3869, %v3861
    %v5110 = vpack.c.b16 %v3870, %v3862
    %v5111 = vpack.c.b16 %v3871, %v3863
    %v5112 = vpack.c.b16 %v3872, %v3864
    %v5113 = vpack.c.b16 %v3873, %v3865
    %v5114 = vpack.c.b16 %v3882, %v3874
    %v5115 = vpack.c.b16 %v3883, %v3875
    %v5116 = vpack.c.b16 %v3884, %v3876
    %v5117 = vpack.c.b16 %v3885, %v3877
    %v5118 = vpack.c.b16 %v3886, %v3878
    %v5119 = vpack.c.b16 %v3887, %v3879
    %v5120 = vpack.c.b16 %v3888, %v3880
    %v5121 = vpack.c.b16 %v3889, %v3881
    %v5122 = vpack.c.b16 %v3898, %v3890
    %v5123 = vpack.c.b16 %v3899, %v3891
    %v5124 = vpack.c.b16 %v3900, %v3892
    %v5125 = vpack.c.b16 %v3901, %v3893
    %v5126 = vpack.c.b16 %v3902, %v3894
    %v5127 = vpack.c.b16 %v3903, %v3895
    %v5128 = vpack.c.b16 %v3904, %v3896
    %v5129 = vpack.c.b16 %v3905, %v3897
    %v5130 = vpack.c.b16 %v3914, %v3906
    %v5131 = vpack.c.b16 %v3915, %v3907
    %v5132 = vpack.c.b16 %v3916, %v3908
    %v5133 = vpack.c.b16 %v3917, %v3909
    %v5134 = vpack.c.b16 %v3918, %v3910
    %v5135 = vpack.c.b16 %v3919, %v3911
    %v5136 = vpack.c.b16 %v3920, %v3912
    %v5137 = vpack.c.b16 %v3921, %v3913
    %v5138 = vpack.c.b16 %v3930, %v3922
    %v5139 = vpack.c.b16 %v3931, %v3923
    %v5140 = vpack.c.b16 %v3932, %v3924
    %v5141 = vpack.c.b16 %v3933, %v3925
    %v5142 = vpack.c.b16 %v3934, %v3926
    %v5143 = vpack.c.b16 %v3935, %v3927
    %v5144 = vpack.c.b16 %v3936, %v3928
    %v5145 = vpack.c.b16 %v3937, %v3929
    %v5146 = vpack.c.b16 %v3946, %v3938
    %v5147 = vpack.c.b16 %v3947, %v3939
    %v5148 = vpack.c.b16 %v3948, %v3940
    %v5149 = vpack.c.b16 %v3949, %v3941
    %v5150 = vpack.c.b16 %v3950, %v3942
    %v5151 = vpack.c.b16 %v3951, %v3943
    %v5152 = vpack.c.b16 %v3952, %v3944
    %v5153 = vpack.c.b16 %v3953, %v3945
    %v5154 = vpack.c.b16 %v3962, %v3954
    %v5155 = vpack.c.b16 %v3963, %v3955
    %v5156 = vpack.c.b16 %v3964, %v3956
    %v5157 = vpack.c.b16 %v3965, %v3957
    %v5158 = vpack.c.b16 %v3966, %v3958
    %v5159 = vpack.c.b16 %v3967, %v3959
    %v5160 = vpack.c.b16 %v3968, %v3960
    %v5161 = vpack.c.b16 %v3969, %v3961
    %v5162 = vpack.c.b16 %v3978, %v3970
    %v5163 = vpack.c.b16 %v3979, %v3971
    %v5164 = vpack.c.b16 %v3980, %v3972
    %v5165 = vpack.c.b16 %v3981, %v3973
    %v5166 = vpack.c.b16 %v3982, %v3974
    %v5167 = vpack.c.b16 %v3983, %v3975
    %v5168 = vpack.c.b16 %v3984, %v3976
    %v5169 = vpack.c.b16 %v3985, %v3977
    %v5170 = vpack.c.b16 %v3994, %v3986
    %v5171 = vpack.c.b16 %v3995, %v3987
    %v5172 = vpack.c.b16 %v3996, %v3988
    %v5173 = vpack.c.b16 %v3997, %v3989
    %v5174 = vpack.c.b16 %v3998, %v3990
    %v5175 = vpack.c.b16 %v3999, %v3991
    %v5176 = vpack.c.b16 %v4000, %v3992
    %v5177 = vpack.c.b16 %v4001, %v3993
    %v5178 = vpack.c.b16 %v4010, %v4002
    %v5179 = vpack.c.b16 %v4011, %v4003
    %v5180 = vpack.c.b16 %v4012, %v4004
    %v5181 = vpack.c.b16 %v4013, %v4005
    %v5182 = vpack.c.b16 %v4014, %v4006
    %v5183 = vpack.c.b16 %v4015, %v4007
    %v5184 = vpack.c.b16 %v4016, %v4008
    %v5185 = vpack.c.b16 %v4017, %v4009
    %v5186 = vpack.c.b16 %v4026, %v4018
    %v5187 = vpack.c.b16 %v4027, %v4019
    %v5188 = vpack.c.b16 %v4028, %v4020
    %v5189 = vpack.c.b16 %v4029, %v4021
    %v5190 = vpack.c.b16 %v4030, %v4022
    %v5191 = vpack.c.b16 %v4031, %v4023
    %v5192 = vpack.c.b16 %v4032, %v4024
    %v5193 = vpack.c.b16 %v4033, %v4025
    %v5194 = vpack.c.b16 %v4042, %v4034
    %v5195 = vpack.c.b16 %v4043, %v4035
    %v5196 = vpack.c.b16 %v4044, %v4036
    %v5197 = vpack.c.b16 %v4045, %v4037
    %v5198 = vpack.c.b16 %v4046, %v4038
    %v5199 = vpack.c.b16 %v4047, %v4039
    %v5200 = vpack.c.b16 %v4048, %v4040
    %v5201 = vpack.c.b16 %v4049, %v4041
    %v5202 = vpack.c.b16 %v4058, %v4050
    %v5203 = vpack.c.b16 %v4059, %v4051
    %v5204 = vpack.c.b16 %v4060, %v4052
    %v5205 = vpack.c.b16 %v4061, %v4053
    %v5206 = vpack.c.b16 %v4062, %v4054
    %v5207 = vpack.c.b16 %v4063, %v4055
    %v5208 = vpack.c.b16 %v4064, %v4056
    %v5209 = vpack.c.b16 %v4065, %v4057
    %v5210 = vpack.c.b16 %v4074, %v4066
    %v5211 = vpack.c.b16 %v4075, %v4067
    %v5212 = vpack.c.b16 %v4076, %v4068
    %v5213 = vpack.c.b16 %v4077, %v4069
    %v5214 = vpack.c.b16 %v4078, %v4070
    %v5215 = vpack.c.b16 %v4079, %v4071
    %v5216 = vpack.c.b16 %v4080, %v4072
    %v5217 = vpack.c.b16 %v4081, %v4073
    %v5218 = vpack.c.b16 %v4090, %v4082
    %v5219 = vpack.c.b16 %v4091, %v4083
    %v5220 = vpack.c.b16 %v4092, %v4084
    %v5221 = vpack.c.b16 %v4093, %v4085
    %v5222 = vpack.c.b16 %v4094, %v4086
    %v5223 = vpack.c.b16 %v4095, %v4087
    %v5224 = vpack.c.b16 %v4096, %v4088
    %v5225 = vpack.c.b16 %v4097, %v4089
    %v5226 = vpack.c.b16 %v4106, %v4098
    %v5227 = vpack.c.b16 %v4107, %v4099
    %v5228 = vpack.c.b16 %v4108, %v4100
    %v5229 = vpack.c.b16 %v4109, %v4101
    %v5230 = vpack.c.b16 %v4110, %v4102
    %v5231 = vpack.c.b16 %v4111, %v4103
    %v5232 = vpack.c.b16 %v4112, %v4104
    %v5233 = vpack.c.b16 %v4113, %v4105
    %v5234 = vpack.c.b16 %v4122, %v4114
    %v5235 = vpack.c.b16 %v4123, %v4115
    %v5236 = vpack.c.b16 %v4124, %v4116
    %v5237 = vpack.c.b16 %v4125, %v4117
    %v5238 = vpack.c.b16 %v4126, %v4118
    %v5239 = vpack.c.b16 %v4127, %v4119
    %v5240 = vpack.c.b16 %v4128, %v4120
    %v5241 = vpack.c.b16 %v4129, %v4121
    %v5242 = vpack.c.b16 %v4138, %v4130
    %v5243 = vpack.c.b16 %v4139, %v4131
    %v5244 = vpack.c.b16 %v4140, %v4132
    %v5245 = vpack.c.b16 %v4141, %v4133
    %v5246 = vpack.c.b16 %v4142, %v4134
    %v5247 = vpack.c.b16 %v4143, %v4135
    %v5248 = vpack.c.b16 %v4144, %v4136
    %v5249 = vpack.c.b16 %v4145, %v4137
    %v5250 = vpack.c.b16 %v4154, %v4146
    %v5251 = vpack.c.b16 %v4155, %v4147
    %v5252 = vpack.c.b16 %v4156, %v4148
    %v5253 = vpack.c.b16 %v4157, %v4149
    %v5254 = vpack.c.b16 %v4158, %v4150
    %v5255 = vpack.c.b16 %v4159, %v4151
    %v5256 = vpack.c.b16 %v4160, %v4152
    %v5257 = vpack.c.b16 %v4161, %v4153
    %v5258 = vpack.c.b16 %v4170, %v4162
    %v5259 = vpack.c.b16 %v4171, %v4163
    %v5260 = vpack.c.b16 %v4172, %v4164
    %v5261 = vpack.c.b16 %v4173, %v4165
    %v5262 = vpack.c.b16 %v4174, %v4166
    %v5263 = vpack.c.b16 %v4175, %v4167
    %v5264 = vpack.c.b16 %v4176, %v4168
    %v5265 = vpack.c.b16 %v4177, %v4169
    %v5266 = vpack.c.b16 %v4186, %v4178
    %v5267 = vpack.c.b16 %v4187, %v4179
    %v5268 = vpack.c.b16 %v4188, %v4180
    %v5269 = vpack.c.b16 %v4189, %v4181
    %v5270 = vpack.c.b16 %v4190, %v4182
    %v5271 = vpack.c.b16 %v4191, %v4183
    %v5272 = vpack.c.b16 %v4192, %v4184
    %v5273 = vpack.c.b16 %v4193, %v4185
    %v5274 = vpack.c.b16 %v4202, %v4194
    %v5275 = vpack.c.b16 %v4203, %v4195
    %v5276 = vpack.c.b16 %v4204, %v4196
    %v5277 = vpack.c.b16 %v4205, %v4197
    %v5278 = vpack.c.b16 %v4206, %v4198
    %v5279 = vpack.c.b16 %v4207, %v4199
    %v5280 = vpack.c.b16 %v4208, %v4200
    %v5281 = vpack.c.b16 %v4209, %v4201
    %v5282 = vpack.c.b16 %v4218, %v4210
    %v5283 = vpack.c.b16 %v4219, %v4211
    %v5284 = vpack.c.b16 %v4220, %v4212
    %v5285 = vpack.c.b16 %v4221, %v4213
    %v5286 = vpack.c.b16 %v4222, %v4214
    %v5287 = vpack.c.b16 %v4223, %v4215
    %v5288 = vpack.c.b16 %v4224, %v4216
    %v5289 = vpack.c.b16 %v4225, %v4217
    %v5290 = vpack.c.b16 %v4234, %v4226
    %v5291 = vpack.c.b16 %v4235, %v4227
    %v5292 = vpack.c.b16 %v4236, %v4228
    %v5293 = vpack.c.b16 %v4237, %v4229
    %v5294 = vpack.c.b16 %v4238, %v4230
    %v5295 = vpack.c.b16 %v4239, %v4231
    %v5296 = vpack.c.b16 %v4240, %v4232
    %v5297 = vpack.c.b16 %v4241, %v4233
    %v5298 = vpack.c.b16 %v4250, %v4242
    %v5299 = vpack.c.b16 %v4251, %v4243
    %v5300 = vpack.c.b16 %v4252, %v4244
    %v5301 = vpack.c.b16 %v4253, %v4245
    %v5302 = vpack.c.b16 %v4254, %v4246
    %v5303 = vpack.c.b16 %v4255, %v4247
    %v5304 = vpack.c.b16 %v4256, %v4248
    %v5305 = vpack.c.b16 %v4257, %v4249
    %v5306 = vpack.c.b16 %v4266, %v4258
    %v5307 = vpack.c.b16 %v4267, %v4259
    %v5308 = vpack.c.b16 %v4268, %v4260
    %v5309 = vpack.c.b16 %v4269, %v4261
    %v5310 = vpack.c.b16 %v4270, %v4262
    %v5311 = vpack.c.b16 %v4271, %v4263
    %v5312 = vpack.c.b16 %v4272, %v4264
    %v5313 = vpack.c.b16 %v4273, %v4265
    %v5314 = vpack.c.b16 %v4282, %v4274
    %v5315 = vpack.c.b16 %v4283, %v4275
    %v5316 = vpack.c.b16 %v4284, %v4276
    %v5317 = vpack.c.b16 %v4285, %v4277
    %v5318 = vpack.c.b16 %v4286, %v4278
    %v5319 = vpack.c.b16 %v4287, %v4279
    %v5320 = vpack.c.b16 %v4288, %v4280
    %v5321 = vpack.c.b16 %v4289, %v4281
    %v5322 = vpack.c.b16 %v4298, %v4290
    %v5323 = vpack.c.b16 %v4299, %v4291
    %v5324 = vpack.c.b16 %v4300, %v4292
    %v5325 = vpack.c.b16 %v4301, %v4293
    %v5326 = vpack.c.b16 %v4302, %v4294
    %v5327 = vpack.c.b16 %v4303, %v4295
    %v5328 = vpack.c.b16 %v4304, %v4296
    %v5329 = vpack.c.b16 %v4305, %v4297
    %6354 = vmatprep.subr.bf16.mxu0 %v4363
    %6355 = vmatpush1.bf16.msra.mxu0 %v4362
    %6356 = vmatprep.subr.bf16.mxu0 %v4355
    %6357 = vmatpush1.bf16.msra.mxu0 %v4354
    %6358 = vmatprep.subr.bf16.mxu0 %v4347
    %6359 = vmatpush1.bf16.msra.mxu0 %v4346
    %6360 = vmatprep.subr.bf16.mxu0 %v4339
    %6361 = vmatpush1.bf16.msra.mxu0 %v4338
    %6362 = vmatprep.subr.bf16.mxu0 %v4331
    %6363 = vmatpush1.bf16.msra.mxu0 %v4330
    %6364 = vmatprep.subr.bf16.mxu0 %v4323
    %6365 = vmatpush1.bf16.msra.mxu0 %v4322
    %6366 = vmatprep.subr.bf16.mxu0 %v4315
    %6367 = vmatpush1.bf16.msra.mxu0 %v4314
    %6368 = vmatprep.subr.bf16.mxu0 %v4307
    %6369 = vmatpush1.bf16.msra.mxu0 %v4306
    %6370 = vmatprep.subr.bf16.mxu0 %v4427
    %6371 = vmatpush2.bf16.msra.mxu0 %v4426
    %6372 = vmatprep.subr.bf16.mxu0 %v4419
    %6373 = vmatpush2.bf16.msra.mxu0 %v4418
    %6374 = vmatprep.subr.bf16.mxu0 %v4411
    %6375 = vmatpush2.bf16.msra.mxu0 %v4410
    %6376 = vmatprep.subr.bf16.mxu0 %v4403
    %6377 = vmatpush2.bf16.msra.mxu0 %v4402
    %6378 = vmatprep.subr.bf16.mxu0 %v4395
    %6379 = vmatpush2.bf16.msra.mxu0 %v4394
    %6380 = vmatprep.subr.bf16.mxu0 %v4387
    %6381 = vmatpush2.bf16.msra.mxu0 %v4386
    %6382 = vmatprep.subr.bf16.mxu0 %v4379
    %6383 = vmatpush2.bf16.msra.mxu0 %v4378
    %6384 = vmatprep.subr.bf16.mxu0 %v4371
    %6385 = vmatpush2.bf16.msra.mxu0 %v4370
    %6386 = vmatprep.mubr.bf16.mxu0 %v1165
    %6387 = vmatmul.mubr.bf16.gmra.mxu0 %v1157
    %v6388 = vpop.f32.mrf.mxu0
    %v6389 = vadd.f32 %v1109, %v6388
    %v6390 = vpop.f32.mrf.mxu0
    %v6391 = vadd.f32 %v1113, %v6390
    %v6392 = vpop.f32.mrf.mxu0
    %v6393 = vpop.f32.mrf.mxu0
    %6394 = vdwg.mxu0
    %6395 = vmatprep.subr.bf16.mxu0 %v4491
    %6396 = vmatpush1.bf16.msra.mxu0 %v4490
    %6397 = vmatprep.subr.bf16.mxu0 %v4483
    %6398 = vmatpush1.bf16.msra.mxu0 %v4482
    %6399 = vmatprep.subr.bf16.mxu0 %v4475
    %6400 = vmatpush1.bf16.msra.mxu0 %v4474
    %6401 = vmatprep.subr.bf16.mxu0 %v4467
    %6402 = vmatpush1.bf16.msra.mxu0 %v4466
    %6403 = vmatprep.subr.bf16.mxu0 %v4459
    %6404 = vmatpush1.bf16.msra.mxu0 %v4458
    %6405 = vmatprep.subr.bf16.mxu0 %v4451
    %6406 = vmatpush1.bf16.msra.mxu0 %v4450
    %6407 = vmatprep.subr.bf16.mxu0 %v4443
    %6408 = vmatpush1.bf16.msra.mxu0 %v4442
    %6409 = vmatprep.subr.bf16.mxu0 %v4435
    %6410 = vmatpush1.bf16.msra.mxu0 %v4434
    %6411 = vmatprep.subr.bf16.mxu0 %v4555
    %6412 = vmatpush2.bf16.msra.mxu0 %v4554
    %6413 = vmatprep.subr.bf16.mxu0 %v4547
    %6414 = vmatpush2.bf16.msra.mxu0 %v4546
    %6415 = vmatprep.subr.bf16.mxu0 %v4539
    %6416 = vmatpush2.bf16.msra.mxu0 %v4538
    %6417 = vmatprep.subr.bf16.mxu0 %v4531
    %6418 = vmatpush2.bf16.msra.mxu0 %v4530
    %6419 = vmatprep.subr.bf16.mxu0 %v4523
    %6420 = vmatpush2.bf16.msra.mxu0 %v4522
    %6421 = vmatprep.subr.bf16.mxu0 %v4515
    %6422 = vmatpush2.bf16.msra.mxu0 %v4514
    %6423 = vmatprep.subr.bf16.mxu0 %v4507
    %6424 = vmatpush2.bf16.msra.mxu0 %v4506
    %6425 = vmatprep.subr.bf16.mxu0 %v4499
    %6426 = vmatpush2.bf16.msra.mxu0 %v4498
    %6427 = vmatprep.mubr.bf16.mxu0 %v1166
    %6428 = vmatmul.mubr.bf16.gmra.mxu0 %v1164
    %v6429 = vpop.f32.mrf.mxu0
    %v6430 = vadd.f32 %v6389, %v6429
    %v6431 = vpop.f32.mrf.mxu0
    %v6432 = vadd.f32 %v6391, %v6431
    %v6433 = vpop.f32.mrf.mxu0
    %v6434 = vpop.f32.mrf.mxu0
    %6435 = vdwg.mxu0
    %6436 = vmatprep.subr.bf16.mxu0 %v4619
    %6437 = vmatpush1.bf16.msra.mxu0 %v4618
    %6438 = vmatprep.subr.bf16.mxu0 %v4611
    %6439 = vmatpush1.bf16.msra.mxu0 %v4610
    %6440 = vmatprep.subr.bf16.mxu0 %v4603
    %6441 = vmatpush1.bf16.msra.mxu0 %v4602
    %6442 = vmatprep.subr.bf16.mxu0 %v4595
    %6443 = vmatpush1.bf16.msra.mxu0 %v4594
    %6444 = vmatprep.subr.bf16.mxu0 %v4587
    %6445 = vmatpush1.bf16.msra.mxu0 %v4586
    %6446 = vmatprep.subr.bf16.mxu0 %v4579
    %6447 = vmatpush1.bf16.msra.mxu0 %v4578
    %6448 = vmatprep.subr.bf16.mxu0 %v4571
    %6449 = vmatpush1.bf16.msra.mxu0 %v4570
    %6450 = vmatprep.subr.bf16.mxu0 %v4563
    %6451 = vmatpush1.bf16.msra.mxu0 %v4562
    %6452 = vmatprep.subr.bf16.mxu0 %v4683
    %6453 = vmatpush2.bf16.msra.mxu0 %v4682
    %6454 = vmatprep.subr.bf16.mxu0 %v4675
    %6455 = vmatpush2.bf16.msra.mxu0 %v4674
    %6456 = vmatprep.subr.bf16.mxu0 %v4667
    %6457 = vmatpush2.bf16.msra.mxu0 %v4666
    %6458 = vmatprep.subr.bf16.mxu0 %v4659
    %6459 = vmatpush2.bf16.msra.mxu0 %v4658
    %6460 = vmatprep.subr.bf16.mxu0 %v4651
    %6461 = vmatpush2.bf16.msra.mxu0 %v4650
    %6462 = vmatprep.subr.bf16.mxu0 %v4643
    %6463 = vmatpush2.bf16.msra.mxu0 %v4642
    %6464 = vmatprep.subr.bf16.mxu0 %v4635
    %6465 = vmatpush2.bf16.msra.mxu0 %v4634
    %6466 = vmatprep.subr.bf16.mxu0 %v4627
    %6467 = vmatpush2.bf16.msra.mxu0 %v4626
    %6468 = vmatprep.mubr.bf16.mxu0 %v1182
    %6469 = vmatmul.mubr.bf16.gmra.mxu0 %v1174
    %v6470 = vpop.f32.mrf.mxu0
    %v6471 = vadd.f32 %v6430, %v6470
    %v6472 = vpop.f32.mrf.mxu0
    %v6473 = vadd.f32 %v6432, %v6472
    %v6474 = vpop.f32.mrf.mxu0
    %v6475 = vpop.f32.mrf.mxu0
    %6476 = vdwg.mxu0
    %6477 = vmatprep.subr.bf16.mxu0 %v4747
    %6478 = vmatpush1.bf16.msra.mxu0 %v4746
    %6479 = vmatprep.subr.bf16.mxu0 %v4739
    %6480 = vmatpush1.bf16.msra.mxu0 %v4738
    %6481 = vmatprep.subr.bf16.mxu0 %v4731
    %6482 = vmatpush1.bf16.msra.mxu0 %v4730
    %6483 = vmatprep.subr.bf16.mxu0 %v4723
    %6484 = vmatpush1.bf16.msra.mxu0 %v4722
    %6485 = vmatprep.subr.bf16.mxu0 %v4715
    %6486 = vmatpush1.bf16.msra.mxu0 %v4714
    %6487 = vmatprep.subr.bf16.mxu0 %v4707
    %6488 = vmatpush1.bf16.msra.mxu0 %v4706
    %6489 = vmatprep.subr.bf16.mxu0 %v4699
    %6490 = vmatpush1.bf16.msra.mxu0 %v4698
    %6491 = vmatprep.subr.bf16.mxu0 %v4691
    %6492 = vmatpush1.bf16.msra.mxu0 %v4690
    %6493 = vmatprep.subr.bf16.mxu0 %v4811
    %6494 = vmatpush2.bf16.msra.mxu0 %v4810
    %6495 = vmatprep.subr.bf16.mxu0 %v4803
    %6496 = vmatpush2.bf16.msra.mxu0 %v4802
    %6497 = vmatprep.subr.bf16.mxu0 %v4795
    %6498 = vmatpush2.bf16.msra.mxu0 %v4794
    %6499 = vmatprep.subr.bf16.mxu0 %v4787
    %6500 = vmatpush2.bf16.msra.mxu0 %v4786
    %6501 = vmatprep.subr.bf16.mxu0 %v4779
    %6502 = vmatpush2.bf16.msra.mxu0 %v4778
    %6503 = vmatprep.subr.bf16.mxu0 %v4771
    %6504 = vmatpush2.bf16.msra.mxu0 %v4770
    %6505 = vmatprep.subr.bf16.mxu0 %v4763
    %6506 = vmatpush2.bf16.msra.mxu0 %v4762
    %6507 = vmatprep.subr.bf16.mxu0 %v4755
    %6508 = vmatpush2.bf16.msra.mxu0 %v4754
    %6509 = vmatprep.mubr.bf16.mxu0 %v1183
    %6510 = vmatmul.mubr.bf16.gmra.mxu0 %v1181
    %v6511 = vpop.f32.mrf.mxu0
    %v6512 = vadd.f32 %v6471, %v6511
    %v6513 = vpop.f32.mrf.mxu0
    %v6514 = vadd.f32 %v6473, %v6513
    %v6515 = vpop.f32.mrf.mxu0
    %v6516 = vpop.f32.mrf.mxu0
    %6517 = vdwg.mxu0
    %6518 = vmatprep.subr.bf16.mxu0 %v4875
    %6519 = vmatpush1.bf16.msra.mxu0 %v4874
    %6520 = vmatprep.subr.bf16.mxu0 %v4867
    %6521 = vmatpush1.bf16.msra.mxu0 %v4866
    %6522 = vmatprep.subr.bf16.mxu0 %v4859
    %6523 = vmatpush1.bf16.msra.mxu0 %v4858
    %6524 = vmatprep.subr.bf16.mxu0 %v4851
    %6525 = vmatpush1.bf16.msra.mxu0 %v4850
    %6526 = vmatprep.subr.bf16.mxu0 %v4843
    %6527 = vmatpush1.bf16.msra.mxu0 %v4842
    %6528 = vmatprep.subr.bf16.mxu0 %v4835
    %6529 = vmatpush1.bf16.msra.mxu0 %v4834
    %6530 = vmatprep.subr.bf16.mxu0 %v4827
    %6531 = vmatpush1.bf16.msra.mxu0 %v4826
    %6532 = vmatprep.subr.bf16.mxu0 %v4819
    %6533 = vmatpush1.bf16.msra.mxu0 %v4818
    %6534 = vmatprep.subr.bf16.mxu0 %v4939
    %6535 = vmatpush2.bf16.msra.mxu0 %v4938
    %6536 = vmatprep.subr.bf16.mxu0 %v4931
    %6537 = vmatpush2.bf16.msra.mxu0 %v4930
    %6538 = vmatprep.subr.bf16.mxu0 %v4923
    %6539 = vmatpush2.bf16.msra.mxu0 %v4922
    %6540 = vmatprep.subr.bf16.mxu0 %v4915
    %6541 = vmatpush2.bf16.msra.mxu0 %v4914
    %6542 = vmatprep.subr.bf16.mxu0 %v4907
    %6543 = vmatpush2.bf16.msra.mxu0 %v4906
    %6544 = vmatprep.subr.bf16.mxu0 %v4899
    %6545 = vmatpush2.bf16.msra.mxu0 %v4898
    %6546 = vmatprep.subr.bf16.mxu0 %v4891
    %6547 = vmatpush2.bf16.msra.mxu0 %v4890
    %6548 = vmatprep.subr.bf16.mxu0 %v4883
    %6549 = vmatpush2.bf16.msra.mxu0 %v4882
    %6550 = vmatprep.mubr.bf16.mxu0 %v1199
    %6551 = vmatmul.mubr.bf16.gmra.mxu0 %v1191
    %v6552 = vpop.f32.mrf.mxu0
    %v6553 = vadd.f32 %v6512, %v6552
    %v6554 = vpop.f32.mrf.mxu0
    %v6555 = vadd.f32 %v6514, %v6554
    %v6556 = vpop.f32.mrf.mxu0
    %v6557 = vpop.f32.mrf.mxu0
    %6558 = vdwg.mxu0
    %6559 = vmatprep.subr.bf16.mxu0 %v5003
    %6560 = vmatpush1.bf16.msra.mxu0 %v5002
    %6561 = vmatprep.subr.bf16.mxu0 %v4995
    %6562 = vmatpush1.bf16.msra.mxu0 %v4994
    %6563 = vmatprep.subr.bf16.mxu0 %v4987
    %6564 = vmatpush1.bf16.msra.mxu0 %v4986
    %6565 = vmatprep.subr.bf16.mxu0 %v4979
    %6566 = vmatpush1.bf16.msra.mxu0 %v4978
    %6567 = vmatprep.subr.bf16.mxu0 %v4971
    %6568 = vmatpush1.bf16.msra.mxu0 %v4970
    %6569 = vmatprep.subr.bf16.mxu0 %v4963
    %6570 = vmatpush1.bf16.msra.mxu0 %v4962
    %6571 = vmatprep.subr.bf16.mxu0 %v4955
    %6572 = vmatpush1.bf16.msra.mxu0 %v4954
    %6573 = vmatprep.subr.bf16.mxu0 %v4947
    %6574 = vmatpush1.bf16.msra.mxu0 %v4946
    %6575 = vmatprep.subr.bf16.mxu0 %v5067
    %6576 = vmatpush2.bf16.msra.mxu0 %v5066
    %6577 = vmatprep.subr.bf16.mxu0 %v5059
    %6578 = vmatpush2.bf16.msra.mxu0 %v5058
    %6579 = vmatprep.subr.bf16.mxu0 %v5051
    %6580 = vmatpush2.bf16.msra.mxu0 %v5050
    %6581 = vmatprep.subr.bf16.mxu0 %v5043
    %6582 = vmatpush2.bf16.msra.mxu0 %v5042
    %6583 = vmatprep.subr.bf16.mxu0 %v5035
    %6584 = vmatpush2.bf16.msra.mxu0 %v5034
    %6585 = vmatprep.subr.bf16.mxu0 %v5027
    %6586 = vmatpush2.bf16.msra.mxu0 %v5026
    %6587 = vmatprep.subr.bf16.mxu0 %v5019
    %6588 = vmatpush2.bf16.msra.mxu0 %v5018
    %6589 = vmatprep.subr.bf16.mxu0 %v5011
    %6590 = vmatpush2.bf16.msra.mxu0 %v5010
    %6591 = vmatprep.mubr.bf16.mxu0 %v1200
    %6592 = vmatmul.mubr.bf16.gmra.mxu0 %v1198
    %v6593 = vpop.f32.mrf.mxu0
    %v6594 = vadd.f32 %v6553, %v6593
    %v6595 = vpop.f32.mrf.mxu0
    %v6596 = vadd.f32 %v6555, %v6595
    %v6597 = vpop.f32.mrf.mxu0
    %v6598 = vpop.f32.mrf.mxu0
    %6599 = vdwg.mxu0
    %6600 = vmatprep.subr.bf16.mxu0 %v5131
    %6601 = vmatpush1.bf16.msra.mxu0 %v5130
    %6602 = vmatprep.subr.bf16.mxu0 %v5123
    %6603 = vmatpush1.bf16.msra.mxu0 %v5122
    %6604 = vmatprep.subr.bf16.mxu0 %v5115
    %6605 = vmatpush1.bf16.msra.mxu0 %v5114
    %6606 = vmatprep.subr.bf16.mxu0 %v5107
    %6607 = vmatpush1.bf16.msra.mxu0 %v5106
    %6608 = vmatprep.subr.bf16.mxu0 %v5099
    %6609 = vmatpush1.bf16.msra.mxu0 %v5098
    %6610 = vmatprep.subr.bf16.mxu0 %v5091
    %6611 = vmatpush1.bf16.msra.mxu0 %v5090
    %6612 = vmatprep.subr.bf16.mxu0 %v5083
    %6613 = vmatpush1.bf16.msra.mxu0 %v5082
    %6614 = vmatprep.subr.bf16.mxu0 %v5075
    %6615 = vmatpush1.bf16.msra.mxu0 %v5074
    %6616 = vmatprep.subr.bf16.mxu0 %v5195
    %6617 = vmatpush2.bf16.msra.mxu0 %v5194
    %6618 = vmatprep.subr.bf16.mxu0 %v5187
    %6619 = vmatpush2.bf16.msra.mxu0 %v5186
    %6620 = vmatprep.subr.bf16.mxu0 %v5179
    %6621 = vmatpush2.bf16.msra.mxu0 %v5178
    %6622 = vmatprep.subr.bf16.mxu0 %v5171
    %6623 = vmatpush2.bf16.msra.mxu0 %v5170
    %6624 = vmatprep.subr.bf16.mxu0 %v5163
    %6625 = vmatpush2.bf16.msra.mxu0 %v5162
    %6626 = vmatprep.subr.bf16.mxu0 %v5155
    %6627 = vmatpush2.bf16.msra.mxu0 %v5154
    %6628 = vmatprep.subr.bf16.mxu0 %v5147
    %6629 = vmatpush2.bf16.msra.mxu0 %v5146
    %6630 = vmatprep.subr.bf16.mxu0 %v5139
    %6631 = vmatpush2.bf16.msra.mxu0 %v5138
    %6632 = vmatprep.mubr.bf16.mxu0 %v1216
    %6633 = vmatmul.mubr.bf16.gmra.mxu0 %v1208
    %v6634 = vpop.f32.mrf.mxu0
    %v6635 = vadd.f32 %v6594, %v6634
    %v6636 = vpop.f32.mrf.mxu0
    %v6637 = vadd.f32 %v6596, %v6636
    %v6638 = vpop.f32.mrf.mxu0
    %v6639 = vpop.f32.mrf.mxu0
    %6640 = vdwg.mxu0
    %6641 = vmatprep.subr.bf16.mxu0 %v5259
    %6642 = vmatpush1.bf16.msra.mxu0 %v5258
    %6643 = vmatprep.subr.bf16.mxu0 %v5251
    %6644 = vmatpush1.bf16.msra.mxu0 %v5250
    %6645 = vmatprep.subr.bf16.mxu0 %v5243
    %6646 = vmatpush1.bf16.msra.mxu0 %v5242
    %6647 = vmatprep.subr.bf16.mxu0 %v5235
    %6648 = vmatpush1.bf16.msra.mxu0 %v5234
    %6649 = vmatprep.subr.bf16.mxu0 %v5227
    %6650 = vmatpush1.bf16.msra.mxu0 %v5226
    %6651 = vmatprep.subr.bf16.mxu0 %v5219
    %6652 = vmatpush1.bf16.msra.mxu0 %v5218
    %6653 = vmatprep.subr.bf16.mxu0 %v5211
    %6654 = vmatpush1.bf16.msra.mxu0 %v5210
    %6655 = vmatprep.subr.bf16.mxu0 %v5203
    %6656 = vmatpush1.bf16.msra.mxu0 %v5202
    %6657 = vmatprep.subr.bf16.mxu0 %v5323
    %6658 = vmatpush2.bf16.msra.mxu0 %v5322
    %6659 = vmatprep.subr.bf16.mxu0 %v5315
    %6660 = vmatpush2.bf16.msra.mxu0 %v5314
    %6661 = vmatprep.subr.bf16.mxu0 %v5307
    %6662 = vmatpush2.bf16.msra.mxu0 %v5306
    %6663 = vmatprep.subr.bf16.mxu0 %v5299
    %6664 = vmatpush2.bf16.msra.mxu0 %v5298
    %6665 = vmatprep.subr.bf16.mxu0 %v5291
    %6666 = vmatpush2.bf16.msra.mxu0 %v5290
    %6667 = vmatprep.subr.bf16.mxu0 %v5283
    %6668 = vmatpush2.bf16.msra.mxu0 %v5282
    %6669 = vmatprep.subr.bf16.mxu0 %v5275
    %6670 = vmatpush2.bf16.msra.mxu0 %v5274
    %6671 = vmatprep.subr.bf16.mxu0 %v5267
    %6672 = vmatpush2.bf16.msra.mxu0 %v5266
    %6673 = vmatprep.mubr.bf16.mxu0 %v1217
    %6674 = vmatmul.mubr.bf16.gmra.mxu0 %v1215
    %v6675 = vpop.f32.mrf.mxu0
    %v6676 = vadd.f32 %v6635, %v6675
    %v6677 = vpop.f32.mrf.mxu0
    %v6678 = vadd.f32 %v6637, %v6677
    %v6679 = vpop.f32.mrf.mxu0
    %v6680 = vpop.f32.mrf.mxu0
    %6681 = vdwg.mxu0
    %6682 = vmatprep.subr.bf16.mxu0 %v4365
    %6683 = vmatpush1.bf16.msra.mxu0 %v4364
    %6684 = vmatprep.subr.bf16.mxu0 %v4357
    %6685 = vmatpush1.bf16.msra.mxu0 %v4356
    %6686 = vmatprep.subr.bf16.mxu0 %v4349
    %6687 = vmatpush1.bf16.msra.mxu0 %v4348
    %6688 = vmatprep.subr.bf16.mxu0 %v4341
    %6689 = vmatpush1.bf16.msra.mxu0 %v4340
    %6690 = vmatprep.subr.bf16.mxu0 %v4333
    %6691 = vmatpush1.bf16.msra.mxu0 %v4332
    %6692 = vmatprep.subr.bf16.mxu0 %v4325
    %6693 = vmatpush1.bf16.msra.mxu0 %v4324
    %6694 = vmatprep.subr.bf16.mxu0 %v4317
    %6695 = vmatpush1.bf16.msra.mxu0 %v4316
    %6696 = vmatprep.subr.bf16.mxu0 %v4309
    %6697 = vmatpush1.bf16.msra.mxu0 %v4308
    %6698 = vmatprep.subr.bf16.mxu0 %v4429
    %6699 = vmatpush2.bf16.msra.mxu0 %v4428
    %6700 = vmatprep.subr.bf16.mxu0 %v4421
    %6701 = vmatpush2.bf16.msra.mxu0 %v4420
    %6702 = vmatprep.subr.bf16.mxu0 %v4413
    %6703 = vmatpush2.bf16.msra.mxu0 %v4412
    %6704 = vmatprep.subr.bf16.mxu0 %v4405
    %6705 = vmatpush2.bf16.msra.mxu0 %v4404
    %6706 = vmatprep.subr.bf16.mxu0 %v4397
    %6707 = vmatpush2.bf16.msra.mxu0 %v4396
    %6708 = vmatprep.subr.bf16.mxu0 %v4389
    %6709 = vmatpush2.bf16.msra.mxu0 %v4388
    %6710 = vmatprep.subr.bf16.mxu0 %v4381
    %6711 = vmatpush2.bf16.msra.mxu0 %v4380
    %6712 = vmatprep.subr.bf16.mxu0 %v4373
    %6713 = vmatpush2.bf16.msra.mxu0 %v4372
    %6714 = vmatprep.mubr.bf16.mxu0 %v1165
    %6715 = vmatmul.mubr.bf16.gmra.mxu0 %v1157
    %v6716 = vpop.f32.mrf.mxu0
    %v6717 = vadd.f32 %v1117, %v6716
    %v6718 = vpop.f32.mrf.mxu0
    %v6719 = vadd.f32 %v1121, %v6718
    %v6720 = vpop.f32.mrf.mxu0
    %v6721 = vpop.f32.mrf.mxu0
    %6722 = vdwg.mxu0
    %6723 = vmatprep.subr.bf16.mxu0 %v4493
    %6724 = vmatpush1.bf16.msra.mxu0 %v4492
    %6725 = vmatprep.subr.bf16.mxu0 %v4485
    %6726 = vmatpush1.bf16.msra.mxu0 %v4484
    %6727 = vmatprep.subr.bf16.mxu0 %v4477
    %6728 = vmatpush1.bf16.msra.mxu0 %v4476
    %6729 = vmatprep.subr.bf16.mxu0 %v4469
    %6730 = vmatpush1.bf16.msra.mxu0 %v4468
    %6731 = vmatprep.subr.bf16.mxu0 %v4461
    %6732 = vmatpush1.bf16.msra.mxu0 %v4460
    %6733 = vmatprep.subr.bf16.mxu0 %v4453
    %6734 = vmatpush1.bf16.msra.mxu0 %v4452
    %6735 = vmatprep.subr.bf16.mxu0 %v4445
    %6736 = vmatpush1.bf16.msra.mxu0 %v4444
    %6737 = vmatprep.subr.bf16.mxu0 %v4437
    %6738 = vmatpush1.bf16.msra.mxu0 %v4436
    %6739 = vmatprep.subr.bf16.mxu0 %v4557
    %6740 = vmatpush2.bf16.msra.mxu0 %v4556
    %6741 = vmatprep.subr.bf16.mxu0 %v4549
    %6742 = vmatpush2.bf16.msra.mxu0 %v4548
    %6743 = vmatprep.subr.bf16.mxu0 %v4541
    %6744 = vmatpush2.bf16.msra.mxu0 %v4540
    %6745 = vmatprep.subr.bf16.mxu0 %v4533
    %6746 = vmatpush2.bf16.msra.mxu0 %v4532
    %6747 = vmatprep.subr.bf16.mxu0 %v4525
    %6748 = vmatpush2.bf16.msra.mxu0 %v4524
    %6749 = vmatprep.subr.bf16.mxu0 %v4517
    %6750 = vmatpush2.bf16.msra.mxu0 %v4516
    %6751 = vmatprep.subr.bf16.mxu0 %v4509
    %6752 = vmatpush2.bf16.msra.mxu0 %v4508
    %6753 = vmatprep.subr.bf16.mxu0 %v4501
    %6754 = vmatpush2.bf16.msra.mxu0 %v4500
    %6755 = vmatprep.mubr.bf16.mxu0 %v1166
    %6756 = vmatmul.mubr.bf16.gmra.mxu0 %v1164
    %v6757 = vpop.f32.mrf.mxu0
    %v6758 = vadd.f32 %v6717, %v6757
    %v6759 = vpop.f32.mrf.mxu0
    %v6760 = vadd.f32 %v6719, %v6759
    %v6761 = vpop.f32.mrf.mxu0
    %v6762 = vpop.f32.mrf.mxu0
    %6763 = vdwg.mxu0
    %6764 = vmatprep.subr.bf16.mxu0 %v4621
    %6765 = vmatpush1.bf16.msra.mxu0 %v4620
    %6766 = vmatprep.subr.bf16.mxu0 %v4613
    %6767 = vmatpush1.bf16.msra.mxu0 %v4612
    %6768 = vmatprep.subr.bf16.mxu0 %v4605
    %6769 = vmatpush1.bf16.msra.mxu0 %v4604
    %6770 = vmatprep.subr.bf16.mxu0 %v4597
    %6771 = vmatpush1.bf16.msra.mxu0 %v4596
    %6772 = vmatprep.subr.bf16.mxu0 %v4589
    %6773 = vmatpush1.bf16.msra.mxu0 %v4588
    %6774 = vmatprep.subr.bf16.mxu0 %v4581
    %6775 = vmatpush1.bf16.msra.mxu0 %v4580
    %6776 = vmatprep.subr.bf16.mxu0 %v4573
    %6777 = vmatpush1.bf16.msra.mxu0 %v4572
    %6778 = vmatprep.subr.bf16.mxu0 %v4565
    %6779 = vmatpush1.bf16.msra.mxu0 %v4564
    %6780 = vmatprep.subr.bf16.mxu0 %v4685
    %6781 = vmatpush2.bf16.msra.mxu0 %v4684
    %6782 = vmatprep.subr.bf16.mxu0 %v4677
    %6783 = vmatpush2.bf16.msra.mxu0 %v4676
    %6784 = vmatprep.subr.bf16.mxu0 %v4669
    %6785 = vmatpush2.bf16.msra.mxu0 %v4668
    %6786 = vmatprep.subr.bf16.mxu0 %v4661
    %6787 = vmatpush2.bf16.msra.mxu0 %v4660
    %6788 = vmatprep.subr.bf16.mxu0 %v4653
    %6789 = vmatpush2.bf16.msra.mxu0 %v4652
    %6790 = vmatprep.subr.bf16.mxu0 %v4645
    %6791 = vmatpush2.bf16.msra.mxu0 %v4644
    %6792 = vmatprep.subr.bf16.mxu0 %v4637
    %6793 = vmatpush2.bf16.msra.mxu0 %v4636
    %6794 = vmatprep.subr.bf16.mxu0 %v4629
    %6795 = vmatpush2.bf16.msra.mxu0 %v4628
    %6796 = vmatprep.mubr.bf16.mxu0 %v1182
    %6797 = vmatmul.mubr.bf16.gmra.mxu0 %v1174
    %v6798 = vpop.f32.mrf.mxu0
    %v6799 = vadd.f32 %v6758, %v6798
    %v6800 = vpop.f32.mrf.mxu0
    %v6801 = vadd.f32 %v6760, %v6800
    %v6802 = vpop.f32.mrf.mxu0
    %v6803 = vpop.f32.mrf.mxu0
    %6804 = vdwg.mxu0
    %6805 = vmatprep.subr.bf16.mxu0 %v4749
    %6806 = vmatpush1.bf16.msra.mxu0 %v4748
    %6807 = vmatprep.subr.bf16.mxu0 %v4741
    %6808 = vmatpush1.bf16.msra.mxu0 %v4740
    %6809 = vmatprep.subr.bf16.mxu0 %v4733
    %6810 = vmatpush1.bf16.msra.mxu0 %v4732
    %6811 = vmatprep.subr.bf16.mxu0 %v4725
    %6812 = vmatpush1.bf16.msra.mxu0 %v4724
    %6813 = vmatprep.subr.bf16.mxu0 %v4717
    %6814 = vmatpush1.bf16.msra.mxu0 %v4716
    %6815 = vmatprep.subr.bf16.mxu0 %v4709
    %6816 = vmatpush1.bf16.msra.mxu0 %v4708
    %6817 = vmatprep.subr.bf16.mxu0 %v4701
    %6818 = vmatpush1.bf16.msra.mxu0 %v4700
    %6819 = vmatprep.subr.bf16.mxu0 %v4693
    %6820 = vmatpush1.bf16.msra.mxu0 %v4692
    %6821 = vmatprep.subr.bf16.mxu0 %v4813
    %6822 = vmatpush2.bf16.msra.mxu0 %v4812
    %6823 = vmatprep.subr.bf16.mxu0 %v4805
    %6824 = vmatpush2.bf16.msra.mxu0 %v4804
    %6825 = vmatprep.subr.bf16.mxu0 %v4797
    %6826 = vmatpush2.bf16.msra.mxu0 %v4796
    %6827 = vmatprep.subr.bf16.mxu0 %v4789
    %6828 = vmatpush2.bf16.msra.mxu0 %v4788
    %6829 = vmatprep.subr.bf16.mxu0 %v4781
    %6830 = vmatpush2.bf16.msra.mxu0 %v4780
    %6831 = vmatprep.subr.bf16.mxu0 %v4773
    %6832 = vmatpush2.bf16.msra.mxu0 %v4772
    %6833 = vmatprep.subr.bf16.mxu0 %v4765
    %6834 = vmatpush2.bf16.msra.mxu0 %v4764
    %6835 = vmatprep.subr.bf16.mxu0 %v4757
    %6836 = vmatpush2.bf16.msra.mxu0 %v4756
    %6837 = vmatprep.mubr.bf16.mxu0 %v1183
    %6838 = vmatmul.mubr.bf16.gmra.mxu0 %v1181
    %v6839 = vpop.f32.mrf.mxu0
    %v6840 = vadd.f32 %v6799, %v6839
    %v6841 = vpop.f32.mrf.mxu0
    %v6842 = vadd.f32 %v6801, %v6841
    %v6843 = vpop.f32.mrf.mxu0
    %v6844 = vpop.f32.mrf.mxu0
    %6845 = vdwg.mxu0
    %6846 = vmatprep.subr.bf16.mxu0 %v4877
    %6847 = vmatpush1.bf16.msra.mxu0 %v4876
    %6848 = vmatprep.subr.bf16.mxu0 %v4869
    %6849 = vmatpush1.bf16.msra.mxu0 %v4868
    %6850 = vmatprep.subr.bf16.mxu0 %v4861
    %6851 = vmatpush1.bf16.msra.mxu0 %v4860
    %6852 = vmatprep.subr.bf16.mxu0 %v4853
    %6853 = vmatpush1.bf16.msra.mxu0 %v4852
    %6854 = vmatprep.subr.bf16.mxu0 %v4845
    %6855 = vmatpush1.bf16.msra.mxu0 %v4844
    %6856 = vmatprep.subr.bf16.mxu0 %v4837
    %6857 = vmatpush1.bf16.msra.mxu0 %v4836
    %6858 = vmatprep.subr.bf16.mxu0 %v4829
    %6859 = vmatpush1.bf16.msra.mxu0 %v4828
    %6860 = vmatprep.subr.bf16.mxu0 %v4821
    %6861 = vmatpush1.bf16.msra.mxu0 %v4820
    %6862 = vmatprep.subr.bf16.mxu0 %v4941
    %6863 = vmatpush2.bf16.msra.mxu0 %v4940
    %6864 = vmatprep.subr.bf16.mxu0 %v4933
    %6865 = vmatpush2.bf16.msra.mxu0 %v4932
    %6866 = vmatprep.subr.bf16.mxu0 %v4925
    %6867 = vmatpush2.bf16.msra.mxu0 %v4924
    %6868 = vmatprep.subr.bf16.mxu0 %v4917
    %6869 = vmatpush2.bf16.msra.mxu0 %v4916
    %6870 = vmatprep.subr.bf16.mxu0 %v4909
    %6871 = vmatpush2.bf16.msra.mxu0 %v4908
    %6872 = vmatprep.subr.bf16.mxu0 %v4901
    %6873 = vmatpush2.bf16.msra.mxu0 %v4900
    %6874 = vmatprep.subr.bf16.mxu0 %v4893
    %6875 = vmatpush2.bf16.msra.mxu0 %v4892
    %6876 = vmatprep.subr.bf16.mxu0 %v4885
    %6877 = vmatpush2.bf16.msra.mxu0 %v4884
    %6878 = vmatprep.mubr.bf16.mxu0 %v1199
    %6879 = vmatmul.mubr.bf16.gmra.mxu0 %v1191
    %v6880 = vpop.f32.mrf.mxu0
    %v6881 = vadd.f32 %v6840, %v6880
    %v6882 = vpop.f32.mrf.mxu0
    %v6883 = vadd.f32 %v6842, %v6882
    %v6884 = vpop.f32.mrf.mxu0
    %v6885 = vpop.f32.mrf.mxu0
    %6886 = vdwg.mxu0
    %6887 = vmatprep.subr.bf16.mxu0 %v5005
    %6888 = vmatpush1.bf16.msra.mxu0 %v5004
    %6889 = vmatprep.subr.bf16.mxu0 %v4997
    %6890 = vmatpush1.bf16.msra.mxu0 %v4996
    %6891 = vmatprep.subr.bf16.mxu0 %v4989
    %6892 = vmatpush1.bf16.msra.mxu0 %v4988
    %6893 = vmatprep.subr.bf16.mxu0 %v4981
    %6894 = vmatpush1.bf16.msra.mxu0 %v4980
    %6895 = vmatprep.subr.bf16.mxu0 %v4973
    %6896 = vmatpush1.bf16.msra.mxu0 %v4972
    %6897 = vmatprep.subr.bf16.mxu0 %v4965
    %6898 = vmatpush1.bf16.msra.mxu0 %v4964
    %6899 = vmatprep.subr.bf16.mxu0 %v4957
    %6900 = vmatpush1.bf16.msra.mxu0 %v4956
    %6901 = vmatprep.subr.bf16.mxu0 %v4949
    %6902 = vmatpush1.bf16.msra.mxu0 %v4948
    %6903 = vmatprep.subr.bf16.mxu0 %v5069
    %6904 = vmatpush2.bf16.msra.mxu0 %v5068
    %6905 = vmatprep.subr.bf16.mxu0 %v5061
    %6906 = vmatpush2.bf16.msra.mxu0 %v5060
    %6907 = vmatprep.subr.bf16.mxu0 %v5053
    %6908 = vmatpush2.bf16.msra.mxu0 %v5052
    %6909 = vmatprep.subr.bf16.mxu0 %v5045
    %6910 = vmatpush2.bf16.msra.mxu0 %v5044
    %6911 = vmatprep.subr.bf16.mxu0 %v5037
    %6912 = vmatpush2.bf16.msra.mxu0 %v5036
    %6913 = vmatprep.subr.bf16.mxu0 %v5029
    %6914 = vmatpush2.bf16.msra.mxu0 %v5028
    %6915 = vmatprep.subr.bf16.mxu0 %v5021
    %6916 = vmatpush2.bf16.msra.mxu0 %v5020
    %6917 = vmatprep.subr.bf16.mxu0 %v5013
    %6918 = vmatpush2.bf16.msra.mxu0 %v5012
    %6919 = vmatprep.mubr.bf16.mxu0 %v1200
    %6920 = vmatmul.mubr.bf16.gmra.mxu0 %v1198
    %v6921 = vpop.f32.mrf.mxu0
    %v6922 = vadd.f32 %v6881, %v6921
    %v6923 = vpop.f32.mrf.mxu0
    %v6924 = vadd.f32 %v6883, %v6923
    %v6925 = vpop.f32.mrf.mxu0
    %v6926 = vpop.f32.mrf.mxu0
    %6927 = vdwg.mxu0
    %6928 = vmatprep.subr.bf16.mxu0 %v5133
    %6929 = vmatpush1.bf16.msra.mxu0 %v5132
    %6930 = vmatprep.subr.bf16.mxu0 %v5125
    %6931 = vmatpush1.bf16.msra.mxu0 %v5124
    %6932 = vmatprep.subr.bf16.mxu0 %v5117
    %6933 = vmatpush1.bf16.msra.mxu0 %v5116
    %6934 = vmatprep.subr.bf16.mxu0 %v5109
    %6935 = vmatpush1.bf16.msra.mxu0 %v5108
    %6936 = vmatprep.subr.bf16.mxu0 %v5101
    %6937 = vmatpush1.bf16.msra.mxu0 %v5100
    %6938 = vmatprep.subr.bf16.mxu0 %v5093
    %6939 = vmatpush1.bf16.msra.mxu0 %v5092
    %6940 = vmatprep.subr.bf16.mxu0 %v5085
    %6941 = vmatpush1.bf16.msra.mxu0 %v5084
    %6942 = vmatprep.subr.bf16.mxu0 %v5077
    %6943 = vmatpush1.bf16.msra.mxu0 %v5076
    %6944 = vmatprep.subr.bf16.mxu0 %v5197
    %6945 = vmatpush2.bf16.msra.mxu0 %v5196
    %6946 = vmatprep.subr.bf16.mxu0 %v5189
    %6947 = vmatpush2.bf16.msra.mxu0 %v5188
    %6948 = vmatprep.subr.bf16.mxu0 %v5181
    %6949 = vmatpush2.bf16.msra.mxu0 %v5180
    %6950 = vmatprep.subr.bf16.mxu0 %v5173
    %6951 = vmatpush2.bf16.msra.mxu0 %v5172
    %6952 = vmatprep.subr.bf16.mxu0 %v5165
    %6953 = vmatpush2.bf16.msra.mxu0 %v5164
    %6954 = vmatprep.subr.bf16.mxu0 %v5157
    %6955 = vmatpush2.bf16.msra.mxu0 %v5156
    %6956 = vmatprep.subr.bf16.mxu0 %v5149
    %6957 = vmatpush2.bf16.msra.mxu0 %v5148
    %6958 = vmatprep.subr.bf16.mxu0 %v5141
    %6959 = vmatpush2.bf16.msra.mxu0 %v5140
    %6960 = vmatprep.mubr.bf16.mxu0 %v1216
    %6961 = vmatmul.mubr.bf16.gmra.mxu0 %v1208
    %v6962 = vpop.f32.mrf.mxu0
    %v6963 = vadd.f32 %v6922, %v6962
    %v6964 = vpop.f32.mrf.mxu0
    %v6965 = vadd.f32 %v6924, %v6964
    %v6966 = vpop.f32.mrf.mxu0
    %v6967 = vpop.f32.mrf.mxu0
    %6968 = vdwg.mxu0
    %6969 = vmatprep.subr.bf16.mxu0 %v5261
    %6970 = vmatpush1.bf16.msra.mxu0 %v5260
    %6971 = vmatprep.subr.bf16.mxu0 %v5253
    %6972 = vmatpush1.bf16.msra.mxu0 %v5252
    %6973 = vmatprep.subr.bf16.mxu0 %v5245
    %6974 = vmatpush1.bf16.msra.mxu0 %v5244
    %6975 = vmatprep.subr.bf16.mxu0 %v5237
    %6976 = vmatpush1.bf16.msra.mxu0 %v5236
    %6977 = vmatprep.subr.bf16.mxu0 %v5229
    %6978 = vmatpush1.bf16.msra.mxu0 %v5228
    %6979 = vmatprep.subr.bf16.mxu0 %v5221
    %6980 = vmatpush1.bf16.msra.mxu0 %v5220
    %6981 = vmatprep.subr.bf16.mxu0 %v5213
    %6982 = vmatpush1.bf16.msra.mxu0 %v5212
    %6983 = vmatprep.subr.bf16.mxu0 %v5205
    %6984 = vmatpush1.bf16.msra.mxu0 %v5204
    %6985 = vmatprep.subr.bf16.mxu0 %v5325
    %6986 = vmatpush2.bf16.msra.mxu0 %v5324
    %6987 = vmatprep.subr.bf16.mxu0 %v5317
    %6988 = vmatpush2.bf16.msra.mxu0 %v5316
    %6989 = vmatprep.subr.bf16.mxu0 %v5309
    %6990 = vmatpush2.bf16.msra.mxu0 %v5308
    %6991 = vmatprep.subr.bf16.mxu0 %v5301
    %6992 = vmatpush2.bf16.msra.mxu0 %v5300
    %6993 = vmatprep.subr.bf16.mxu0 %v5293
    %6994 = vmatpush2.bf16.msra.mxu0 %v5292
    %6995 = vmatprep.subr.bf16.mxu0 %v5285
    %6996 = vmatpush2.bf16.msra.mxu0 %v5284
    %6997 = vmatprep.subr.bf16.mxu0 %v5277
    %6998 = vmatpush2.bf16.msra.mxu0 %v5276
    %6999 = vmatprep.subr.bf16.mxu0 %v5269
    %7000 = vmatpush2.bf16.msra.mxu0 %v5268
    %7001 = vmatprep.mubr.bf16.mxu0 %v1217
    %7002 = vmatmul.mubr.bf16.gmra.mxu0 %v1215
    %v7003 = vpop.f32.mrf.mxu0
    %v7004 = vadd.f32 %v6963, %v7003
    %v7005 = vpop.f32.mrf.mxu0
    %v7006 = vadd.f32 %v6965, %v7005
    %v7007 = vpop.f32.mrf.mxu0
    %v7008 = vpop.f32.mrf.mxu0
    %7009 = vdwg.mxu0
    %7010 = vmatprep.subr.bf16.mxu0 %v4367
    %7011 = vmatpush1.bf16.msra.mxu0 %v4366
    %7012 = vmatprep.subr.bf16.mxu0 %v4359
    %7013 = vmatpush1.bf16.msra.mxu0 %v4358
    %7014 = vmatprep.subr.bf16.mxu0 %v4351
    %7015 = vmatpush1.bf16.msra.mxu0 %v4350
    %7016 = vmatprep.subr.bf16.mxu0 %v4343
    %7017 = vmatpush1.bf16.msra.mxu0 %v4342
    %7018 = vmatprep.subr.bf16.mxu0 %v4335
    %7019 = vmatpush1.bf16.msra.mxu0 %v4334
    %7020 = vmatprep.subr.bf16.mxu0 %v4327
    %7021 = vmatpush1.bf16.msra.mxu0 %v4326
    %7022 = vmatprep.subr.bf16.mxu0 %v4319
    %7023 = vmatpush1.bf16.msra.mxu0 %v4318
    %7024 = vmatprep.subr.bf16.mxu0 %v4311
    %7025 = vmatpush1.bf16.msra.mxu0 %v4310
    %7026 = vmatprep.subr.bf16.mxu0 %v4431
    %7027 = vmatpush2.bf16.msra.mxu0 %v4430
    %7028 = vmatprep.subr.bf16.mxu0 %v4423
    %7029 = vmatpush2.bf16.msra.mxu0 %v4422
    %7030 = vmatprep.subr.bf16.mxu0 %v4415
    %7031 = vmatpush2.bf16.msra.mxu0 %v4414
    %7032 = vmatprep.subr.bf16.mxu0 %v4407
    %7033 = vmatpush2.bf16.msra.mxu0 %v4406
    %7034 = vmatprep.subr.bf16.mxu0 %v4399
    %7035 = vmatpush2.bf16.msra.mxu0 %v4398
    %7036 = vmatprep.subr.bf16.mxu0 %v4391
    %7037 = vmatpush2.bf16.msra.mxu0 %v4390
    %7038 = vmatprep.subr.bf16.mxu0 %v4383
    %7039 = vmatpush2.bf16.msra.mxu0 %v4382
    %7040 = vmatprep.subr.bf16.mxu0 %v4375
    %7041 = vmatpush2.bf16.msra.mxu0 %v4374
    %7042 = vmatprep.mubr.bf16.mxu0 %v1165
    %7043 = vmatmul.mubr.bf16.gmra.mxu0 %v1157
    %v7044 = vpop.f32.mrf.mxu0
    %v7045 = vadd.f32 %v1125, %v7044
    %v7046 = vpop.f32.mrf.mxu0
    %v7047 = vadd.f32 %v1129, %v7046
    %v7048 = vpop.f32.mrf.mxu0
    %v7049 = vpop.f32.mrf.mxu0
    %7050 = vdwg.mxu0
    %7051 = vmatprep.subr.bf16.mxu0 %v4495
    %7052 = vmatpush1.bf16.msra.mxu0 %v4494
    %7053 = vmatprep.subr.bf16.mxu0 %v4487
    %7054 = vmatpush1.bf16.msra.mxu0 %v4486
    %7055 = vmatprep.subr.bf16.mxu0 %v4479
    %7056 = vmatpush1.bf16.msra.mxu0 %v4478
    %7057 = vmatprep.subr.bf16.mxu0 %v4471
    %7058 = vmatpush1.bf16.msra.mxu0 %v4470
    %7059 = vmatprep.subr.bf16.mxu0 %v4463
    %7060 = vmatpush1.bf16.msra.mxu0 %v4462
    %7061 = vmatprep.subr.bf16.mxu0 %v4455
    %7062 = vmatpush1.bf16.msra.mxu0 %v4454
    %7063 = vmatprep.subr.bf16.mxu0 %v4447
    %7064 = vmatpush1.bf16.msra.mxu0 %v4446
    %7065 = vmatprep.subr.bf16.mxu0 %v4439
    %7066 = vmatpush1.bf16.msra.mxu0 %v4438
    %7067 = vmatprep.subr.bf16.mxu0 %v4559
    %7068 = vmatpush2.bf16.msra.mxu0 %v4558
    %7069 = vmatprep.subr.bf16.mxu0 %v4551
    %7070 = vmatpush2.bf16.msra.mxu0 %v4550
    %7071 = vmatprep.subr.bf16.mxu0 %v4543
    %7072 = vmatpush2.bf16.msra.mxu0 %v4542
    %7073 = vmatprep.subr.bf16.mxu0 %v4535
    %7074 = vmatpush2.bf16.msra.mxu0 %v4534
    %7075 = vmatprep.subr.bf16.mxu0 %v4527
    %7076 = vmatpush2.bf16.msra.mxu0 %v4526
    %7077 = vmatprep.subr.bf16.mxu0 %v4519
    %7078 = vmatpush2.bf16.msra.mxu0 %v4518
    %7079 = vmatprep.subr.bf16.mxu0 %v4511
    %7080 = vmatpush2.bf16.msra.mxu0 %v4510
    %7081 = vmatprep.subr.bf16.mxu0 %v4503
    %7082 = vmatpush2.bf16.msra.mxu0 %v4502
    %7083 = vmatprep.mubr.bf16.mxu0 %v1166
    %7084 = vmatmul.mubr.bf16.gmra.mxu0 %v1164
    %v7085 = vpop.f32.mrf.mxu0
    %v7086 = vadd.f32 %v7045, %v7085
    %v7087 = vpop.f32.mrf.mxu0
    %v7088 = vadd.f32 %v7047, %v7087
    %v7089 = vpop.f32.mrf.mxu0
    %v7090 = vpop.f32.mrf.mxu0
    %7091 = vdwg.mxu0
    %7092 = vmatprep.subr.bf16.mxu0 %v4623
    %7093 = vmatpush1.bf16.msra.mxu0 %v4622
    %7094 = vmatprep.subr.bf16.mxu0 %v4615
    %7095 = vmatpush1.bf16.msra.mxu0 %v4614
    %7096 = vmatprep.subr.bf16.mxu0 %v4607
    %7097 = vmatpush1.bf16.msra.mxu0 %v4606
    %7098 = vmatprep.subr.bf16.mxu0 %v4599
    %7099 = vmatpush1.bf16.msra.mxu0 %v4598
    %7100 = vmatprep.subr.bf16.mxu0 %v4591
    %7101 = vmatpush1.bf16.msra.mxu0 %v4590
    %7102 = vmatprep.subr.bf16.mxu0 %v4583
    %7103 = vmatpush1.bf16.msra.mxu0 %v4582
    %7104 = vmatprep.subr.bf16.mxu0 %v4575
    %7105 = vmatpush1.bf16.msra.mxu0 %v4574
    %7106 = vmatprep.subr.bf16.mxu0 %v4567
    %7107 = vmatpush1.bf16.msra.mxu0 %v4566
    %7108 = vmatprep.subr.bf16.mxu0 %v4687
    %7109 = vmatpush2.bf16.msra.mxu0 %v4686
    %7110 = vmatprep.subr.bf16.mxu0 %v4679
    %7111 = vmatpush2.bf16.msra.mxu0 %v4678
    %7112 = vmatprep.subr.bf16.mxu0 %v4671
    %7113 = vmatpush2.bf16.msra.mxu0 %v4670
    %7114 = vmatprep.subr.bf16.mxu0 %v4663
    %7115 = vmatpush2.bf16.msra.mxu0 %v4662
    %7116 = vmatprep.subr.bf16.mxu0 %v4655
    %7117 = vmatpush2.bf16.msra.mxu0 %v4654
    %7118 = vmatprep.subr.bf16.mxu0 %v4647
    %7119 = vmatpush2.bf16.msra.mxu0 %v4646
    %7120 = vmatprep.subr.bf16.mxu0 %v4639
    %7121 = vmatpush2.bf16.msra.mxu0 %v4638
    %7122 = vmatprep.subr.bf16.mxu0 %v4631
    %7123 = vmatpush2.bf16.msra.mxu0 %v4630
    %7124 = vmatprep.mubr.bf16.mxu0 %v1182
    %7125 = vmatmul.mubr.bf16.gmra.mxu0 %v1174
    %v7126 = vpop.f32.mrf.mxu0
    %v7127 = vadd.f32 %v7086, %v7126
    %v7128 = vpop.f32.mrf.mxu0
    %v7129 = vadd.f32 %v7088, %v7128
    %v7130 = vpop.f32.mrf.mxu0
    %v7131 = vpop.f32.mrf.mxu0
    %7132 = vdwg.mxu0
    %7133 = vmatprep.subr.bf16.mxu0 %v4751
    %7134 = vmatpush1.bf16.msra.mxu0 %v4750
    %7135 = vmatprep.subr.bf16.mxu0 %v4743
    %7136 = vmatpush1.bf16.msra.mxu0 %v4742
    %7137 = vmatprep.subr.bf16.mxu0 %v4735
    %7138 = vmatpush1.bf16.msra.mxu0 %v4734
    %7139 = vmatprep.subr.bf16.mxu0 %v4727
    %7140 = vmatpush1.bf16.msra.mxu0 %v4726
    %7141 = vmatprep.subr.bf16.mxu0 %v4719
    %7142 = vmatpush1.bf16.msra.mxu0 %v4718
    %7143 = vmatprep.subr.bf16.mxu0 %v4711
    %7144 = vmatpush1.bf16.msra.mxu0 %v4710
    %7145 = vmatprep.subr.bf16.mxu0 %v4703
    %7146 = vmatpush1.bf16.msra.mxu0 %v4702
    %7147 = vmatprep.subr.bf16.mxu0 %v4695
    %7148 = vmatpush1.bf16.msra.mxu0 %v4694
    %7149 = vmatprep.subr.bf16.mxu0 %v4815
    %7150 = vmatpush2.bf16.msra.mxu0 %v4814
    %7151 = vmatprep.subr.bf16.mxu0 %v4807
    %7152 = vmatpush2.bf16.msra.mxu0 %v4806
    %7153 = vmatprep.subr.bf16.mxu0 %v4799
    %7154 = vmatpush2.bf16.msra.mxu0 %v4798
    %7155 = vmatprep.subr.bf16.mxu0 %v4791
    %7156 = vmatpush2.bf16.msra.mxu0 %v4790
    %7157 = vmatprep.subr.bf16.mxu0 %v4783
    %7158 = vmatpush2.bf16.msra.mxu0 %v4782
    %7159 = vmatprep.subr.bf16.mxu0 %v4775
    %7160 = vmatpush2.bf16.msra.mxu0 %v4774
    %7161 = vmatprep.subr.bf16.mxu0 %v4767
    %7162 = vmatpush2.bf16.msra.mxu0 %v4766
    %7163 = vmatprep.subr.bf16.mxu0 %v4759
    %7164 = vmatpush2.bf16.msra.mxu0 %v4758
    %7165 = vmatprep.mubr.bf16.mxu0 %v1183
    %7166 = vmatmul.mubr.bf16.gmra.mxu0 %v1181
    %v7167 = vpop.f32.mrf.mxu0
    %v7168 = vadd.f32 %v7127, %v7167
    %v7169 = vpop.f32.mrf.mxu0
    %v7170 = vadd.f32 %v7129, %v7169
    %v7171 = vpop.f32.mrf.mxu0
    %v7172 = vpop.f32.mrf.mxu0
    %7173 = vdwg.mxu0
    %7174 = vmatprep.subr.bf16.mxu0 %v4879
    %7175 = vmatpush1.bf16.msra.mxu0 %v4878
    %7176 = vmatprep.subr.bf16.mxu0 %v4871
    %7177 = vmatpush1.bf16.msra.mxu0 %v4870
    %7178 = vmatprep.subr.bf16.mxu0 %v4863
    %7179 = vmatpush1.bf16.msra.mxu0 %v4862
    %7180 = vmatprep.subr.bf16.mxu0 %v4855
    %7181 = vmatpush1.bf16.msra.mxu0 %v4854
    %7182 = vmatprep.subr.bf16.mxu0 %v4847
    %7183 = vmatpush1.bf16.msra.mxu0 %v4846
    %7184 = vmatprep.subr.bf16.mxu0 %v4839
    %7185 = vmatpush1.bf16.msra.mxu0 %v4838
    %7186 = vmatprep.subr.bf16.mxu0 %v4831
    %7187 = vmatpush1.bf16.msra.mxu0 %v4830
    %7188 = vmatprep.subr.bf16.mxu0 %v4823
    %7189 = vmatpush1.bf16.msra.mxu0 %v4822
    %7190 = vmatprep.subr.bf16.mxu0 %v4943
    %7191 = vmatpush2.bf16.msra.mxu0 %v4942
    %7192 = vmatprep.subr.bf16.mxu0 %v4935
    %7193 = vmatpush2.bf16.msra.mxu0 %v4934
    %7194 = vmatprep.subr.bf16.mxu0 %v4927
    %7195 = vmatpush2.bf16.msra.mxu0 %v4926
    %7196 = vmatprep.subr.bf16.mxu0 %v4919
    %7197 = vmatpush2.bf16.msra.mxu0 %v4918
    %7198 = vmatprep.subr.bf16.mxu0 %v4911
    %7199 = vmatpush2.bf16.msra.mxu0 %v4910
    %7200 = vmatprep.subr.bf16.mxu0 %v4903
    %7201 = vmatpush2.bf16.msra.mxu0 %v4902
    %7202 = vmatprep.subr.bf16.mxu0 %v4895
    %7203 = vmatpush2.bf16.msra.mxu0 %v4894
    %7204 = vmatprep.subr.bf16.mxu0 %v4887
    %7205 = vmatpush2.bf16.msra.mxu0 %v4886
    %7206 = vmatprep.mubr.bf16.mxu0 %v1199
    %7207 = vmatmul.mubr.bf16.gmra.mxu0 %v1191
    %v7208 = vpop.f32.mrf.mxu0
    %v7209 = vadd.f32 %v7168, %v7208
    %v7210 = vpop.f32.mrf.mxu0
    %v7211 = vadd.f32 %v7170, %v7210
    %v7212 = vpop.f32.mrf.mxu0
    %v7213 = vpop.f32.mrf.mxu0
    %7214 = vdwg.mxu0
    %7215 = vmatprep.subr.bf16.mxu0 %v5007
    %7216 = vmatpush1.bf16.msra.mxu0 %v5006
    %7217 = vmatprep.subr.bf16.mxu0 %v4999
    %7218 = vmatpush1.bf16.msra.mxu0 %v4998
    %7219 = vmatprep.subr.bf16.mxu0 %v4991
    %7220 = vmatpush1.bf16.msra.mxu0 %v4990
    %7221 = vmatprep.subr.bf16.mxu0 %v4983
    %7222 = vmatpush1.bf16.msra.mxu0 %v4982
    %7223 = vmatprep.subr.bf16.mxu0 %v4975
    %7224 = vmatpush1.bf16.msra.mxu0 %v4974
    %7225 = vmatprep.subr.bf16.mxu0 %v4967
    %7226 = vmatpush1.bf16.msra.mxu0 %v4966
    %7227 = vmatprep.subr.bf16.mxu0 %v4959
    %7228 = vmatpush1.bf16.msra.mxu0 %v4958
    %7229 = vmatprep.subr.bf16.mxu0 %v4951
    %7230 = vmatpush1.bf16.msra.mxu0 %v4950
    %7231 = vmatprep.subr.bf16.mxu0 %v5071
    %7232 = vmatpush2.bf16.msra.mxu0 %v5070
    %7233 = vmatprep.subr.bf16.mxu0 %v5063
    %7234 = vmatpush2.bf16.msra.mxu0 %v5062
    %7235 = vmatprep.subr.bf16.mxu0 %v5055
    %7236 = vmatpush2.bf16.msra.mxu0 %v5054
    %7237 = vmatprep.subr.bf16.mxu0 %v5047
    %7238 = vmatpush2.bf16.msra.mxu0 %v5046
    %7239 = vmatprep.subr.bf16.mxu0 %v5039
    %7240 = vmatpush2.bf16.msra.mxu0 %v5038
    %7241 = vmatprep.subr.bf16.mxu0 %v5031
    %7242 = vmatpush2.bf16.msra.mxu0 %v5030
    %7243 = vmatprep.subr.bf16.mxu0 %v5023
    %7244 = vmatpush2.bf16.msra.mxu0 %v5022
    %7245 = vmatprep.subr.bf16.mxu0 %v5015
    %7246 = vmatpush2.bf16.msra.mxu0 %v5014
    %7247 = vmatprep.mubr.bf16.mxu0 %v1200
    %7248 = vmatmul.mubr.bf16.gmra.mxu0 %v1198
    %v7249 = vpop.f32.mrf.mxu0
    %v7250 = vadd.f32 %v7209, %v7249
    %v7251 = vpop.f32.mrf.mxu0
    %v7252 = vadd.f32 %v7211, %v7251
    %v7253 = vpop.f32.mrf.mxu0
    %v7254 = vpop.f32.mrf.mxu0
    %7255 = vdwg.mxu0
    %7256 = vmatprep.subr.bf16.mxu0 %v5135
    %7257 = vmatpush1.bf16.msra.mxu0 %v5134
    %7258 = vmatprep.subr.bf16.mxu0 %v5127
    %7259 = vmatpush1.bf16.msra.mxu0 %v5126
    %7260 = vmatprep.subr.bf16.mxu0 %v5119
    %7261 = vmatpush1.bf16.msra.mxu0 %v5118
    %7262 = vmatprep.subr.bf16.mxu0 %v5111
    %7263 = vmatpush1.bf16.msra.mxu0 %v5110
    %7264 = vmatprep.subr.bf16.mxu0 %v5103
    %7265 = vmatpush1.bf16.msra.mxu0 %v5102
    %7266 = vmatprep.subr.bf16.mxu0 %v5095
    %7267 = vmatpush1.bf16.msra.mxu0 %v5094
    %7268 = vmatprep.subr.bf16.mxu0 %v5087
    %7269 = vmatpush1.bf16.msra.mxu0 %v5086
    %7270 = vmatprep.subr.bf16.mxu0 %v5079
    %7271 = vmatpush1.bf16.msra.mxu0 %v5078
    %7272 = vmatprep.subr.bf16.mxu0 %v5199
    %7273 = vmatpush2.bf16.msra.mxu0 %v5198
    %7274 = vmatprep.subr.bf16.mxu0 %v5191
    %7275 = vmatpush2.bf16.msra.mxu0 %v5190
    %7276 = vmatprep.subr.bf16.mxu0 %v5183
    %7277 = vmatpush2.bf16.msra.mxu0 %v5182
    %7278 = vmatprep.subr.bf16.mxu0 %v5175
    %7279 = vmatpush2.bf16.msra.mxu0 %v5174
    %7280 = vmatprep.subr.bf16.mxu0 %v5167
    %7281 = vmatpush2.bf16.msra.mxu0 %v5166
    %7282 = vmatprep.subr.bf16.mxu0 %v5159
    %7283 = vmatpush2.bf16.msra.mxu0 %v5158
    %7284 = vmatprep.subr.bf16.mxu0 %v5151
    %7285 = vmatpush2.bf16.msra.mxu0 %v5150
    %7286 = vmatprep.subr.bf16.mxu0 %v5143
    %7287 = vmatpush2.bf16.msra.mxu0 %v5142
    %7288 = vmatprep.mubr.bf16.mxu0 %v1216
    %7289 = vmatmul.mubr.bf16.gmra.mxu0 %v1208
    %v7290 = vpop.f32.mrf.mxu0
    %v7291 = vadd.f32 %v7250, %v7290
    %v7292 = vpop.f32.mrf.mxu0
    %v7293 = vadd.f32 %v7252, %v7292
    %v7294 = vpop.f32.mrf.mxu0
    %v7295 = vpop.f32.mrf.mxu0
    %7296 = vdwg.mxu0
    %7297 = vmatprep.subr.bf16.mxu0 %v5263
    %7298 = vmatpush1.bf16.msra.mxu0 %v5262
    %7299 = vmatprep.subr.bf16.mxu0 %v5255
    %7300 = vmatpush1.bf16.msra.mxu0 %v5254
    %7301 = vmatprep.subr.bf16.mxu0 %v5247
    %7302 = vmatpush1.bf16.msra.mxu0 %v5246
    %7303 = vmatprep.subr.bf16.mxu0 %v5239
    %7304 = vmatpush1.bf16.msra.mxu0 %v5238
    %7305 = vmatprep.subr.bf16.mxu0 %v5231
    %7306 = vmatpush1.bf16.msra.mxu0 %v5230
    %7307 = vmatprep.subr.bf16.mxu0 %v5223
    %7308 = vmatpush1.bf16.msra.mxu0 %v5222
    %7309 = vmatprep.subr.bf16.mxu0 %v5215
    %7310 = vmatpush1.bf16.msra.mxu0 %v5214
    %7311 = vmatprep.subr.bf16.mxu0 %v5207
    %7312 = vmatpush1.bf16.msra.mxu0 %v5206
    %7313 = vmatprep.subr.bf16.mxu0 %v5327
    %7314 = vmatpush2.bf16.msra.mxu0 %v5326
    %7315 = vmatprep.subr.bf16.mxu0 %v5319
    %7316 = vmatpush2.bf16.msra.mxu0 %v5318
    %7317 = vmatprep.subr.bf16.mxu0 %v5311
    %7318 = vmatpush2.bf16.msra.mxu0 %v5310
    %7319 = vmatprep.subr.bf16.mxu0 %v5303
    %7320 = vmatpush2.bf16.msra.mxu0 %v5302
    %7321 = vmatprep.subr.bf16.mxu0 %v5295
    %7322 = vmatpush2.bf16.msra.mxu0 %v5294
    %7323 = vmatprep.subr.bf16.mxu0 %v5287
    %7324 = vmatpush2.bf16.msra.mxu0 %v5286
    %7325 = vmatprep.subr.bf16.mxu0 %v5279
    %7326 = vmatpush2.bf16.msra.mxu0 %v5278
    %7327 = vmatprep.subr.bf16.mxu0 %v5271
    %7328 = vmatpush2.bf16.msra.mxu0 %v5270
    %7329 = vmatprep.mubr.bf16.mxu0 %v1217
    %7330 = vmatmul.mubr.bf16.gmra.mxu0 %v1215
    %v7331 = vpop.f32.mrf.mxu0
    %v7332 = vadd.f32 %v7291, %v7331
    %v7333 = vpop.f32.mrf.mxu0
    %v7334 = vadd.f32 %v7293, %v7333
    %v7335 = vpop.f32.mrf.mxu0
    %v7336 = vpop.f32.mrf.mxu0
    %7337 = vdwg.mxu0
    %7338 = vmatprep.subr.bf16.mxu0 %v4369
    %7339 = vmatpush1.bf16.msra.mxu0 %v4368
    %7340 = vmatprep.subr.bf16.mxu0 %v4361
    %7341 = vmatpush1.bf16.msra.mxu0 %v4360
    %7342 = vmatprep.subr.bf16.mxu0 %v4353
    %7343 = vmatpush1.bf16.msra.mxu0 %v4352
    %7344 = vmatprep.subr.bf16.mxu0 %v4345
    %7345 = vmatpush1.bf16.msra.mxu0 %v4344
    %7346 = vmatprep.subr.bf16.mxu0 %v4337
    %7347 = vmatpush1.bf16.msra.mxu0 %v4336
    %7348 = vmatprep.subr.bf16.mxu0 %v4329
    %7349 = vmatpush1.bf16.msra.mxu0 %v4328
    %7350 = vmatprep.subr.bf16.mxu0 %v4321
    %7351 = vmatpush1.bf16.msra.mxu0 %v4320
    %7352 = vmatprep.subr.bf16.mxu0 %v4313
    %7353 = vmatpush1.bf16.msra.mxu0 %v4312
    %7354 = vmatprep.subr.bf16.mxu0 %v4433
    %7355 = vmatpush2.bf16.msra.mxu0 %v4432
    %7356 = vmatprep.subr.bf16.mxu0 %v4425
    %7357 = vmatpush2.bf16.msra.mxu0 %v4424
    %7358 = vmatprep.subr.bf16.mxu0 %v4417
    %7359 = vmatpush2.bf16.msra.mxu0 %v4416
    %7360 = vmatprep.subr.bf16.mxu0 %v4409
    %7361 = vmatpush2.bf16.msra.mxu0 %v4408
    %7362 = vmatprep.subr.bf16.mxu0 %v4401
    %7363 = vmatpush2.bf16.msra.mxu0 %v4400
    %7364 = vmatprep.subr.bf16.mxu0 %v4393
    %7365 = vmatpush2.bf16.msra.mxu0 %v4392
    %7366 = vmatprep.subr.bf16.mxu0 %v4385
    %7367 = vmatpush2.bf16.msra.mxu0 %v4384
    %7368 = vmatprep.subr.bf16.mxu0 %v4377
    %7369 = vmatpush2.bf16.msra.mxu0 %v4376
    %7370 = vmatprep.mubr.bf16.mxu0 %v1165
    %7371 = vmatmul.mubr.bf16.gmra.mxu0 %v1157
    %v7372 = vpop.f32.mrf.mxu0
    %v7373 = vadd.f32 %v1133, %v7372
    %v7374 = vpop.f32.mrf.mxu0
    %v7375 = vadd.f32 %v1137, %v7374
    %v7376 = vpop.f32.mrf.mxu0
    %v7377 = vpop.f32.mrf.mxu0
    %7378 = vdwg.mxu0
    %7379 = vmatprep.subr.bf16.mxu0 %v4497
    %7380 = vmatpush1.bf16.msra.mxu0 %v4496
    %7381 = vmatprep.subr.bf16.mxu0 %v4489
    %7382 = vmatpush1.bf16.msra.mxu0 %v4488
    %7383 = vmatprep.subr.bf16.mxu0 %v4481
    %7384 = vmatpush1.bf16.msra.mxu0 %v4480
    %7385 = vmatprep.subr.bf16.mxu0 %v4473
    %7386 = vmatpush1.bf16.msra.mxu0 %v4472
    %7387 = vmatprep.subr.bf16.mxu0 %v4465
    %7388 = vmatpush1.bf16.msra.mxu0 %v4464
    %7389 = vmatprep.subr.bf16.mxu0 %v4457
    %7390 = vmatpush1.bf16.msra.mxu0 %v4456
    %7391 = vmatprep.subr.bf16.mxu0 %v4449
    %7392 = vmatpush1.bf16.msra.mxu0 %v4448
    %7393 = vmatprep.subr.bf16.mxu0 %v4441
    %7394 = vmatpush1.bf16.msra.mxu0 %v4440
    %7395 = vmatprep.subr.bf16.mxu0 %v4561
    %7396 = vmatpush2.bf16.msra.mxu0 %v4560
    %7397 = vmatprep.subr.bf16.mxu0 %v4553
    %7398 = vmatpush2.bf16.msra.mxu0 %v4552
    %7399 = vmatprep.subr.bf16.mxu0 %v4545
    %7400 = vmatpush2.bf16.msra.mxu0 %v4544
    %7401 = vmatprep.subr.bf16.mxu0 %v4537
    %7402 = vmatpush2.bf16.msra.mxu0 %v4536
    %7403 = vmatprep.subr.bf16.mxu0 %v4529
    %7404 = vmatpush2.bf16.msra.mxu0 %v4528
    %7405 = vmatprep.subr.bf16.mxu0 %v4521
    %7406 = vmatpush2.bf16.msra.mxu0 %v4520
    %7407 = vmatprep.subr.bf16.mxu0 %v4513
    %7408 = vmatpush2.bf16.msra.mxu0 %v4512
    %7409 = vmatprep.subr.bf16.mxu0 %v4505
    %7410 = vmatpush2.bf16.msra.mxu0 %v4504
    %7411 = vmatprep.mubr.bf16.mxu0 %v1166
    %7412 = vmatmul.mubr.bf16.gmra.mxu0 %v1164
    %v7413 = vpop.f32.mrf.mxu0
    %v7414 = vadd.f32 %v7373, %v7413
    %v7415 = vpop.f32.mrf.mxu0
    %v7416 = vadd.f32 %v7375, %v7415
    %v7417 = vpop.f32.mrf.mxu0
    %v7418 = vpop.f32.mrf.mxu0
    %7419 = vdwg.mxu0
    %7420 = vmatprep.subr.bf16.mxu0 %v4625
    %7421 = vmatpush1.bf16.msra.mxu0 %v4624
    %7422 = vmatprep.subr.bf16.mxu0 %v4617
    %7423 = vmatpush1.bf16.msra.mxu0 %v4616
    %7424 = vmatprep.subr.bf16.mxu0 %v4609
    %7425 = vmatpush1.bf16.msra.mxu0 %v4608
    %7426 = vmatprep.subr.bf16.mxu0 %v4601
    %7427 = vmatpush1.bf16.msra.mxu0 %v4600
    %7428 = vmatprep.subr.bf16.mxu0 %v4593
    %7429 = vmatpush1.bf16.msra.mxu0 %v4592
    %7430 = vmatprep.subr.bf16.mxu0 %v4585
    %7431 = vmatpush1.bf16.msra.mxu0 %v4584
    %7432 = vmatprep.subr.bf16.mxu0 %v4577
    %7433 = vmatpush1.bf16.msra.mxu0 %v4576
    %7434 = vmatprep.subr.bf16.mxu0 %v4569
    %7435 = vmatpush1.bf16.msra.mxu0 %v4568
    %7436 = vmatprep.subr.bf16.mxu0 %v4689
    %7437 = vmatpush2.bf16.msra.mxu0 %v4688
    %7438 = vmatprep.subr.bf16.mxu0 %v4681
    %7439 = vmatpush2.bf16.msra.mxu0 %v4680
    %7440 = vmatprep.subr.bf16.mxu0 %v4673
    %7441 = vmatpush2.bf16.msra.mxu0 %v4672
    %7442 = vmatprep.subr.bf16.mxu0 %v4665
    %7443 = vmatpush2.bf16.msra.mxu0 %v4664
    %7444 = vmatprep.subr.bf16.mxu0 %v4657
    %7445 = vmatpush2.bf16.msra.mxu0 %v4656
    %7446 = vmatprep.subr.bf16.mxu0 %v4649
    %7447 = vmatpush2.bf16.msra.mxu0 %v4648
    %7448 = vmatprep.subr.bf16.mxu0 %v4641
    %7449 = vmatpush2.bf16.msra.mxu0 %v4640
    %7450 = vmatprep.subr.bf16.mxu0 %v4633
    %7451 = vmatpush2.bf16.msra.mxu0 %v4632
    %7452 = vmatprep.mubr.bf16.mxu0 %v1182
    %7453 = vmatmul.mubr.bf16.gmra.mxu0 %v1174
    %v7454 = vpop.f32.mrf.mxu0
    %v7455 = vadd.f32 %v7414, %v7454
    %v7456 = vpop.f32.mrf.mxu0
    %v7457 = vadd.f32 %v7416, %v7456
    %v7458 = vpop.f32.mrf.mxu0
    %v7459 = vpop.f32.mrf.mxu0
    %7460 = vdwg.mxu0
    %7461 = vmatprep.subr.bf16.mxu0 %v4753
    %7462 = vmatpush1.bf16.msra.mxu0 %v4752
    %7463 = vmatprep.subr.bf16.mxu0 %v4745
    %7464 = vmatpush1.bf16.msra.mxu0 %v4744
    %7465 = vmatprep.subr.bf16.mxu0 %v4737
    %7466 = vmatpush1.bf16.msra.mxu0 %v4736
    %7467 = vmatprep.subr.bf16.mxu0 %v4729
    %7468 = vmatpush1.bf16.msra.mxu0 %v4728
    %7469 = vmatprep.subr.bf16.mxu0 %v4721
    %7470 = vmatpush1.bf16.msra.mxu0 %v4720
    %7471 = vmatprep.subr.bf16.mxu0 %v4713
    %7472 = vmatpush1.bf16.msra.mxu0 %v4712
    %7473 = vmatprep.subr.bf16.mxu0 %v4705
    %7474 = vmatpush1.bf16.msra.mxu0 %v4704
    %7475 = vmatprep.subr.bf16.mxu0 %v4697
    %7476 = vmatpush1.bf16.msra.mxu0 %v4696
    %7477 = vmatprep.subr.bf16.mxu0 %v4817
    %7478 = vmatpush2.bf16.msra.mxu0 %v4816
    %7479 = vmatprep.subr.bf16.mxu0 %v4809
    %7480 = vmatpush2.bf16.msra.mxu0 %v4808
    %7481 = vmatprep.subr.bf16.mxu0 %v4801
    %7482 = vmatpush2.bf16.msra.mxu0 %v4800
    %7483 = vmatprep.subr.bf16.mxu0 %v4793
    %7484 = vmatpush2.bf16.msra.mxu0 %v4792
    %7485 = vmatprep.subr.bf16.mxu0 %v4785
    %7486 = vmatpush2.bf16.msra.mxu0 %v4784
    %7487 = vmatprep.subr.bf16.mxu0 %v4777
    %7488 = vmatpush2.bf16.msra.mxu0 %v4776
    %7489 = vmatprep.subr.bf16.mxu0 %v4769
    %7490 = vmatpush2.bf16.msra.mxu0 %v4768
    %7491 = vmatprep.subr.bf16.mxu0 %v4761
    %7492 = vmatpush2.bf16.msra.mxu0 %v4760
    %7493 = vmatprep.mubr.bf16.mxu0 %v1183
    %7494 = vmatmul.mubr.bf16.gmra.mxu0 %v1181
    %v7495 = vpop.f32.mrf.mxu0
    %v7496 = vadd.f32 %v7455, %v7495
    %v7497 = vpop.f32.mrf.mxu0
    %v7498 = vadd.f32 %v7457, %v7497
    %v7499 = vpop.f32.mrf.mxu0
    %v7500 = vpop.f32.mrf.mxu0
    %7501 = vdwg.mxu0
    %7502 = vmatprep.subr.bf16.mxu0 %v4881
    %7503 = vmatpush1.bf16.msra.mxu0 %v4880
    %7504 = vmatprep.subr.bf16.mxu0 %v4873
    %7505 = vmatpush1.bf16.msra.mxu0 %v4872
    %7506 = vmatprep.subr.bf16.mxu0 %v4865
    %7507 = vmatpush1.bf16.msra.mxu0 %v4864
    %7508 = vmatprep.subr.bf16.mxu0 %v4857
    %7509 = vmatpush1.bf16.msra.mxu0 %v4856
    %7510 = vmatprep.subr.bf16.mxu0 %v4849
    %7511 = vmatpush1.bf16.msra.mxu0 %v4848
    %7512 = vmatprep.subr.bf16.mxu0 %v4841
    %7513 = vmatpush1.bf16.msra.mxu0 %v4840
    %7514 = vmatprep.subr.bf16.mxu0 %v4833
    %7515 = vmatpush1.bf16.msra.mxu0 %v4832
    %7516 = vmatprep.subr.bf16.mxu0 %v4825
    %7517 = vmatpush1.bf16.msra.mxu0 %v4824
    %7518 = vmatprep.subr.bf16.mxu0 %v4945
    %7519 = vmatpush2.bf16.msra.mxu0 %v4944
    %7520 = vmatprep.subr.bf16.mxu0 %v4937
    %7521 = vmatpush2.bf16.msra.mxu0 %v4936
    %7522 = vmatprep.subr.bf16.mxu0 %v4929
    %7523 = vmatpush2.bf16.msra.mxu0 %v4928
    %7524 = vmatprep.subr.bf16.mxu0 %v4921
    %7525 = vmatpush2.bf16.msra.mxu0 %v4920
    %7526 = vmatprep.subr.bf16.mxu0 %v4913
    %7527 = vmatpush2.bf16.msra.mxu0 %v4912
    %7528 = vmatprep.subr.bf16.mxu0 %v4905
    %7529 = vmatpush2.bf16.msra.mxu0 %v4904
    %7530 = vmatprep.subr.bf16.mxu0 %v4897
    %7531 = vmatpush2.bf16.msra.mxu0 %v4896
    %7532 = vmatprep.subr.bf16.mxu0 %v4889
    %7533 = vmatpush2.bf16.msra.mxu0 %v4888
    %7534 = vmatprep.mubr.bf16.mxu0 %v1199
    %7535 = vmatmul.mubr.bf16.gmra.mxu0 %v1191
    %v7536 = vpop.f32.mrf.mxu0
    %v7537 = vadd.f32 %v7496, %v7536
    %v7538 = vpop.f32.mrf.mxu0
    %v7539 = vadd.f32 %v7498, %v7538
    %v7540 = vpop.f32.mrf.mxu0
    %v7541 = vpop.f32.mrf.mxu0
    %7542 = vdwg.mxu0
    %7543 = vmatprep.subr.bf16.mxu0 %v5009
    %7544 = vmatpush1.bf16.msra.mxu0 %v5008
    %7545 = vmatprep.subr.bf16.mxu0 %v5001
    %7546 = vmatpush1.bf16.msra.mxu0 %v5000
    %7547 = vmatprep.subr.bf16.mxu0 %v4993
    %7548 = vmatpush1.bf16.msra.mxu0 %v4992
    %7549 = vmatprep.subr.bf16.mxu0 %v4985
    %7550 = vmatpush1.bf16.msra.mxu0 %v4984
    %7551 = vmatprep.subr.bf16.mxu0 %v4977
    %7552 = vmatpush1.bf16.msra.mxu0 %v4976
    %7553 = vmatprep.subr.bf16.mxu0 %v4969
    %7554 = vmatpush1.bf16.msra.mxu0 %v4968
    %7555 = vmatprep.subr.bf16.mxu0 %v4961
    %7556 = vmatpush1.bf16.msra.mxu0 %v4960
    %7557 = vmatprep.subr.bf16.mxu0 %v4953
    %7558 = vmatpush1.bf16.msra.mxu0 %v4952
    %7559 = vmatprep.subr.bf16.mxu0 %v5073
    %7560 = vmatpush2.bf16.msra.mxu0 %v5072
    %7561 = vmatprep.subr.bf16.mxu0 %v5065
    %7562 = vmatpush2.bf16.msra.mxu0 %v5064
    %7563 = vmatprep.subr.bf16.mxu0 %v5057
    %7564 = vmatpush2.bf16.msra.mxu0 %v5056
    %7565 = vmatprep.subr.bf16.mxu0 %v5049
    %7566 = vmatpush2.bf16.msra.mxu0 %v5048
    %7567 = vmatprep.subr.bf16.mxu0 %v5041
    %7568 = vmatpush2.bf16.msra.mxu0 %v5040
    %7569 = vmatprep.subr.bf16.mxu0 %v5033
    %7570 = vmatpush2.bf16.msra.mxu0 %v5032
    %7571 = vmatprep.subr.bf16.mxu0 %v5025
    %7572 = vmatpush2.bf16.msra.mxu0 %v5024
    %7573 = vmatprep.subr.bf16.mxu0 %v5017
    %7574 = vmatpush2.bf16.msra.mxu0 %v5016
    %7575 = vmatprep.mubr.bf16.mxu0 %v1200
    %7576 = vmatmul.mubr.bf16.gmra.mxu0 %v1198
    %v7577 = vpop.f32.mrf.mxu0
    %v7578 = vadd.f32 %v7537, %v7577
    %v7579 = vpop.f32.mrf.mxu0
    %v7580 = vadd.f32 %v7539, %v7579
    %v7581 = vpop.f32.mrf.mxu0
    %v7582 = vpop.f32.mrf.mxu0
    %7583 = vdwg.mxu0
    %7584 = vmatprep.subr.bf16.mxu0 %v5137
    %7585 = vmatpush1.bf16.msra.mxu0 %v5136
    %7586 = vmatprep.subr.bf16.mxu0 %v5129
    %7587 = vmatpush1.bf16.msra.mxu0 %v5128
    %7588 = vmatprep.subr.bf16.mxu0 %v5121
    %7589 = vmatpush1.bf16.msra.mxu0 %v5120
    %7590 = vmatprep.subr.bf16.mxu0 %v5113
    %7591 = vmatpush1.bf16.msra.mxu0 %v5112
    %7592 = vmatprep.subr.bf16.mxu0 %v5105
    %7593 = vmatpush1.bf16.msra.mxu0 %v5104
    %7594 = vmatprep.subr.bf16.mxu0 %v5097
    %7595 = vmatpush1.bf16.msra.mxu0 %v5096
    %7596 = vmatprep.subr.bf16.mxu0 %v5089
    %7597 = vmatpush1.bf16.msra.mxu0 %v5088
    %7598 = vmatprep.subr.bf16.mxu0 %v5081
    %7599 = vmatpush1.bf16.msra.mxu0 %v5080
    %7600 = vmatprep.subr.bf16.mxu0 %v5201
    %7601 = vmatpush2.bf16.msra.mxu0 %v5200
    %7602 = vmatprep.subr.bf16.mxu0 %v5193
    %7603 = vmatpush2.bf16.msra.mxu0 %v5192
    %7604 = vmatprep.subr.bf16.mxu0 %v5185
    %7605 = vmatpush2.bf16.msra.mxu0 %v5184
    %7606 = vmatprep.subr.bf16.mxu0 %v5177
    %7607 = vmatpush2.bf16.msra.mxu0 %v5176
    %7608 = vmatprep.subr.bf16.mxu0 %v5169
    %7609 = vmatpush2.bf16.msra.mxu0 %v5168
    %7610 = vmatprep.subr.bf16.mxu0 %v5161
    %7611 = vmatpush2.bf16.msra.mxu0 %v5160
    %7612 = vmatprep.subr.bf16.mxu0 %v5153
    %7613 = vmatpush2.bf16.msra.mxu0 %v5152
    %7614 = vmatprep.subr.bf16.mxu0 %v5145
    %7615 = vmatpush2.bf16.msra.mxu0 %v5144
    %7616 = vmatprep.mubr.bf16.mxu0 %v1216
    %7617 = vmatmul.mubr.bf16.gmra.mxu0 %v1208
    %v7618 = vpop.f32.mrf.mxu0
    %v7619 = vadd.f32 %v7578, %v7618
    %v7620 = vpop.f32.mrf.mxu0
    %v7621 = vadd.f32 %v7580, %v7620
    %v7622 = vpop.f32.mrf.mxu0
    %v7623 = vpop.f32.mrf.mxu0
    %7624 = vdwg.mxu0
    %7625 = vmatprep.subr.bf16.mxu0 %v5265
    %7626 = vmatpush1.bf16.msra.mxu0 %v5264
    %7627 = vmatprep.subr.bf16.mxu0 %v5257
    %7628 = vmatpush1.bf16.msra.mxu0 %v5256
    %7629 = vmatprep.subr.bf16.mxu0 %v5249
    %7630 = vmatpush1.bf16.msra.mxu0 %v5248
    %7631 = vmatprep.subr.bf16.mxu0 %v5241
    %7632 = vmatpush1.bf16.msra.mxu0 %v5240
    %7633 = vmatprep.subr.bf16.mxu0 %v5233
    %7634 = vmatpush1.bf16.msra.mxu0 %v5232
    %7635 = vmatprep.subr.bf16.mxu0 %v5225
    %7636 = vmatpush1.bf16.msra.mxu0 %v5224
    %7637 = vmatprep.subr.bf16.mxu0 %v5217
    %7638 = vmatpush1.bf16.msra.mxu0 %v5216
    %7639 = vmatprep.subr.bf16.mxu0 %v5209
    %7640 = vmatpush1.bf16.msra.mxu0 %v5208
    %7641 = vmatprep.subr.bf16.mxu0 %v5329
    %7642 = vmatpush2.bf16.msra.mxu0 %v5328
    %7643 = vmatprep.subr.bf16.mxu0 %v5321
    %7644 = vmatpush2.bf16.msra.mxu0 %v5320
    %7645 = vmatprep.subr.bf16.mxu0 %v5313
    %7646 = vmatpush2.bf16.msra.mxu0 %v5312
    %7647 = vmatprep.subr.bf16.mxu0 %v5305
    %7648 = vmatpush2.bf16.msra.mxu0 %v5304
    %7649 = vmatprep.subr.bf16.mxu0 %v5297
    %7650 = vmatpush2.bf16.msra.mxu0 %v5296
    %7651 = vmatprep.subr.bf16.mxu0 %v5289
    %7652 = vmatpush2.bf16.msra.mxu0 %v5288
    %7653 = vmatprep.subr.bf16.mxu0 %v5281
    %7654 = vmatpush2.bf16.msra.mxu0 %v5280
    %7655 = vmatprep.subr.bf16.mxu0 %v5273
    %7656 = vmatpush2.bf16.msra.mxu0 %v5272
    %7657 = vmatprep.mubr.bf16.mxu0 %v1217
    %7658 = vmatmul.mubr.bf16.gmra.mxu0 %v1215
    %v7659 = vpop.f32.mrf.mxu0
    %v7660 = vadd.f32 %v7619, %v7659
    %v7661 = vpop.f32.mrf.mxu0
    %v7662 = vadd.f32 %v7621, %v7661
    %v7663 = vpop.f32.mrf.mxu0
    %v7664 = vpop.f32.mrf.mxu0
    %7665 = vdwg.mxu0
    %v7666 = vpack.c.bf16 %v6676, %v6676
    %v7667 = vpack.c.bf16 %v6678, %v6678
    %v7668 = vpack.c.bf16 %v7004, %v7004
    %v7669 = vpack.c.bf16 %v7006, %v7006
    %v7670 = vpack.c.bf16 %v7332, %v7332
    %v7671 = vpack.c.bf16 %v7334, %v7334
    %v7672 = vpack.c.bf16 %v7660, %v7660
    %v7673 = vpack.c.bf16 %v7662, %v7662
    %7674 = vst [vmem:[#allocation2] sm:$0xf] 0
    %7675 = vst [vmem:[#allocation2 + $0x10] sm:$0xf] 0
    %7676 = vst [vmem:[#allocation2 + $0xc] sm:$0xf] 0
    %7677 = vst [vmem:[#allocation2 + $0x1c] sm:$0xf] 0
    %v7680 = vunpack.c.l.b16 %v7666
    %v7681 = vunpack.c.l.b16 %v7667
    %v7682 = vpack.c.b16 %v7681, %v7680
    %7684 = vst [vmem:[#allocation2 + $0x4] sm:$0x33] %v7682
    %v7687 = vunpack.c.l.b16 %v7668
    %v7688 = vunpack.c.l.b16 %v7669
    %v7689 = vpack.c.b16 %v7688, %v7687
    %v7690 = vrot.slane %v7689, 6
    %7692 = vst [vmem:[#allocation2 + $0x4] sm:$0xcc] %v7690
    %v7695 = vunpack.c.l.b16 %v7670
    %v7696 = vunpack.c.l.b16 %v7671
    %v7697 = vpack.c.b16 %v7696, %v7695
    %7699 = vst [vmem:[#allocation2 + $0x14] sm:$0x33] %v7697
    %v7702 = vunpack.c.l.b16 %v7672
    %v7703 = vunpack.c.l.b16 %v7673
    %v7704 = vpack.c.b16 %v7703, %v7702
    %v7705 = vrot.slane %v7704, 6
    %7707 = vst [vmem:[#allocation2 + $0x14] sm:$0xcc] %v7705
    %v7708 = vlaneseq
    %v7709 = vand.u32 %v7708, 127
    %v7710 = vadd.s32 %v7709, 128
    %vm7711 = vcmp.lt.s32.totalorder %v7709, 0
    %v7712 = vsub.s32 0, %v7709
    %v7713 = vsel %vm7711, %v7712, %v7709
    %v7714 = vshrl.u32 %v7713, 4
    %v7715 = vand.u32 %v7713, 15
    %v7716 = vsub.s32 0, %v7715
    %v7717 = vsel %vm7711, %v7716, %v7715
    %vm7718 = vcmp.lt.s32.totalorder %v7710, 0
    %v7719 = vsub.s32 0, %v7710
    %v7720 = vsel %vm7718, %v7719, %v7710
    %v7721 = vshrl.u32 %v7720, 4
    %v7722 = vand.u32 %v7720, 15
    %v7723 = vsub.s32 0, %v7722
    %v7724 = vsel %vm7718, %v7723, %v7722
    %vm7725 = vcmp.ne.s32.totalorder %v7717, 0
    %vm7726 = vcmp.ne.s32.totalorder %v7724, 0
    %vm7727 = vcmp.lt.s32.totalorder %v7717, 0
    %vm7728 = vcmp.lt.s32.totalorder %v7724, 0
    %vm7729 = vmand %vm7727, %vm7725
    %vm7730 = vmand %vm7728, %vm7726
    %v7731 = vadd.s32 %v7717, 16
    %v7732 = vadd.s32 %v7724, 16
    %v7733 = vsel %vm7729, %v7731, %v7717
    %v7734 = vsel %vm7730, %v7732, %v7724
    %vm7735 = vcmp.ge.s32.totalorder %v7733, 1
    %vm7736 = vcmp.ge.s32.totalorder %v7734, 1
    %vm7737 = vcmp.le.s32.totalorder %v7733, 14
    %vm7738 = vcmp.le.s32.totalorder %v7734, 14
    %v7739 = vld [vmem:[#allocation2] sm:$0xff]
    %v7740 = vld [vmem:[#allocation2 + $0x8] sm:$0xf]
    %v7741 = vld [vmem:[#allocation2 + $0x10] sm:$0xff]
    %v7742 = vld [vmem:[#allocation2 + $0x18] sm:$0xf]
    %vm7743 = vmpackc.low %vm7736, %vm7735
    %v7744 = vsel %vm7743, 65537, 0
    %7745 = vrot.lane.b32.xlu0 %v7744, 111
    %v7746 = vpop.permute.xlu0 %7745
    %v7747 = vrot.slane %v7746, 4
    %vm7748 = vcmask 908288
    %v7749 = vsel %vm7748, %v7747, %v7746
    %vm7750 = vcmp.ne.s16.totalorder %v7749, 0
    %vm7751 = vcmp.ne.s16.totalorder %v7747, 0
    %v7752 = vsel %vm7750, %v7739, 0
    %v7753 = vsel %vm7751, %v7740, 0
    %v7754 = vsel %vm7750, %v7741, 0
    %v7755 = vsel %vm7751, %v7742, 0
    %7760 = vrot.lane.b32.xlu0 %v7752, 17
    %v7761 = vpop.permute.xlu0 %7760
    %7762 = vrot.lane.b32.xlu0 %v7753, 17
    %v7763 = vpop.permute.xlu0 %7762
    %7764 = vrot.lane.b32.xlu0 %v7754, 17
    %v7765 = vpop.permute.xlu0 %7764
    %7766 = vrot.lane.b32.xlu0 %v7755, 17
    %v7767 = vpop.permute.xlu0 %7766
    %v7768 = vrot.slane %v7761, 4
    %v7769 = vrot.slane %v7763, 4
    %v7770 = vrot.slane %v7765, 4
    %v7771 = vrot.slane %v7767, 4
    %vm7772 = vcmask 1043456
    %v7773 = vsel %vm7772, %v7768, %v7769
    %vm7774 = vcmask 138240
    %v7775 = vsel %vm7774, %v7761, %v7773
    %v7776 = vsel %vm7772, %v7770, %v7771
    %v7777 = vsel %vm7774, %v7765, %v7776
    %7780 = vst [vmem:[#allocation3] sm:$0xff] %v7775
    %7781 = vst [vmem:[#allocation3 + $0x8] sm:$0xff] %v7777
    %v7782 = vld [vmem:[#allocation2] sm:$0xff]
    %v7783 = vld [vmem:[#allocation2 + $0x8] sm:$0xf]
    %v7784 = vld [vmem:[#allocation2 + $0x10] sm:$0xff]
    %v7785 = vld [vmem:[#allocation2 + $0x18] sm:$0xf]
    %7790 = vrot.lane.b32.xlu0 %v7782, 16
    %v7791 = vpop.permute.xlu0 %7790
    %7792 = vrot.lane.b32.xlu0 %v7783, 16
    %v7793 = vpop.permute.xlu0 %7792
    %7794 = vrot.lane.b32.xlu0 %v7784, 16
    %v7795 = vpop.permute.xlu0 %7794
    %7796 = vrot.lane.b32.xlu0 %v7785, 16
    %v7797 = vpop.permute.xlu0 %7796
    %v7798 = vrot.slane %v7791, 4
    %v7799 = vrot.slane %v7793, 4
    %v7800 = vrot.slane %v7795, 4
    %v7801 = vrot.slane %v7797, 4
    %v7802 = vsel %vm7772, %v7798, %v7799
    %vm7803 = vcmask 130048
    %v7804 = vsel %vm7803, %v7791, %v7802
    %v7805 = vsel %vm7772, %v7800, %v7801
    %v7806 = vsel %vm7803, %v7795, %v7805
    %7809 = vst [vmem:[#allocation3 + $0x10] sm:$0xff] %v7804
    %7810 = vst [vmem:[#allocation3 + $0x18] sm:$0xff] %v7806
    %v7811 = vld [vmem:[#allocation2] sm:$0xff]
    %v7812 = vld [vmem:[#allocation2 + $0x8] sm:$0xf]
    %v7813 = vld [vmem:[#allocation2 + $0x10] sm:$0xff]
    %v7814 = vld [vmem:[#allocation2 + $0x18] sm:$0xf]
    %vm7815 = vmpackc.low %vm7738, %vm7737
    %v7816 = vsel %vm7815, 65537, 0
    %7817 = vrot.lane.b32.xlu0 %v7816, 113
    %v7818 = vpop.permute.xlu0 %7817
    %v7819 = vrot.slane %v7818, 4
    %vm7820 = vcmask 924672
    %v7821 = vsel %vm7820, %v7819, %v7818
    %vm7822 = vcmp.ne.s16.totalorder %v7821, 0
    %vm7823 = vcmp.ne.s16.totalorder %v7819, 0
    %v7824 = vsel %vm7822, %v7811, 0
    %v7825 = vsel %vm7823, %v7812, 0
    %v7826 = vsel %vm7822, %v7813, 0
    %v7827 = vsel %vm7823, %v7814, 0
    %7832 = vrot.lane.b32.xlu0 %v7824, 15
    %v7833 = vpop.permute.xlu0 %7832
    %7834 = vrot.lane.b32.xlu0 %v7825, 15
    %v7835 = vpop.permute.xlu0 %7834
    %7836 = vrot.lane.b32.xlu0 %v7826, 15
    %v7837 = vpop.permute.xlu0 %7836
    %7838 = vrot.lane.b32.xlu0 %v7827, 15
    %v7839 = vpop.permute.xlu0 %7838
    %v7840 = vrot.slane %v7833, 4
    %v7841 = vrot.slane %v7835, 4
    %v7842 = vrot.slane %v7837, 4
    %v7843 = vrot.slane %v7839, 4
    %v7844 = vsel %vm7772, %v7840, %v7841
    %vm7845 = vcmask 121856
    %v7846 = vsel %vm7845, %v7833, %v7844
    %v7847 = vsel %vm7772, %v7842, %v7843
    %v7848 = vsel %vm7845, %v7837, %v7847
    %7851 = vst [vmem:[#allocation3 + $0x20] sm:$0xff] %v7846
    %7852 = vst [vmem:[#allocation3 + $0x28] sm:$0xff] %v7848
    %v7853 = vld [vmem:[#allocation2] sm:$0xff]
    %v7854 = vld [vmem:[#allocation2 + $0x8] sm:$0xf]
    %v7855 = vld [vmem:[#allocation2 + $0x10] sm:$0xff]
    %v7856 = vld [vmem:[#allocation2 + $0x18] sm:$0xf]
    %7857 = vrot.lane.b32.xlu0 %v7744, 127
    %v7858 = vpop.permute.xlu0 %7857
    %v7859 = vrot.slane %v7858, 4
    %vm7860 = vcmask 1039360
    %v7861 = vsel %vm7860, %v7859, %v7858
    %vm7862 = vcmp.ne.s16.totalorder %v7861, 0
    %vm7863 = vcmp.ne.s16.totalorder %v7859, 0
    %v7864 = vsel %vm7862, %v7853, 0
    %v7865 = vsel %vm7863, %v7854, 0
    %v7866 = vsel %vm7862, %v7855, 0
    %v7867 = vsel %vm7863, %v7856, 0
    %7872 = vrot.lane.b32.xlu0 %v7864, 1
    %v7873 = vpop.permute.xlu0 %7872
    %7874 = vrot.lane.b32.xlu0 %v7865, 1
    %v7875 = vpop.permute.xlu0 %7874
    %7876 = vrot.lane.b32.xlu0 %v7866, 1
    %v7877 = vpop.permute.xlu0 %7876
    %7878 = vrot.lane.b32.xlu0 %v7867, 1
    %v7879 = vpop.permute.xlu0 %7878
    %v7880 = vrot.slane %v7873, 4
    %v7881 = vrot.slane %v7875, 4
    %v7882 = vrot.slane %v7877, 4
    %v7883 = vrot.slane %v7879, 4
    %v7884 = vsel %vm7772, %v7880, %v7881
    %vm7885 = vcmask 7168
    %v7886 = vsel %vm7885, %v7873, %v7884
    %v7887 = vsel %vm7772, %v7882, %v7883
    %v7888 = vsel %vm7885, %v7877, %v7887
    %7891 = vst [vmem:[#allocation3 + $0x30] sm:$0xff] %v7886
    %7892 = vst [vmem:[#allocation3 + $0x38] sm:$0xff] %v7888
    %v7893 = vld [vmem:[#allocation2 + $0x4] sm:$0xff]
    %v7894 = vld [vmem:[#allocation2 + $0x14] sm:$0xff]
    %7895 = vst [vmem:[#allocation3 + $0x40] sm:$0xff] %v7893
    %7896 = vst [vmem:[#allocation3 + $0x48] sm:$0xff] %v7894
    %v7897 = vld [vmem:[#allocation2 + $0x4] sm:$0xff]
    %v7898 = vld [vmem:[#allocation2 + $0xc] sm:$0xf]
    %v7899 = vld [vmem:[#allocation2 + $0x14] sm:$0xff]
    %v7900 = vld [vmem:[#allocation2 + $0x1c] sm:$0xf]
    %7901 = vrot.lane.b32.xlu0 %v7816, 1
    %v7902 = vpop.permute.xlu0 %7901
    %v7903 = vrot.slane %v7902, 4
    %v7904 = vsel %vm7885, %v7903, %v7902
    %vm7905 = vcmp.ne.s16.totalorder %v7904, 0
    %vm7906 = vcmp.ne.s16.totalorder %v7903, 0
    %v7907 = vsel %vm7905, %v7897, 0
    %v7908 = vsel %vm7906, %v7898, 0
    %v7909 = vsel %vm7905, %v7899, 0
    %v7910 = vsel %vm7906, %v7900, 0
    %7915 = vrot.lane.b32.xlu0 %v7907, 127
    %v7916 = vpop.permute.xlu0 %7915
    %7917 = vrot.lane.b32.xlu0 %v7908, 127
    %v7918 = vpop.permute.xlu0 %7917
    %7919 = vrot.lane.b32.xlu0 %v7909, 127
    %v7920 = vpop.permute.xlu0 %7919
    %7921 = vrot.lane.b32.xlu0 %v7910, 127
    %v7922 = vpop.permute.xlu0 %7921
    %v7923 = vrot.slane %v7916, 4
    %v7924 = vrot.slane %v7918, 4
    %v7925 = vrot.slane %v7920, 4
    %v7926 = vrot.slane %v7922, 4
    %v7927 = vsel %vm7772, %v7923, %v7924
    %v7928 = vsel %vm7860, %v7916, %v7927
    %v7929 = vsel %vm7772, %v7925, %v7926
    %v7930 = vsel %vm7860, %v7920, %v7929
    %7933 = vst [vmem:[#allocation3 + $0x50] sm:$0xff] %v7928
    %7934 = vst [vmem:[#allocation3 + $0x58] sm:$0xff] %v7930
    %v7935 = vld [vmem:[#allocation2 + $0x4] sm:$0xff]
    %v7936 = vld [vmem:[#allocation2 + $0xc] sm:$0xf]
    %v7937 = vld [vmem:[#allocation2 + $0x14] sm:$0xff]
    %v7938 = vld [vmem:[#allocation2 + $0x1c] sm:$0xf]
    %7939 = vrot.lane.b32.xlu0 %v7744, 15
    %v7940 = vpop.permute.xlu0 %7939
    %v7941 = vrot.slane %v7940, 4
    %v7942 = vsel %vm7845, %v7941, %v7940
    %vm7943 = vcmp.ne.s16.totalorder %v7942, 0
    %vm7944 = vcmp.ne.s16.totalorder %v7941, 0
    %v7945 = vsel %vm7943, %v7935, 0
    %v7946 = vsel %vm7944, %v7936, 0
    %v7947 = vsel %vm7943, %v7937, 0
    %v7948 = vsel %vm7944, %v7938, 0
    %7953 = vrot.lane.b32.xlu0 %v7945, 113
    %v7954 = vpop.permute.xlu0 %7953
    %7955 = vrot.lane.b32.xlu0 %v7946, 113
    %v7956 = vpop.permute.xlu0 %7955
    %7957 = vrot.lane.b32.xlu0 %v7947, 113
    %v7958 = vpop.permute.xlu0 %7957
    %7959 = vrot.lane.b32.xlu0 %v7948, 113
    %v7960 = vpop.permute.xlu0 %7959
    %v7961 = vrot.slane %v7954, 4
    %v7962 = vrot.slane %v7956, 4
    %v7963 = vrot.slane %v7958, 4
    %v7964 = vrot.slane %v7960, 4
    %v7965 = vsel %vm7772, %v7961, %v7962
    %v7966 = vsel %vm7820, %v7954, %v7965
    %v7967 = vsel %vm7772, %v7963, %v7964
    %v7968 = vsel %vm7820, %v7958, %v7967
    %7971 = vst [vmem:[#allocation3 + $0x60] sm:$0xff] %v7966
    %7972 = vst [vmem:[#allocation3 + $0x68] sm:$0xff] %v7968
    %v7973 = vld [vmem:[#allocation2 + $0x4] sm:$0xff]
    %v7974 = vld [vmem:[#allocation2 + $0xc] sm:$0xf]
    %v7975 = vld [vmem:[#allocation2 + $0x14] sm:$0xff]
    %v7976 = vld [vmem:[#allocation2 + $0x1c] sm:$0xf]
    %7981 = vrot.lane.b32.xlu0 %v7973, 112
    %v7982 = vpop.permute.xlu0 %7981
    %7983 = vrot.lane.b32.xlu0 %v7974, 112
    %v7984 = vpop.permute.xlu0 %7983
    %7985 = vrot.lane.b32.xlu0 %v7975, 112
    %v7986 = vpop.permute.xlu0 %7985
    %7987 = vrot.lane.b32.xlu0 %v7976, 112
    %v7988 = vpop.permute.xlu0 %7987
    %v7989 = vrot.slane %v7982, 4
    %v7990 = vrot.slane %v7984, 4
    %v7991 = vrot.slane %v7986, 4
    %v7992 = vrot.slane %v7988, 4
    %v7993 = vsel %vm7772, %v7989, %v7990
    %vm7994 = vcmask 916480
    %v7995 = vsel %vm7994, %v7982, %v7993
    %v7996 = vsel %vm7772, %v7991, %v7992
    %v7997 = vsel %vm7994, %v7986, %v7996
    %8000 = vst [vmem:[#allocation3 + $0x70] sm:$0xff] %v7995
    %8001 = vst [vmem:[#allocation3 + $0x78] sm:$0xff] %v7997
    %v8002 = vld [vmem:[#allocation2 + $0x4] sm:$0xff]
    %v8003 = vld [vmem:[#allocation2 + $0xc] sm:$0xf]
    %v8004 = vld [vmem:[#allocation2 + $0x14] sm:$0xff]
    %v8005 = vld [vmem:[#allocation2 + $0x1c] sm:$0xf]
    %8006 = vrot.lane.b32.xlu0 %v7816, 17
    %v8007 = vpop.permute.xlu0 %8006
    %v8008 = vrot.slane %v8007, 4
    %v8009 = vsel %vm7774, %v8008, %v8007
    %vm8010 = vcmp.ne.s16.totalorder %v8009, 0
    %vm8011 = vcmp.ne.s16.totalorder %v8008, 0
    %v8012 = vsel %vm8010, %v8002, 0
    %v8013 = vsel %vm8011, %v8003, 0
    %v8014 = vsel %vm8010, %v8004, 0
    %v8015 = vsel %vm8011, %v8005, 0
    %8020 = vrot.lane.b32.xlu0 %v8012, 111
    %v8021 = vpop.permute.xlu0 %8020
    %8022 = vrot.lane.b32.xlu0 %v8013, 111
    %v8023 = vpop.permute.xlu0 %8022
    %8024 = vrot.lane.b32.xlu0 %v8014, 111
    %v8025 = vpop.permute.xlu0 %8024
    %8026 = vrot.lane.b32.xlu0 %v8015, 111
    %v8027 = vpop.permute.xlu0 %8026
    %v8028 = vrot.slane %v8021, 4
    %v8029 = vrot.slane %v8023, 4
    %v8030 = vrot.slane %v8025, 4
    %v8031 = vrot.slane %v8027, 4
    %v8032 = vsel %vm7772, %v8028, %v8029
    %v8033 = vsel %vm7748, %v8021, %v8032
    %v8034 = vsel %vm7772, %v8030, %v8031
    %v8035 = vsel %vm7748, %v8025, %v8034
    %8038 = vst [vmem:[#allocation3 + $0x80] sm:$0xff] %v8033
    %8039 = vst [vmem:[#allocation3 + $0x88] sm:$0xff] %v8035
    %v8040 = vld [vmem:[#allocation8] sm:$0xff]
    %v8041 = vld [vmem:[#allocation8 + $0x8] sm:$0xff]
    %v8042 = vld [vmem:[#allocation3] sm:$0xff]
    %v8043 = vld [vmem:[#allocation3 + $0x8] sm:$0xff]
    %v8044 = vld [vmem:[#allocation3 + $0x10] sm:$0xff]
    %v8045 = vld [vmem:[#allocation3 + $0x18] sm:$0xff]
    %v8046 = vld [vmem:[#allocation3 + $0x20] sm:$0xff]
    %v8047 = vld [vmem:[#allocation3 + $0x28] sm:$0xff]
    %v8048 = vld [vmem:[#allocation3 + $0x30] sm:$0xff]
    %v8049 = vld [vmem:[#allocation3 + $0x38] sm:$0xff]
    %v8050 = vld [vmem:[#allocation3 + $0x40] sm:$0xff]
    %v8051 = vld [vmem:[#allocation3 + $0x48] sm:$0xff]
    %v8052 = vld [vmem:[#allocation3 + $0x50] sm:$0xff]
    %v8053 = vld [vmem:[#allocation3 + $0x58] sm:$0xff]
    %v8054 = vld [vmem:[#allocation3 + $0x60] sm:$0xff]
    %v8055 = vld [vmem:[#allocation3 + $0x68] sm:$0xff]
    %v8056 = vld [vmem:[#allocation3 + $0x70] sm:$0xff]
    %v8057 = vld [vmem:[#allocation3 + $0x78] sm:$0xff]
    %v8058 = vld [vmem:[#allocation3 + $0x80] sm:$0xff]
    %v8059 = vld [vmem:[#allocation3 + $0x88] sm:$0xff]
    %v8060 = vld [vmem:[#allocation9] sm:$0xff]
    %v8061 = vld [vmem:[#allocation9 + $0x8] sm:$0xff]
    %8063 = vset.pattern.permute.xlu0 0
    %8064 = vperm.xlu0 %8063, %v8060
    %v8065 = vpop.permute.xlu0 %8064
    %8068 = vset.pattern.permute.xlu0 0
    %8069 = vperm.xlu0 %8068, %v8061
    %v8070 = vpop.permute.xlu0 %8069
    %v8074 = vunpack.c.l.b16 %v8040
    %v8075 = vunpack.c.h.b16 %v8040
    %v8076 = vunpack.c.l.b16 %v8041
    %v8077 = vunpack.c.h.b16 %v8041
    %v8078 = vpack.c.b16 %v8076, %v8074
    %v8079 = vpack.c.b16 %v8077, %v8075
    %v8099 = vunpack.c.l.b16 %v8042
    %v8100 = vunpack.c.h.b16 %v8042
    %v8101 = vunpack.c.l.b16 %v8043
    %v8102 = vunpack.c.h.b16 %v8043
    %v8103 = vunpack.c.l.b16 %v8044
    %v8104 = vunpack.c.h.b16 %v8044
    %v8105 = vunpack.c.l.b16 %v8045
    %v8106 = vunpack.c.h.b16 %v8045
    %v8107 = vunpack.c.l.b16 %v8046
    %v8108 = vunpack.c.h.b16 %v8046
    %v8109 = vunpack.c.l.b16 %v8047
    %v8110 = vunpack.c.h.b16 %v8047
    %v8111 = vunpack.c.l.b16 %v8048
    %v8112 = vunpack.c.h.b16 %v8048
    %v8113 = vunpack.c.l.b16 %v8049
    %v8114 = vunpack.c.h.b16 %v8049
    %v8115 = vunpack.c.l.b16 %v8050
    %v8116 = vunpack.c.h.b16 %v8050
    %v8117 = vunpack.c.l.b16 %v8051
    %v8118 = vunpack.c.h.b16 %v8051
    %v8119 = vunpack.c.l.b16 %v8052
    %v8120 = vunpack.c.h.b16 %v8052
    %v8121 = vunpack.c.l.b16 %v8053
    %v8122 = vunpack.c.h.b16 %v8053
    %v8123 = vunpack.c.l.b16 %v8054
    %v8124 = vunpack.c.h.b16 %v8054
    %v8125 = vunpack.c.l.b16 %v8055
    %v8126 = vunpack.c.h.b16 %v8055
    %v8127 = vunpack.c.l.b16 %v8056
    %v8128 = vunpack.c.h.b16 %v8056
    %v8129 = vunpack.c.l.b16 %v8057
    %v8130 = vunpack.c.h.b16 %v8057
    %v8131 = vunpack.c.l.b16 %v8058
    %v8132 = vunpack.c.h.b16 %v8058
    %v8133 = vunpack.c.l.b16 %v8059
    %v8134 = vunpack.c.h.b16 %v8059
    %v8135 = vpack.c.b16 %v8101, %v8099
    %v8136 = vpack.c.b16 %v8102, %v8100
    %v8137 = vpack.c.b16 %v8105, %v8103
    %v8138 = vpack.c.b16 %v8106, %v8104
    %v8139 = vpack.c.b16 %v8109, %v8107
    %v8140 = vpack.c.b16 %v8110, %v8108
    %v8141 = vpack.c.b16 %v8113, %v8111
    %v8142 = vpack.c.b16 %v8114, %v8112
    %v8143 = vpack.c.b16 %v8117, %v8115
    %v8144 = vpack.c.b16 %v8118, %v8116
    %v8145 = vpack.c.b16 %v8121, %v8119
    %v8146 = vpack.c.b16 %v8122, %v8120
    %v8147 = vpack.c.b16 %v8125, %v8123
    %v8148 = vpack.c.b16 %v8126, %v8124
    %v8149 = vpack.c.b16 %v8129, %v8127
    %v8150 = vpack.c.b16 %v8130, %v8128
    %v8151 = vpack.c.b16 %v8133, %v8131
    %v8152 = vpack.c.b16 %v8134, %v8132
    %vm8171 = vcmask 130048
    %v8173 = vsel %vm8171, %v8079, 0
    %8175 = vmatprep.subr.bf16.mxu0 %v8150
    %8176 = vmatpush1.bf16.msra.mxu0 %v8149
    %8177 = vmatprep.subr.bf16.mxu0 %v8148
    %8178 = vmatpush1.bf16.msra.mxu0 %v8147
    %8179 = vmatprep.subr.bf16.mxu0 %v8146
    %8180 = vmatpush1.bf16.msra.mxu0 %v8145
    %8181 = vmatprep.subr.bf16.mxu0 %v8144
    %8182 = vmatpush1.bf16.msra.mxu0 %v8143
    %8183 = vmatprep.subr.bf16.mxu0 %v8142
    %8184 = vmatpush1.bf16.msra.mxu0 %v8141
    %8185 = vmatprep.subr.bf16.mxu0 %v8140
    %8186 = vmatpush1.bf16.msra.mxu0 %v8139
    %8187 = vmatprep.subr.bf16.mxu0 %v8138
    %8188 = vmatpush1.bf16.msra.mxu0 %v8137
    %8189 = vmatprep.subr.bf16.mxu0 %v8136
    %8190 = vmatpush1.bf16.msra.mxu0 %v8135
    %8191 = vmatprep.subr.bf16.mxu0 0
    %8192 = vmatpush2.bf16.msra.mxu0 0
    %8193 = vmatprep.subr.bf16.mxu0 0
    %8194 = vmatpush2.bf16.msra.mxu0 0
    %8195 = vmatprep.subr.bf16.mxu0 0
    %8196 = vmatpush2.bf16.msra.mxu0 0
    %8197 = vmatprep.subr.bf16.mxu0 0
    %8198 = vmatpush2.bf16.msra.mxu0 0
    %8199 = vmatprep.subr.bf16.mxu0 0
    %8200 = vmatpush2.bf16.msra.mxu0 0
    %8201 = vmatprep.subr.bf16.mxu0 0
    %8202 = vmatpush2.bf16.msra.mxu0 0
    %8203 = vmatprep.subr.bf16.mxu0 0
    %8204 = vmatpush2.bf16.msra.mxu0 0
    %8205 = vmatprep.subr.bf16.mxu0 %v8152
    %8206 = vmatpush2.bf16.msra.mxu0 %v8151
    %8207 = vmatprep.mubr.bf16.mxu0 %v8173
    %8208 = vmatmul.mubr.bf16.gmra.mxu0 %v8078
    %v8209 = vpop.f32.mrf.mxu0
    %v8210 = vadd.f32 %v8065, %v8209
    %v8211 = vpop.f32.mrf.mxu0
    %v8212 = vadd.f32 %v8065, %v8211
    %v8213 = vpop.f32.mrf.mxu0
    %v8214 = vadd.f32 %v8070, %v8213
    %v8215 = vpop.f32.mrf.mxu0
    %v8216 = vadd.f32 %v8070, %v8215
    %8217 = vdwg.mxu0
    %8218 = vst [vmem:[%s5] sm:$0xff] %v8210
    %8219 = vst [vmem:[%s5 + $0x8] sm:$0xff] %v8212
    %8220 = vst [vmem:[%s5 + $0x10] sm:$0xff] %v8214
    %8221 = vst [vmem:[%s5 + $0x18] sm:$0xff] %v8216
    // Predicated region
    $region38: #{_lambda_.1} parent=1 // pred_check
      _
    $region39: #{_lambda_.1} parent=1 // pred_check_branch
      %8223 = sbr.rel (0) target = $region41
    $region40: #{_lambda_.1} parent=1 // pred_region
      _
    $region41: #{_lambda_.1} parent=1 // pred_fallthru
      _
    // Predicated region
    $region42: #{_lambda_.1} parent=1 // pred_check
      _
    $region43: #{_lambda_.1} parent=1 // pred_check_branch
      %8225 = sbr.rel (0) target = $region45
    $region44: #{_lambda_.1} parent=1 // pred_region
      _
    $region45: #{_lambda_.1} parent=1 // pred_fallthru
      _
    %8226 = vsyncpa [#allocation5], 1
    %8227 = vsyncpa [#allocation7], 1
    %8228 = vsyncpa [#allocation10], 1

</llo_original>
